<compile_context>
chip_gen: v6e
topology: v6e:2x2x1
jax: 0.10.0
libtpu: 0.0.40
codegen_flags: <defaults>
</compile_context>

<pallas_src>
import functools

import jax
import jax.numpy as jnp
import numpy as np
from jax.experimental import pallas as pl
from jax.experimental.pallas import tpu as pltpu

# ---- scaled-down configuration (channel widths /16 vs. the original model) ----
NUM_CLASSES = 8
C1, C2, C3, C4 = 16, 32, 64, 128       # synthetic backbone stage channels (orig 256/512/1024/2048)
HID = 16                               # SpatialOCR_ASP hidden_features      (orig 256)
KEY = HID // 2                         # OCR key_channels
OUT_ASP = 32                           # SpatialOCR_ASP out_features         (orig 512)
MID_EDGE = 16                          # Edge_Module mid_fea                 (orig 256)
EDGE_OUT = 2
DEC_C1, DEC_C2, DEC_HID = 16, 8, 16    # CE2P decoder                        (orig 256/48/256)
DSN_HID = 32                           # dsn hidden                          (orig 512)
CLS_HID = 16                           # cls hidden                          (orig 256)
BN_EPS = 1e-5

MXU_DTYPE = jnp.bfloat16               # MXU operand dtype (f32 accumulate + epilogue)


def _ceil_to(v, m):
    return (v + m - 1) // m * m


def _vmem_limit(block_bytes):
    """Explicit scoped-VMEM limit: headroom over the double-buffered block footprint,
    kept under v7x's 64 MiB physical VMEM."""
    return int(min(max(2 * block_bytes + (8 << 20), 32 << 20), 48 << 20))


# ----------------------------- Pallas kernels -----------------------------

def _mm_dag_kernel(*refs, srcs_list, store_list, act_list, mxu_dtype):
    """Fused chain/DAG of 1x1-conv matmuls on a resident row tile.

    Stage s computes  act_s( sum_j src_j @ W_{s,j} + b_s ), where src_j is either the
    external row tile (src < 0) or the output of an earlier stage.  act_s is a static
    per-stage choice: 'relu', 'none', or ('mixed', lo, hi) = identity on lanes [lo,hi),
    ReLU elsewhere.  Stages with store=True write their 128-lane-padded output to HBM.
    """
    pos = 0
    x = refs[pos][...]
    pos += 1
    w_refs, b_refs = [], []
    for srcs in srcs_list:
        w_refs.append([refs[pos + j] for j in range(len(srcs))])
        pos += len(srcs)
        b_refs.append(refs[pos])
        pos += 1
    out_refs = list(refs[pos:])

    vals = []
    oi = 0
    for s, srcs in enumerate(srcs_list):
        acc = None
        for j, src in enumerate(srcs):
            lhs = x if src < 0 else vals[src].astype(mxu_dtype)
            c = jnp.dot(lhs, w_refs[s][j][...], preferred_element_type=jnp.float32)
            acc = c if acc is None else acc + c
        acc = acc + b_refs[s][...]
        act = act_list[s]
        if act == 'relu':
            acc = jnp.maximum(acc, 0.0)
        elif isinstance(act, tuple) and act[0] == 'mixed':
            lo, hi = act[1], act[2]
            lane = jax.lax.broadcasted_iota(jnp.int32, acc.shape, 1)
            keep = (lane >= lo) & (lane < hi)
            acc = jnp.where(keep, acc, jnp.maximum(acc, 0.0))
        # act == 'none' -> identity
        if store_list[s]:
            out_refs[oi][...] = acc
            oi += 1
        vals.append(acc)


def mm_dag(x_rows, stages, *, mxu_dtype=MXU_DTYPE):
    """Run a fused stage-DAG of matmuls on a row-major (M, K) matrix.

    stages: list of dicts with keys
        srcs  : list[int]    (-1 = external rows, k >= 0 = output of stage k)
        ws    : list[array]  one pre-padded bf16 (K_src, N) weight per src
        b     : (1, N) f32 bias
        act   : 'relu' | 'none' | ('mixed', lo, hi)
        store : bool
    Returns the stored stage outputs (rows cropped back to M0; lanes stay padded).
    """
    M0, K0 = x_rows.shape
    K = None
    for s in stages:
        for src, w in zip(s['srcs'], s['ws']):
            if src < 0:
                K = w.shape[0]
    assert K is not None and K >= K0
    M = _ceil_to(M0, 8)
    x = jnp.pad(x_rows.astype(mxu_dtype), ((0, M - M0), (0, K - K0)))

    # Single grid step at small scale (per-step overhead dominates); only split when
    # there is real per-core work for the v7x megacore.
    TM = M // 2 if (M >= 2048 and M % 16 == 0) else M
    grid = (M // TM,)

    srcs_list = tuple(tuple(s['srcs']) for s in stages)
    store_list = tuple(bool(s['store']) for s in stages)
    act_list = tuple(s['act'] for s in stages)
    widths = [s['ws'][0].shape[1] for s in stages]

    inputs = [x]
    in_specs = [pl.BlockSpec((TM, K), lambda i: (i, 0))]
    blk = TM * K * jnp.dtype(mxu_dtype).itemsize
    for si, s in enumerate(stages):
        N = widths[si]
        for src, w in zip(s['srcs'], s['ws']):
            inputs.append(w)
            in_specs.append(pl.BlockSpec(w.shape, lambda i: (0, 0)))
            blk += int(w.size) * w.dtype.itemsize
        inputs.append(s['b'])
        in_specs.append(pl.BlockSpec(s['b'].shape, lambda i: (0, 0)))
        blk += int(s['b'].size) * 4
        blk += TM * N * 4                      # stage value / stored output (f32)

    stored_n = [widths[i] for i in range(len(stages)) if store_list[i]]
    out_shape = [jax.ShapeDtypeStruct((M, n), jnp.float32) for n in stored_n]
    out_specs = [pl.BlockSpec((TM, n), lambda i: (i, 0)) for n in stored_n]

    outs = pl.pallas_call(
        functools.partial(_mm_dag_kernel, srcs_list=srcs_list,
                          store_list=store_list, act_list=act_list,
                          mxu_dtype=mxu_dtype),
        out_shape=out_shape,
        grid_spec=pltpu.PrefetchScalarGridSpec(
            num_scalar_prefetch=0, grid=grid,
            in_specs=in_specs, out_specs=out_specs),
        compiler_params=pltpu.CompilerParams(
            dimension_semantics=("parallel",),
            vmem_limit_bytes=_vmem_limit(blk)),
    )(*inputs)
    return [o if M == M0 else o[:M0] for o in outs]


def _ocr_kernel(probs_ref, feats_ref,
                wfp1, bfp1, wfp2, bfp2, wfokv, bfokv, wfo2, bfo2, wfu, bfu,
                o_ref, *, scale, key_ch):
    """Fused SpatialGather + ObjectAttentionBlock2D (per batch element)."""
    def cbr(xv, w, b):                       # conv1x1 + folded BN + ReLU
        return jnp.maximum(
            jnp.dot(xv, w[...], preferred_element_type=jnp.float32) + b[...], 0.0)

    p = probs_ref[0]                                         # (Kcls, HW) logits
    p = jnp.exp(p - jnp.max(p, axis=-1, keepdims=True))
    p = p / jnp.sum(p, axis=-1, keepdims=True)
    feats = feats_ref[0]                                     # (HW, HID)
    proxy = jnp.dot(p, feats, preferred_element_type=jnp.float32)    # (Kcls, HID)

    q = cbr(cbr(feats, wfp1, bfp1), wfp2, bfp2)              # (HW, KEY)
    kv = cbr(proxy, wfokv, bfokv)                            # (Kcls, 2*KEY)  [f_object L1 | f_down]
    k = cbr(kv[:, :key_ch], wfo2, bfo2)                      # (Kcls, KEY)
    v = kv[:, key_ch:]                                       # (Kcls, KEY)

    sim = jax.lax.dot_general(q, k, (((1,), (1,)), ((), ())),
                              preferred_element_type=jnp.float32) * scale   # (HW, Kcls)
    sim = jnp.exp(sim - jnp.max(sim, axis=-1, keepdims=True))
    attn = sim / jnp.sum(sim, axis=-1, keepdims=True)
    ctx = jnp.dot(attn, v, preferred_element_type=jnp.float32)              # (HW, KEY)
    o_ref[0] = jnp.maximum(
        jnp.dot(ctx, wfu[...], preferred_element_type=jnp.float32) + bfu[...], 0.0)


def ocr_fused(probs, feats, fp):
    B, kc, hw = probs.shape
    hid = feats.shape[2]
    npad = fp['ocr_fu_w'].shape[1]
    args = [probs.astype(jnp.float32), feats.astype(jnp.float32)]
    in_specs = [pl.BlockSpec((1, kc, hw), lambda b: (b, 0, 0)),
                pl.BlockSpec((1, hw, hid), lambda b: (b, 0, 0))]
    blk = kc * hw * 4 + hw * hid * 4 + hw * npad * 4
    for name in ('fp1', 'fp2', 'fokv', 'fo2', 'fu'):
        w = fp['ocr_' + name + '_w']
        b = fp['ocr_' + name + '_b']
        args += [w, b]
        in_specs += [pl.BlockSpec(w.shape, lambda i: (0, 0)),
                     pl.BlockSpec(b.shape, lambda i: (0, 0))]
        blk += int(w.size) * 4 + int(b.size) * 4
    return pl.pallas_call(
        functools.partial(_ocr_kernel, scale=float(KEY) ** -0.5, key_ch=KEY),
        out_shape=jax.ShapeDtypeStruct((B, hw, npad), jnp.float32),
        grid_spec=pltpu.PrefetchScalarGridSpec(
            num_scalar_prefetch=0, grid=(B,),
            in_specs=in_specs,
            out_specs=pl.BlockSpec((1, hw, npad), lambda b: (b, 0, 0))),
        compiler_params=pltpu.CompilerParams(
            dimension_semantics=("parallel",),
            vmem_limit_bytes=_vmem_limit(blk)),
    )(*args)


def _resize_kernel(*refs, n_srcs):
    """Bilinear (align_corners=True) resize as interp-matrix @ row-major tile."""
    ins = refs[:2 * n_srcs]
    outs = refs[2 * n_srcs:]
    for s in range(n_srcs):
        outs[s][0] = jnp.dot(ins[2 * s][...], ins[2 * s + 1][0],
                             preferred_element_type=jnp.float32)


def resize_fused(sources, B, *, mxu_dtype=MXU_DTYPE):
    """One pallas_call (grid over batch) applying a (HW_out, HW_in) interpolation
    matrix to each row-major (B*HW_in, C) source.  Returns [(B, HW_out, Cpad128)] f32.
    No channel-major transposes are needed on either side."""
    args, in_specs, out_shapes, out_specs = [], [], [], []
    blk = 0
    for interp, rows, hw_in in sources:
        hw_out = int(interp.shape[0])
        C = rows.shape[1]
        Cp = _ceil_to(C, 128)
        x = jnp.pad(rows.astype(mxu_dtype), ((0, 0), (0, Cp - C))).reshape(B, hw_in, Cp)
        args += [jnp.asarray(np.asarray(interp, np.float32), dtype=mxu_dtype), x]
        in_specs += [pl.BlockSpec((hw_out, hw_in), lambda b: (0, 0)),
                     pl.BlockSpec((1, hw_in, Cp), lambda b: (b, 0, 0))]
        out_shapes.append(jax.ShapeDtypeStruct((B, hw_out, Cp), jnp.float32))
        out_specs.append(pl.BlockSpec((1, hw_out, Cp), lambda b: (b, 0, 0)))
        blk += (hw_out * hw_in + hw_in * Cp) * 2 + hw_out * Cp * 4
    outs = pl.pallas_call(
        functools.partial(_resize_kernel, n_srcs=len(sources)),
        out_shape=out_shapes,
        grid_spec=pltpu.PrefetchScalarGridSpec(
            num_scalar_prefetch=0, grid=(B,),
            in_specs=in_specs, out_specs=out_specs),
        compiler_params=pltpu.CompilerParams(
            dimension_semantics=("parallel",),
            vmem_limit_bytes=_vmem_limit(blk)),
    )(*args)
    return list(outs)


# ------------------------------ JAX glue -----------------------------------

def im2col_cl(x_nhwc, k=3, dilation=1):
    """'same' stride-1 conv patches, channels-last: (B,H,W,C) -> (B*H*W, k*k*C)."""
    # TODO(synk): at real channel widths replace with in-kernel shifted accumulation.
    B, H, W, C = x_nhwc.shape
    pad = dilation * (k - 1) // 2
    xp = jnp.pad(x_nhwc, ((0, 0), (pad, pad), (pad, pad), (0, 0)))
    cols = []
    for dy in range(k):
        for dx in range(k):
            oy, ox = dy * dilation, dx * dilation
            cols.append(xp[:, oy:oy + H, ox:ox + W, :])
    return jnp.concatenate(cols, axis=-1).reshape(B * H * W, k * k * C)


def bilinear_matrix(n_in, n_out):
    """align_corners=True interpolation matrix, shape (n_out, n_in) (numpy constant)."""
    if n_out == 1:
        pos = np.zeros((1,), np.float64)
    else:
        pos = np.arange(n_out, dtype=np.float64) * (n_in - 1) / (n_out - 1)
    i0 = np.clip(np.floor(pos), 0, n_in - 1).astype(np.int64)
    i1 = np.clip(i0 + 1, 0, n_in - 1)
    frac = (pos - i0).astype(np.float32)
    M = np.zeros((n_out, n_in), np.float32)
    rows = np.arange(n_out)
    M[rows, i0] += 1.0 - frac
    M[rows, i1] += frac
    return M


# --------------------- parameter folding & fused-weight assembly ---------------------

def _fold(w, conv_bias, gamma, beta, rmean=None, rvar=None):
    """Fold eval-mode BatchNorm (with running stats) and conv bias into (W, b)."""
    cout = w.shape[1]
    if gamma is None:
        scale = jnp.ones((cout,), jnp.float32)
        shift = jnp.zeros((cout,), jnp.float32)
    else:
        rm = jnp.zeros((cout,), jnp.float32) if rmean is None else rmean
        rv = jnp.ones((cout,), jnp.float32) if rvar is None else rvar
        inv = gamma / jnp.sqrt(rv + BN_EPS)
        scale = inv
        shift = beta - rm * inv
    cb = jnp.zeros((cout,), jnp.float32) if conv_bias is None else conv_bias
    return w * scale[None, :], cb * scale + shift


def _block(shape, parts):
    W = jnp.zeros(shape, jnp.float32)
    for r, c, w in parts:
        W = W.at[r:r + w.shape[0], c:c + w.shape[1]].set(w)
    return W


def _blockw(shape, parts):
    return _block(shape, parts).astype(MXU_DTYPE)


def _vec(n, parts):
    v = jnp.zeros((1, n), jnp.float32)
    for c, x in parts:
        v = v.at[0, c:c + x.shape[0]].set(x)
    return v


def fuse_params(p):
    """Fold BN into weights and pre-assemble the final padded bf16 block weights once."""
    fp = {}

    bb1w, bb1b = _fold(p['bb1_w'], None, p['bb1_g'], p['bb1_b'])
    bb2w, bb2b = _fold(p['bb2_w'], None, p['bb2_g'], p['bb2_b'])
    bb3w, bb3b = _fold(p['bb3_w'], None, p['bb3_g'], p['bb3_b'])
    bb4w, bb4b = _fold(p['bb4_w'], None, p['bb4_g'], p['bb4_b'])
    e1w, e1b = _fold(p['e1_w'], None, p['e1_g'], p['e1_b'])
    e2w, e2b = _fold(p['e2_w'], None, p['e2_g'], p['e2_b'])
    e3w, e3b = _fold(p['e3_w'], None, p['e3_g'], p['e3_b'])
    d2w, d2b = _fold(p['d2_w'], None, p['d2_g'], p['d2_b'])
    dsn1w, dsn1b = _fold(p['dsn1_w'], None, p['dsn1_g'], p['dsn1_b'])
    dsn2w, dsn2b = _fold(p['dsn2_w'], p['dsn2_bias'], None, None)
    ctxw, ctxb = _fold(p['ctx_w'], p['ctx_bias'], p['ctx_g'], p['ctx_b'])
    a2w, a2b = _fold(p['a2_w'], p['a2_bias'], p['a2_g'], p['a2_b'])
    a3w, a3b = _fold(p['a3_w'], p['a3_bias'], p['a3_g'], p['a3_b'])
    a4w, a4b = _fold(p['a4_w'], p['a4_bias'], p['a4_g'], p['a4_b'])
    a5w, a5b = _fold(p['a5_w'], p['a5_bias'], p['a5_g'], p['a5_b'])
    afw, afb = _fold(p['af_w'], p['af_bias'], p['af_g'], p['af_b'])
    d1w, d1b = _fold(p['d1_w'], None, p['d1_g'], p['d1_b'])
    d3aw, d3ab = _fold(p['d3a_w'], None, p['d3a_g'], p['d3a_b'])
    d3bw, d3bb = _fold(p['d3b_w'], None, p['d3b_g'], p['d3b_b'])
    d4w, d4b = _fold(p['d4_w'], p['d4_bias'], None, None)
    c1w, c1b = _fold(p['c1_w'], None, p['c1_g'], p['c1_b'])
    c2w, c2b = _fold(p['c2_w'], p['c2_bias'], None, None)
    e4w, e4b = _fold(p['e4_w'], p['e4_bias'], None, None)
    e5w, e5b = _fold(p['e5_w'], p['e5_bias'], None, None)

    # --- "t8": backbone stage1 + [edge conv1 | decoder conv2] on the H/4 grid ---
    fp['t8_w0'] = _blockw((128, 128), [(0, 0, bb1w)])
    fp['t8_b0'] = _vec(128, [(0, bb1b)])
    fp['t8_w1'] = _blockw((128, 128), [(0, 0, e1w), (0, MID_EDGE, d2w)])
    fp['t8_b1'] = _vec(128, [(0, e1b), (MID_EDGE, d2b)])

    # --- "t4": backbone stages 2-4 + edge conv2/conv3 + ASP 1x1 (a2) ---
    fp['t4_w0'] = _blockw((128, 128), [(0, 0, bb2w)])
    fp['t4_b0'] = _vec(128, [(0, bb2b)])
    fp['t4_w1'] = _blockw((128, 128), [(0, 0, bb3w), (0, C3, e2w)])
    fp['t4_b1'] = _vec(128, [(0, bb3b), (C3, e2b)])
    fp['t4_w2'] = _blockw((128, 256), [(0, 0, bb4w), (0, C4, e3w)])
    fp['t4_b2'] = _vec(256, [(0, bb4b), (C4, e3b)])
    fp['t4_w3'] = _blockw((256, 128), [(0, 0, a2w)])
    fp['t4_b3'] = _vec(128, [(0, a2b)])

    # --- "da": dsn head + dilated ASP 3x3 branches, one concatenated patch matmul ---
    # TODO(synk): K-tile this matmul (arbitrary K grid axis + f32 accumulator) at
    # original channel widths so the blocks fit v7x's 64 MiB VMEM.
    k_f3, k_x5 = C3 * 9, C4 * 9
    k_da = _ceil_to(k_f3 + 4 * k_x5, 128)
    off = [0, k_f3, k_f3 + k_x5, k_f3 + 2 * k_x5, k_f3 + 3 * k_x5]
    col = [0, DSN_HID, DSN_HID + HID, DSN_HID + 2 * HID, DSN_HID + 3 * HID]
    fp['da_w0'] = _blockw((k_da, 128),
                          [(off[0], col[0], dsn1w), (off[1], col[1], ctxw),
                           (off[2], col[2], a3w), (off[3], col[3], a4w),
                           (off[4], col[4], a5w)])
    fp['da_b0'] = _vec(128, [(col[0], dsn1b), (col[1], ctxb), (col[2], a3b),
                             (col[3], a4b), (col[4], a5b)])
    fp['da_w1'] = _blockw((128, 128), [(0, 0, dsn2w)])
    fp['da_b1'] = _vec(128, [(0, dsn2b)])

    # --- fused OCR projections (f_object L1 and f_down fused into one K|V matmul) ---
    for name in ('fp1', 'fp2', 'fo2'):
        w, b = _fold(p[name + '_w'], p[name + '_bias'], p[name + '_g'], p[name + '_b'])
        fp['ocr_' + name + '_w'] = w
        fp['ocr_' + name + '_b'] = b.reshape(1, -1)
    fo1w, fo1b = _fold(p['fo1_w'], p['fo1_bias'], p['fo1_g'], p['fo1_b'])
    fdw, fdb = _fold(p['fd_w'], p['fd_bias'], p['fd_g'], p['fd_b'])
    fp['ocr_fokv_w'] = jnp.concatenate([fo1w, fdw], axis=1)
    fp['ocr_fokv_b'] = jnp.concatenate([fo1b, fdb]).reshape(1, -1)
    fuw, fub = _fold(p['fu_w'], p['fu_bias'], p['fu_g'], p['fu_b'])
    fp['ocr_fu_w'] = _block((KEY, 128), [(0, 0, fuw)])
    fp['ocr_fu_b'] = _vec(128, [(0, fub)])

    # --- "ad": ASP fuse conv + decoder conv1 ---
    fp['ad_w0'] = _blockw((128, 128), [(0, 0, afw)])
    fp['ad_b0'] = _vec(128, [(0, afb)])
    fp['ad_w1'] = _blockw((128, 128), [(0, 0, d1w)])
    fp['ad_b1'] = _vec(128, [(0, d1b)])

    # --- "e4": shared edge 3x3 conv applied to the three row-stacked scales ---
    fp['e4_w0'] = _blockw((_ceil_to(MID_EDGE * 9, 128), 128), [(0, 0, e4w)])
    fp['e4_b0'] = _vec(128, [(0, e4b)])

    # --- "tl": edge conv5 + decoder conv3/conv4 + cls head, all on the H/4 grid ---
    # external column layout: [0:54 edge patches][54:70 xt][70:78 xl][78:126 edge_fea]
    o_xt = 3 * EDGE_OUT * 9
    o_xl = o_xt + DEC_C1
    o_ef = o_xl + DEC_C2
    k_tl = _ceil_to(o_ef + 3 * MID_EDGE, 128)
    fp['tl_w0'] = _blockw((k_tl, 128), [(0, 0, e5w), (o_xt, EDGE_OUT, d3aw)])
    fp['tl_b0'] = _vec(128, [(0, e5b), (EDGE_OUT, d3ab)])
    fp['tl_w1'] = _blockw((128, 128), [(EDGE_OUT, 0, d3bw)])
    fp['tl_b1'] = _vec(128, [(0, d3bb)])
    fp['tl_w2a'] = _blockw((128, 128), [(0, 0, d4w), (0, NUM_CLASSES, c1w[:DEC_HID])])
    fp['tl_w2b'] = _blockw((k_tl, 128), [(o_ef, NUM_CLASSES, c1w[DEC_HID:])])
    fp['tl_b2'] = _vec(128, [(0, d4b), (NUM_CLASSES, c1b)])
    fp['tl_w3'] = _blockw((128, 128), [(NUM_CLASSES, 0, c2w)])
    fp['tl_b3'] = _vec(128, [(0, c2b)])
    return fp


# ------------------------------ forward pass ---------------------------------

def forward(fp, x_):
    B, _, Hin, Win = x_.shape
    x_ = x_.astype(jnp.float32)
    H4, W4, H8, W8 = Hin // 4, Win // 4, Hin // 8, Win // 8
    HW4, HW8 = H4 * W4, H8 * W8
    M4, M8 = B * HW4, B * HW8

    def st(tag, i, srcs, store, act='relu'):
        return dict(srcs=srcs, ws=[fp[f'{tag}_w{i}']], b=fp[f'{tag}_b{i}'],
                    act=act, store=store)

    # ---- synthetic backbone stub -------------------------------------------------
    # TODO(synk): the pretrained ResNet backbone (BackboneSelector) is replaced by a
    # small deterministic 1x1-conv stub producing the four feature maps the heads use.
    x4s = x_[:, :, ::4, ::4].transpose(0, 2, 3, 1).reshape(M4, 3)
    t8 = mm_dag(x4s, [st('t8', 0, [-1], True), st('t8', 1, [0], True)])
    f1_rows = t8[0][:, :C1]
    e1f_rows = t8[1][:, :MID_EDGE]
    xl_rows = t8[1][:, MID_EDGE:MID_EDGE + DEC_C2]

    f1d_rows = f1_rows.reshape(B, H4, W4, C1)[:, ::2, ::2, :].reshape(M8, C1)
    t4 = mm_dag(f1d_rows, [st('t4', 0, [-1], False), st('t4', 1, [0], True),
                           st('t4', 2, [1], True), st('t4', 3, [2], True)])
    f3_rows, e2f_rows = t4[0][:, :C3], t4[0][:, C3:C3 + MID_EDGE]
    x5_rows, e3f_rows = t4[1][:, :C4], t4[1][:, C4:C4 + MID_EDGE]
    feat2_rows = t4[2][:, :HID]

    # ---- dsn head + dilated ASP branches: one fused patch matmul -------------------
    f3_sp = f3_rows.reshape(B, H8, W8, C3)
    x5_sp = x5_rows.reshape(B, H8, W8, C4)
    pat = jnp.concatenate([im2col_cl(f3_sp, 3, 1),
                           im2col_cl(x5_sp, 3, 1),
                           im2col_cl(x5_sp, 3, 6),
                           im2col_cl(x5_sp, 3, 12),
                           im2col_cl(x5_sp, 3, 18)], axis=1)
    da = mm_dag(pat, [st('da', 0, [-1], True), st('da', 1, [0], True, act='none')])
    ctx_rows = da[0][:, DSN_HID:DSN_HID + HID]
    feat3_rows = da[0][:, DSN_HID + HID:DSN_HID + 2 * HID]
    feat4_rows = da[0][:, DSN_HID + 2 * HID:DSN_HID + 3 * HID]
    feat5_rows = da[0][:, DSN_HID + 3 * HID:DSN_HID + 4 * HID]
    seg_dsn_rows = da[1][:, :NUM_CLASSES]

    # ---- fused OCR: spatial gather + object attention + all 1x1 projections --------
    probs = seg_dsn_rows.reshape(B, HW8, NUM_CLASSES).transpose(0, 2, 1)
    feats = ctx_rows.reshape(B, HW8, HID)
    feat1_rows = ocr_fused(probs, feats, fp)[:, :, :HID].reshape(M8, HID)

    # ---- ASP fuse conv + decoder conv1 ---------------------------------------------
    asp_rows = jnp.concatenate([feat1_rows, feat2_rows, feat3_rows,
                                feat4_rows, feat5_rows], axis=1)
    ad = mm_dag(asp_rows, [st('ad', 0, [-1], False), st('ad', 1, [0], True)])
    xt_lo_rows = ad[0][:, :DEC_C1]

    # ---- shared edge conv4 over all three scales (row-stacked, one matmul) ----------
    e1f_sp = e1f_rows.reshape(B, H4, W4, MID_EDGE)
    e2f_sp = e2f_rows.reshape(B, H8, W8, MID_EDGE)
    e3f_sp = e3f_rows.reshape(B, H8, W8, MID_EDGE)
    e4_in = jnp.concatenate([im2col_cl(e1f_sp, 3, 1),
                             im2col_cl(e2f_sp, 3, 1),
                             im2col_cl(e3f_sp, 3, 1)], axis=0)
    e4o = mm_dag(e4_in, [st('e4', 0, [-1], True, act='none')])[0]
    e1_rows = e4o[:M4, :EDGE_OUT]
    e2_rows = e4o[M4:M4 + M8, :EDGE_OUT]
    e3_rows = e4o[M4 + M8:, :EDGE_OUT]

    # ---- one fused bilinear (align_corners=True) upsample H/8 -> H/4 ----------------
    # Row-major per-batch interp matmul in bf16: no channel-major transposes needed.
    # TODO(synk): at real resolution use a separable H-then-W interp (Kron is dense).
    up_mid = np.kron(bilinear_matrix(H8, H4), bilinear_matrix(W8, W4))      # (HW4, HW8)
    mid_rows = jnp.concatenate([e2f_rows, e3f_rows, e2_rows, e3_rows, xt_lo_rows], axis=1)
    up = resize_fused([(up_mid, mid_rows, HW8)], B)[0].reshape(M4, -1)
    c = 0
    e2f_up = up[:, c:c + MID_EDGE]; c += MID_EDGE
    e3f_up = up[:, c:c + MID_EDGE]; c += MID_EDGE
    e2_up = up[:, c:c + EDGE_OUT]; c += EDGE_OUT
    e3_up = up[:, c:c + EDGE_OUT]; c += EDGE_OUT
    xt_rows = up[:, c:c + DEC_C1]

    # ---- fused tail: edge conv5 + decoder conv3/conv4 + cls head --------------------
    edge_sp = jnp.concatenate([e1_rows, e2_up, e3_up], axis=1).reshape(B, H4, W4, 3 * EDGE_OUT)
    tail_in = jnp.concatenate([im2col_cl(edge_sp, 3, 1), xt_rows, xl_rows,
                               e1f_rows, e2f_up, e3f_up], axis=1)
    tl = mm_dag(tail_in, [
        st('tl', 0, [-1], True, act=('mixed', 0, EDGE_OUT)),
        st('tl', 1, [0], False),
        dict(srcs=[1, -1], ws=[fp['tl_w2a'], fp['tl_w2b']], b=fp['tl_b2'],
             act=('mixed', 0, NUM_CLASSES), store=True),
        st('tl', 3, [2], True, act='none'),
    ])
    edge_rows = tl[0][:, :EDGE_OUT]
    seg1_rows = tl[1][:, :NUM_CLASSES]
    seg2_rows = tl[2][:, :NUM_CLASSES]

    # ---- single fused bilinear upsample of all four heads to input resolution -------
    up_a = np.kron(bilinear_matrix(H4, Hin), bilinear_matrix(W4, Win))      # (HWo, HW4)
    up_b = np.kron(bilinear_matrix(H8, Hin), bilinear_matrix(W8, Win))      # (HWo, HW8)
    fin_hi = jnp.concatenate([seg1_rows, seg2_rows, edge_rows], axis=1)     # (M4, 18)
    fa, fb = resize_fused([(up_a, fin_hi, HW4), (up_b, seg_dsn_rows, HW8)], B)
    n_hi = 2 * NUM_CLASSES + EDGE_OUT
    fa_t = fa[:, :, :n_hi].transpose(0, 2, 1).reshape(B, n_hi, Hin, Win)
    seg_out1 = fa_t[:, :NUM_CLASSES]
    seg_out2 = fa_t[:, NUM_CLASSES:2 * NUM_CLASSES]
    edge_out = fa_t[:, 2 * NUM_CLASSES:]
    seg_dsn = fb[:, :, :NUM_CLASSES].transpose(0, 2, 1).reshape(B, NUM_CLASSES, Hin, Win)
    return seg_out1, edge_out, seg_dsn, seg_out2


# ------------------------- deterministic parameters --------------------------

def init_params(key):
    keys = iter(jax.random.split(key, 256))

    def w_(cin, cout, k=1):
        return 0.05 * jax.random.normal(next(keys), (cin * k * k, cout), jnp.float32)

    def b_(c):
        return 0.05 * jax.random.normal(next(keys), (c,), jnp.float32)

    def g_(c):
        return 1.0 + 0.05 * jax.random.normal(next(keys), (c,), jnp.float32)

    p = {}
    # synthetic backbone stub
    p['bb1_w'], p['bb1_g'], p['bb1_b'] = w_(3, C1), g_(C1), b_(C1)
    p['bb2_w'], p['bb2_g'], p['bb2_b'] = w_(C1, C2), g_(C2), b_(C2)
    p['bb3_w'], p['bb3_g'], p['bb3_b'] = w_(C2, C3), g_(C3), b_(C3)
    p['bb4_w'], p['bb4_g'], p['bb4_b'] = w_(C3, C4), g_(C4), b_(C4)
    # dsn
    p['dsn1_w'], p['dsn1_g'], p['dsn1_b'] = w_(C3, DSN_HID, 3), g_(DSN_HID), b_(DSN_HID)
    p['dsn2_w'], p['dsn2_bias'] = w_(DSN_HID, NUM_CLASSES), b_(NUM_CLASSES)
    # Edge_Module
    p['e1_w'], p['e1_g'], p['e1_b'] = w_(C1, MID_EDGE), g_(MID_EDGE), b_(MID_EDGE)
    p['e2_w'], p['e2_g'], p['e2_b'] = w_(C2, MID_EDGE), g_(MID_EDGE), b_(MID_EDGE)
    p['e3_w'], p['e3_g'], p['e3_b'] = w_(C3, MID_EDGE), g_(MID_EDGE), b_(MID_EDGE)
    p['e4_w'], p['e4_bias'] = w_(MID_EDGE, EDGE_OUT, 3), b_(EDGE_OUT)      # shared across scales
    p['e5_w'], p['e5_bias'] = w_(3 * EDGE_OUT, EDGE_OUT, 3), b_(EDGE_OUT)
    # SpatialOCR_ASP
    p['ctx_w'], p['ctx_bias'], p['ctx_g'], p['ctx_b'] = w_(C4, HID, 3), b_(HID), g_(HID), b_(HID)
    for name, cin, cout in [('fp1', HID, KEY), ('fp2', KEY, KEY),
                            ('fo1', HID, KEY), ('fo2', KEY, KEY),
                            ('fd', HID, KEY), ('fu', KEY, HID)]:
        p[name + '_w'], p[name + '_bias'] = w_(cin, cout), b_(cout)
        p[name + '_g'], p[name + '_b'] = g_(cout), b_(cout)
    p['a2_w'], p['a2_bias'], p['a2_g'], p['a2_b'] = w_(C4, HID), b_(HID), g_(HID), b_(HID)
    for name in ['a3', 'a4', 'a5']:
        p[name + '_w'], p[name + '_bias'] = w_(C4, HID, 3), b_(HID)
        p[name + '_g'], p[name + '_b'] = g_(HID), b_(HID)
    p['af_w'], p['af_bias'], p['af_g'], p['af_b'] = w_(5 * HID, OUT_ASP), b_(OUT_ASP), g_(OUT_ASP), b_(OUT_ASP)
    # decoder
    p['d1_w'], p['d1_g'], p['d1_b'] = w_(OUT_ASP, DEC_C1), g_(DEC_C1), b_(DEC_C1)
    p['d2_w'], p['d2_g'], p['d2_b'] = w_(C1, DEC_C2), g_(DEC_C2), b_(DEC_C2)
    p['d3a_w'], p['d3a_g'], p['d3a_b'] = w_(DEC_C1 + DEC_C2, DEC_HID), g_(DEC_HID), b_(DEC_HID)
    p['d3b_w'], p['d3b_g'], p['d3b_b'] = w_(DEC_HID, DEC_HID), g_(DEC_HID), b_(DEC_HID)
    p['d4_w'], p['d4_bias'] = w_(DEC_HID, NUM_CLASSES), b_(NUM_CLASSES)
    # cls
    p['c1_w'], p['c1_g'], p['c1_b'] = w_(DEC_HID + 3 * MID_EDGE, CLS_HID), g_(CLS_HID), b_(CLS_HID)
    p['c2_w'], p['c2_bias'] = w_(CLS_HID, NUM_CLASSES), b_(NUM_CLASSES)
    return p


if __name__ == "__main__":
    key = jax.random.PRNGKey(0)
    pkey, xkey = jax.random.split(key)
    raw_params = init_params(pkey)
    fused_params = fuse_params(raw_params)          # BN folding + padded bf16 block weights (once)
    x = jax.random.normal(xkey, (2, 3, 32, 32), jnp.float32)

    fwd = jax.jit(forward)
    seg_out1, edge_out, seg_dsn, seg_out2 = jax.block_until_ready(fwd(fused_params, x))

    assert seg_out1.shape == (2, NUM_CLASSES, 32, 32)
    assert edge_out.shape == (2, EDGE_OUT, 32, 32)
    assert seg_dsn.shape == (2, NUM_CLASSES, 32, 32)
    assert seg_out2.shape == (2, NUM_CLASSES, 32, 32)
    assert all(bool(jnp.all(jnp.isfinite(t)))
               for t in (seg_out1, edge_out, seg_dsn, seg_out2))
    print("KERNEL_OK")
</pallas_src>

<mosaic_0001>
module attributes {stable_mosaic.version = 11 : i64} {
  func.func @_mm_dag_kernel(%arg0: i32, %arg1: memref<128x128xbf16, #tpu.memory_space<vmem>>, %arg2: memref<128x128xbf16, #tpu.memory_space<vmem>>, %arg3: memref<1x128xf32, #tpu.memory_space<vmem>>, %arg4: memref<128x128xbf16, #tpu.memory_space<vmem>>, %arg5: memref<1x128xf32, #tpu.memory_space<vmem>>, %arg6: memref<128x128xf32, #tpu.memory_space<vmem>>, %arg7: memref<128x128xf32, #tpu.memory_space<vmem>>) attributes {dimension_semantics = [#tpu.dimension_semantics<parallel>], iteration_bounds = array<i64: 1>, scalar_prefetch = 0 : i64, scratch_operands = 0 : i64, tpu.core_type = #tpu.core_type<tc>, window_params = [{transform_indices = @transform_0, window_bounds = array<i64: 128, 128>}, {pipeline_mode = #tpu.pipeline_mode<synchronous>, transform_indices = @transform_1, window_bounds = array<i64: 128, 128>}, {pipeline_mode = #tpu.pipeline_mode<synchronous>, transform_indices = @transform_2, window_bounds = array<i64: 1, 128>}, {pipeline_mode = #tpu.pipeline_mode<synchronous>, transform_indices = @transform_3, window_bounds = array<i64: 128, 128>}, {pipeline_mode = #tpu.pipeline_mode<synchronous>, transform_indices = @transform_4, window_bounds = array<i64: 1, 128>}, {transform_indices = @transform_5, window_bounds = array<i64: 128, 128>}, {transform_indices = @transform_6, window_bounds = array<i64: 128, 128>}]} {
    %c0 = arith.constant 0 : index
    %c0_0 = arith.constant 0 : index
    %0 = vector.load %arg1[%c0, %c0_0] : memref<128x128xbf16, #tpu.memory_space<vmem>>, vector<128x128xbf16>
    %c0_1 = arith.constant 0 : index
    %c0_2 = arith.constant 0 : index
    %1 = vector.load %arg2[%c0_1, %c0_2] : memref<128x128xbf16, #tpu.memory_space<vmem>>, vector<128x128xbf16>
    %cst = arith.constant dense<0.000000e+00> : vector<128x128xf32>
    %2 = tpu.matmul %0, %1, %cst {dimension_numbers = #tpu.dot_dimension_numbers<[1], [0], [0], [1], [0, 0, 1, 1], [], []>} : vector<128x128xbf16>, vector<128x128xbf16>, vector<128x128xf32> -> vector<128x128xf32>
    %c0_3 = arith.constant 0 : index
    %c0_4 = arith.constant 0 : index
    %3 = vector.load %arg3[%c0_3, %c0_4] : memref<1x128xf32, #tpu.memory_space<vmem>>, vector<1x128xf32>
    %4 = vector.broadcast %3 : vector<1x128xf32> to vector<128x128xf32>
    %5 = arith.addf %2, %4 : vector<128x128xf32>
    %cst_5 = arith.constant 0.000000e+00 : f32
    %6 = vector.broadcast %cst_5 : f32 to vector<128x128xf32>
    %7 = arith.maximumf %5, %6 : vector<128x128xf32>
    %c0_6 = arith.constant 0 : index
    %c0_7 = arith.constant 0 : index
    %8 = vector.load %arg6[%c0_6, %c0_7] : memref<128x128xf32, #tpu.memory_space<vmem>>, vector<128x128xf32>
    tpu.vector_store %arg6[%c0_6, %c0_7], %7 {strides = array<i32>} : memref<128x128xf32, #tpu.memory_space<vmem>>, vector<128x128xf32>,
    %9 = arith.truncf %7 : vector<128x128xf32> to vector<128x128xbf16>
    %c0_8 = arith.constant 0 : index
    %c0_9 = arith.constant 0 : index
    %10 = vector.load %arg4[%c0_8, %c0_9] : memref<128x128xbf16, #tpu.memory_space<vmem>>, vector<128x128xbf16>
    %cst_10 = arith.constant dense<0.000000e+00> : vector<128x128xf32>
    %11 = tpu.matmul %9, %10, %cst_10 {dimension_numbers = #tpu.dot_dimension_numbers<[1], [0], [0], [1], [0, 0, 1, 1], [], []>} : vector<128x128xbf16>, vector<128x128xbf16>, vector<128x128xf32> -> vector<128x128xf32>
    %c0_11 = arith.constant 0 : index
    %c0_12 = arith.constant 0 : index
    %12 = vector.load %arg5[%c0_11, %c0_12] : memref<1x128xf32, #tpu.memory_space<vmem>>, vector<1x128xf32>
    %13 = vector.broadcast %12 : vector<1x128xf32> to vector<128x128xf32>
    %14 = arith.addf %11, %13 : vector<128x128xf32>
    %cst_13 = arith.constant 0.000000e+00 : f32
    %15 = vector.broadcast %cst_13 : f32 to vector<128x128xf32>
    %16 = arith.maximumf %14, %15 : vector<128x128xf32>
    %c0_14 = arith.constant 0 : index
    %c0_15 = arith.constant 0 : index
    %17 = vector.load %arg7[%c0_14, %c0_15] : memref<128x128xf32, #tpu.memory_space<vmem>>, vector<128x128xf32>
    tpu.vector_store %arg7[%c0_14, %c0_15], %16 {strides = array<i32>} : memref<128x128xf32, #tpu.memory_space<vmem>>, vector<128x128xf32>,
    return
  }
  func.func @transform_0(%arg0: i32) -> (i32, i32) {
    %c0_i32 = arith.constant 0 : i32
    %c0_i32_0 = arith.constant 0 : i32
    return %arg0, %c0_i32 : i32, i32
  }
  func.func @transform_1(%arg0: i32) -> (i32, i32) {
    %c0_i32 = arith.constant 0 : i32
    %c0_i32_0 = arith.constant 0 : i32
    %c0_i32_1 = arith.constant 0 : i32
    return %c0_i32, %c0_i32_0 : i32, i32
  }
  func.func @transform_2(%arg0: i32) -> (i32, i32) {
    %c0_i32 = arith.constant 0 : i32
    %c0_i32_0 = arith.constant 0 : i32
    %c0_i32_1 = arith.constant 0 : i32
    return %c0_i32, %c0_i32_0 : i32, i32
  }
  func.func @transform_3(%arg0: i32) -> (i32, i32) {
    %c0_i32 = arith.constant 0 : i32
    %c0_i32_0 = arith.constant 0 : i32
    %c0_i32_1 = arith.constant 0 : i32
    return %c0_i32, %c0_i32_0 : i32, i32
  }
  func.func @transform_4(%arg0: i32) -> (i32, i32) {
    %c0_i32 = arith.constant 0 : i32
    %c0_i32_0 = arith.constant 0 : i32
    %c0_i32_1 = arith.constant 0 : i32
    return %c0_i32, %c0_i32_0 : i32, i32
  }
  func.func @transform_5(%arg0: i32) -> (i32, i32) {
    %c0_i32 = arith.constant 0 : i32
    %c0_i32_0 = arith.constant 0 : i32
    return %arg0, %c0_i32 : i32, i32
  }
  func.func @transform_6(%arg0: i32) -> (i32, i32) {
    %c0_i32 = arith.constant 0 : i32
    %c0_i32_0 = arith.constant 0 : i32
    return %arg0, %c0_i32 : i32, i32
  }
}

module attributes {stable_mosaic.version = 11 : i64} {
  func.func @_mm_dag_kernel(%arg0: i32, %arg1: memref<32x128xbf16, #tpu.memory_space<vmem>>, %arg2: memref<128x128xbf16, #tpu.memory_space<vmem>>, %arg3: memref<1x128xf32, #tpu.memory_space<vmem>>, %arg4: memref<128x128xbf16, #tpu.memory_space<vmem>>, %arg5: memref<1x128xf32, #tpu.memory_space<vmem>>, %arg6: memref<128x256xbf16, #tpu.memory_space<vmem>>, %arg7: memref<1x256xf32, #tpu.memory_space<vmem>>, %arg8: memref<256x128xbf16, #tpu.memory_space<vmem>>, %arg9: memref<1x128xf32, #tpu.memory_space<vmem>>, %arg10: memref<32x128xf32, #tpu.memory_space<vmem>>, %arg11: memref<32x256xf32, #tpu.memory_space<vmem>>, %arg12: memref<32x128xf32, #tpu.memory_space<vmem>>) attributes {dimension_semantics = [#tpu.dimension_semantics<parallel>], iteration_bounds = array<i64: 1>, scalar_prefetch = 0 : i64, scratch_operands = 0 : i64, tpu.core_type = #tpu.core_type<tc>, window_params = [{transform_indices = @transform_0, window_bounds = array<i64: 32, 128>}, {pipeline_mode = #tpu.pipeline_mode<synchronous>, transform_indices = @transform_1, window_bounds = array<i64: 128, 128>}, {pipeline_mode = #tpu.pipeline_mode<synchronous>, transform_indices = @transform_2, window_bounds = array<i64: 1, 128>}, {pipeline_mode = #tpu.pipeline_mode<synchronous>, transform_indices = @transform_3, window_bounds = array<i64: 128, 128>}, {pipeline_mode = #tpu.pipeline_mode<synchronous>, transform_indices = @transform_4, window_bounds = array<i64: 1, 128>}, {pipeline_mode = #tpu.pipeline_mode<synchronous>, transform_indices = @transform_5, window_bounds = array<i64: 128, 256>}, {pipeline_mode = #tpu.pipeline_mode<synchronous>, transform_indices = @transform_6, window_bounds = array<i64: 1, 256>}, {pipeline_mode = #tpu.pipeline_mode<synchronous>, transform_indices = @transform_7, window_bounds = array<i64: 256, 128>}, {pipeline_mode = #tpu.pipeline_mode<synchronous>, transform_indices = @transform_8, window_bounds = array<i64: 1, 128>}, {transform_indices = @transform_9, window_bounds = array<i64: 32, 128>}, {transform_indices = @transform_10, window_bounds = array<i64: 32, 256>}, {transform_indices = @transform_11, window_bounds = array<i64: 32, 128>}]} {
    %c0 = arith.constant 0 : index
    %c0_0 = arith.constant 0 : index
    %0 = vector.load %arg1[%c0, %c0_0] : memref<32x128xbf16, #tpu.memory_space<vmem>>, vector<32x128xbf16>
    %c0_1 = arith.constant 0 : index
    %c0_2 = arith.constant 0 : index
    %1 = vector.load %arg2[%c0_1, %c0_2] : memref<128x128xbf16, #tpu.memory_space<vmem>>, vector<128x128xbf16>
    %cst = arith.constant dense<0.000000e+00> : vector<32x128xf32>
    %2 = tpu.matmul %0, %1, %cst {dimension_numbers = #tpu.dot_dimension_numbers<[1], [0], [0], [1], [0, 0, 1, 1], [], []>} : vector<32x128xbf16>, vector<128x128xbf16>, vector<32x128xf32> -> vector<32x128xf32>
    %c0_3 = arith.constant 0 : index
    %c0_4 = arith.constant 0 : index
    %3 = vector.load %arg3[%c0_3, %c0_4] : memref<1x128xf32, #tpu.memory_space<vmem>>, vector<1x128xf32>
    %4 = vector.broadcast %3 : vector<1x128xf32> to vector<32x128xf32>
    %5 = arith.addf %2, %4 : vector<32x128xf32>
    %cst_5 = arith.constant 0.000000e+00 : f32
    %6 = vector.broadcast %cst_5 : f32 to vector<32x128xf32>
    %7 = arith.maximumf %5, %6 : vector<32x128xf32>
    %8 = arith.truncf %7 : vector<32x128xf32> to vector<32x128xbf16>
    %c0_6 = arith.constant 0 : index
    %c0_7 = arith.constant 0 : index
    %9 = vector.load %arg4[%c0_6, %c0_7] : memref<128x128xbf16, #tpu.memory_space<vmem>>, vector<128x128xbf16>
    %cst_8 = arith.constant dense<0.000000e+00> : vector<32x128xf32>
    %10 = tpu.matmul %8, %9, %cst_8 {dimension_numbers = #tpu.dot_dimension_numbers<[1], [0], [0], [1], [0, 0, 1, 1], [], []>} : vector<32x128xbf16>, vector<128x128xbf16>, vector<32x128xf32> -> vector<32x128xf32>
    %c0_9 = arith.constant 0 : index
    %c0_10 = arith.constant 0 : index
    %11 = vector.load %arg5[%c0_9, %c0_10] : memref<1x128xf32, #tpu.memory_space<vmem>>, vector<1x128xf32>
    %12 = vector.broadcast %11 : vector<1x128xf32> to vector<32x128xf32>
    %13 = arith.addf %10, %12 : vector<32x128xf32>
    %cst_11 = arith.constant 0.000000e+00 : f32
    %14 = vector.broadcast %cst_11 : f32 to vector<32x128xf32>
    %15 = arith.maximumf %13, %14 : vector<32x128xf32>
    %c0_12 = arith.constant 0 : index
    %c0_13 = arith.constant 0 : index
    %16 = vector.load %arg10[%c0_12, %c0_13] : memref<32x128xf32, #tpu.memory_space<vmem>>, vector<32x128xf32>
    tpu.vector_store %arg10[%c0_12, %c0_13], %15 {strides = array<i32>} : memref<32x128xf32, #tpu.memory_space<vmem>>, vector<32x128xf32>,
    %17 = arith.truncf %15 : vector<32x128xf32> to vector<32x128xbf16>
    %c0_14 = arith.constant 0 : index
    %c0_15 = arith.constant 0 : index
    %18 = vector.load %arg6[%c0_14, %c0_15] : memref<128x256xbf16, #tpu.memory_space<vmem>>, vector<128x256xbf16>
    %cst_16 = arith.constant dense<0.000000e+00> : vector<32x256xf32>
    %19 = tpu.matmul %17, %18, %cst_16 {dimension_numbers = #tpu.dot_dimension_numbers<[1], [0], [0], [1], [0, 0, 1, 1], [], []>} : vector<32x128xbf16>, vector<128x256xbf16>, vector<32x256xf32> -> vector<32x256xf32>
    %c0_17 = arith.constant 0 : index
    %c0_18 = arith.constant 0 : index
    %20 = vector.load %arg7[%c0_17, %c0_18] : memref<1x256xf32, #tpu.memory_space<vmem>>, vector<1x256xf32>
    %21 = vector.broadcast %20 : vector<1x256xf32> to vector<32x256xf32>
    %22 = arith.addf %19, %21 : vector<32x256xf32>
    %cst_19 = arith.constant 0.000000e+00 : f32
    %23 = vector.broadcast %cst_19 : f32 to vector<32x256xf32>
    %24 = arith.maximumf %22, %23 : vector<32x256xf32>
    %c0_20 = arith.constant 0 : index
    %c0_21 = arith.constant 0 : index
    %25 = vector.load %arg11[%c0_20, %c0_21] : memref<32x256xf32, #tpu.memory_space<vmem>>, vector<32x256xf32>
    tpu.vector_store %arg11[%c0_20, %c0_21], %24 {strides = array<i32>} : memref<32x256xf32, #tpu.memory_space<vmem>>, vector<32x256xf32>,
    %26 = arith.truncf %24 : vector<32x256xf32> to vector<32x256xbf16>
    %c0_22 = arith.constant 0 : index
    %c0_23 = arith.constant 0 : index
    %27 = vector.load %arg8[%c0_22, %c0_23] : memref<256x128xbf16, #tpu.memory_space<vmem>>, vector<256x128xbf16>
    %cst_24 = arith.constant dense<0.000000e+00> : vector<32x128xf32>
    %28 = tpu.matmul %26, %27, %cst_24 {dimension_numbers = #tpu.dot_dimension_numbers<[1], [0], [0], [1], [0, 0, 1, 1], [], []>} : vector<32x256xbf16>, vector<256x128xbf16>, vector<32x128xf32> -> vector<32x128xf32>
    %c0_25 = arith.constant 0 : index
    %c0_26 = arith.constant 0 : index
    %29 = vector.load %arg9[%c0_25, %c0_26] : memref<1x128xf32, #tpu.memory_space<vmem>>, vector<1x128xf32>
    %30 = vector.broadcast %29 : vector<1x128xf32> to vector<32x128xf32>
    %31 = arith.addf %28, %30 : vector<32x128xf32>
    %cst_27 = arith.constant 0.000000e+00 : f32
    %32 = vector.broadcast %cst_27 : f32 to vector<32x128xf32>
    %33 = arith.maximumf %31, %32 : vector<32x128xf32>
    %c0_28 = arith.constant 0 : index
    %c0_29 = arith.constant 0 : index
    %34 = vector.load %arg12[%c0_28, %c0_29] : memref<32x128xf32, #tpu.memory_space<vmem>>, vector<32x128xf32>
    tpu.vector_store %arg12[%c0_28, %c0_29], %33 {strides = array<i32>} : memref<32x128xf32, #tpu.memory_space<vmem>>, vector<32x128xf32>,
    return
  }
  func.func @transform_0(%arg0: i32) -> (i32, i32) {
    %c0_i32 = arith.constant 0 : i32
    %c0_i32_0 = arith.constant 0 : i32
    return %arg0, %c0_i32 : i32, i32
  }
  func.func @transform_1(%arg0: i32) -> (i32, i32) {
    %c0_i32 = arith.constant 0 : i32
    %c0_i32_0 = arith.constant 0 : i32
    %c0_i32_1 = arith.constant 0 : i32
    return %c0_i32, %c0_i32_0 : i32, i32
  }
  func.func @transform_2(%arg0: i32) -> (i32, i32) {
    %c0_i32 = arith.constant 0 : i32
    %c0_i32_0 = arith.constant 0 : i32
    %c0_i32_1 = arith.constant 0 : i32
    return %c0_i32, %c0_i32_0 : i32, i32
  }
  func.func @transform_3(%arg0: i32) -> (i32, i32) {
    %c0_i32 = arith.constant 0 : i32
    %c0_i32_0 = arith.constant 0 : i32
    %c0_i32_1 = arith.constant 0 : i32
    return %c0_i32, %c0_i32_0 : i32, i32
  }
  func.func @transform_4(%arg0: i32) -> (i32, i32) {
    %c0_i32 = arith.constant 0 : i32
    %c0_i32_0 = arith.constant 0 : i32
    %c0_i32_1 = arith.constant 0 : i32
    return %c0_i32, %c0_i32_0 : i32, i32
  }
  func.func @transform_5(%arg0: i32) -> (i32, i32) {
    %c0_i32 = arith.constant 0 : i32
    %c0_i32_0 = arith.constant 0 : i32
    %c0_i32_1 = arith.constant 0 : i32
    return %c0_i32, %c0_i32_0 : i32, i32
  }
  func.func @transform_6(%arg0: i32) -> (i32, i32) {
    %c0_i32 = arith.constant 0 : i32
    %c0_i32_0 = arith.constant 0 : i32
    %c0_i32_1 = arith.constant 0 : i32
    return %c0_i32, %c0_i32_0 : i32, i32
  }
  func.func @transform_7(%arg0: i32) -> (i32, i32) {
    %c0_i32 = arith.constant 0 : i32
    %c0_i32_0 = arith.constant 0 : i32
    %c0_i32_1 = arith.constant 0 : i32
    return %c0_i32, %c0_i32_0 : i32, i32
  }
  func.func @transform_8(%arg0: i32) -> (i32, i32) {
    %c0_i32 = arith.constant 0 : i32
    %c0_i32_0 = arith.constant 0 : i32
    %c0_i32_1 = arith.constant 0 : i32
    return %c0_i32, %c0_i32_0 : i32, i32
  }
  func.func @transform_9(%arg0: i32) -> (i32, i32) {
    %c0_i32 = arith.constant 0 : i32
    %c0_i32_0 = arith.constant 0 : i32
    return %arg0, %c0_i32 : i32, i32
  }
  func.func @transform_10(%arg0: i32) -> (i32, i32) {
    %c0_i32 = arith.constant 0 : i32
    %c0_i32_0 = arith.constant 0 : i32
    return %arg0, %c0_i32 : i32, i32
  }
  func.func @transform_11(%arg0: i32) -> (i32, i32) {
    %c0_i32 = arith.constant 0 : i32
    %c0_i32_0 = arith.constant 0 : i32
    return %arg0, %c0_i32 : i32, i32
  }
}

module attributes {stable_mosaic.version = 11 : i64} {
  func.func @_mm_dag_kernel(%arg0: i32, %arg1: memref<32x5248xbf16, #tpu.memory_space<vmem>>, %arg2: memref<5248x128xbf16, #tpu.memory_space<vmem>>, %arg3: memref<1x128xf32, #tpu.memory_space<vmem>>, %arg4: memref<128x128xbf16, #tpu.memory_space<vmem>>, %arg5: memref<1x128xf32, #tpu.memory_space<vmem>>, %arg6: memref<32x128xf32, #tpu.memory_space<vmem>>, %arg7: memref<32x128xf32, #tpu.memory_space<vmem>>) attributes {dimension_semantics = [#tpu.dimension_semantics<parallel>], iteration_bounds = array<i64: 1>, scalar_prefetch = 0 : i64, scratch_operands = 0 : i64, tpu.core_type = #tpu.core_type<tc>, window_params = [{transform_indices = @transform_0, window_bounds = array<i64: 32, 5248>}, {pipeline_mode = #tpu.pipeline_mode<synchronous>, transform_indices = @transform_1, window_bounds = array<i64: 5248, 128>}, {pipeline_mode = #tpu.pipeline_mode<synchronous>, transform_indices = @transform_2, window_bounds = array<i64: 1, 128>}, {pipeline_mode = #tpu.pipeline_mode<synchronous>, transform_indices = @transform_3, window_bounds = array<i64: 128, 128>}, {pipeline_mode = #tpu.pipeline_mode<synchronous>, transform_indices = @transform_4, window_bounds = array<i64: 1, 128>}, {transform_indices = @transform_5, window_bounds = array<i64: 32, 128>}, {transform_indices = @transform_6, window_bounds = array<i64: 32, 128>}]} {
    %c0 = arith.constant 0 : index
    %c0_0 = arith.constant 0 : index
    %0 = vector.load %arg1[%c0, %c0_0] : memref<32x5248xbf16, #tpu.memory_space<vmem>>, vector<32x5248xbf16>
    %c0_1 = arith.constant 0 : index
    %c0_2 = arith.constant 0 : index
    %1 = vector.load %arg2[%c0_1, %c0_2] : memref<5248x128xbf16, #tpu.memory_space<vmem>>, vector<5248x128xbf16>
    %cst = arith.constant dense<0.000000e+00> : vector<32x128xf32>
    %2 = tpu.matmul %0, %1, %cst {dimension_numbers = #tpu.dot_dimension_numbers<[1], [0], [0], [1], [0, 0, 1, 1], [], []>} : vector<32x5248xbf16>, vector<5248x128xbf16>, vector<32x128xf32> -> vector<32x128xf32>
    %c0_3 = arith.constant 0 : index
    %c0_4 = arith.constant 0 : index
    %3 = vector.load %arg3[%c0_3, %c0_4] : memref<1x128xf32, #tpu.memory_space<vmem>>, vector<1x128xf32>
    %4 = vector.broadcast %3 : vector<1x128xf32> to vector<32x128xf32>
    %5 = arith.addf %2, %4 : vector<32x128xf32>
    %cst_5 = arith.constant 0.000000e+00 : f32
    %6 = vector.broadcast %cst_5 : f32 to vector<32x128xf32>
    %7 = arith.maximumf %5, %6 : vector<32x128xf32>
    %c0_6 = arith.constant 0 : index
    %c0_7 = arith.constant 0 : index
    %8 = vector.load %arg6[%c0_6, %c0_7] : memref<32x128xf32, #tpu.memory_space<vmem>>, vector<32x128xf32>
    tpu.vector_store %arg6[%c0_6, %c0_7], %7 {strides = array<i32>} : memref<32x128xf32, #tpu.memory_space<vmem>>, vector<32x128xf32>,
    %9 = arith.truncf %7 : vector<32x128xf32> to vector<32x128xbf16>
    %c0_8 = arith.constant 0 : index
    %c0_9 = arith.constant 0 : index
    %10 = vector.load %arg4[%c0_8, %c0_9] : memref<128x128xbf16, #tpu.memory_space<vmem>>, vector<128x128xbf16>
    %cst_10 = arith.constant dense<0.000000e+00> : vector<32x128xf32>
    %11 = tpu.matmul %9, %10, %cst_10 {dimension_numbers = #tpu.dot_dimension_numbers<[1], [0], [0], [1], [0, 0, 1, 1], [], []>} : vector<32x128xbf16>, vector<128x128xbf16>, vector<32x128xf32> -> vector<32x128xf32>
    %c0_11 = arith.constant 0 : index
    %c0_12 = arith.constant 0 : index
    %12 = vector.load %arg5[%c0_11, %c0_12] : memref<1x128xf32, #tpu.memory_space<vmem>>, vector<1x128xf32>
    %13 = vector.broadcast %12 : vector<1x128xf32> to vector<32x128xf32>
    %14 = arith.addf %11, %13 : vector<32x128xf32>
    %c0_13 = arith.constant 0 : index
    %c0_14 = arith.constant 0 : index
    %15 = vector.load %arg7[%c0_13, %c0_14] : memref<32x128xf32, #tpu.memory_space<vmem>>, vector<32x128xf32>
    tpu.vector_store %arg7[%c0_13, %c0_14], %14 {strides = array<i32>} : memref<32x128xf32, #tpu.memory_space<vmem>>, vector<32x128xf32>,
    return
  }
  func.func @transform_0(%arg0: i32) -> (i32, i32) {
    %c0_i32 = arith.constant 0 : i32
    %c0_i32_0 = arith.constant 0 : i32
    return %arg0, %c0_i32 : i32, i32
  }
  func.func @transform_1(%arg0: i32) -> (i32, i32) {
    %c0_i32 = arith.constant 0 : i32
    %c0_i32_0 = arith.constant 0 : i32
    %c0_i32_1 = arith.constant 0 : i32
    return %c0_i32, %c0_i32_0 : i32, i32
  }
  func.func @transform_2(%arg0: i32) -> (i32, i32) {
    %c0_i32 = arith.constant 0 : i32
    %c0_i32_0 = arith.constant 0 : i32
    %c0_i32_1 = arith.constant 0 : i32
    return %c0_i32, %c0_i32_0 : i32, i32
  }
  func.func @transform_3(%arg0: i32) -> (i32, i32) {
    %c0_i32 = arith.constant 0 : i32
    %c0_i32_0 = arith.constant 0 : i32
    %c0_i32_1 = arith.constant 0 : i32
    return %c0_i32, %c0_i32_0 : i32, i32
  }
  func.func @transform_4(%arg0: i32) -> (i32, i32) {
    %c0_i32 = arith.constant 0 : i32
    %c0_i32_0 = arith.constant 0 : i32
    %c0_i32_1 = arith.constant 0 : i32
    return %c0_i32, %c0_i32_0 : i32, i32
  }
  func.func @transform_5(%arg0: i32) -> (i32, i32) {
    %c0_i32 = arith.constant 0 : i32
    %c0_i32_0 = arith.constant 0 : i32
    return %arg0, %c0_i32 : i32, i32
  }
  func.func @transform_6(%arg0: i32) -> (i32, i32) {
    %c0_i32 = arith.constant 0 : i32
    %c0_i32_0 = arith.constant 0 : i32
    return %arg0, %c0_i32 : i32, i32
  }
}

module attributes {stable_mosaic.version = 11 : i64} {
  func.func @_ocr_kernel(%arg0: i32, %arg1: memref<1x8x16xf32, #tpu.memory_space<vmem>>, %arg2: memref<1x16x16xf32, #tpu.memory_space<vmem>>, %arg3: memref<16x8xf32, #tpu.memory_space<vmem>>, %arg4: memref<1x8xf32, #tpu.memory_space<vmem>>, %arg5: memref<8x8xf32, #tpu.memory_space<vmem>>, %arg6: memref<1x8xf32, #tpu.memory_space<vmem>>, %arg7: memref<16x16xf32, #tpu.memory_space<vmem>>, %arg8: memref<1x16xf32, #tpu.memory_space<vmem>>, %arg9: memref<8x8xf32, #tpu.memory_space<vmem>>, %arg10: memref<1x8xf32, #tpu.memory_space<vmem>>, %arg11: memref<8x128xf32, #tpu.memory_space<vmem>>, %arg12: memref<1x128xf32, #tpu.memory_space<vmem>>, %arg13: memref<1x16x128xf32, #tpu.memory_space<vmem>>) attributes {dimension_semantics = [#tpu.dimension_semantics<parallel>], iteration_bounds = array<i64: 2>, scalar_prefetch = 0 : i64, scratch_operands = 0 : i64, tpu.core_type = #tpu.core_type<tc>, window_params = [{transform_indices = @transform_0, window_bounds = array<i64: 1, 8, 16>}, {transform_indices = @transform_1, window_bounds = array<i64: 1, 16, 16>}, {pipeline_mode = #tpu.pipeline_mode<synchronous>, transform_indices = @transform_2, window_bounds = array<i64: 16, 8>}, {pipeline_mode = #tpu.pipeline_mode<synchronous>, transform_indices = @transform_3, window_bounds = array<i64: 1, 8>}, {pipeline_mode = #tpu.pipeline_mode<synchronous>, transform_indices = @transform_4, window_bounds = array<i64: 8, 8>}, {pipeline_mode = #tpu.pipeline_mode<synchronous>, transform_indices = @transform_5, window_bounds = array<i64: 1, 8>}, {pipeline_mode = #tpu.pipeline_mode<synchronous>, transform_indices = @transform_6, window_bounds = array<i64: 16, 16>}, {pipeline_mode = #tpu.pipeline_mode<synchronous>, transform_indices = @transform_7, window_bounds = array<i64: 1, 16>}, {pipeline_mode = #tpu.pipeline_mode<synchronous>, transform_indices = @transform_8, window_bounds = array<i64: 8, 8>}, {pipeline_mode = #tpu.pipeline_mode<synchronous>, transform_indices = @transform_9, window_bounds = array<i64: 1, 8>}, {pipeline_mode = #tpu.pipeline_mode<synchronous>, transform_indices = @transform_10, window_bounds = array<i64: 8, 128>}, {pipeline_mode = #tpu.pipeline_mode<synchronous>, transform_indices = @transform_11, window_bounds = array<i64: 1, 128>}, {transform_indices = @transform_12, window_bounds = array<i64: 1, 16, 128>}]} {
    %c0 = arith.constant 0 : index
    %c0_0 = arith.constant 0 : index
    %c0_1 = arith.constant 0 : index
    %0 = vector.load %arg1[%c0, %c0_0, %c0_1] : memref<1x8x16xf32, #tpu.memory_space<vmem>>, vector<1x8x16xf32>
    %1 = vector.shape_cast %0 : vector<1x8x16xf32> to vector<8x16xf32>
    %cst = arith.constant dense<0xFF800000> : vector<8xf32>
    %2 = vector.multi_reduction <maximumf>, %1, %cst [1] : vector<8x16xf32> to vector<8xf32>
    %3 = vector.shape_cast %2 : vector<8xf32> to vector<8x1xf32>
    %4 = vector.broadcast %3 : vector<8x1xf32> to vector<8x16xf32>
    %5 = arith.subf %1, %4 : vector<8x16xf32>
    %6 = math.exp %5 : vector<8x16xf32>
    %cst_2 = arith.constant dense<0.000000e+00> : vector<8xf32>
    %7 = vector.multi_reduction <add>, %6, %cst_2 [1] : vector<8x16xf32> to vector<8xf32>
    %8 = vector.shape_cast %7 : vector<8xf32> to vector<8x1xf32>
    %9 = vector.broadcast %8 : vector<8x1xf32> to vector<8x16xf32>
    %10 = arith.divf %6, %9 : vector<8x16xf32>
    %c0_3 = arith.constant 0 : index
    %c0_4 = arith.constant 0 : index
    %c0_5 = arith.constant 0 : index
    %11 = vector.load %arg2[%c0_3, %c0_4, %c0_5] : memref<1x16x16xf32, #tpu.memory_space<vmem>>, vector<1x16x16xf32>
    %12 = vector.shape_cast %11 : vector<1x16x16xf32> to vector<16x16xf32>
    %cst_6 = arith.constant dense<0.000000e+00> : vector<8x16xf32>
    %13 = tpu.matmul %10, %12, %cst_6 {dimension_numbers = #tpu.dot_dimension_numbers<[1], [0], [0], [1], [0, 0, 1, 1], [], []>} : vector<8x16xf32>, vector<16x16xf32>, vector<8x16xf32> -> vector<8x16xf32>
    %c0_7 = arith.constant 0 : index
    %c0_8 = arith.constant 0 : index
    %14 = vector.load %arg3[%c0_7, %c0_8] : memref<16x8xf32, #tpu.memory_space<vmem>>, vector<16x8xf32>
    %cst_9 = arith.constant dense<0.000000e+00> : vector<16x8xf32>
    %15 = tpu.matmul %12, %14, %cst_9 {dimension_numbers = #tpu.dot_dimension_numbers<[1], [0], [0], [1], [0, 0, 1, 1], [], []>} : vector<16x16xf32>, vector<16x8xf32>, vector<16x8xf32> -> vector<16x8xf32>
    %c0_10 = arith.constant 0 : index
    %c0_11 = arith.constant 0 : index
    %16 = vector.load %arg4[%c0_10, %c0_11] : memref<1x8xf32, #tpu.memory_space<vmem>>, vector<1x8xf32>
    %17 = vector.broadcast %16 : vector<1x8xf32> to vector<16x8xf32>
    %18 = arith.addf %15, %17 : vector<16x8xf32>
    %cst_12 = arith.constant 0.000000e+00 : f32
    %19 = vector.broadcast %cst_12 : f32 to vector<16x8xf32>
    %20 = arith.maximumf %18, %19 : vector<16x8xf32>
    %c0_13 = arith.constant 0 : index
    %c0_14 = arith.constant 0 : index
    %21 = vector.load %arg5[%c0_13, %c0_14] : memref<8x8xf32, #tpu.memory_space<vmem>>, vector<8x8xf32>
    %cst_15 = arith.constant dense<0.000000e+00> : vector<16x8xf32>
    %22 = tpu.matmul %20, %21, %cst_15 {dimension_numbers = #tpu.dot_dimension_numbers<[1], [0], [0], [1], [0, 0, 1, 1], [], []>} : vector<16x8xf32>, vector<8x8xf32>, vector<16x8xf32> -> vector<16x8xf32>
    %c0_16 = arith.constant 0 : index
    %c0_17 = arith.constant 0 : index
    %23 = vector.load %arg6[%c0_16, %c0_17] : memref<1x8xf32, #tpu.memory_space<vmem>>, vector<1x8xf32>
    %24 = vector.broadcast %23 : vector<1x8xf32> to vector<16x8xf32>
    %25 = arith.addf %22, %24 : vector<16x8xf32>
    %cst_18 = arith.constant 0.000000e+00 : f32
    %26 = vector.broadcast %cst_18 : f32 to vector<16x8xf32>
    %27 = arith.maximumf %25, %26 : vector<16x8xf32>
    %c0_19 = arith.constant 0 : index
    %c0_20 = arith.constant 0 : index
    %28 = vector.load %arg7[%c0_19, %c0_20] : memref<16x16xf32, #tpu.memory_space<vmem>>, vector<16x16xf32>
    %cst_21 = arith.constant dense<0.000000e+00> : vector<8x16xf32>
    %29 = tpu.matmul %13, %28, %cst_21 {dimension_numbers = #tpu.dot_dimension_numbers<[1], [0], [0], [1], [0, 0, 1, 1], [], []>} : vector<8x16xf32>, vector<16x16xf32>, vector<8x16xf32> -> vector<8x16xf32>
    %c0_22 = arith.constant 0 : index
    %c0_23 = arith.constant 0 : index
    %30 = vector.load %arg8[%c0_22, %c0_23] : memref<1x16xf32, #tpu.memory_space<vmem>>, vector<1x16xf32>
    %31 = vector.broadcast %30 : vector<1x16xf32> to vector<8x16xf32>
    %32 = arith.addf %29, %31 : vector<8x16xf32>
    %cst_24 = arith.constant 0.000000e+00 : f32
    %33 = vector.broadcast %cst_24 : f32 to vector<8x16xf32>
    %34 = arith.maximumf %32, %33 : vector<8x16xf32>
    %35 = vector.extract_strided_slice %34 {offsets = [0, 0], sizes = [8, 8], strides = [1, 1]} : vector<8x16xf32> to vector<8x8xf32>
    %c0_25 = arith.constant 0 : index
    %c0_26 = arith.constant 0 : index
    %36 = vector.load %arg9[%c0_25, %c0_26] : memref<8x8xf32, #tpu.memory_space<vmem>>, vector<8x8xf32>
    %cst_27 = arith.constant dense<0.000000e+00> : vector<8x8xf32>
    %37 = tpu.matmul %35, %36, %cst_27 {dimension_numbers = #tpu.dot_dimension_numbers<[1], [0], [0], [1], [0, 0, 1, 1], [], []>} : vector<8x8xf32>, vector<8x8xf32>, vector<8x8xf32> -> vector<8x8xf32>
    %c0_28 = arith.constant 0 : index
    %c0_29 = arith.constant 0 : index
    %38 = vector.load %arg10[%c0_28, %c0_29] : memref<1x8xf32, #tpu.memory_space<vmem>>, vector<1x8xf32>
    %39 = vector.broadcast %38 : vector<1x8xf32> to vector<8x8xf32>
    %40 = arith.addf %37, %39 : vector<8x8xf32>
    %cst_30 = arith.constant 0.000000e+00 : f32
    %41 = vector.broadcast %cst_30 : f32 to vector<8x8xf32>
    %42 = arith.maximumf %40, %41 : vector<8x8xf32>
    %43 = vector.extract_strided_slice %34 {offsets = [0, 8], sizes = [8, 8], strides = [1, 1]} : vector<8x16xf32> to vector<8x8xf32>
    %cst_31 = arith.constant dense<0.000000e+00> : vector<16x8xf32>
    %44 = tpu.matmul %27, %42, %cst_31 {dimension_numbers = #tpu.dot_dimension_numbers<[1], [1], [0], [0], [0, 0, 1, 0], [], []>} : vector<16x8xf32>, vector<8x8xf32>, vector<16x8xf32> -> vector<16x8xf32>
    %cst_32 = arith.constant 0.353553385 : f32
    %45 = vector.broadcast %cst_32 : f32 to vector<16x8xf32>
    %46 = arith.mulf %44, %45 : vector<16x8xf32>
    %cst_33 = arith.constant dense<0xFF800000> : vector<16xf32>
    %47 = vector.multi_reduction <maximumf>, %46, %cst_33 [1] : vector<16x8xf32> to vector<16xf32>
    %48 = vector.shape_cast %47 : vector<16xf32> to vector<16x1xf32>
    %49 = vector.broadcast %48 : vector<16x1xf32> to vector<16x8xf32>
    %50 = arith.subf %46, %49 : vector<16x8xf32>
    %51 = math.exp %50 : vector<16x8xf32>
    %cst_34 = arith.constant dense<0.000000e+00> : vector<16xf32>
    %52 = vector.multi_reduction <add>, %51, %cst_34 [1] : vector<16x8xf32> to vector<16xf32>
    %53 = vector.shape_cast %52 : vector<16xf32> to vector<16x1xf32>
    %54 = vector.broadcast %53 : vector<16x1xf32> to vector<16x8xf32>
    %55 = arith.divf %51, %54 : vector<16x8xf32>
    %cst_35 = arith.constant dense<0.000000e+00> : vector<16x8xf32>
    %56 = tpu.matmul %55, %43, %cst_35 {dimension_numbers = #tpu.dot_dimension_numbers<[1], [0], [0], [1], [0, 0, 1, 1], [], []>} : vector<16x8xf32>, vector<8x8xf32>, vector<16x8xf32> -> vector<16x8xf32>
    %c0_36 = arith.constant 0 : index
    %c0_37 = arith.constant 0 : index
    %57 = vector.load %arg11[%c0_36, %c0_37] : memref<8x128xf32, #tpu.memory_space<vmem>>, vector<8x128xf32>
    %cst_38 = arith.constant dense<0.000000e+00> : vector<16x128xf32>
    %58 = tpu.matmul %56, %57, %cst_38 {dimension_numbers = #tpu.dot_dimension_numbers<[1], [0], [0], [1], [0, 0, 1, 1], [], []>} : vector<16x8xf32>, vector<8x128xf32>, vector<16x128xf32> -> vector<16x128xf32>
    %c0_39 = arith.constant 0 : index
    %c0_40 = arith.constant 0 : index
    %59 = vector.load %arg12[%c0_39, %c0_40] : memref<1x128xf32, #tpu.memory_space<vmem>>, vector<1x128xf32>
    %60 = vector.broadcast %59 : vector<1x128xf32> to vector<16x128xf32>
    %61 = arith.addf %58, %60 : vector<16x128xf32>
    %cst_41 = arith.constant 0.000000e+00 : f32
    %62 = vector.broadcast %cst_41 : f32 to vector<16x128xf32>
    %63 = arith.maximumf %61, %62 : vector<16x128xf32>
    %c0_42 = arith.constant 0 : index
    %c0_43 = arith.constant 0 : index
    %c0_44 = arith.constant 0 : index
    %64 = vector.load %arg13[%c0_42, %c0_43, %c0_44] : memref<1x16x128xf32, #tpu.memory_space<vmem>>, vector<1x16x128xf32>
    %65 = vector.shape_cast %64 : vector<1x16x128xf32> to vector<16x128xf32>
    %66 = vector.shape_cast %63 : vector<16x128xf32> to vector<1x16x128xf32>
    tpu.vector_store %arg13[%c0_42, %c0_43, %c0_44], %66 {strides = array<i32>} : memref<1x16x128xf32, #tpu.memory_space<vmem>>, vector<1x16x128xf32>,
    return
  }
  func.func @transform_0(%arg0: i32) -> (i32, i32, i32) {
    %c0_i32 = arith.constant 0 : i32
    %c0_i32_0 = arith.constant 0 : i32
    %c0_i32_1 = arith.constant 0 : i32
    return %arg0, %c0_i32, %c0_i32_0 : i32, i32, i32
  }
  func.func @transform_1(%arg0: i32) -> (i32, i32, i32) {
    %c0_i32 = arith.constant 0 : i32
    %c0_i32_0 = arith.constant 0 : i32
    %c0_i32_1 = arith.constant 0 : i32
    return %arg0, %c0_i32, %c0_i32_0 : i32, i32, i32
  }
  func.func @transform_2(%arg0: i32) -> (i32, i32) {
    %c0_i32 = arith.constant 0 : i32
    %c0_i32_0 = arith.constant 0 : i32
    %c0_i32_1 = arith.constant 0 : i32
    return %c0_i32, %c0_i32_0 : i32, i32
  }
  func.func @transform_3(%arg0: i32) -> (i32, i32) {
    %c0_i32 = arith.constant 0 : i32
    %c0_i32_0 = arith.constant 0 : i32
    %c0_i32_1 = arith.constant 0 : i32
    return %c0_i32, %c0_i32_0 : i32, i32
  }
  func.func @transform_4(%arg0: i32) -> (i32, i32) {
    %c0_i32 = arith.constant 0 : i32
    %c0_i32_0 = arith.constant 0 : i32
    %c0_i32_1 = arith.constant 0 : i32
    return %c0_i32, %c0_i32_0 : i32, i32
  }
  func.func @transform_5(%arg0: i32) -> (i32, i32) {
    %c0_i32 = arith.constant 0 : i32
    %c0_i32_0 = arith.constant 0 : i32
    %c0_i32_1 = arith.constant 0 : i32
    return %c0_i32, %c0_i32_0 : i32, i32
  }
  func.func @transform_6(%arg0: i32) -> (i32, i32) {
    %c0_i32 = arith.constant 0 : i32
    %c0_i32_0 = arith.constant 0 : i32
    %c0_i32_1 = arith.constant 0 : i32
    return %c0_i32, %c0_i32_0 : i32, i32
  }
  func.func @transform_7(%arg0: i32) -> (i32, i32) {
    %c0_i32 = arith.constant 0 : i32
    %c0_i32_0 = arith.constant 0 : i32
    %c0_i32_1 = arith.constant 0 : i32
    return %c0_i32, %c0_i32_0 : i32, i32
  }
  func.func @transform_8(%arg0: i32) -> (i32, i32) {
    %c0_i32 = arith.constant 0 : i32
    %c0_i32_0 = arith.constant 0 : i32
    %c0_i32_1 = arith.constant 0 : i32
    return %c0_i32, %c0_i32_0 : i32, i32
  }
  func.func @transform_9(%arg0: i32) -> (i32, i32) {
    %c0_i32 = arith.constant 0 : i32
    %c0_i32_0 = arith.constant 0 : i32
    %c0_i32_1 = arith.constant 0 : i32
    return %c0_i32, %c0_i32_0 : i32, i32
  }
  func.func @transform_10(%arg0: i32) -> (i32, i32) {
    %c0_i32 = arith.constant 0 : i32
    %c0_i32_0 = arith.constant 0 : i32
    %c0_i32_1 = arith.constant 0 : i32
    return %c0_i32, %c0_i32_0 : i32, i32
  }
  func.func @transform_11(%arg0: i32) -> (i32, i32) {
    %c0_i32 = arith.constant 0 : i32
    %c0_i32_0 = arith.constant 0 : i32
    %c0_i32_1 = arith.constant 0 : i32
    return %c0_i32, %c0_i32_0 : i32, i32
  }
  func.func @transform_12(%arg0: i32) -> (i32, i32, i32) {
    %c0_i32 = arith.constant 0 : i32
    %c0_i32_0 = arith.constant 0 : i32
    %c0_i32_1 = arith.constant 0 : i32
    return %arg0, %c0_i32, %c0_i32_0 : i32, i32, i32
  }
}

module attributes {stable_mosaic.version = 11 : i64} {
  func.func @_mm_dag_kernel(%arg0: i32, %arg1: memref<32x128xbf16, #tpu.memory_space<vmem>>, %arg2: memref<128x128xbf16, #tpu.memory_space<vmem>>, %arg3: memref<1x128xf32, #tpu.memory_space<vmem>>, %arg4: memref<128x128xbf16, #tpu.memory_space<vmem>>, %arg5: memref<1x128xf32, #tpu.memory_space<vmem>>, %arg6: memref<32x128xf32, #tpu.memory_space<vmem>>) attributes {dimension_semantics = [#tpu.dimension_semantics<parallel>], iteration_bounds = array<i64: 1>, scalar_prefetch = 0 : i64, scratch_operands = 0 : i64, tpu.core_type = #tpu.core_type<tc>, window_params = [{transform_indices = @transform_0, window_bounds = array<i64: 32, 128>}, {pipeline_mode = #tpu.pipeline_mode<synchronous>, transform_indices = @transform_1, window_bounds = array<i64: 128, 128>}, {pipeline_mode = #tpu.pipeline_mode<synchronous>, transform_indices = @transform_2, window_bounds = array<i64: 1, 128>}, {pipeline_mode = #tpu.pipeline_mode<synchronous>, transform_indices = @transform_3, window_bounds = array<i64: 128, 128>}, {pipeline_mode = #tpu.pipeline_mode<synchronous>, transform_indices = @transform_4, window_bounds = array<i64: 1, 128>}, {transform_indices = @transform_5, window_bounds = array<i64: 32, 128>}]} {
    %c0 = arith.constant 0 : index
    %c0_0 = arith.constant 0 : index
    %0 = vector.load %arg1[%c0, %c0_0] : memref<32x128xbf16, #tpu.memory_space<vmem>>, vector<32x128xbf16>
    %c0_1 = arith.constant 0 : index
    %c0_2 = arith.constant 0 : index
    %1 = vector.load %arg2[%c0_1, %c0_2] : memref<128x128xbf16, #tpu.memory_space<vmem>>, vector<128x128xbf16>
    %cst = arith.constant dense<0.000000e+00> : vector<32x128xf32>
    %2 = tpu.matmul %0, %1, %cst {dimension_numbers = #tpu.dot_dimension_numbers<[1], [0], [0], [1], [0, 0, 1, 1], [], []>} : vector<32x128xbf16>, vector<128x128xbf16>, vector<32x128xf32> -> vector<32x128xf32>
    %c0_3 = arith.constant 0 : index
    %c0_4 = arith.constant 0 : index
    %3 = vector.load %arg3[%c0_3, %c0_4] : memref<1x128xf32, #tpu.memory_space<vmem>>, vector<1x128xf32>
    %4 = vector.broadcast %3 : vector<1x128xf32> to vector<32x128xf32>
    %5 = arith.addf %2, %4 : vector<32x128xf32>
    %cst_5 = arith.constant 0.000000e+00 : f32
    %6 = vector.broadcast %cst_5 : f32 to vector<32x128xf32>
    %7 = arith.maximumf %5, %6 : vector<32x128xf32>
    %8 = arith.truncf %7 : vector<32x128xf32> to vector<32x128xbf16>
    %c0_6 = arith.constant 0 : index
    %c0_7 = arith.constant 0 : index
    %9 = vector.load %arg4[%c0_6, %c0_7] : memref<128x128xbf16, #tpu.memory_space<vmem>>, vector<128x128xbf16>
    %cst_8 = arith.constant dense<0.000000e+00> : vector<32x128xf32>
    %10 = tpu.matmul %8, %9, %cst_8 {dimension_numbers = #tpu.dot_dimension_numbers<[1], [0], [0], [1], [0, 0, 1, 1], [], []>} : vector<32x128xbf16>, vector<128x128xbf16>, vector<32x128xf32> -> vector<32x128xf32>
    %c0_9 = arith.constant 0 : index
    %c0_10 = arith.constant 0 : index
    %11 = vector.load %arg5[%c0_9, %c0_10] : memref<1x128xf32, #tpu.memory_space<vmem>>, vector<1x128xf32>
    %12 = vector.broadcast %11 : vector<1x128xf32> to vector<32x128xf32>
    %13 = arith.addf %10, %12 : vector<32x128xf32>
    %cst_11 = arith.constant 0.000000e+00 : f32
    %14 = vector.broadcast %cst_11 : f32 to vector<32x128xf32>
    %15 = arith.maximumf %13, %14 : vector<32x128xf32>
    %c0_12 = arith.constant 0 : index
    %c0_13 = arith.constant 0 : index
    %16 = vector.load %arg6[%c0_12, %c0_13] : memref<32x128xf32, #tpu.memory_space<vmem>>, vector<32x128xf32>
    tpu.vector_store %arg6[%c0_12, %c0_13], %15 {strides = array<i32>} : memref<32x128xf32, #tpu.memory_space<vmem>>, vector<32x128xf32>,
    return
  }
  func.func @transform_0(%arg0: i32) -> (i32, i32) {
    %c0_i32 = arith.constant 0 : i32
    %c0_i32_0 = arith.constant 0 : i32
    return %arg0, %c0_i32 : i32, i32
  }
  func.func @transform_1(%arg0: i32) -> (i32, i32) {
    %c0_i32 = arith.constant 0 : i32
    %c0_i32_0 = arith.constant 0 : i32
    %c0_i32_1 = arith.constant 0 : i32
    return %c0_i32, %c0_i32_0 : i32, i32
  }
  func.func @transform_2(%arg0: i32) -> (i32, i32) {
    %c0_i32 = arith.constant 0 : i32
    %c0_i32_0 = arith.constant 0 : i32
    %c0_i32_1 = arith.constant 0 : i32
    return %c0_i32, %c0_i32_0 : i32, i32
  }
  func.func @transform_3(%arg0: i32) -> (i32, i32) {
    %c0_i32 = arith.constant 0 : i32
    %c0_i32_0 = arith.constant 0 : i32
    %c0_i32_1 = arith.constant 0 : i32
    return %c0_i32, %c0_i32_0 : i32, i32
  }
  func.func @transform_4(%arg0: i32) -> (i32, i32) {
    %c0_i32 = arith.constant 0 : i32
    %c0_i32_0 = arith.constant 0 : i32
    %c0_i32_1 = arith.constant 0 : i32
    return %c0_i32, %c0_i32_0 : i32, i32
  }
  func.func @transform_5(%arg0: i32) -> (i32, i32) {
    %c0_i32 = arith.constant 0 : i32
    %c0_i32_0 = arith.constant 0 : i32
    return %arg0, %c0_i32 : i32, i32
  }
}

module attributes {stable_mosaic.version = 11 : i64} {
  func.func @_resize_kernel(%arg0: i32, %arg1: memref<64x16xbf16, #tpu.memory_space<vmem>>, %arg2: memref<1x16x128xbf16, #tpu.memory_space<vmem>>, %arg3: memref<1x64x128xf32, #tpu.memory_space<vmem>>) attributes {dimension_semantics = [#tpu.dimension_semantics<parallel>], iteration_bounds = array<i64: 2>, scalar_prefetch = 0 : i64, scratch_operands = 0 : i64, tpu.core_type = #tpu.core_type<tc>, window_params = [{pipeline_mode = #tpu.pipeline_mode<synchronous>, transform_indices = @transform_0, window_bounds = array<i64: 64, 16>}, {transform_indices = @transform_1, window_bounds = array<i64: 1, 16, 128>}, {transform_indices = @transform_2, window_bounds = array<i64: 1, 64, 128>}]} {
    %c0 = arith.constant 0 : index
    %c0_0 = arith.constant 0 : index
    %0 = vector.load %arg1[%c0, %c0_0] : memref<64x16xbf16, #tpu.memory_space<vmem>>, vector<64x16xbf16>
    %c0_1 = arith.constant 0 : index
    %c0_2 = arith.constant 0 : index
    %c0_3 = arith.constant 0 : index
    %1 = vector.load %arg2[%c0_1, %c0_2, %c0_3] : memref<1x16x128xbf16, #tpu.memory_space<vmem>>, vector<1x16x128xbf16>
    %2 = vector.shape_cast %1 : vector<1x16x128xbf16> to vector<16x128xbf16>
    %cst = arith.constant dense<0.000000e+00> : vector<64x128xf32>
    %3 = tpu.matmul %0, %2, %cst {dimension_numbers = #tpu.dot_dimension_numbers<[1], [0], [0], [1], [0, 0, 1, 1], [], []>} : vector<64x16xbf16>, vector<16x128xbf16>, vector<64x128xf32> -> vector<64x128xf32>
    %c0_4 = arith.constant 0 : index
    %c0_5 = arith.constant 0 : index
    %c0_6 = arith.constant 0 : index
    %4 = vector.load %arg3[%c0_4, %c0_5, %c0_6] : memref<1x64x128xf32, #tpu.memory_space<vmem>>, vector<1x64x128xf32>
    %5 = vector.shape_cast %4 : vector<1x64x128xf32> to vector<64x128xf32>
    %6 = vector.shape_cast %3 : vector<64x128xf32> to vector<1x64x128xf32>
    tpu.vector_store %arg3[%c0_4, %c0_5, %c0_6], %6 {strides = array<i32>} : memref<1x64x128xf32, #tpu.memory_space<vmem>>, vector<1x64x128xf32>,
    return
  }
  func.func @transform_0(%arg0: i32) -> (i32, i32) {
    %c0_i32 = arith.constant 0 : i32
    %c0_i32_0 = arith.constant 0 : i32
    %c0_i32_1 = arith.constant 0 : i32
    return %c0_i32, %c0_i32_0 : i32, i32
  }
  func.func @transform_1(%arg0: i32) -> (i32, i32, i32) {
    %c0_i32 = arith.constant 0 : i32
    %c0_i32_0 = arith.constant 0 : i32
    %c0_i32_1 = arith.constant 0 : i32
    return %arg0, %c0_i32, %c0_i32_0 : i32, i32, i32
  }
  func.func @transform_2(%arg0: i32) -> (i32, i32, i32) {
    %c0_i32 = arith.constant 0 : i32
    %c0_i32_0 = arith.constant 0 : i32
    %c0_i32_1 = arith.constant 0 : i32
    return %arg0, %c0_i32, %c0_i32_0 : i32, i32, i32
  }
}

module attributes {stable_mosaic.version = 11 : i64} {
  func.func @_mm_dag_kernel(%arg0: i32, %arg1: memref<192x256xbf16, #tpu.memory_space<vmem>>, %arg2: memref<256x128xbf16, #tpu.memory_space<vmem>>, %arg3: memref<1x128xf32, #tpu.memory_space<vmem>>, %arg4: memref<192x128xf32, #tpu.memory_space<vmem>>) attributes {dimension_semantics = [#tpu.dimension_semantics<parallel>], iteration_bounds = array<i64: 1>, scalar_prefetch = 0 : i64, scratch_operands = 0 : i64, tpu.core_type = #tpu.core_type<tc>, window_params = [{transform_indices = @transform_0, window_bounds = array<i64: 192, 256>}, {pipeline_mode = #tpu.pipeline_mode<synchronous>, transform_indices = @transform_1, window_bounds = array<i64: 256, 128>}, {pipeline_mode = #tpu.pipeline_mode<synchronous>, transform_indices = @transform_2, window_bounds = array<i64: 1, 128>}, {transform_indices = @transform_3, window_bounds = array<i64: 192, 128>}]} {
    %c0 = arith.constant 0 : index
    %c0_0 = arith.constant 0 : index
    %0 = vector.load %arg1[%c0, %c0_0] : memref<192x256xbf16, #tpu.memory_space<vmem>>, vector<192x256xbf16>
    %c0_1 = arith.constant 0 : index
    %c0_2 = arith.constant 0 : index
    %1 = vector.load %arg2[%c0_1, %c0_2] : memref<256x128xbf16, #tpu.memory_space<vmem>>, vector<256x128xbf16>
    %cst = arith.constant dense<0.000000e+00> : vector<192x128xf32>
    %2 = tpu.matmul %0, %1, %cst {dimension_numbers = #tpu.dot_dimension_numbers<[1], [0], [0], [1], [0, 0, 1, 1], [], []>} : vector<192x256xbf16>, vector<256x128xbf16>, vector<192x128xf32> -> vector<192x128xf32>
    %c0_3 = arith.constant 0 : index
    %c0_4 = arith.constant 0 : index
    %3 = vector.load %arg3[%c0_3, %c0_4] : memref<1x128xf32, #tpu.memory_space<vmem>>, vector<1x128xf32>
    %4 = vector.broadcast %3 : vector<1x128xf32> to vector<192x128xf32>
    %5 = arith.addf %2, %4 : vector<192x128xf32>
    %c0_5 = arith.constant 0 : index
    %c0_6 = arith.constant 0 : index
    %6 = vector.load %arg4[%c0_5, %c0_6] : memref<192x128xf32, #tpu.memory_space<vmem>>, vector<192x128xf32>
    tpu.vector_store %arg4[%c0_5, %c0_6], %5 {strides = array<i32>} : memref<192x128xf32, #tpu.memory_space<vmem>>, vector<192x128xf32>,
    return
  }
  func.func @transform_0(%arg0: i32) -> (i32, i32) {
    %c0_i32 = arith.constant 0 : i32
    %c0_i32_0 = arith.constant 0 : i32
    return %arg0, %c0_i32 : i32, i32
  }
  func.func @transform_1(%arg0: i32) -> (i32, i32) {
    %c0_i32 = arith.constant 0 : i32
    %c0_i32_0 = arith.constant 0 : i32
    %c0_i32_1 = arith.constant 0 : i32
    return %c0_i32, %c0_i32_0 : i32, i32
  }
  func.func @transform_2(%arg0: i32) -> (i32, i32) {
    %c0_i32 = arith.constant 0 : i32
    %c0_i32_0 = arith.constant 0 : i32
    %c0_i32_1 = arith.constant 0 : i32
    return %c0_i32, %c0_i32_0 : i32, i32
  }
  func.func @transform_3(%arg0: i32) -> (i32, i32) {
    %c0_i32 = arith.constant 0 : i32
    %c0_i32_0 = arith.constant 0 : i32
    return %arg0, %c0_i32 : i32, i32
  }
}

module attributes {stable_mosaic.version = 11 : i64} {
  func.func @_mm_dag_kernel(%arg0: i32, %arg1: memref<128x128xbf16, #tpu.memory_space<vmem>>, %arg2: memref<128x128xbf16, #tpu.memory_space<vmem>>, %arg3: memref<1x128xf32, #tpu.memory_space<vmem>>, %arg4: memref<128x128xbf16, #tpu.memory_space<vmem>>, %arg5: memref<1x128xf32, #tpu.memory_space<vmem>>, %arg6: memref<128x128xbf16, #tpu.memory_space<vmem>>, %arg7: memref<128x128xbf16, #tpu.memory_space<vmem>>, %arg8: memref<1x128xf32, #tpu.memory_space<vmem>>, %arg9: memref<128x128xbf16, #tpu.memory_space<vmem>>, %arg10: memref<1x128xf32, #tpu.memory_space<vmem>>, %arg11: memref<128x128xf32, #tpu.memory_space<vmem>>, %arg12: memref<128x128xf32, #tpu.memory_space<vmem>>, %arg13: memref<128x128xf32, #tpu.memory_space<vmem>>) attributes {dimension_semantics = [#tpu.dimension_semantics<parallel>], iteration_bounds = array<i64: 1>, scalar_prefetch = 0 : i64, scratch_operands = 0 : i64, tpu.core_type = #tpu.core_type<tc>, window_params = [{transform_indices = @transform_0, window_bounds = array<i64: 128, 128>}, {pipeline_mode = #tpu.pipeline_mode<synchronous>, transform_indices = @transform_1, window_bounds = array<i64: 128, 128>}, {pipeline_mode = #tpu.pipeline_mode<synchronous>, transform_indices = @transform_2, window_bounds = array<i64: 1, 128>}, {pipeline_mode = #tpu.pipeline_mode<synchronous>, transform_indices = @transform_3, window_bounds = array<i64: 128, 128>}, {pipeline_mode = #tpu.pipeline_mode<synchronous>, transform_indices = @transform_4, window_bounds = array<i64: 1, 128>}, {pipeline_mode = #tpu.pipeline_mode<synchronous>, transform_indices = @transform_5, window_bounds = array<i64: 128, 128>}, {pipeline_mode = #tpu.pipeline_mode<synchronous>, transform_indices = @transform_6, window_bounds = array<i64: 128, 128>}, {pipeline_mode = #tpu.pipeline_mode<synchronous>, transform_indices = @transform_7, window_bounds = array<i64: 1, 128>}, {pipeline_mode = #tpu.pipeline_mode<synchronous>, transform_indices = @transform_8, window_bounds = array<i64: 128, 128>}, {pipeline_mode = #tpu.pipeline_mode<synchronous>, transform_indices = @transform_9, window_bounds = array<i64: 1, 128>}, {transform_indices = @transform_10, window_bounds = array<i64: 128, 128>}, {transform_indices = @transform_11, window_bounds = array<i64: 128, 128>}, {transform_indices = @transform_12, window_bounds = array<i64: 128, 128>}]} {
    %c0 = arith.constant 0 : index
    %c0_0 = arith.constant 0 : index
    %0 = vector.load %arg1[%c0, %c0_0] : memref<128x128xbf16, #tpu.memory_space<vmem>>, vector<128x128xbf16>
    %c0_1 = arith.constant 0 : index
    %c0_2 = arith.constant 0 : index
    %1 = vector.load %arg2[%c0_1, %c0_2] : memref<128x128xbf16, #tpu.memory_space<vmem>>, vector<128x128xbf16>
    %cst = arith.constant dense<0.000000e+00> : vector<128x128xf32>
    %2 = tpu.matmul %0, %1, %cst {dimension_numbers = #tpu.dot_dimension_numbers<[1], [0], [0], [1], [0, 0, 1, 1], [], []>} : vector<128x128xbf16>, vector<128x128xbf16>, vector<128x128xf32> -> vector<128x128xf32>
    %c0_3 = arith.constant 0 : index
    %c0_4 = arith.constant 0 : index
    %3 = vector.load %arg3[%c0_3, %c0_4] : memref<1x128xf32, #tpu.memory_space<vmem>>, vector<1x128xf32>
    %4 = vector.broadcast %3 : vector<1x128xf32> to vector<128x128xf32>
    %5 = arith.addf %2, %4 : vector<128x128xf32>
    %6 = tpu.iota {dimensions = array<i32: 1>} : vector<128x128xi32>
    %c0_i32 = arith.constant 0 : i32
    %7 = vector.broadcast %c0_i32 : i32 to vector<128x128xi32>
    %8 = arith.cmpi sge, %6, %7 : vector<128x128xi32>
    %c2_i32 = arith.constant 2 : i32
    %9 = vector.broadcast %c2_i32 : i32 to vector<128x128xi32>
    %10 = arith.cmpi slt, %6, %9 : vector<128x128xi32>
    %11 = arith.andi %8, %10 : vector<128x128xi1>
    %cst_5 = arith.constant 0.000000e+00 : f32
    %12 = vector.broadcast %cst_5 : f32 to vector<128x128xf32>
    %13 = arith.maximumf %5, %12 : vector<128x128xf32>
    %14 = arith.select %11, %5, %13 : vector<128x128xi1>, vector<128x128xf32>
    %c0_6 = arith.constant 0 : index
    %c0_7 = arith.constant 0 : index
    %15 = vector.load %arg11[%c0_6, %c0_7] : memref<128x128xf32, #tpu.memory_space<vmem>>, vector<128x128xf32>
    tpu.vector_store %arg11[%c0_6, %c0_7], %14 {strides = array<i32>} : memref<128x128xf32, #tpu.memory_space<vmem>>, vector<128x128xf32>,
    %16 = arith.truncf %14 : vector<128x128xf32> to vector<128x128xbf16>
    %c0_8 = arith.constant 0 : index
    %c0_9 = arith.constant 0 : index
    %17 = vector.load %arg4[%c0_8, %c0_9] : memref<128x128xbf16, #tpu.memory_space<vmem>>, vector<128x128xbf16>
    %cst_10 = arith.constant dense<0.000000e+00> : vector<128x128xf32>
    %18 = tpu.matmul %16, %17, %cst_10 {dimension_numbers = #tpu.dot_dimension_numbers<[1], [0], [0], [1], [0, 0, 1, 1], [], []>} : vector<128x128xbf16>, vector<128x128xbf16>, vector<128x128xf32> -> vector<128x128xf32>
    %c0_11 = arith.constant 0 : index
    %c0_12 = arith.constant 0 : index
    %19 = vector.load %arg5[%c0_11, %c0_12] : memref<1x128xf32, #tpu.memory_space<vmem>>, vector<1x128xf32>
    %20 = vector.broadcast %19 : vector<1x128xf32> to vector<128x128xf32>
    %21 = arith.addf %18, %20 : vector<128x128xf32>
    %cst_13 = arith.constant 0.000000e+00 : f32
    %22 = vector.broadcast %cst_13 : f32 to vector<128x128xf32>
    %23 = arith.maximumf %21, %22 : vector<128x128xf32>
    %24 = arith.truncf %23 : vector<128x128xf32> to vector<128x128xbf16>
    %c0_14 = arith.constant 0 : index
    %c0_15 = arith.constant 0 : index
    %25 = vector.load %arg6[%c0_14, %c0_15] : memref<128x128xbf16, #tpu.memory_space<vmem>>, vector<128x128xbf16>
    %cst_16 = arith.constant dense<0.000000e+00> : vector<128x128xf32>
    %26 = tpu.matmul %24, %25, %cst_16 {dimension_numbers = #tpu.dot_dimension_numbers<[1], [0], [0], [1], [0, 0, 1, 1], [], []>} : vector<128x128xbf16>, vector<128x128xbf16>, vector<128x128xf32> -> vector<128x128xf32>
    %c0_17 = arith.constant 0 : index
    %c0_18 = arith.constant 0 : index
    %27 = vector.load %arg7[%c0_17, %c0_18] : memref<128x128xbf16, #tpu.memory_space<vmem>>, vector<128x128xbf16>
    %cst_19 = arith.constant dense<0.000000e+00> : vector<128x128xf32>
    %28 = tpu.matmul %0, %27, %cst_19 {dimension_numbers = #tpu.dot_dimension_numbers<[1], [0], [0], [1], [0, 0, 1, 1], [], []>} : vector<128x128xbf16>, vector<128x128xbf16>, vector<128x128xf32> -> vector<128x128xf32>
    %29 = arith.addf %26, %28 : vector<128x128xf32>
    %c0_20 = arith.constant 0 : index
    %c0_21 = arith.constant 0 : index
    %30 = vector.load %arg8[%c0_20, %c0_21] : memref<1x128xf32, #tpu.memory_space<vmem>>, vector<1x128xf32>
    %31 = vector.broadcast %30 : vector<1x128xf32> to vector<128x128xf32>
    %32 = arith.addf %29, %31 : vector<128x128xf32>
    %33 = tpu.iota {dimensions = array<i32: 1>} : vector<128x128xi32>
    %c0_i32_22 = arith.constant 0 : i32
    %34 = vector.broadcast %c0_i32_22 : i32 to vector<128x128xi32>
    %35 = arith.cmpi sge, %33, %34 : vector<128x128xi32>
    %c8_i32 = arith.constant 8 : i32
    %36 = vector.broadcast %c8_i32 : i32 to vector<128x128xi32>
    %37 = arith.cmpi slt, %33, %36 : vector<128x128xi32>
    %38 = arith.andi %35, %37 : vector<128x128xi1>
    %cst_23 = arith.constant 0.000000e+00 : f32
    %39 = vector.broadcast %cst_23 : f32 to vector<128x128xf32>
    %40 = arith.maximumf %32, %39 : vector<128x128xf32>
    %41 = arith.select %38, %32, %40 : vector<128x128xi1>, vector<128x128xf32>
    %c0_24 = arith.constant 0 : index
    %c0_25 = arith.constant 0 : index
    %42 = vector.load %arg12[%c0_24, %c0_25] : memref<128x128xf32, #tpu.memory_space<vmem>>, vector<128x128xf32>
    tpu.vector_store %arg12[%c0_24, %c0_25], %41 {strides = array<i32>} : memref<128x128xf32, #tpu.memory_space<vmem>>, vector<128x128xf32>,
    %43 = arith.truncf %41 : vector<128x128xf32> to vector<128x128xbf16>
    %c0_26 = arith.constant 0 : index
    %c0_27 = arith.constant 0 : index
    %44 = vector.load %arg9[%c0_26, %c0_27] : memref<128x128xbf16, #tpu.memory_space<vmem>>, vector<128x128xbf16>
    %cst_28 = arith.constant dense<0.000000e+00> : vector<128x128xf32>
    %45 = tpu.matmul %43, %44, %cst_28 {dimension_numbers = #tpu.dot_dimension_numbers<[1], [0], [0], [1], [0, 0, 1, 1], [], []>} : vector<128x128xbf16>, vector<128x128xbf16>, vector<128x128xf32> -> vector<128x128xf32>
    %c0_29 = arith.constant 0 : index
    %c0_30 = arith.constant 0 : index
    %46 = vector.load %arg10[%c0_29, %c0_30] : memref<1x128xf32, #tpu.memory_space<vmem>>, vector<1x128xf32>
    %47 = vector.broadcast %46 : vector<1x128xf32> to vector<128x128xf32>
    %48 = arith.addf %45, %47 : vector<128x128xf32>
    %c0_31 = arith.constant 0 : index
    %c0_32 = arith.constant 0 : index
    %49 = vector.load %arg13[%c0_31, %c0_32] : memref<128x128xf32, #tpu.memory_space<vmem>>, vector<128x128xf32>
    tpu.vector_store %arg13[%c0_31, %c0_32], %48 {strides = array<i32>} : memref<128x128xf32, #tpu.memory_space<vmem>>, vector<128x128xf32>,
    return
  }
  func.func @transform_0(%arg0: i32) -> (i32, i32) {
    %c0_i32 = arith.constant 0 : i32
    %c0_i32_0 = arith.constant 0 : i32
    return %arg0, %c0_i32 : i32, i32
  }
  func.func @transform_1(%arg0: i32) -> (i32, i32) {
    %c0_i32 = arith.constant 0 : i32
    %c0_i32_0 = arith.constant 0 : i32
    %c0_i32_1 = arith.constant 0 : i32
    return %c0_i32, %c0_i32_0 : i32, i32
  }
  func.func @transform_2(%arg0: i32) -> (i32, i32) {
    %c0_i32 = arith.constant 0 : i32
    %c0_i32_0 = arith.constant 0 : i32
    %c0_i32_1 = arith.constant 0 : i32
    return %c0_i32, %c0_i32_0 : i32, i32
  }
  func.func @transform_3(%arg0: i32) -> (i32, i32) {
    %c0_i32 = arith.constant 0 : i32
    %c0_i32_0 = arith.constant 0 : i32
    %c0_i32_1 = arith.constant 0 : i32
    return %c0_i32, %c0_i32_0 : i32, i32
  }
  func.func @transform_4(%arg0: i32) -> (i32, i32) {
    %c0_i32 = arith.constant 0 : i32
    %c0_i32_0 = arith.constant 0 : i32
    %c0_i32_1 = arith.constant 0 : i32
    return %c0_i32, %c0_i32_0 : i32, i32
  }
  func.func @transform_5(%arg0: i32) -> (i32, i32) {
    %c0_i32 = arith.constant 0 : i32
    %c0_i32_0 = arith.constant 0 : i32
    %c0_i32_1 = arith.constant 0 : i32
    return %c0_i32, %c0_i32_0 : i32, i32
  }
  func.func @transform_6(%arg0: i32) -> (i32, i32) {
    %c0_i32 = arith.constant 0 : i32
    %c0_i32_0 = arith.constant 0 : i32
    %c0_i32_1 = arith.constant 0 : i32
    return %c0_i32, %c0_i32_0 : i32, i32
  }
  func.func @transform_7(%arg0: i32) -> (i32, i32) {
    %c0_i32 = arith.constant 0 : i32
    %c0_i32_0 = arith.constant 0 : i32
    %c0_i32_1 = arith.constant 0 : i32
    return %c0_i32, %c0_i32_0 : i32, i32
  }
  func.func @transform_8(%arg0: i32) -> (i32, i32) {
    %c0_i32 = arith.constant 0 : i32
    %c0_i32_0 = arith.constant 0 : i32
    %c0_i32_1 = arith.constant 0 : i32
    return %c0_i32, %c0_i32_0 : i32, i32
  }
  func.func @transform_9(%arg0: i32) -> (i32, i32) {
    %c0_i32 = arith.constant 0 : i32
    %c0_i32_0 = arith.constant 0 : i32
    %c0_i32_1 = arith.constant 0 : i32
    return %c0_i32, %c0_i32_0 : i32, i32
  }
  func.func @transform_10(%arg0: i32) -> (i32, i32) {
    %c0_i32 = arith.constant 0 : i32
    %c0_i32_0 = arith.constant 0 : i32
    return %arg0, %c0_i32 : i32, i32
  }
  func.func @transform_11(%arg0: i32) -> (i32, i32) {
    %c0_i32 = arith.constant 0 : i32
    %c0_i32_0 = arith.constant 0 : i32
    return %arg0, %c0_i32 : i32, i32
  }
  func.func @transform_12(%arg0: i32) -> (i32, i32) {
    %c0_i32 = arith.constant 0 : i32
    %c0_i32_0 = arith.constant 0 : i32
    return %arg0, %c0_i32 : i32, i32
  }
}

module attributes {stable_mosaic.version = 11 : i64} {
  func.func @_resize_kernel(%arg0: i32, %arg1: memref<1024x64xbf16, #tpu.memory_space<vmem>>, %arg2: memref<1x64x128xbf16, #tpu.memory_space<vmem>>, %arg3: memref<1024x16xbf16, #tpu.memory_space<vmem>>, %arg4: memref<1x16x128xbf16, #tpu.memory_space<vmem>>, %arg5: memref<1x1024x128xf32, #tpu.memory_space<vmem>>, %arg6: memref<1x1024x128xf32, #tpu.memory_space<vmem>>) attributes {dimension_semantics = [#tpu.dimension_semantics<parallel>], iteration_bounds = array<i64: 2>, scalar_prefetch = 0 : i64, scratch_operands = 0 : i64, tpu.core_type = #tpu.core_type<tc>, window_params = [{pipeline_mode = #tpu.pipeline_mode<synchronous>, transform_indices = @transform_0, window_bounds = array<i64: 1024, 64>}, {transform_indices = @transform_1, window_bounds = array<i64: 1, 64, 128>}, {pipeline_mode = #tpu.pipeline_mode<synchronous>, transform_indices = @transform_2, window_bounds = array<i64: 1024, 16>}, {transform_indices = @transform_3, window_bounds = array<i64: 1, 16, 128>}, {transform_indices = @transform_4, window_bounds = array<i64: 1, 1024, 128>}, {transform_indices = @transform_5, window_bounds = array<i64: 1, 1024, 128>}]} {
    %c0 = arith.constant 0 : index
    %c0_0 = arith.constant 0 : index
    %0 = vector.load %arg1[%c0, %c0_0] : memref<1024x64xbf16, #tpu.memory_space<vmem>>, vector<1024x64xbf16>
    %c0_1 = arith.constant 0 : index
    %c0_2 = arith.constant 0 : index
    %c0_3 = arith.constant 0 : index
    %1 = vector.load %arg2[%c0_1, %c0_2, %c0_3] : memref<1x64x128xbf16, #tpu.memory_space<vmem>>, vector<1x64x128xbf16>
    %2 = vector.shape_cast %1 : vector<1x64x128xbf16> to vector<64x128xbf16>
    %cst = arith.constant dense<0.000000e+00> : vector<1024x128xf32>
    %3 = tpu.matmul %0, %2, %cst {dimension_numbers = #tpu.dot_dimension_numbers<[1], [0], [0], [1], [0, 0, 1, 1], [], []>} : vector<1024x64xbf16>, vector<64x128xbf16>, vector<1024x128xf32> -> vector<1024x128xf32>
    %c0_4 = arith.constant 0 : index
    %c0_5 = arith.constant 0 : index
    %c0_6 = arith.constant 0 : index
    %4 = vector.load %arg5[%c0_4, %c0_5, %c0_6] : memref<1x1024x128xf32, #tpu.memory_space<vmem>>, vector<1x1024x128xf32>
    %5 = vector.shape_cast %4 : vector<1x1024x128xf32> to vector<1024x128xf32>
    %6 = vector.shape_cast %3 : vector<1024x128xf32> to vector<1x1024x128xf32>
    tpu.vector_store %arg5[%c0_4, %c0_5, %c0_6], %6 {strides = array<i32>} : memref<1x1024x128xf32, #tpu.memory_space<vmem>>, vector<1x1024x128xf32>,
    %c0_7 = arith.constant 0 : index
    %c0_8 = arith.constant 0 : index
    %7 = vector.load %arg3[%c0_7, %c0_8] : memref<1024x16xbf16, #tpu.memory_space<vmem>>, vector<1024x16xbf16>
    %c0_9 = arith.constant 0 : index
    %c0_10 = arith.constant 0 : index
    %c0_11 = arith.constant 0 : index
    %8 = vector.load %arg4[%c0_9, %c0_10, %c0_11] : memref<1x16x128xbf16, #tpu.memory_space<vmem>>, vector<1x16x128xbf16>
    %9 = vector.shape_cast %8 : vector<1x16x128xbf16> to vector<16x128xbf16>
    %cst_12 = arith.constant dense<0.000000e+00> : vector<1024x128xf32>
    %10 = tpu.matmul %7, %9, %cst_12 {dimension_numbers = #tpu.dot_dimension_numbers<[1], [0], [0], [1], [0, 0, 1, 1], [], []>} : vector<1024x16xbf16>, vector<16x128xbf16>, vector<1024x128xf32> -> vector<1024x128xf32>
    %c0_13 = arith.constant 0 : index
    %c0_14 = arith.constant 0 : index
    %c0_15 = arith.constant 0 : index
    %11 = vector.load %arg6[%c0_13, %c0_14, %c0_15] : memref<1x1024x128xf32, #tpu.memory_space<vmem>>, vector<1x1024x128xf32>
    %12 = vector.shape_cast %11 : vector<1x1024x128xf32> to vector<1024x128xf32>
    %13 = vector.shape_cast %10 : vector<1024x128xf32> to vector<1x1024x128xf32>
    tpu.vector_store %arg6[%c0_13, %c0_14, %c0_15], %13 {strides = array<i32>} : memref<1x1024x128xf32, #tpu.memory_space<vmem>>, vector<1x1024x128xf32>,
    return
  }
  func.func @transform_0(%arg0: i32) -> (i32, i32) {
    %c0_i32 = arith.constant 0 : i32
    %c0_i32_0 = arith.constant 0 : i32
    %c0_i32_1 = arith.constant 0 : i32
    return %c0_i32, %c0_i32_0 : i32, i32
  }
  func.func @transform_1(%arg0: i32) -> (i32, i32, i32) {
    %c0_i32 = arith.constant 0 : i32
    %c0_i32_0 = arith.constant 0 : i32
    %c0_i32_1 = arith.constant 0 : i32
    return %arg0, %c0_i32, %c0_i32_0 : i32, i32, i32
  }
  func.func @transform_2(%arg0: i32) -> (i32, i32) {
    %c0_i32 = arith.constant 0 : i32
    %c0_i32_0 = arith.constant 0 : i32
    %c0_i32_1 = arith.constant 0 : i32
    return %c0_i32, %c0_i32_0 : i32, i32
  }
  func.func @transform_3(%arg0: i32) -> (i32, i32, i32) {
    %c0_i32 = arith.constant 0 : i32
    %c0_i32_0 = arith.constant 0 : i32
    %c0_i32_1 = arith.constant 0 : i32
    return %arg0, %c0_i32, %c0_i32_0 : i32, i32, i32
  }
  func.func @transform_4(%arg0: i32) -> (i32, i32, i32) {
    %c0_i32 = arith.constant 0 : i32
    %c0_i32_0 = arith.constant 0 : i32
    %c0_i32_1 = arith.constant 0 : i32
    return %arg0, %c0_i32, %c0_i32_0 : i32, i32, i32
  }
  func.func @transform_5(%arg0: i32) -> (i32, i32, i32) {
    %c0_i32 = arith.constant 0 : i32
    %c0_i32_0 = arith.constant 0 : i32
    %c0_i32_1 = arith.constant 0 : i32
    return %arg0, %c0_i32, %c0_i32_0 : i32, i32, i32
  }
}

</mosaic_0001>

<llo_original>
// kernel: forward.9
$region0: #{forward.9}
  #allocation0 [shape = 'u32[]', space=smem, size = 0x4, offset = 0x4, fixed_abs, tag = 'smem constant byte address 0x4 - core index']
  #allocation1 [shape = 'u32[144,128]{1,0:T(1,128)}', space=vmem, size = 0x12000, scoped, tag = 'internal scratch']
  %s0 = inlined_call_operand.vmem [shape: bf16[128,128], index: 0, kind: input, shape index: {}]
  %s1 = inlined_call_operand.hbm [shape: bf16[128,128], index: 1, kind: input, shape index: {}]
  %s2 = inlined_call_operand.hbm [shape: f32[1,128], index: 2, kind: input, shape index: {}]
  %s3 = inlined_call_operand.hbm [shape: bf16[128,128], index: 3, kind: input, shape index: {}]
  %s4 = inlined_call_operand.hbm [shape: f32[1,128], index: 4, kind: input, shape index: {}]
  %s5 = inlined_call_operand.vmem [shape: f32[128,128], index: 5, kind: output, shape index: {0}]
  %s6 = inlined_call_operand.vmem [shape: f32[128,128], index: 6, kind: output, shape index: {1}]
  %7 = xla_tuple %s5, %s6
  %s8 = sld [smem:[#allocation0]]
  $region54: #{forward.9} parent=0
    _
  %s10 = ssub.s32 1, %s8
  %s11 = scalar_select 0, %s10, %s8
  $region1: #{forward.9} parent=0
    #allocation2 [shape = 'u8[32768]{0}', space=vmem, size = 0x8000, scoped, tag = 'input window, operand 1, single buffered']
    #allocation3 [shape = 's32[1]{0}', space=sflag, size = 0x4, scoped, tag = 'scoped memory for forward.9']
    #allocation4 [shape = 'u8[512]{0}', space=vmem, size = 0x400, scoped, tag = 'input window, operand 2, single buffered']
    #allocation5 [shape = 's32[1]{0}', space=sflag, size = 0x4, scoped, tag = 'scoped memory for forward.9']
    #allocation6 [shape = 'u8[32768]{0}', space=vmem, size = 0x8000, scoped, tag = 'input window, operand 3, single buffered']
    #allocation7 [shape = 'u8[512]{0}', space=vmem, size = 0x400, scoped, tag = 'input window, operand 4, single buffered']
    #allocation8 [shape = 's32[1]{0}', space=sflag, size = 0x4, scoped, tag = 'scoped memory for forward.9']
    %12 = vsyncpa [#allocation3], 0
    %13 = vsyncpa [#allocation5], 0
    %14 = vsyncpa [#allocation8], 0
    // Predicated region
    $region2: #{forward.9} parent=1 // pred_check
      _
    $region3: #{forward.9} parent=1 // pred_check_branch
      %16 = sbr.rel (0) target = $region5
    $region4: #{forward.9} parent=1 // pred_region
      _
    $region5: #{forward.9} parent=1 // pred_fallthru
      _
    // Predicated region
    $region6: #{forward.9} parent=1 // pred_check
      _
    $region7: #{forward.9} parent=1 // pred_check_branch
      %18 = sbr.rel (0) target = $region9
    $region8: #{forward.9} parent=1 // pred_region
      %s20 = ssub.s32 1024, 1024
      %21 = vsyncadd [#allocation3], %s20
      %s22 = sshll.u32 [#allocation2], 4
      %s23 = int_to_ptr.vmem [resolvable:$true] %s22
      %28 = dma.hbm_to_vmem [thread:$0]  %s1, 1024, %s23, [#allocation3], 64, 64, 4
    $region9: #{forward.9} parent=1 // pred_fallthru
      _
    // Predicated region
    $region10: #{forward.9} parent=1 // pred_check
      _
    $region11: #{forward.9} parent=1 // pred_check_branch
      %30 = sbr.rel (0) target = $region13
    $region12: #{forward.9} parent=1 // pred_region
      %s32 = ssub.s32 16, 16
      %33 = vsyncadd [#allocation5], %s32
      %s35 = sshll.u32 [#allocation4], 4
      %s36 = int_to_ptr.vmem [resolvable:$true] %s35
      %38 = dma.hbm_to_vmem [thread:$0]  %s2, 16, %s36, [#allocation5]
    $region13: #{forward.9} parent=1 // pred_fallthru
      _
    // Predicated region
    $region14: #{forward.9} parent=1 // pred_check
      _
    $region15: #{forward.9} parent=1 // pred_check_branch
      %40 = sbr.rel (0) target = $region17
    $region16: #{forward.9} parent=1 // pred_region
      %s42 = ssub.s32 1024, 1024
      %43 = vsyncadd [#allocation5], %s42
      %s44 = sshll.u32 [#allocation6], 4
      %s45 = int_to_ptr.vmem [resolvable:$true] %s44
      %50 = dma.hbm_to_vmem [thread:$0]  %s3, 1024, %s45, [#allocation5], 64, 64, 4
    $region17: #{forward.9} parent=1 // pred_fallthru
      _
    // Predicated region
    $region18: #{forward.9} parent=1 // pred_check
      _
    $region19: #{forward.9} parent=1 // pred_check_branch
      %52 = sbr.rel (0) target = $region21
    $region20: #{forward.9} parent=1 // pred_region
      %s54 = ssub.s32 16, 16
      %55 = vsyncadd [#allocation8], %s54
      %s57 = sshll.u32 [#allocation7], 4
      %s58 = int_to_ptr.vmem [resolvable:$true] %s57
      %60 = dma.hbm_to_vmem [thread:$0]  %s4, 16, %s58, [#allocation8]
    $region21: #{forward.9} parent=1 // pred_fallthru
      _
    // Predicated region
    $region22: #{forward.9} parent=1 // pred_check
      _
    $region23: #{forward.9} parent=1 // pred_check_branch
      %62 = sbr.rel (0) target = $region25
    $region24: #{forward.9} parent=1 // pred_region
      %63 = dma.done [#allocation3], 1024
    $region25: #{forward.9} parent=1 // pred_fallthru
      _
    // Predicated region
    $region26: #{forward.9} parent=1 // pred_check
      _
    $region27: #{forward.9} parent=1 // pred_check_branch
      %65 = sbr.rel (0) target = $region29
    $region28: #{forward.9} parent=1 // pred_region
      %66 = dma.done [#allocation5], 16
    $region29: #{forward.9} parent=1 // pred_fallthru
      _
    // Predicated region
    $region30: #{forward.9} parent=1 // pred_check
      _
    $region31: #{forward.9} parent=1 // pred_check_branch
      %68 = sbr.rel (0) target = $region33
    $region32: #{forward.9} parent=1 // pred_region
      %69 = dma.done [#allocation5], 1024
    $region33: #{forward.9} parent=1 // pred_fallthru
      _
    // Predicated region
    $region34: #{forward.9} parent=1 // pred_check
      _
    $region35: #{forward.9} parent=1 // pred_check_branch
      %71 = sbr.rel (0) target = $region37
    $region36: #{forward.9} parent=1 // pred_region
      %72 = dma.done [#allocation8], 16
    $region37: #{forward.9} parent=1 // pred_fallthru
      _
    %v74 = vld [vmem:[%s0] sm:$0xf]
    %v75 = vld [vmem:[%s0 + $0x4] sm:$0xf]
    %v76 = vld [vmem:[%s0 + $0x8] sm:$0xf]
    %v77 = vld [vmem:[%s0 + $0xc] sm:$0xf]
    %v78 = vld [vmem:[%s0 + $0x10] sm:$0xf]
    %v79 = vld [vmem:[%s0 + $0x14] sm:$0xf]
    %v80 = vld [vmem:[%s0 + $0x18] sm:$0xf]
    %v81 = vld [vmem:[%s0 + $0x1c] sm:$0xf]
    %v82 = vld [vmem:[%s0 + $0x20] sm:$0xf]
    %v83 = vld [vmem:[%s0 + $0x24] sm:$0xf]
    %v84 = vld [vmem:[%s0 + $0x28] sm:$0xf]
    %v85 = vld [vmem:[%s0 + $0x2c] sm:$0xf]
    %v86 = vld [vmem:[%s0 + $0x30] sm:$0xf]
    %v87 = vld [vmem:[%s0 + $0x34] sm:$0xf]
    %v88 = vld [vmem:[%s0 + $0x38] sm:$0xf]
    %v89 = vld [vmem:[%s0 + $0x3c] sm:$0xf]
    %v90 = vld [vmem:[#allocation2] sm:$0xf]
    %v91 = vld [vmem:[#allocation2 + $0x4] sm:$0xf]
    %v92 = vld [vmem:[#allocation2 + $0x8] sm:$0xf]
    %v93 = vld [vmem:[#allocation2 + $0xc] sm:$0xf]
    %v94 = vld [vmem:[#allocation2 + $0x10] sm:$0xf]
    %v95 = vld [vmem:[#allocation2 + $0x14] sm:$0xf]
    %v96 = vld [vmem:[#allocation2 + $0x18] sm:$0xf]
    %v97 = vld [vmem:[#allocation2 + $0x1c] sm:$0xf]
    %v98 = vld [vmem:[#allocation2 + $0x20] sm:$0xf]
    %v99 = vld [vmem:[#allocation2 + $0x24] sm:$0xf]
    %v100 = vld [vmem:[#allocation2 + $0x28] sm:$0xf]
    %v101 = vld [vmem:[#allocation2 + $0x2c] sm:$0xf]
    %v102 = vld [vmem:[#allocation2 + $0x30] sm:$0xf]
    %v103 = vld [vmem:[#allocation2 + $0x34] sm:$0xf]
    %v104 = vld [vmem:[#allocation2 + $0x38] sm:$0xf]
    %v105 = vld [vmem:[#allocation2 + $0x3c] sm:$0xf]
    %v106 = vld [vmem:[#allocation4] sm:$0x1]
    %v108 = vlaneseq
    %v109 = vshrl.u32 %v108, 7
    %v110 = vsub.s32 0, %v109
    %v111 = vrot.slane %v106, %v110
    %v129 = vunpack.c.l.b16 %v74
    %v130 = vunpack.c.l.b16 %v75
    %v131 = vunpack.c.l.b16 %v76
    %v132 = vunpack.c.l.b16 %v77
    %v133 = vunpack.c.l.b16 %v78
    %v134 = vunpack.c.l.b16 %v79
    %v135 = vunpack.c.l.b16 %v80
    %v136 = vunpack.c.l.b16 %v81
    %v137 = vunpack.c.l.b16 %v82
    %v138 = vunpack.c.l.b16 %v83
    %v139 = vunpack.c.l.b16 %v84
    %v140 = vunpack.c.l.b16 %v85
    %v141 = vunpack.c.l.b16 %v86
    %v142 = vunpack.c.l.b16 %v87
    %v143 = vunpack.c.l.b16 %v88
    %v144 = vunpack.c.l.b16 %v89
    %v145 = vpack.c.b16 %v130, %v129
    %v146 = vpack.c.b16 %v132, %v131
    %v147 = vpack.c.b16 %v134, %v133
    %v148 = vpack.c.b16 %v136, %v135
    %v149 = vpack.c.b16 %v138, %v137
    %v150 = vpack.c.b16 %v140, %v139
    %v151 = vpack.c.b16 %v142, %v141
    %v152 = vpack.c.b16 %v144, %v143
    %v177 = vunpack.c.l.b16 %v90
    %v178 = vunpack.c.l.b16 %v91
    %v179 = vunpack.c.l.b16 %v92
    %v180 = vunpack.c.l.b16 %v93
    %v181 = vunpack.c.l.b16 %v94
    %v182 = vunpack.c.l.b16 %v95
    %v183 = vunpack.c.l.b16 %v96
    %v184 = vunpack.c.l.b16 %v97
    %v185 = vunpack.c.l.b16 %v98
    %v186 = vunpack.c.l.b16 %v99
    %v187 = vunpack.c.l.b16 %v100
    %v188 = vunpack.c.l.b16 %v101
    %v189 = vunpack.c.l.b16 %v102
    %v190 = vunpack.c.l.b16 %v103
    %v191 = vunpack.c.l.b16 %v104
    %v192 = vunpack.c.l.b16 %v105
    %v193 = vpack.c.b16 %v178, %v177
    %v194 = vpack.c.b16 %v180, %v179
    %v195 = vpack.c.b16 %v182, %v181
    %v196 = vpack.c.b16 %v184, %v183
    %v197 = vpack.c.b16 %v186, %v185
    %v198 = vpack.c.b16 %v188, %v187
    %v199 = vpack.c.b16 %v190, %v189
    %v200 = vpack.c.b16 %v192, %v191
    %209 = vmatprep.subr.bf16.mxu0 0
    %210 = vmatpush1.bf16.msra.mxu0 %v200
    %211 = vmatprep.subr.bf16.mxu0 0
    %212 = vmatpush1.bf16.msra.mxu0 %v199
    %213 = vmatprep.subr.bf16.mxu0 0
    %214 = vmatpush1.bf16.msra.mxu0 %v198
    %215 = vmatprep.subr.bf16.mxu0 0
    %216 = vmatpush1.bf16.msra.mxu0 %v197
    %217 = vmatprep.subr.bf16.mxu0 0
    %218 = vmatpush1.bf16.msra.mxu0 %v196
    %219 = vmatprep.subr.bf16.mxu0 0
    %220 = vmatpush1.bf16.msra.mxu0 %v195
    %221 = vmatprep.subr.bf16.mxu0 0
    %222 = vmatpush1.bf16.msra.mxu0 %v194
    %223 = vmatprep.subr.bf16.mxu0 0
    %224 = vmatpush1.bf16.msra.mxu0 %v193
    %225 = vmatprep.subr.bf16.mxu0 0
    %226 = vmatpush2.bf16.msra.mxu0 0
    %227 = vmatprep.subr.bf16.mxu0 0
    %228 = vmatpush2.bf16.msra.mxu0 0
    %229 = vmatprep.subr.bf16.mxu0 0
    %230 = vmatpush2.bf16.msra.mxu0 0
    %231 = vmatprep.subr.bf16.mxu0 0
    %232 = vmatpush2.bf16.msra.mxu0 0
    %233 = vmatprep.subr.bf16.mxu0 0
    %234 = vmatpush2.bf16.msra.mxu0 0
    %235 = vmatprep.subr.bf16.mxu0 0
    %236 = vmatpush2.bf16.msra.mxu0 0
    %237 = vmatprep.subr.bf16.mxu0 0
    %238 = vmatpush2.bf16.msra.mxu0 0
    %239 = vmatprep.subr.bf16.mxu0 0
    %240 = vmatpush2.bf16.msra.mxu0 0
    %241 = vmatprep.mubr.bf16.mxu0 0
    %242 = vmatmul.mubr.bf16.gmra.mxu0 %v145
    %v243 = vpop.f32.mrf.mxu0
    %v244 = vadd.f32 %v111, %v243
    %v245 = vpop.f32.mrf.mxu0
    %v246 = vpop.f32.mrf.mxu0
    %v247 = vadd.f32 %v111, %v246
    %v248 = vpop.f32.mrf.mxu0
    %249 = vmatprep.mubr.bf16.mxu0 0
    %250 = vmatmul.mubr.bf16.gmra.mxu0 %v146
    %v251 = vpop.f32.mrf.mxu0
    %v252 = vadd.f32 %v111, %v251
    %v253 = vpop.f32.mrf.mxu0
    %v254 = vpop.f32.mrf.mxu0
    %v255 = vadd.f32 %v111, %v254
    %v256 = vpop.f32.mrf.mxu0
    %257 = vmatprep.mubr.bf16.mxu0 0
    %258 = vmatmul.mubr.bf16.gmra.mxu0 %v147
    %v259 = vpop.f32.mrf.mxu0
    %v260 = vadd.f32 %v111, %v259
    %v261 = vpop.f32.mrf.mxu0
    %v262 = vpop.f32.mrf.mxu0
    %v263 = vadd.f32 %v111, %v262
    %v264 = vpop.f32.mrf.mxu0
    %265 = vmatprep.mubr.bf16.mxu0 0
    %266 = vmatmul.mubr.bf16.gmra.mxu0 %v148
    %v267 = vpop.f32.mrf.mxu0
    %v268 = vadd.f32 %v111, %v267
    %v269 = vpop.f32.mrf.mxu0
    %v270 = vpop.f32.mrf.mxu0
    %v271 = vadd.f32 %v111, %v270
    %v272 = vpop.f32.mrf.mxu0
    %273 = vmatprep.mubr.bf16.mxu0 0
    %274 = vmatmul.mubr.bf16.gmra.mxu0 %v149
    %v275 = vpop.f32.mrf.mxu0
    %v276 = vadd.f32 %v111, %v275
    %v277 = vpop.f32.mrf.mxu0
    %v278 = vpop.f32.mrf.mxu0
    %v279 = vadd.f32 %v111, %v278
    %v280 = vpop.f32.mrf.mxu0
    %281 = vmatprep.mubr.bf16.mxu0 0
    %282 = vmatmul.mubr.bf16.gmra.mxu0 %v150
    %v283 = vpop.f32.mrf.mxu0
    %v284 = vadd.f32 %v111, %v283
    %v285 = vpop.f32.mrf.mxu0
    %v286 = vpop.f32.mrf.mxu0
    %v287 = vadd.f32 %v111, %v286
    %v288 = vpop.f32.mrf.mxu0
    %289 = vmatprep.mubr.bf16.mxu0 0
    %290 = vmatmul.mubr.bf16.gmra.mxu0 %v151
    %v291 = vpop.f32.mrf.mxu0
    %v292 = vadd.f32 %v111, %v291
    %v293 = vpop.f32.mrf.mxu0
    %v294 = vpop.f32.mrf.mxu0
    %v295 = vadd.f32 %v111, %v294
    %v296 = vpop.f32.mrf.mxu0
    %297 = vmatprep.mubr.bf16.mxu0 0
    %298 = vmatmul.mubr.bf16.gmra.mxu0 %v152
    %v299 = vpop.f32.mrf.mxu0
    %v300 = vadd.f32 %v111, %v299
    %v301 = vpop.f32.mrf.mxu0
    %v302 = vpop.f32.mrf.mxu0
    %v303 = vadd.f32 %v111, %v302
    %v304 = vpop.f32.mrf.mxu0
    %305 = vdwg.mxu0
    %v306 = vmax.f32 %v244, 0.0
    %v307 = vmax.f32 %v247, 0.0
    %v308 = vmax.f32 %v252, 0.0
    %v309 = vmax.f32 %v255, 0.0
    %v310 = vmax.f32 %v260, 0.0
    %v311 = vmax.f32 %v263, 0.0
    %v312 = vmax.f32 %v268, 0.0
    %v313 = vmax.f32 %v271, 0.0
    %v314 = vmax.f32 %v276, 0.0
    %v315 = vmax.f32 %v279, 0.0
    %v316 = vmax.f32 %v284, 0.0
    %v317 = vmax.f32 %v287, 0.0
    %v318 = vmax.f32 %v292, 0.0
    %v319 = vmax.f32 %v295, 0.0
    %v320 = vmax.f32 %v300, 0.0
    %v321 = vmax.f32 %v303, 0.0
    %322 = vst [vmem:[%s5] sm:$0xff] %v306
    %323 = vst [vmem:[%s5 + $0x8] sm:$0xff] %v307
    %324 = vst [vmem:[%s5 + $0x10] sm:$0xff] %v308
    %325 = vst [vmem:[%s5 + $0x18] sm:$0xff] %v309
    %326 = vst [vmem:[%s5 + $0x20] sm:$0xff] %v310
    %327 = vst [vmem:[%s5 + $0x28] sm:$0xff] %v311
    %328 = vst [vmem:[%s5 + $0x30] sm:$0xff] %v312
    %329 = vst [vmem:[%s5 + $0x38] sm:$0xff] %v313
    %330 = vst [vmem:[%s5 + $0x40] sm:$0xff] %v314
    %331 = vst [vmem:[%s5 + $0x48] sm:$0xff] %v315
    %332 = vst [vmem:[%s5 + $0x50] sm:$0xff] %v316
    %333 = vst [vmem:[%s5 + $0x58] sm:$0xff] %v317
    %334 = vst [vmem:[%s5 + $0x60] sm:$0xff] %v318
    %335 = vst [vmem:[%s5 + $0x68] sm:$0xff] %v319
    %336 = vst [vmem:[%s5 + $0x70] sm:$0xff] %v320
    %337 = vst [vmem:[%s5 + $0x78] sm:$0xff] %v321
    %v338 = vpack.c.bf16 %v307, %v306
    %v339 = vpack.c.bf16 %v309, %v308
    %v340 = vpack.c.bf16 %v311, %v310
    %v341 = vpack.c.bf16 %v313, %v312
    %v342 = vpack.c.bf16 %v315, %v314
    %v343 = vpack.c.bf16 %v317, %v316
    %v344 = vpack.c.bf16 %v319, %v318
    %v345 = vpack.c.bf16 %v321, %v320
    %v346 = vld [vmem:[#allocation6] sm:$0xf]
    %v347 = vld [vmem:[#allocation6 + $0x4] sm:$0xf]
    %v348 = vld [vmem:[#allocation6 + $0x8] sm:$0xf]
    %v349 = vld [vmem:[#allocation6 + $0xc] sm:$0xf]
    %v350 = vld [vmem:[#allocation6 + $0x10] sm:$0xf]
    %v351 = vld [vmem:[#allocation6 + $0x14] sm:$0xf]
    %v352 = vld [vmem:[#allocation6 + $0x18] sm:$0xf]
    %v353 = vld [vmem:[#allocation6 + $0x1c] sm:$0xf]
    %v354 = vld [vmem:[#allocation6 + $0x20] sm:$0xf]
    %v355 = vld [vmem:[#allocation6 + $0x24] sm:$0xf]
    %v356 = vld [vmem:[#allocation6 + $0x28] sm:$0xf]
    %v357 = vld [vmem:[#allocation6 + $0x2c] sm:$0xf]
    %v358 = vld [vmem:[#allocation6 + $0x30] sm:$0xf]
    %v359 = vld [vmem:[#allocation6 + $0x34] sm:$0xf]
    %v360 = vld [vmem:[#allocation6 + $0x38] sm:$0xf]
    %v361 = vld [vmem:[#allocation6 + $0x3c] sm:$0xf]
    %v362 = vld [vmem:[#allocation7] sm:$0x1]
    %v364 = vlaneseq
    %v365 = vshrl.u32 %v364, 7
    %v366 = vsub.s32 0, %v365
    %v367 = vrot.slane %v362, %v366
    %v385 = vunpack.c.l.b16 %v346
    %v386 = vunpack.c.l.b16 %v347
    %v387 = vunpack.c.l.b16 %v348
    %v388 = vunpack.c.l.b16 %v349
    %v389 = vunpack.c.l.b16 %v350
    %v390 = vunpack.c.l.b16 %v351
    %v391 = vunpack.c.l.b16 %v352
    %v392 = vunpack.c.l.b16 %v353
    %v393 = vunpack.c.l.b16 %v354
    %v394 = vunpack.c.l.b16 %v355
    %v395 = vunpack.c.l.b16 %v356
    %v396 = vunpack.c.l.b16 %v357
    %v397 = vunpack.c.l.b16 %v358
    %v398 = vunpack.c.l.b16 %v359
    %v399 = vunpack.c.l.b16 %v360
    %v400 = vunpack.c.l.b16 %v361
    %v401 = vpack.c.b16 %v386, %v385
    %v402 = vpack.c.b16 %v388, %v387
    %v403 = vpack.c.b16 %v390, %v389
    %v404 = vpack.c.b16 %v392, %v391
    %v405 = vpack.c.b16 %v394, %v393
    %v406 = vpack.c.b16 %v396, %v395
    %v407 = vpack.c.b16 %v398, %v397
    %v408 = vpack.c.b16 %v400, %v399
    %417 = vmatprep.subr.bf16.mxu0 0
    %418 = vmatpush1.bf16.msra.mxu0 %v408
    %419 = vmatprep.subr.bf16.mxu0 0
    %420 = vmatpush1.bf16.msra.mxu0 %v407
    %421 = vmatprep.subr.bf16.mxu0 0
    %422 = vmatpush1.bf16.msra.mxu0 %v406
    %423 = vmatprep.subr.bf16.mxu0 0
    %424 = vmatpush1.bf16.msra.mxu0 %v405
    %425 = vmatprep.subr.bf16.mxu0 0
    %426 = vmatpush1.bf16.msra.mxu0 %v404
    %427 = vmatprep.subr.bf16.mxu0 0
    %428 = vmatpush1.bf16.msra.mxu0 %v403
    %429 = vmatprep.subr.bf16.mxu0 0
    %430 = vmatpush1.bf16.msra.mxu0 %v402
    %431 = vmatprep.subr.bf16.mxu0 0
    %432 = vmatpush1.bf16.msra.mxu0 %v401
    %433 = vmatprep.subr.bf16.mxu0 0
    %434 = vmatpush2.bf16.msra.mxu0 0
    %435 = vmatprep.subr.bf16.mxu0 0
    %436 = vmatpush2.bf16.msra.mxu0 0
    %437 = vmatprep.subr.bf16.mxu0 0
    %438 = vmatpush2.bf16.msra.mxu0 0
    %439 = vmatprep.subr.bf16.mxu0 0
    %440 = vmatpush2.bf16.msra.mxu0 0
    %441 = vmatprep.subr.bf16.mxu0 0
    %442 = vmatpush2.bf16.msra.mxu0 0
    %443 = vmatprep.subr.bf16.mxu0 0
    %444 = vmatpush2.bf16.msra.mxu0 0
    %445 = vmatprep.subr.bf16.mxu0 0
    %446 = vmatpush2.bf16.msra.mxu0 0
    %447 = vmatprep.subr.bf16.mxu0 0
    %448 = vmatpush2.bf16.msra.mxu0 0
    %449 = vmatprep.mubr.bf16.mxu0 0
    %450 = vmatmul.mubr.bf16.gmra.mxu0 %v338
    %v451 = vpop.f32.mrf.mxu0
    %v452 = vadd.f32 %v367, %v451
    %v453 = vpop.f32.mrf.mxu0
    %v454 = vpop.f32.mrf.mxu0
    %v455 = vadd.f32 %v367, %v454
    %v456 = vpop.f32.mrf.mxu0
    %457 = vmatprep.mubr.bf16.mxu0 0
    %458 = vmatmul.mubr.bf16.gmra.mxu0 %v339
    %v459 = vpop.f32.mrf.mxu0
    %v460 = vadd.f32 %v367, %v459
    %v461 = vpop.f32.mrf.mxu0
    %v462 = vpop.f32.mrf.mxu0
    %v463 = vadd.f32 %v367, %v462
    %v464 = vpop.f32.mrf.mxu0
    %465 = vmatprep.mubr.bf16.mxu0 0
    %466 = vmatmul.mubr.bf16.gmra.mxu0 %v340
    %v467 = vpop.f32.mrf.mxu0
    %v468 = vadd.f32 %v367, %v467
    %v469 = vpop.f32.mrf.mxu0
    %v470 = vpop.f32.mrf.mxu0
    %v471 = vadd.f32 %v367, %v470
    %v472 = vpop.f32.mrf.mxu0
    %473 = vmatprep.mubr.bf16.mxu0 0
    %474 = vmatmul.mubr.bf16.gmra.mxu0 %v341
    %v475 = vpop.f32.mrf.mxu0
    %v476 = vadd.f32 %v367, %v475
    %v477 = vpop.f32.mrf.mxu0
    %v478 = vpop.f32.mrf.mxu0
    %v479 = vadd.f32 %v367, %v478
    %v480 = vpop.f32.mrf.mxu0
    %481 = vmatprep.mubr.bf16.mxu0 0
    %482 = vmatmul.mubr.bf16.gmra.mxu0 %v342
    %v483 = vpop.f32.mrf.mxu0
    %v484 = vadd.f32 %v367, %v483
    %v485 = vpop.f32.mrf.mxu0
    %v486 = vpop.f32.mrf.mxu0
    %v487 = vadd.f32 %v367, %v486
    %v488 = vpop.f32.mrf.mxu0
    %489 = vmatprep.mubr.bf16.mxu0 0
    %490 = vmatmul.mubr.bf16.gmra.mxu0 %v343
    %v491 = vpop.f32.mrf.mxu0
    %v492 = vadd.f32 %v367, %v491
    %v493 = vpop.f32.mrf.mxu0
    %v494 = vpop.f32.mrf.mxu0
    %v495 = vadd.f32 %v367, %v494
    %v496 = vpop.f32.mrf.mxu0
    %497 = vmatprep.mubr.bf16.mxu0 0
    %498 = vmatmul.mubr.bf16.gmra.mxu0 %v344
    %v499 = vpop.f32.mrf.mxu0
    %v500 = vadd.f32 %v367, %v499
    %v501 = vpop.f32.mrf.mxu0
    %v502 = vpop.f32.mrf.mxu0
    %v503 = vadd.f32 %v367, %v502
    %v504 = vpop.f32.mrf.mxu0
    %505 = vmatprep.mubr.bf16.mxu0 0
    %506 = vmatmul.mubr.bf16.gmra.mxu0 %v345
    %v507 = vpop.f32.mrf.mxu0
    %v508 = vadd.f32 %v367, %v507
    %v509 = vpop.f32.mrf.mxu0
    %v510 = vpop.f32.mrf.mxu0
    %v511 = vadd.f32 %v367, %v510
    %v512 = vpop.f32.mrf.mxu0
    %513 = vdwg.mxu0
    %v514 = vmax.f32 %v452, 0.0
    %v515 = vmax.f32 %v455, 0.0
    %v516 = vmax.f32 %v460, 0.0
    %v517 = vmax.f32 %v463, 0.0
    %v518 = vmax.f32 %v468, 0.0
    %v519 = vmax.f32 %v471, 0.0
    %v520 = vmax.f32 %v476, 0.0
    %v521 = vmax.f32 %v479, 0.0
    %v522 = vmax.f32 %v484, 0.0
    %v523 = vmax.f32 %v487, 0.0
    %v524 = vmax.f32 %v492, 0.0
    %v525 = vmax.f32 %v495, 0.0
    %v526 = vmax.f32 %v500, 0.0
    %v527 = vmax.f32 %v503, 0.0
    %v528 = vmax.f32 %v508, 0.0
    %v529 = vmax.f32 %v511, 0.0
    %530 = vst [vmem:[%s6] sm:$0xff] %v514
    %531 = vst [vmem:[%s6 + $0x8] sm:$0xff] %v515
    %532 = vst [vmem:[%s6 + $0x10] sm:$0xff] %v516
    %533 = vst [vmem:[%s6 + $0x18] sm:$0xff] %v517
    %534 = vst [vmem:[%s6 + $0x20] sm:$0xff] %v518
    %535 = vst [vmem:[%s6 + $0x28] sm:$0xff] %v519
    %536 = vst [vmem:[%s6 + $0x30] sm:$0xff] %v520
    %537 = vst [vmem:[%s6 + $0x38] sm:$0xff] %v521
    %538 = vst [vmem:[%s6 + $0x40] sm:$0xff] %v522
    %539 = vst [vmem:[%s6 + $0x48] sm:$0xff] %v523
    %540 = vst [vmem:[%s6 + $0x50] sm:$0xff] %v524
    %541 = vst [vmem:[%s6 + $0x58] sm:$0xff] %v525
    %542 = vst [vmem:[%s6 + $0x60] sm:$0xff] %v526
    %543 = vst [vmem:[%s6 + $0x68] sm:$0xff] %v527
    %544 = vst [vmem:[%s6 + $0x70] sm:$0xff] %v528
    %545 = vst [vmem:[%s6 + $0x78] sm:$0xff] %v529
    // Predicated region
    $region38: #{forward.9} parent=1 // pred_check
      _
    $region39: #{forward.9} parent=1 // pred_check_branch
      %547 = sbr.rel (0) target = $region41
    $region40: #{forward.9} parent=1 // pred_region
      _
    $region41: #{forward.9} parent=1 // pred_fallthru
      _
    // Predicated region
    $region42: #{forward.9} parent=1 // pred_check
      _
    $region43: #{forward.9} parent=1 // pred_check_branch
      %549 = sbr.rel (0) target = $region45
    $region44: #{forward.9} parent=1 // pred_region
      _
    $region45: #{forward.9} parent=1 // pred_fallthru
      _
    // Predicated region
    $region46: #{forward.9} parent=1 // pred_check
      _
    $region47: #{forward.9} parent=1 // pred_check_branch
      %551 = sbr.rel (0) target = $region49
    $region48: #{forward.9} parent=1 // pred_region
      _
    $region49: #{forward.9} parent=1 // pred_fallthru
      _
    // Predicated region
    $region50: #{forward.9} parent=1 // pred_check
      _
    $region51: #{forward.9} parent=1 // pred_check_branch
      %553 = sbr.rel (0) target = $region53
    $region52: #{forward.9} parent=1 // pred_region
      _
    $region53: #{forward.9} parent=1 // pred_fallthru
      _
    %554 = vsyncpa [#allocation3], 1
    %555 = vsyncpa [#allocation5], 1
    %556 = vsyncpa [#allocation8], 1

// kernel: forward.10
$region0: #{forward.10}
  #allocation0 [shape = 'u32[]', space=smem, size = 0x4, offset = 0x4, fixed_abs, tag = 'smem constant byte address 0x4 - core index']
  #allocation1 [shape = 'u32[144,128]{1,0:T(1,128)}', space=vmem, size = 0x12000, scoped, tag = 'internal scratch']
  %s0 = inlined_call_operand.vmem [shape: bf16[32,128], index: 0, kind: input, shape index: {}]
  %s1 = inlined_call_operand.hbm [shape: bf16[128,128], index: 1, kind: input, shape index: {}]
  %s2 = inlined_call_operand.hbm [shape: f32[1,128], index: 2, kind: input, shape index: {}]
  %s3 = inlined_call_operand.hbm [shape: bf16[128,128], index: 3, kind: input, shape index: {}]
  %s4 = inlined_call_operand.hbm [shape: f32[1,128], index: 4, kind: input, shape index: {}]
  %s5 = inlined_call_operand.hbm [shape: bf16[128,256], index: 5, kind: input, shape index: {}]
  %s6 = inlined_call_operand.hbm [shape: f32[1,256], index: 6, kind: input, shape index: {}]
  %s7 = inlined_call_operand.hbm [shape: bf16[256,128], index: 7, kind: input, shape index: {}]
  %s8 = inlined_call_operand.hbm [shape: f32[1,128], index: 8, kind: input, shape index: {}]
  %s9 = inlined_call_operand.vmem [shape: f32[32,128], index: 9, kind: output, shape index: {0}]
  %s10 = inlined_call_operand.vmem [shape: f32[32,256], index: 10, kind: output, shape index: {1}]
  %s11 = inlined_call_operand.vmem [shape: f32[32,128], index: 11, kind: output, shape index: {2}]
  %12 = xla_tuple %s9, %s10, %s11
  %s13 = sld [smem:[#allocation0]]
  $region94: #{forward.10} parent=0
    _
  %s15 = ssub.s32 1, %s13
  %s16 = scalar_select 0, %s15, %s13
  $region1: #{forward.10} parent=0
    #allocation2 [shape = 'u8[32768]{0}', space=vmem, size = 0x8000, scoped, tag = 'input window, operand 1, single buffered']
    #allocation3 [shape = 's32[1]{0}', space=sflag, size = 0x4, scoped, tag = 'scoped memory for forward.10']
    #allocation4 [shape = 'u8[512]{0}', space=vmem, size = 0x400, scoped, tag = 'input window, operand 2, single buffered']
    #allocation5 [shape = 's32[1]{0}', space=sflag, size = 0x4, scoped, tag = 'scoped memory for forward.10']
    #allocation6 [shape = 'u8[32768]{0}', space=vmem, size = 0x8000, scoped, tag = 'input window, operand 3, single buffered']
    #allocation7 [shape = 'u8[512]{0}', space=vmem, size = 0x400, scoped, tag = 'input window, operand 4, single buffered']
    #allocation8 [shape = 's32[1]{0}', space=sflag, size = 0x4, scoped, tag = 'scoped memory for forward.10']
    #allocation9 [shape = 'u8[65536]{0}', space=vmem, size = 0x10000, scoped, tag = 'input window, operand 5, single buffered']
    #allocation10 [shape = 'u8[1024]{0}', space=vmem, size = 0x400, scoped, tag = 'input window, operand 6, single buffered']
    #allocation11 [shape = 's32[1]{0}', space=sflag, size = 0x4, scoped, tag = 'scoped memory for forward.10']
    #allocation12 [shape = 'u8[65536]{0}', space=vmem, size = 0x10000, scoped, tag = 'input window, operand 7, single buffered']
    #allocation13 [shape = 'u8[512]{0}', space=vmem, size = 0x400, scoped, tag = 'input window, operand 8, single buffered']
    #allocation14 [shape = 's32[1]{0}', space=sflag, size = 0x4, scoped, tag = 'scoped memory for forward.10']
    %17 = vsyncpa [#allocation3], 0
    %18 = vsyncpa [#allocation5], 0
    %19 = vsyncpa [#allocation8], 0
    %20 = vsyncpa [#allocation11], 0
    %21 = vsyncpa [#allocation14], 0
    // Predicated region
    $region2: #{forward.10} parent=1 // pred_check
      _
    $region3: #{forward.10} parent=1 // pred_check_branch
      %23 = sbr.rel (0) target = $region5
    $region4: #{forward.10} parent=1 // pred_region
      _
    $region5: #{forward.10} parent=1 // pred_fallthru
      _
    // Predicated region
    $region6: #{forward.10} parent=1 // pred_check
      _
    $region7: #{forward.10} parent=1 // pred_check_branch
      %25 = sbr.rel (0) target = $region9
    $region8: #{forward.10} parent=1 // pred_region
      %s27 = ssub.s32 1024, 1024
      %28 = vsyncadd [#allocation3], %s27
      %s29 = sshll.u32 [#allocation2], 4
      %s30 = int_to_ptr.vmem [resolvable:$true] %s29
      %35 = dma.hbm_to_vmem [thread:$0]  %s1, 1024, %s30, [#allocation3], 64, 64, 4
    $region9: #{forward.10} parent=1 // pred_fallthru
      _
    // Predicated region
    $region10: #{forward.10} parent=1 // pred_check
      _
    $region11: #{forward.10} parent=1 // pred_check_branch
      %37 = sbr.rel (0) target = $region13
    $region12: #{forward.10} parent=1 // pred_region
      %s39 = ssub.s32 16, 16
      %40 = vsyncadd [#allocation5], %s39
      %s42 = sshll.u32 [#allocation4], 4
      %s43 = int_to_ptr.vmem [resolvable:$true] %s42
      %45 = dma.hbm_to_vmem [thread:$0]  %s2, 16, %s43, [#allocation5]
    $region13: #{forward.10} parent=1 // pred_fallthru
      _
    // Predicated region
    $region14: #{forward.10} parent=1 // pred_check
      _
    $region15: #{forward.10} parent=1 // pred_check_branch
      %47 = sbr.rel (0) target = $region17
    $region16: #{forward.10} parent=1 // pred_region
      %s49 = ssub.s32 1024, 1024
      %50 = vsyncadd [#allocation5], %s49
      %s51 = sshll.u32 [#allocation6], 4
      %s52 = int_to_ptr.vmem [resolvable:$true] %s51
      %57 = dma.hbm_to_vmem [thread:$0]  %s3, 1024, %s52, [#allocation5], 64, 64, 4
    $region17: #{forward.10} parent=1 // pred_fallthru
      _
    // Predicated region
    $region18: #{forward.10} parent=1 // pred_check
      _
    $region19: #{forward.10} parent=1 // pred_check_branch
      %59 = sbr.rel (0) target = $region21
    $region20: #{forward.10} parent=1 // pred_region
      %s61 = ssub.s32 16, 16
      %62 = vsyncadd [#allocation8], %s61
      %s64 = sshll.u32 [#allocation7], 4
      %s65 = int_to_ptr.vmem [resolvable:$true] %s64
      %67 = dma.hbm_to_vmem [thread:$0]  %s4, 16, %s65, [#allocation8]
    $region21: #{forward.10} parent=1 // pred_fallthru
      _
    // Predicated region
    $region22: #{forward.10} parent=1 // pred_check
      _
    $region23: #{forward.10} parent=1 // pred_check_branch
      %69 = sbr.rel (0) target = $region25
    $region24: #{forward.10} parent=1 // pred_region
      %s71 = ssub.s32 2048, 2048
      %72 = vsyncadd [#allocation8], %s71
      %s73 = sshll.u32 [#allocation9], 4
      %s74 = int_to_ptr.vmem [resolvable:$true] %s73
      %79 = dma.hbm_to_vmem [thread:$0]  %s5, 2048, %s74, [#allocation8], 128, 128, 8
    $region25: #{forward.10} parent=1 // pred_fallthru
      _
    // Predicated region
    $region26: #{forward.10} parent=1 // pred_check
      _
    $region27: #{forward.10} parent=1 // pred_check_branch
      %81 = sbr.rel (0) target = $region29
    $region28: #{forward.10} parent=1 // pred_region
      %s83 = ssub.s32 32, 32
      %84 = vsyncadd [#allocation11], %s83
      %s86 = sshll.u32 [#allocation10], 4
      %s87 = int_to_ptr.vmem [resolvable:$true] %s86
      %89 = dma.hbm_to_vmem [thread:$0]  %s6, 32, %s87, [#allocation11]
    $region29: #{forward.10} parent=1 // pred_fallthru
      _
    // Predicated region
    $region30: #{forward.10} parent=1 // pred_check
      _
    $region31: #{forward.10} parent=1 // pred_check_branch
      %91 = sbr.rel (0) target = $region33
    $region32: #{forward.10} parent=1 // pred_region
      %s93 = ssub.s32 2048, 2048
      %94 = vsyncadd [#allocation11], %s93
      %s95 = sshll.u32 [#allocation12], 4
      %s96 = int_to_ptr.vmem [resolvable:$true] %s95
      %101 = dma.hbm_to_vmem [thread:$0]  %s7, 2048, %s96, [#allocation11], 64, 64, 4
    $region33: #{forward.10} parent=1 // pred_fallthru
      _
    // Predicated region
    $region34: #{forward.10} parent=1 // pred_check
      _
    $region35: #{forward.10} parent=1 // pred_check_branch
      %103 = sbr.rel (0) target = $region37
    $region36: #{forward.10} parent=1 // pred_region
      %s105 = ssub.s32 16, 16
      %106 = vsyncadd [#allocation14], %s105
      %s108 = sshll.u32 [#allocation13], 4
      %s109 = int_to_ptr.vmem [resolvable:$true] %s108
      %111 = dma.hbm_to_vmem [thread:$0]  %s8, 16, %s109, [#allocation14]
    $region37: #{forward.10} parent=1 // pred_fallthru
      _
    // Predicated region
    $region38: #{forward.10} parent=1 // pred_check
      _
    $region39: #{forward.10} parent=1 // pred_check_branch
      %113 = sbr.rel (0) target = $region41
    $region40: #{forward.10} parent=1 // pred_region
      %114 = dma.done [#allocation3], 1024
    $region41: #{forward.10} parent=1 // pred_fallthru
      _
    // Predicated region
    $region42: #{forward.10} parent=1 // pred_check
      _
    $region43: #{forward.10} parent=1 // pred_check_branch
      %116 = sbr.rel (0) target = $region45
    $region44: #{forward.10} parent=1 // pred_region
      %117 = dma.done [#allocation5], 16
    $region45: #{forward.10} parent=1 // pred_fallthru
      _
    // Predicated region
    $region46: #{forward.10} parent=1 // pred_check
      _
    $region47: #{forward.10} parent=1 // pred_check_branch
      %119 = sbr.rel (0) target = $region49
    $region48: #{forward.10} parent=1 // pred_region
      %120 = dma.done [#allocation5], 1024
    $region49: #{forward.10} parent=1 // pred_fallthru
      _
    // Predicated region
    $region50: #{forward.10} parent=1 // pred_check
      _
    $region51: #{forward.10} parent=1 // pred_check_branch
      %122 = sbr.rel (0) target = $region53
    $region52: #{forward.10} parent=1 // pred_region
      %123 = dma.done [#allocation8], 16
    $region53: #{forward.10} parent=1 // pred_fallthru
      _
    // Predicated region
    $region54: #{forward.10} parent=1 // pred_check
      _
    $region55: #{forward.10} parent=1 // pred_check_branch
      %125 = sbr.rel (0) target = $region57
    $region56: #{forward.10} parent=1 // pred_region
      %126 = dma.done [#allocation8], 2048
    $region57: #{forward.10} parent=1 // pred_fallthru
      _
    // Predicated region
    $region58: #{forward.10} parent=1 // pred_check
      _
    $region59: #{forward.10} parent=1 // pred_check_branch
      %128 = sbr.rel (0) target = $region61
    $region60: #{forward.10} parent=1 // pred_region
      %129 = dma.done [#allocation11], 32
    $region61: #{forward.10} parent=1 // pred_fallthru
      _
    // Predicated region
    $region62: #{forward.10} parent=1 // pred_check
      _
    $region63: #{forward.10} parent=1 // pred_check_branch
      %131 = sbr.rel (0) target = $region65
    $region64: #{forward.10} parent=1 // pred_region
      %132 = dma.done [#allocation11], 2048
    $region65: #{forward.10} parent=1 // pred_fallthru
      _
    // Predicated region
    $region66: #{forward.10} parent=1 // pred_check
      _
    $region67: #{forward.10} parent=1 // pred_check_branch
      %134 = sbr.rel (0) target = $region69
    $region68: #{forward.10} parent=1 // pred_region
      %135 = dma.done [#allocation14], 16
    $region69: #{forward.10} parent=1 // pred_fallthru
      _
    %v137 = vld [vmem:[%s0] sm:$0xf]
    %v138 = vld [vmem:[%s0 + $0x4] sm:$0xf]
    %v139 = vld [vmem:[%s0 + $0x8] sm:$0xf]
    %v140 = vld [vmem:[%s0 + $0xc] sm:$0xf]
    %v141 = vld [vmem:[#allocation2] sm:$0xf]
    %v142 = vld [vmem:[#allocation2 + $0x4] sm:$0xf]
    %v143 = vld [vmem:[#allocation2 + $0x8] sm:$0xf]
    %v144 = vld [vmem:[#allocation2 + $0xc] sm:$0xf]
    %v145 = vld [vmem:[#allocation2 + $0x10] sm:$0xf]
    %v146 = vld [vmem:[#allocation2 + $0x14] sm:$0xf]
    %v147 = vld [vmem:[#allocation2 + $0x18] sm:$0xf]
    %v148 = vld [vmem:[#allocation2 + $0x1c] sm:$0xf]
    %v149 = vld [vmem:[#allocation2 + $0x20] sm:$0xf]
    %v150 = vld [vmem:[#allocation2 + $0x24] sm:$0xf]
    %v151 = vld [vmem:[#allocation2 + $0x28] sm:$0xf]
    %v152 = vld [vmem:[#allocation2 + $0x2c] sm:$0xf]
    %v153 = vld [vmem:[#allocation2 + $0x30] sm:$0xf]
    %v154 = vld [vmem:[#allocation2 + $0x34] sm:$0xf]
    %v155 = vld [vmem:[#allocation2 + $0x38] sm:$0xf]
    %v156 = vld [vmem:[#allocation2 + $0x3c] sm:$0xf]
    %v157 = vld [vmem:[#allocation4] sm:$0x1]
    %v159 = vlaneseq
    %v160 = vshrl.u32 %v159, 7
    %v161 = vsub.s32 0, %v160
    %v162 = vrot.slane %v157, %v161
    %v168 = vunpack.c.l.b16 %v137
    %v169 = vunpack.c.l.b16 %v138
    %v170 = vunpack.c.l.b16 %v139
    %v171 = vunpack.c.l.b16 %v140
    %v172 = vpack.c.b16 %v169, %v168
    %v173 = vpack.c.b16 %v171, %v170
    %v192 = vunpack.c.l.b16 %v141
    %v193 = vunpack.c.l.b16 %v142
    %v194 = vunpack.c.l.b16 %v143
    %v195 = vunpack.c.l.b16 %v144
    %v196 = vunpack.c.l.b16 %v145
    %v197 = vunpack.c.l.b16 %v146
    %v198 = vunpack.c.l.b16 %v147
    %v199 = vunpack.c.l.b16 %v148
    %v200 = vunpack.c.l.b16 %v149
    %v201 = vunpack.c.l.b16 %v150
    %v202 = vunpack.c.l.b16 %v151
    %v203 = vunpack.c.l.b16 %v152
    %v204 = vunpack.c.l.b16 %v153
    %v205 = vunpack.c.l.b16 %v154
    %v206 = vunpack.c.l.b16 %v155
    %v207 = vunpack.c.l.b16 %v156
    %v208 = vpack.c.b16 %v193, %v192
    %v209 = vpack.c.b16 %v195, %v194
    %v210 = vpack.c.b16 %v197, %v196
    %v211 = vpack.c.b16 %v199, %v198
    %v212 = vpack.c.b16 %v201, %v200
    %v213 = vpack.c.b16 %v203, %v202
    %v214 = vpack.c.b16 %v205, %v204
    %v215 = vpack.c.b16 %v207, %v206
    %224 = vmatprep.subr.bf16.mxu0 0
    %225 = vmatpush1.bf16.msra.mxu0 %v215
    %226 = vmatprep.subr.bf16.mxu0 0
    %227 = vmatpush1.bf16.msra.mxu0 %v214
    %228 = vmatprep.subr.bf16.mxu0 0
    %229 = vmatpush1.bf16.msra.mxu0 %v213
    %230 = vmatprep.subr.bf16.mxu0 0
    %231 = vmatpush1.bf16.msra.mxu0 %v212
    %232 = vmatprep.subr.bf16.mxu0 0
    %233 = vmatpush1.bf16.msra.mxu0 %v211
    %234 = vmatprep.subr.bf16.mxu0 0
    %235 = vmatpush1.bf16.msra.mxu0 %v210
    %236 = vmatprep.subr.bf16.mxu0 0
    %237 = vmatpush1.bf16.msra.mxu0 %v209
    %238 = vmatprep.subr.bf16.mxu0 0
    %239 = vmatpush1.bf16.msra.mxu0 %v208
    %240 = vmatprep.subr.bf16.mxu0 0
    %241 = vmatpush2.bf16.msra.mxu0 0
    %242 = vmatprep.subr.bf16.mxu0 0
    %243 = vmatpush2.bf16.msra.mxu0 0
    %244 = vmatprep.subr.bf16.mxu0 0
    %245 = vmatpush2.bf16.msra.mxu0 0
    %246 = vmatprep.subr.bf16.mxu0 0
    %247 = vmatpush2.bf16.msra.mxu0 0
    %248 = vmatprep.subr.bf16.mxu0 0
    %249 = vmatpush2.bf16.msra.mxu0 0
    %250 = vmatprep.subr.bf16.mxu0 0
    %251 = vmatpush2.bf16.msra.mxu0 0
    %252 = vmatprep.subr.bf16.mxu0 0
    %253 = vmatpush2.bf16.msra.mxu0 0
    %254 = vmatprep.subr.bf16.mxu0 0
    %255 = vmatpush2.bf16.msra.mxu0 0
    %256 = vmatprep.mubr.bf16.mxu0 0
    %257 = vmatmul.mubr.bf16.gmra.mxu0 %v172
    %v258 = vpop.f32.mrf.mxu0
    %v259 = vadd.f32 %v162, %v258
    %v260 = vpop.f32.mrf.mxu0
    %v261 = vpop.f32.mrf.mxu0
    %v262 = vadd.f32 %v162, %v261
    %v263 = vpop.f32.mrf.mxu0
    %264 = vmatprep.mubr.bf16.mxu0 0
    %265 = vmatmul.mubr.bf16.gmra.mxu0 %v173
    %v266 = vpop.f32.mrf.mxu0
    %v267 = vadd.f32 %v162, %v266
    %v268 = vpop.f32.mrf.mxu0
    %v269 = vpop.f32.mrf.mxu0
    %v270 = vadd.f32 %v162, %v269
    %v271 = vpop.f32.mrf.mxu0
    %272 = vdwg.mxu0
    %v273 = vmax.f32 %v259, 0.0
    %v274 = vmax.f32 %v262, 0.0
    %v275 = vmax.f32 %v267, 0.0
    %v276 = vmax.f32 %v270, 0.0
    %v277 = vpack.c.bf16 %v274, %v273
    %v278 = vpack.c.bf16 %v276, %v275
    %v279 = vld [vmem:[#allocation6] sm:$0xf]
    %v280 = vld [vmem:[#allocation6 + $0x4] sm:$0xf]
    %v281 = vld [vmem:[#allocation6 + $0x8] sm:$0xf]
    %v282 = vld [vmem:[#allocation6 + $0xc] sm:$0xf]
    %v283 = vld [vmem:[#allocation6 + $0x10] sm:$0xf]
    %v284 = vld [vmem:[#allocation6 + $0x14] sm:$0xf]
    %v285 = vld [vmem:[#allocation6 + $0x18] sm:$0xf]
    %v286 = vld [vmem:[#allocation6 + $0x1c] sm:$0xf]
    %v287 = vld [vmem:[#allocation6 + $0x20] sm:$0xf]
    %v288 = vld [vmem:[#allocation6 + $0x24] sm:$0xf]
    %v289 = vld [vmem:[#allocation6 + $0x28] sm:$0xf]
    %v290 = vld [vmem:[#allocation6 + $0x2c] sm:$0xf]
    %v291 = vld [vmem:[#allocation6 + $0x30] sm:$0xf]
    %v292 = vld [vmem:[#allocation6 + $0x34] sm:$0xf]
    %v293 = vld [vmem:[#allocation6 + $0x38] sm:$0xf]
    %v294 = vld [vmem:[#allocation6 + $0x3c] sm:$0xf]
    %v295 = vld [vmem:[#allocation7] sm:$0x1]
    %v297 = vlaneseq
    %v298 = vshrl.u32 %v297, 7
    %v299 = vsub.s32 0, %v298
    %v300 = vrot.slane %v295, %v299
    %v318 = vunpack.c.l.b16 %v279
    %v319 = vunpack.c.l.b16 %v280
    %v320 = vunpack.c.l.b16 %v281
    %v321 = vunpack.c.l.b16 %v282
    %v322 = vunpack.c.l.b16 %v283
    %v323 = vunpack.c.l.b16 %v284
    %v324 = vunpack.c.l.b16 %v285
    %v325 = vunpack.c.l.b16 %v286
    %v326 = vunpack.c.l.b16 %v287
    %v327 = vunpack.c.l.b16 %v288
    %v328 = vunpack.c.l.b16 %v289
    %v329 = vunpack.c.l.b16 %v290
    %v330 = vunpack.c.l.b16 %v291
    %v331 = vunpack.c.l.b16 %v292
    %v332 = vunpack.c.l.b16 %v293
    %v333 = vunpack.c.l.b16 %v294
    %v334 = vpack.c.b16 %v319, %v318
    %v335 = vpack.c.b16 %v321, %v320
    %v336 = vpack.c.b16 %v323, %v322
    %v337 = vpack.c.b16 %v325, %v324
    %v338 = vpack.c.b16 %v327, %v326
    %v339 = vpack.c.b16 %v329, %v328
    %v340 = vpack.c.b16 %v331, %v330
    %v341 = vpack.c.b16 %v333, %v332
    %350 = vmatprep.subr.bf16.mxu0 0
    %351 = vmatpush1.bf16.msra.mxu0 %v341
    %352 = vmatprep.subr.bf16.mxu0 0
    %353 = vmatpush1.bf16.msra.mxu0 %v340
    %354 = vmatprep.subr.bf16.mxu0 0
    %355 = vmatpush1.bf16.msra.mxu0 %v339
    %356 = vmatprep.subr.bf16.mxu0 0
    %357 = vmatpush1.bf16.msra.mxu0 %v338
    %358 = vmatprep.subr.bf16.mxu0 0
    %359 = vmatpush1.bf16.msra.mxu0 %v337
    %360 = vmatprep.subr.bf16.mxu0 0
    %361 = vmatpush1.bf16.msra.mxu0 %v336
    %362 = vmatprep.subr.bf16.mxu0 0
    %363 = vmatpush1.bf16.msra.mxu0 %v335
    %364 = vmatprep.subr.bf16.mxu0 0
    %365 = vmatpush1.bf16.msra.mxu0 %v334
    %366 = vmatprep.subr.bf16.mxu0 0
    %367 = vmatpush2.bf16.msra.mxu0 0
    %368 = vmatprep.subr.bf16.mxu0 0
    %369 = vmatpush2.bf16.msra.mxu0 0
    %370 = vmatprep.subr.bf16.mxu0 0
    %371 = vmatpush2.bf16.msra.mxu0 0
    %372 = vmatprep.subr.bf16.mxu0 0
    %373 = vmatpush2.bf16.msra.mxu0 0
    %374 = vmatprep.subr.bf16.mxu0 0
    %375 = vmatpush2.bf16.msra.mxu0 0
    %376 = vmatprep.subr.bf16.mxu0 0
    %377 = vmatpush2.bf16.msra.mxu0 0
    %378 = vmatprep.subr.bf16.mxu0 0
    %379 = vmatpush2.bf16.msra.mxu0 0
    %380 = vmatprep.subr.bf16.mxu0 0
    %381 = vmatpush2.bf16.msra.mxu0 0
    %382 = vmatprep.mubr.bf16.mxu0 0
    %383 = vmatmul.mubr.bf16.gmra.mxu0 %v277
    %v384 = vpop.f32.mrf.mxu0
    %v385 = vadd.f32 %v300, %v384
    %v386 = vpop.f32.mrf.mxu0
    %v387 = vpop.f32.mrf.mxu0
    %v388 = vadd.f32 %v300, %v387
    %v389 = vpop.f32.mrf.mxu0
    %390 = vmatprep.mubr.bf16.mxu0 0
    %391 = vmatmul.mubr.bf16.gmra.mxu0 %v278
    %v392 = vpop.f32.mrf.mxu0
    %v393 = vadd.f32 %v300, %v392
    %v394 = vpop.f32.mrf.mxu0
    %v395 = vpop.f32.mrf.mxu0
    %v396 = vadd.f32 %v300, %v395
    %v397 = vpop.f32.mrf.mxu0
    %398 = vdwg.mxu0
    %v399 = vmax.f32 %v385, 0.0
    %v400 = vmax.f32 %v388, 0.0
    %v401 = vmax.f32 %v393, 0.0
    %v402 = vmax.f32 %v396, 0.0
    %403 = vst [vmem:[%s9] sm:$0xff] %v399
    %404 = vst [vmem:[%s9 + $0x8] sm:$0xff] %v400
    %405 = vst [vmem:[%s9 + $0x10] sm:$0xff] %v401
    %406 = vst [vmem:[%s9 + $0x18] sm:$0xff] %v402
    %v407 = vpack.c.bf16 %v400, %v399
    %v408 = vpack.c.bf16 %v402, %v401
    %v409 = vld [vmem:[#allocation9] sm:$0xff]
    %v410 = vld [vmem:[#allocation9 + $0x8] sm:$0xff]
    %v411 = vld [vmem:[#allocation9 + $0x10] sm:$0xff]
    %v412 = vld [vmem:[#allocation9 + $0x18] sm:$0xff]
    %v413 = vld [vmem:[#allocation9 + $0x20] sm:$0xff]
    %v414 = vld [vmem:[#allocation9 + $0x28] sm:$0xff]
    %v415 = vld [vmem:[#allocation9 + $0x30] sm:$0xff]
    %v416 = vld [vmem:[#allocation9 + $0x38] sm:$0xff]
    %v417 = vld [vmem:[#allocation9 + $0x40] sm:$0xff]
    %v418 = vld [vmem:[#allocation9 + $0x48] sm:$0xff]
    %v419 = vld [vmem:[#allocation9 + $0x50] sm:$0xff]
    %v420 = vld [vmem:[#allocation9 + $0x58] sm:$0xff]
    %v421 = vld [vmem:[#allocation9 + $0x60] sm:$0xff]
    %v422 = vld [vmem:[#allocation9 + $0x68] sm:$0xff]
    %v423 = vld [vmem:[#allocation9 + $0x70] sm:$0xff]
    %v424 = vld [vmem:[#allocation9 + $0x78] sm:$0xff]
    %v425 = vld [vmem:[#allocation10] sm:$0x3]
    %v427 = vlaneseq
    %v428 = vshrl.u32 %v427, 7
    %v429 = vsub.s32 0, %v428
    %v430 = vrot.slane %v425, %v429
    %v431 = vlaneseq
    %v432 = vshrl.u32 %v431, 7
    %v433 = vsub.s32 1, %v432
    %v434 = vrot.slane %v425, %v433
    %v453 = vunpack.c.l.b16 %v409
    %v454 = vunpack.c.h.b16 %v409
    %v455 = vunpack.c.l.b16 %v410
    %v456 = vunpack.c.h.b16 %v410
    %v457 = vunpack.c.l.b16 %v411
    %v458 = vunpack.c.h.b16 %v411
    %v459 = vunpack.c.l.b16 %v412
    %v460 = vunpack.c.h.b16 %v412
    %v461 = vunpack.c.l.b16 %v413
    %v462 = vunpack.c.h.b16 %v413
    %v463 = vunpack.c.l.b16 %v414
    %v464 = vunpack.c.h.b16 %v414
    %v465 = vunpack.c.l.b16 %v415
    %v466 = vunpack.c.h.b16 %v415
    %v467 = vunpack.c.l.b16 %v416
    %v468 = vunpack.c.h.b16 %v416
    %v469 = vunpack.c.l.b16 %v417
    %v470 = vunpack.c.h.b16 %v417
    %v471 = vunpack.c.l.b16 %v418
    %v472 = vunpack.c.h.b16 %v418
    %v473 = vunpack.c.l.b16 %v419
    %v474 = vunpack.c.h.b16 %v419
    %v475 = vunpack.c.l.b16 %v420
    %v476 = vunpack.c.h.b16 %v420
    %v477 = vunpack.c.l.b16 %v421
    %v478 = vunpack.c.h.b16 %v421
    %v479 = vunpack.c.l.b16 %v422
    %v480 = vunpack.c.h.b16 %v422
    %v481 = vunpack.c.l.b16 %v423
    %v482 = vunpack.c.h.b16 %v423
    %v483 = vunpack.c.l.b16 %v424
    %v484 = vunpack.c.h.b16 %v424
    %v485 = vpack.c.b16 %v455, %v453
    %v486 = vpack.c.b16 %v456, %v454
    %v487 = vpack.c.b16 %v459, %v457
    %v488 = vpack.c.b16 %v460, %v458
    %v489 = vpack.c.b16 %v463, %v461
    %v490 = vpack.c.b16 %v464, %v462
    %v491 = vpack.c.b16 %v467, %v465
    %v492 = vpack.c.b16 %v468, %v466
    %v493 = vpack.c.b16 %v471, %v469
    %v494 = vpack.c.b16 %v472, %v470
    %v495 = vpack.c.b16 %v475, %v473
    %v496 = vpack.c.b16 %v476, %v474
    %v497 = vpack.c.b16 %v479, %v477
    %v498 = vpack.c.b16 %v480, %v478
    %v499 = vpack.c.b16 %v483, %v481
    %v500 = vpack.c.b16 %v484, %v482
    %517 = vmatprep.subr.bf16.mxu0 %v500
    %518 = vmatpush1.bf16.msra.mxu0 %v499
    %519 = vmatprep.subr.bf16.mxu0 %v498
    %520 = vmatpush1.bf16.msra.mxu0 %v497
    %521 = vmatprep.subr.bf16.mxu0 %v496
    %522 = vmatpush1.bf16.msra.mxu0 %v495
    %523 = vmatprep.subr.bf16.mxu0 %v494
    %524 = vmatpush1.bf16.msra.mxu0 %v493
    %525 = vmatprep.subr.bf16.mxu0 %v492
    %526 = vmatpush1.bf16.msra.mxu0 %v491
    %527 = vmatprep.subr.bf16.mxu0 %v490
    %528 = vmatpush1.bf16.msra.mxu0 %v489
    %529 = vmatprep.subr.bf16.mxu0 %v488
    %530 = vmatpush1.bf16.msra.mxu0 %v487
    %531 = vmatprep.subr.bf16.mxu0 %v486
    %532 = vmatpush1.bf16.msra.mxu0 %v485
    %533 = vmatprep.subr.bf16.mxu0 0
    %534 = vmatpush2.bf16.msra.mxu0 0
    %535 = vmatprep.subr.bf16.mxu0 0
    %536 = vmatpush2.bf16.msra.mxu0 0
    %537 = vmatprep.subr.bf16.mxu0 0
    %538 = vmatpush2.bf16.msra.mxu0 0
    %539 = vmatprep.subr.bf16.mxu0 0
    %540 = vmatpush2.bf16.msra.mxu0 0
    %541 = vmatprep.subr.bf16.mxu0 0
    %542 = vmatpush2.bf16.msra.mxu0 0
    %543 = vmatprep.subr.bf16.mxu0 0
    %544 = vmatpush2.bf16.msra.mxu0 0
    %545 = vmatprep.subr.bf16.mxu0 0
    %546 = vmatpush2.bf16.msra.mxu0 0
    %547 = vmatprep.subr.bf16.mxu0 0
    %548 = vmatpush2.bf16.msra.mxu0 0
    %549 = vmatprep.mubr.bf16.mxu0 0
    %550 = vmatmul.mubr.bf16.gmra.mxu0 %v407
    %v551 = vpop.f32.mrf.mxu0
    %v552 = vadd.f32 %v430, %v551
    %v553 = vpop.f32.mrf.mxu0
    %v554 = vadd.f32 %v434, %v553
    %v555 = vpop.f32.mrf.mxu0
    %v556 = vadd.f32 %v430, %v555
    %v557 = vpop.f32.mrf.mxu0
    %v558 = vadd.f32 %v434, %v557
    %559 = vmatprep.mubr.bf16.mxu0 0
    %560 = vmatmul.mubr.bf16.gmra.mxu0 %v408
    %v561 = vpop.f32.mrf.mxu0
    %v562 = vadd.f32 %v430, %v561
    %v563 = vpop.f32.mrf.mxu0
    %v564 = vadd.f32 %v434, %v563
    %v565 = vpop.f32.mrf.mxu0
    %v566 = vadd.f32 %v430, %v565
    %v567 = vpop.f32.mrf.mxu0
    %v568 = vadd.f32 %v434, %v567
    %569 = vdwg.mxu0
    %v570 = vmax.f32 %v552, 0.0
    %v571 = vmax.f32 %v554, 0.0
    %v572 = vmax.f32 %v556, 0.0
    %v573 = vmax.f32 %v558, 0.0
    %v574 = vmax.f32 %v562, 0.0
    %v575 = vmax.f32 %v564, 0.0
    %v576 = vmax.f32 %v566, 0.0
    %v577 = vmax.f32 %v568, 0.0
    %578 = vst [vmem:[%s10] sm:$0xff] %v570
    %579 = vst [vmem:[%s10 + $0x8] sm:$0xff] %v571
    %580 = vst [vmem:[%s10 + $0x10] sm:$0xff] %v572
    %581 = vst [vmem:[%s10 + $0x18] sm:$0xff] %v573
    %582 = vst [vmem:[%s10 + $0x20] sm:$0xff] %v574
    %583 = vst [vmem:[%s10 + $0x28] sm:$0xff] %v575
    %584 = vst [vmem:[%s10 + $0x30] sm:$0xff] %v576
    %585 = vst [vmem:[%s10 + $0x38] sm:$0xff] %v577
    %v586 = vpack.c.bf16 %v572, %v570
    %v587 = vpack.c.bf16 %v573, %v571
    %v588 = vpack.c.bf16 %v576, %v574
    %v589 = vpack.c.bf16 %v577, %v575
    %v590 = vld [vmem:[#allocation12] sm:$0xf]
    %v591 = vld [vmem:[#allocation12 + $0x4] sm:$0xf]
    %v592 = vld [vmem:[#allocation12 + $0x8] sm:$0xf]
    %v593 = vld [vmem:[#allocation12 + $0xc] sm:$0xf]
    %v594 = vld [vmem:[#allocation12 + $0x10] sm:$0xf]
    %v595 = vld [vmem:[#allocation12 + $0x14] sm:$0xf]
    %v596 = vld [vmem:[#allocation12 + $0x18] sm:$0xf]
    %v597 = vld [vmem:[#allocation12 + $0x1c] sm:$0xf]
    %v598 = vld [vmem:[#allocation12 + $0x20] sm:$0xf]
    %v599 = vld [vmem:[#allocation12 + $0x24] sm:$0xf]
    %v600 = vld [vmem:[#allocation12 + $0x28] sm:$0xf]
    %v601 = vld [vmem:[#allocation12 + $0x2c] sm:$0xf]
    %v602 = vld [vmem:[#allocation12 + $0x30] sm:$0xf]
    %v603 = vld [vmem:[#allocation12 + $0x34] sm:$0xf]
    %v604 = vld [vmem:[#allocation12 + $0x38] sm:$0xf]
    %v605 = vld [vmem:[#allocation12 + $0x3c] sm:$0xf]
    %v606 = vld [vmem:[#allocation12 + $0x40] sm:$0xf]
    %v607 = vld [vmem:[#allocation12 + $0x44] sm:$0xf]
    %v608 = vld [vmem:[#allocation12 + $0x48] sm:$0xf]
    %v609 = vld [vmem:[#allocation12 + $0x4c] sm:$0xf]
    %v610 = vld [vmem:[#allocation12 + $0x50] sm:$0xf]
    %v611 = vld [vmem:[#allocation12 + $0x54] sm:$0xf]
    %v612 = vld [vmem:[#allocation12 + $0x58] sm:$0xf]
    %v613 = vld [vmem:[#allocation12 + $0x5c] sm:$0xf]
    %v614 = vld [vmem:[#allocation12 + $0x60] sm:$0xf]
    %v615 = vld [vmem:[#allocation12 + $0x64] sm:$0xf]
    %v616 = vld [vmem:[#allocation12 + $0x68] sm:$0xf]
    %v617 = vld [vmem:[#allocation12 + $0x6c] sm:$0xf]
    %v618 = vld [vmem:[#allocation12 + $0x70] sm:$0xf]
    %v619 = vld [vmem:[#allocation12 + $0x74] sm:$0xf]
    %v620 = vld [vmem:[#allocation12 + $0x78] sm:$0xf]
    %v621 = vld [vmem:[#allocation12 + $0x7c] sm:$0xf]
    %v622 = vld [vmem:[#allocation13] sm:$0x1]
    %v624 = vlaneseq
    %v625 = vshrl.u32 %v624, 7
    %v626 = vsub.s32 0, %v625
    %v627 = vrot.slane %v622, %v626
    %v661 = vunpack.c.l.b16 %v590
    %v662 = vunpack.c.l.b16 %v591
    %v663 = vunpack.c.l.b16 %v592
    %v664 = vunpack.c.l.b16 %v593
    %v665 = vunpack.c.l.b16 %v594
    %v666 = vunpack.c.l.b16 %v595
    %v667 = vunpack.c.l.b16 %v596
    %v668 = vunpack.c.l.b16 %v597
    %v669 = vunpack.c.l.b16 %v598
    %v670 = vunpack.c.l.b16 %v599
    %v671 = vunpack.c.l.b16 %v600
    %v672 = vunpack.c.l.b16 %v601
    %v673 = vunpack.c.l.b16 %v602
    %v674 = vunpack.c.l.b16 %v603
    %v675 = vunpack.c.l.b16 %v604
    %v676 = vunpack.c.l.b16 %v605
    %v677 = vunpack.c.l.b16 %v606
    %v678 = vunpack.c.l.b16 %v607
    %v679 = vunpack.c.l.b16 %v608
    %v680 = vunpack.c.l.b16 %v609
    %v681 = vunpack.c.l.b16 %v610
    %v682 = vunpack.c.l.b16 %v611
    %v683 = vunpack.c.l.b16 %v612
    %v684 = vunpack.c.l.b16 %v613
    %v685 = vunpack.c.l.b16 %v614
    %v686 = vunpack.c.l.b16 %v615
    %v687 = vunpack.c.l.b16 %v616
    %v688 = vunpack.c.l.b16 %v617
    %v689 = vunpack.c.l.b16 %v618
    %v690 = vunpack.c.l.b16 %v619
    %v691 = vunpack.c.l.b16 %v620
    %v692 = vunpack.c.l.b16 %v621
    %v693 = vpack.c.b16 %v662, %v661
    %v694 = vpack.c.b16 %v664, %v663
    %v695 = vpack.c.b16 %v666, %v665
    %v696 = vpack.c.b16 %v668, %v667
    %v697 = vpack.c.b16 %v670, %v669
    %v698 = vpack.c.b16 %v672, %v671
    %v699 = vpack.c.b16 %v674, %v673
    %v700 = vpack.c.b16 %v676, %v675
    %v701 = vpack.c.b16 %v678, %v677
    %v702 = vpack.c.b16 %v680, %v679
    %v703 = vpack.c.b16 %v682, %v681
    %v704 = vpack.c.b16 %v684, %v683
    %v705 = vpack.c.b16 %v686, %v685
    %v706 = vpack.c.b16 %v688, %v687
    %v707 = vpack.c.b16 %v690, %v689
    %v708 = vpack.c.b16 %v692, %v691
    %725 = vmatprep.subr.bf16.mxu0 0
    %726 = vmatpush1.bf16.msra.mxu0 %v700
    %727 = vmatprep.subr.bf16.mxu0 0
    %728 = vmatpush1.bf16.msra.mxu0 %v699
    %729 = vmatprep.subr.bf16.mxu0 0
    %730 = vmatpush1.bf16.msra.mxu0 %v698
    %731 = vmatprep.subr.bf16.mxu0 0
    %732 = vmatpush1.bf16.msra.mxu0 %v697
    %733 = vmatprep.subr.bf16.mxu0 0
    %734 = vmatpush1.bf16.msra.mxu0 %v696
    %735 = vmatprep.subr.bf16.mxu0 0
    %736 = vmatpush1.bf16.msra.mxu0 %v695
    %737 = vmatprep.subr.bf16.mxu0 0
    %738 = vmatpush1.bf16.msra.mxu0 %v694
    %739 = vmatprep.subr.bf16.mxu0 0
    %740 = vmatpush1.bf16.msra.mxu0 %v693
    %741 = vmatprep.subr.bf16.mxu0 0
    %742 = vmatpush2.bf16.msra.mxu0 %v708
    %743 = vmatprep.subr.bf16.mxu0 0
    %744 = vmatpush2.bf16.msra.mxu0 %v707
    %745 = vmatprep.subr.bf16.mxu0 0
    %746 = vmatpush2.bf16.msra.mxu0 %v706
    %747 = vmatprep.subr.bf16.mxu0 0
    %748 = vmatpush2.bf16.msra.mxu0 %v705
    %749 = vmatprep.subr.bf16.mxu0 0
    %750 = vmatpush2.bf16.msra.mxu0 %v704
    %751 = vmatprep.subr.bf16.mxu0 0
    %752 = vmatpush2.bf16.msra.mxu0 %v703
    %753 = vmatprep.subr.bf16.mxu0 0
    %754 = vmatpush2.bf16.msra.mxu0 %v702
    %755 = vmatprep.subr.bf16.mxu0 0
    %756 = vmatpush2.bf16.msra.mxu0 %v701
    %757 = vmatprep.mubr.bf16.mxu0 %v587
    %758 = vmatmul.mubr.bf16.gmra.mxu0 %v586
    %v759 = vpop.f32.mrf.mxu0
    %v760 = vadd.f32 %v627, %v759
    %v761 = vpop.f32.mrf.mxu0
    %v762 = vpop.f32.mrf.mxu0
    %v763 = vadd.f32 %v627, %v762
    %v764 = vpop.f32.mrf.mxu0
    %765 = vmatprep.mubr.bf16.mxu0 %v589
    %766 = vmatmul.mubr.bf16.gmra.mxu0 %v588
    %v767 = vpop.f32.mrf.mxu0
    %v768 = vadd.f32 %v627, %v767
    %v769 = vpop.f32.mrf.mxu0
    %v770 = vpop.f32.mrf.mxu0
    %v771 = vadd.f32 %v627, %v770
    %v772 = vpop.f32.mrf.mxu0
    %773 = vdwg.mxu0
    %v774 = vmax.f32 %v760, 0.0
    %v775 = vmax.f32 %v763, 0.0
    %v776 = vmax.f32 %v768, 0.0
    %v777 = vmax.f32 %v771, 0.0
    %778 = vst [vmem:[%s11] sm:$0xff] %v774
    %779 = vst [vmem:[%s11 + $0x8] sm:$0xff] %v775
    %780 = vst [vmem:[%s11 + $0x10] sm:$0xff] %v776
    %781 = vst [vmem:[%s11 + $0x18] sm:$0xff] %v777
    // Predicated region
    $region70: #{forward.10} parent=1 // pred_check
      _
    $region71: #{forward.10} parent=1 // pred_check_branch
      %783 = sbr.rel (0) target = $region73
    $region72: #{forward.10} parent=1 // pred_region
      _
    $region73: #{forward.10} parent=1 // pred_fallthru
      _
    // Predicated region
    $region74: #{forward.10} parent=1 // pred_check
      _
    $region75: #{forward.10} parent=1 // pred_check_branch
      %785 = sbr.rel (0) target = $region77
    $region76: #{forward.10} parent=1 // pred_region
      _
    $region77: #{forward.10} parent=1 // pred_fallthru
      _
    // Predicated region
    $region78: #{forward.10} parent=1 // pred_check
      _
    $region79: #{forward.10} parent=1 // pred_check_branch
      %787 = sbr.rel (0) target = $region81
    $region80: #{forward.10} parent=1 // pred_region
      _
    $region81: #{forward.10} parent=1 // pred_fallthru
      _
    // Predicated region
    $region82: #{forward.10} parent=1 // pred_check
      _
    $region83: #{forward.10} parent=1 // pred_check_branch
      %789 = sbr.rel (0) target = $region85
    $region84: #{forward.10} parent=1 // pred_region
      _
    $region85: #{forward.10} parent=1 // pred_fallthru
      _
    // Predicated region
    $region86: #{forward.10} parent=1 // pred_check
      _
    $region87: #{forward.10} parent=1 // pred_check_branch
      %791 = sbr.rel (0) target = $region89
    $region88: #{forward.10} parent=1 // pred_region
      _
    $region89: #{forward.10} parent=1 // pred_fallthru
      _
    // Predicated region
    $region90: #{forward.10} parent=1 // pred_check
      _
    $region91: #{forward.10} parent=1 // pred_check_branch
      %793 = sbr.rel (0) target = $region93
    $region92: #{forward.10} parent=1 // pred_region
      _
    $region93: #{forward.10} parent=1 // pred_fallthru
      _
    %794 = vsyncpa [#allocation3], 1
    %795 = vsyncpa [#allocation5], 1
    %796 = vsyncpa [#allocation8], 1
    %797 = vsyncpa [#allocation11], 1
    %798 = vsyncpa [#allocation14], 1

// kernel: forward.13
$region0: #{forward.13}
  #allocation0 [shape = 'u32[]', space=smem, size = 0x4, offset = 0x4, fixed_abs, tag = 'smem constant byte address 0x4 - core index']
  #allocation1 [shape = 'u32[144,128]{1,0:T(1,128)}', space=vmem, size = 0x12000, scoped, tag = 'internal scratch']
  %s0 = inlined_call_operand.vmem [shape: bf16[32,128], index: 0, kind: input, shape index: {}]
  %s1 = inlined_call_operand.vmem [shape: bf16[128,128], index: 1, kind: input, shape index: {}]
  %s2 = inlined_call_operand.vmem [shape: f32[1,128], index: 2, kind: input, shape index: {}]
  %s3 = inlined_call_operand.vmem [shape: bf16[128,128], index: 3, kind: input, shape index: {}]
  %s4 = inlined_call_operand.vmem [shape: f32[1,128], index: 4, kind: input, shape index: {}]
  %s5 = inlined_call_operand.vmem [shape: f32[32,128], index: 5, kind: output, shape index: {}]
  %s6 = sld [smem:[#allocation0]]
  $region30: #{forward.13} parent=0
    _
  %s8 = ssub.s32 1, %s6
  %s9 = scalar_select 0, %s8, %s6
  // Predicated region
  $region2: #{forward.13} parent=0 // pred_check
    _
  $region3: #{forward.13} parent=0 // pred_check_branch
    %11 = sbr.rel (0) target = $region5
  $region4: #{forward.13} parent=0 // pred_region
    _
  $region5: #{forward.13} parent=0 // pred_fallthru
    _
  // Predicated region
  $region6: #{forward.13} parent=0 // pred_check
    _
  $region7: #{forward.13} parent=0 // pred_check_branch
    %13 = sbr.rel (0) target = $region9
  $region8: #{forward.13} parent=0 // pred_region
    _
  $region9: #{forward.13} parent=0 // pred_fallthru
    _
  // Predicated region
  $region10: #{forward.13} parent=0 // pred_check
    _
  $region11: #{forward.13} parent=0 // pred_check_branch
    %15 = sbr.rel (0) target = $region13
  $region12: #{forward.13} parent=0 // pred_region
    _
  $region13: #{forward.13} parent=0 // pred_fallthru
    _
  // Predicated region
  $region14: #{forward.13} parent=0 // pred_check
    _
  $region15: #{forward.13} parent=0 // pred_check_branch
    %17 = sbr.rel (0) target = $region17
  $region16: #{forward.13} parent=0 // pred_region
    _
  $region17: #{forward.13} parent=0 // pred_fallthru
    _
  // Predicated region
  $region18: #{forward.13} parent=0 // pred_check
    _
  $region19: #{forward.13} parent=0 // pred_check_branch
    %19 = sbr.rel (0) target = $region21
  $region20: #{forward.13} parent=0 // pred_region
    _
  $region21: #{forward.13} parent=0 // pred_fallthru
    _
  %v21 = vld [vmem:[%s0] sm:$0xf]
  %v22 = vld [vmem:[%s0 + $0x4] sm:$0xf]
  %v23 = vld [vmem:[%s0 + $0x8] sm:$0xf]
  %v24 = vld [vmem:[%s0 + $0xc] sm:$0xf]
  %v25 = vld [vmem:[%s1] sm:$0xf]
  %v26 = vld [vmem:[%s1 + $0x4] sm:$0xf]
  %v27 = vld [vmem:[%s1 + $0x8] sm:$0xf]
  %v28 = vld [vmem:[%s1 + $0xc] sm:$0xf]
  %v29 = vld [vmem:[%s1 + $0x10] sm:$0xf]
  %v30 = vld [vmem:[%s1 + $0x14] sm:$0xf]
  %v31 = vld [vmem:[%s1 + $0x18] sm:$0xf]
  %v32 = vld [vmem:[%s1 + $0x1c] sm:$0xf]
  %v33 = vld [vmem:[%s1 + $0x20] sm:$0xf]
  %v34 = vld [vmem:[%s1 + $0x24] sm:$0xf]
  %v35 = vld [vmem:[%s1 + $0x28] sm:$0xf]
  %v36 = vld [vmem:[%s1 + $0x2c] sm:$0xf]
  %v37 = vld [vmem:[%s1 + $0x30] sm:$0xf]
  %v38 = vld [vmem:[%s1 + $0x34] sm:$0xf]
  %v39 = vld [vmem:[%s1 + $0x38] sm:$0xf]
  %v40 = vld [vmem:[%s1 + $0x3c] sm:$0xf]
  %v41 = vld [vmem:[%s2] sm:$0x1]
  %v43 = vlaneseq
  %v44 = vshrl.u32 %v43, 7
  %v45 = vsub.s32 0, %v44
  %v46 = vrot.slane %v41, %v45
  %v52 = vunpack.c.l.b16 %v21
  %v53 = vunpack.c.l.b16 %v22
  %v54 = vunpack.c.l.b16 %v23
  %v55 = vunpack.c.l.b16 %v24
  %v56 = vpack.c.b16 %v53, %v52
  %v57 = vpack.c.b16 %v55, %v54
  %v76 = vunpack.c.l.b16 %v25
  %v77 = vunpack.c.l.b16 %v26
  %v78 = vunpack.c.l.b16 %v27
  %v79 = vunpack.c.l.b16 %v28
  %v80 = vunpack.c.l.b16 %v29
  %v81 = vunpack.c.l.b16 %v30
  %v82 = vunpack.c.l.b16 %v31
  %v83 = vunpack.c.l.b16 %v32
  %v84 = vunpack.c.l.b16 %v33
  %v85 = vunpack.c.l.b16 %v34
  %v86 = vunpack.c.l.b16 %v35
  %v87 = vunpack.c.l.b16 %v36
  %v88 = vunpack.c.l.b16 %v37
  %v89 = vunpack.c.l.b16 %v38
  %v90 = vunpack.c.l.b16 %v39
  %v91 = vunpack.c.l.b16 %v40
  %v92 = vpack.c.b16 %v77, %v76
  %v93 = vpack.c.b16 %v79, %v78
  %v94 = vpack.c.b16 %v81, %v80
  %v95 = vpack.c.b16 %v83, %v82
  %v96 = vpack.c.b16 %v85, %v84
  %v97 = vpack.c.b16 %v87, %v86
  %v98 = vpack.c.b16 %v89, %v88
  %v99 = vpack.c.b16 %v91, %v90
  %108 = vmatprep.subr.bf16.mxu0 0
  %109 = vmatpush1.bf16.msra.mxu0 %v99
  %110 = vmatprep.subr.bf16.mxu0 0
  %111 = vmatpush1.bf16.msra.mxu0 %v98
  %112 = vmatprep.subr.bf16.mxu0 0
  %113 = vmatpush1.bf16.msra.mxu0 %v97
  %114 = vmatprep.subr.bf16.mxu0 0
  %115 = vmatpush1.bf16.msra.mxu0 %v96
  %116 = vmatprep.subr.bf16.mxu0 0
  %117 = vmatpush1.bf16.msra.mxu0 %v95
  %118 = vmatprep.subr.bf16.mxu0 0
  %119 = vmatpush1.bf16.msra.mxu0 %v94
  %120 = vmatprep.subr.bf16.mxu0 0
  %121 = vmatpush1.bf16.msra.mxu0 %v93
  %122 = vmatprep.subr.bf16.mxu0 0
  %123 = vmatpush1.bf16.msra.mxu0 %v92
  %124 = vmatprep.subr.bf16.mxu0 0
  %125 = vmatpush2.bf16.msra.mxu0 0
  %126 = vmatprep.subr.bf16.mxu0 0
  %127 = vmatpush2.bf16.msra.mxu0 0
  %128 = vmatprep.subr.bf16.mxu0 0
  %129 = vmatpush2.bf16.msra.mxu0 0
  %130 = vmatprep.subr.bf16.mxu0 0
  %131 = vmatpush2.bf16.msra.mxu0 0
  %132 = vmatprep.subr.bf16.mxu0 0
  %133 = vmatpush2.bf16.msra.mxu0 0
  %134 = vmatprep.subr.bf16.mxu0 0
  %135 = vmatpush2.bf16.msra.mxu0 0
  %136 = vmatprep.subr.bf16.mxu0 0
  %137 = vmatpush2.bf16.msra.mxu0 0
  %138 = vmatprep.subr.bf16.mxu0 0
  %139 = vmatpush2.bf16.msra.mxu0 0
  %140 = vmatprep.mubr.bf16.mxu0 0
  %141 = vmatmul.mubr.bf16.gmra.mxu0 %v56
  %v142 = vpop.f32.mrf.mxu0
  %v143 = vadd.f32 %v46, %v142
  %v144 = vpop.f32.mrf.mxu0
  %v145 = vpop.f32.mrf.mxu0
  %v146 = vadd.f32 %v46, %v145
  %v147 = vpop.f32.mrf.mxu0
  %148 = vmatprep.mubr.bf16.mxu0 0
  %149 = vmatmul.mubr.bf16.gmra.mxu0 %v57
  %v150 = vpop.f32.mrf.mxu0
  %v151 = vadd.f32 %v46, %v150
  %v152 = vpop.f32.mrf.mxu0
  %v153 = vpop.f32.mrf.mxu0
  %v154 = vadd.f32 %v46, %v153
  %v155 = vpop.f32.mrf.mxu0
  %156 = vdwg.mxu0
  %v157 = vmax.f32 %v143, 0.0
  %v158 = vmax.f32 %v146, 0.0
  %v159 = vmax.f32 %v151, 0.0
  %v160 = vmax.f32 %v154, 0.0
  %v161 = vpack.c.bf16 %v158, %v157
  %v162 = vpack.c.bf16 %v160, %v159
  %v163 = vld [vmem:[%s3] sm:$0xf]
  %v164 = vld [vmem:[%s3 + $0x4] sm:$0xf]
  %v165 = vld [vmem:[%s3 + $0x8] sm:$0xf]
  %v166 = vld [vmem:[%s3 + $0xc] sm:$0xf]
  %v167 = vld [vmem:[%s3 + $0x10] sm:$0xf]
  %v168 = vld [vmem:[%s3 + $0x14] sm:$0xf]
  %v169 = vld [vmem:[%s3 + $0x18] sm:$0xf]
  %v170 = vld [vmem:[%s3 + $0x1c] sm:$0xf]
  %v171 = vld [vmem:[%s3 + $0x20] sm:$0xf]
  %v172 = vld [vmem:[%s3 + $0x24] sm:$0xf]
  %v173 = vld [vmem:[%s3 + $0x28] sm:$0xf]
  %v174 = vld [vmem:[%s3 + $0x2c] sm:$0xf]
  %v175 = vld [vmem:[%s3 + $0x30] sm:$0xf]
  %v176 = vld [vmem:[%s3 + $0x34] sm:$0xf]
  %v177 = vld [vmem:[%s3 + $0x38] sm:$0xf]
  %v178 = vld [vmem:[%s3 + $0x3c] sm:$0xf]
  %v179 = vld [vmem:[%s4] sm:$0x1]
  %v181 = vlaneseq
  %v182 = vshrl.u32 %v181, 7
  %v183 = vsub.s32 0, %v182
  %v184 = vrot.slane %v179, %v183
  %v202 = vunpack.c.l.b16 %v163
  %v203 = vunpack.c.l.b16 %v164
  %v204 = vunpack.c.l.b16 %v165
  %v205 = vunpack.c.l.b16 %v166
  %v206 = vunpack.c.l.b16 %v167
  %v207 = vunpack.c.l.b16 %v168
  %v208 = vunpack.c.l.b16 %v169
  %v209 = vunpack.c.l.b16 %v170
  %v210 = vunpack.c.l.b16 %v171
  %v211 = vunpack.c.l.b16 %v172
  %v212 = vunpack.c.l.b16 %v173
  %v213 = vunpack.c.l.b16 %v174
  %v214 = vunpack.c.l.b16 %v175
  %v215 = vunpack.c.l.b16 %v176
  %v216 = vunpack.c.l.b16 %v177
  %v217 = vunpack.c.l.b16 %v178
  %v218 = vpack.c.b16 %v203, %v202
  %v219 = vpack.c.b16 %v205, %v204
  %v220 = vpack.c.b16 %v207, %v206
  %v221 = vpack.c.b16 %v209, %v208
  %v222 = vpack.c.b16 %v211, %v210
  %v223 = vpack.c.b16 %v213, %v212
  %v224 = vpack.c.b16 %v215, %v214
  %v225 = vpack.c.b16 %v217, %v216
  %234 = vmatprep.subr.bf16.mxu0 0
  %235 = vmatpush1.bf16.msra.mxu0 %v225
  %236 = vmatprep.subr.bf16.mxu0 0
  %237 = vmatpush1.bf16.msra.mxu0 %v224
  %238 = vmatprep.subr.bf16.mxu0 0
  %239 = vmatpush1.bf16.msra.mxu0 %v223
  %240 = vmatprep.subr.bf16.mxu0 0
  %241 = vmatpush1.bf16.msra.mxu0 %v222
  %242 = vmatprep.subr.bf16.mxu0 0
  %243 = vmatpush1.bf16.msra.mxu0 %v221
  %244 = vmatprep.subr.bf16.mxu0 0
  %245 = vmatpush1.bf16.msra.mxu0 %v220
  %246 = vmatprep.subr.bf16.mxu0 0
  %247 = vmatpush1.bf16.msra.mxu0 %v219
  %248 = vmatprep.subr.bf16.mxu0 0
  %249 = vmatpush1.bf16.msra.mxu0 %v218
  %250 = vmatprep.subr.bf16.mxu0 0
  %251 = vmatpush2.bf16.msra.mxu0 0
  %252 = vmatprep.subr.bf16.mxu0 0
  %253 = vmatpush2.bf16.msra.mxu0 0
  %254 = vmatprep.subr.bf16.mxu0 0
  %255 = vmatpush2.bf16.msra.mxu0 0
  %256 = vmatprep.subr.bf16.mxu0 0
  %257 = vmatpush2.bf16.msra.mxu0 0
  %258 = vmatprep.subr.bf16.mxu0 0
  %259 = vmatpush2.bf16.msra.mxu0 0
  %260 = vmatprep.subr.bf16.mxu0 0
  %261 = vmatpush2.bf16.msra.mxu0 0
  %262 = vmatprep.subr.bf16.mxu0 0
  %263 = vmatpush2.bf16.msra.mxu0 0
  %264 = vmatprep.subr.bf16.mxu0 0
  %265 = vmatpush2.bf16.msra.mxu0 0
  %266 = vmatprep.mubr.bf16.mxu0 0
  %267 = vmatmul.mubr.bf16.gmra.mxu0 %v161
  %v268 = vpop.f32.mrf.mxu0
  %v269 = vadd.f32 %v184, %v268
  %v270 = vpop.f32.mrf.mxu0
  %v271 = vpop.f32.mrf.mxu0
  %v272 = vadd.f32 %v184, %v271
  %v273 = vpop.f32.mrf.mxu0
  %274 = vmatprep.mubr.bf16.mxu0 0
  %275 = vmatmul.mubr.bf16.gmra.mxu0 %v162
  %v276 = vpop.f32.mrf.mxu0
  %v277 = vadd.f32 %v184, %v276
  %v278 = vpop.f32.mrf.mxu0
  %v279 = vpop.f32.mrf.mxu0
  %v280 = vadd.f32 %v184, %v279
  %v281 = vpop.f32.mrf.mxu0
  %282 = vdwg.mxu0
  %v283 = vmax.f32 %v269, 0.0
  %v284 = vmax.f32 %v272, 0.0
  %v285 = vmax.f32 %v277, 0.0
  %v286 = vmax.f32 %v280, 0.0
  %287 = vst [vmem:[%s5] sm:$0xff] %v283
  %288 = vst [vmem:[%s5 + $0x8] sm:$0xff] %v284
  %289 = vst [vmem:[%s5 + $0x10] sm:$0xff] %v285
  %290 = vst [vmem:[%s5 + $0x18] sm:$0xff] %v286
  // Predicated region
  $region22: #{forward.13} parent=0 // pred_check
    _
  $region23: #{forward.13} parent=0 // pred_check_branch
    %292 = sbr.rel (0) target = $region25
  $region24: #{forward.13} parent=0 // pred_region
    _
  $region25: #{forward.13} parent=0 // pred_fallthru
    _
  // Predicated region
  $region26: #{forward.13} parent=0 // pred_check
    _
  $region27: #{forward.13} parent=0 // pred_check_branch
    %294 = sbr.rel (0) target = $region29
  $region28: #{forward.13} parent=0 // pred_region
    _
  $region29: #{forward.13} parent=0 // pred_fallthru
    _

// kernel: forward.12
$region0: #{forward.12}
  #allocation0 [shape = 'u32[]', space=smem, size = 0x4, offset = 0x4, fixed_abs, tag = 'smem constant byte address 0x4 - core index']
  #allocation1 [shape = 'u32[144,128]{1,0:T(1,128)}', space=vmem, size = 0x12000, scoped, tag = 'internal scratch']
  %s0 = inlined_call_operand.vmem [shape: f32[2,8,16], index: 0, kind: input, shape index: {}]
  %s1 = inlined_call_operand.vmem [shape: f32[2,16,16], index: 1, kind: input, shape index: {}]
  %s2 = inlined_call_operand.vmem [shape: f32[16,8], index: 2, kind: input, shape index: {}]
  %s3 = inlined_call_operand.vmem [shape: f32[1,8], index: 3, kind: input, shape index: {}]
  %s4 = inlined_call_operand.vmem [shape: f32[8,8], index: 4, kind: input, shape index: {}]
  %s5 = inlined_call_operand.vmem [shape: f32[1,8], index: 5, kind: input, shape index: {}]
  %s6 = inlined_call_operand.vmem [shape: f32[16,16], index: 6, kind: input, shape index: {}]
  %s7 = inlined_call_operand.vmem [shape: f32[1,16], index: 7, kind: input, shape index: {}]
  %s8 = inlined_call_operand.vmem [shape: f32[8,8], index: 8, kind: input, shape index: {}]
  %s9 = inlined_call_operand.vmem [shape: f32[1,8], index: 9, kind: input, shape index: {}]
  %s10 = inlined_call_operand.vmem [shape: f32[8,128], index: 10, kind: input, shape index: {}]
  %s11 = inlined_call_operand.vmem [shape: f32[1,128], index: 11, kind: input, shape index: {}]
  %s12 = inlined_call_operand.vmem [shape: f32[2,16,128], index: 12, kind: output, shape index: {}]
  %s13 = sld [smem:[#allocation0]]
  $region81: #{forward.12} parent=0
    _
  %s15 = ssub.s32 1, %s13
  %s16 = scalar_select 0, %s15, %s13
  loop: start=0, step=1, limit=4
  $region2: #{forward.12} parent=0 // loop_pre_header
    _
  $region3: #{forward.12} parent=0 // loop_header
    %s18 = sphi 0, %s22
    %p19 = scmp.ge.s32.totalorder %s18, 4
    %s28 = sphi 0, %s30
    %s31 = sphi 0, %s28
    %s32 = sphi 0, %s31
    %s48 = sphi 0, %s32
    %s54 = sphi 0, %s56
    %s57 = sphi 0, %s54
    %s58 = sphi 0, %s57
    %s74 = sphi 0, %s58
    %s78 = sphi 0, %s78
    %s80 = sphi 0, %s78
    %s81 = sphi 0, %s80
    %s95 = sphi 0, %s81
    %s99 = sphi 0, %s99
    %s101 = sphi 0, %s99
    %s102 = sphi 0, %s101
    %s116 = sphi 0, %s102
    %s120 = sphi 0, %s120
    %s122 = sphi 0, %s120
    %s123 = sphi 0, %s122
    %s137 = sphi 0, %s123
    %s141 = sphi 0, %s141
    %s143 = sphi 0, %s141
    %s144 = sphi 0, %s143
    %s158 = sphi 0, %s144
    %s162 = sphi 0, %s162
    %s164 = sphi 0, %s162
    %s165 = sphi 0, %s164
    %s179 = sphi 0, %s165
    %s183 = sphi 0, %s183
    %s185 = sphi 0, %s183
    %s186 = sphi 0, %s185
    %s200 = sphi 0, %s186
    %s204 = sphi 0, %s204
    %s206 = sphi 0, %s204
    %s207 = sphi 0, %s206
    %s221 = sphi 0, %s207
    %s225 = sphi 0, %s225
    %s227 = sphi 0, %s225
    %s228 = sphi 0, %s227
    %s242 = sphi 0, %s228
    %s246 = sphi 0, %s246
    %s248 = sphi 0, %s246
    %s249 = sphi 0, %s248
    %s263 = sphi 0, %s249
    %s267 = sphi 0, %s267
    %s269 = sphi 0, %s267
    %s270 = sphi 0, %s269
    %s284 = sphi 0, %s270
    %s290 = sphi 0, %s292
    %s293 = sphi 0, %s290
    %s294 = sphi 0, %s293
    %s310 = sphi 0, %s294
  $region4: #{forward.12} parent=0 // loop_header_branch
    %21 = sbr.rel (%p19) target = $region8
  $region5: #{forward.12} parent=0 // loop_body
    %s23 = ssub.s32 %s18, 1
    %s24 = ssub.s32 %s18, 2
    %s25 = sadd.s32 %s18, 1
    %s26 = ssub.s32 %s18, %s25
    %p27 = scmp.eq.s32.totalorder %s26, 0
    %s29 = sadd.s32 %s28, 1
    %s30 = scalar_select %p27, %s28, %s29
    %p33 = pneg %p27
    %p34 = scmp.eq.s32.totalorder %s18, 1
    %p35 = por %p33, %p34
    %p36 = scmp.ne.s32.totalorder %s28, %s31
    %p37 = scmp.eq.s32.totalorder %s18, 0
    %p38 = por %p36, %p37
    %p39 = scmp.ne.s32.totalorder %s28, %s31
    %p40 = scmp.eq.s32.totalorder %s23, 1
    %p41 = por %p39, %p40
    %p42 = scmp.ne.s32.totalorder %s31, %s32
    %p43 = scmp.eq.s32.totalorder %s23, 0
    %p44 = por %p42, %p43
    %p45 = scmp.ne.s32.totalorder %s31, %s32
    %p46 = scmp.eq.s32.totalorder %s24, 1
    %p47 = por %p45, %p46
    %p49 = scmp.ne.s32.totalorder %s32, %s48
    %p50 = scmp.eq.s32.totalorder %s24, 0
    %p51 = por %p49, %p50
    %s52 = ssub.s32 %s18, %s25
    %p53 = scmp.eq.s32.totalorder %s52, 0
    %s55 = sadd.s32 %s54, 1
    %s56 = scalar_select %p53, %s54, %s55
    %p59 = pneg %p53
    %p60 = scmp.eq.s32.totalorder %s18, 1
    %p61 = por %p59, %p60
    %p62 = scmp.ne.s32.totalorder %s54, %s57
    %p63 = scmp.eq.s32.totalorder %s18, 0
    %p64 = por %p62, %p63
    %p65 = scmp.ne.s32.totalorder %s54, %s57
    %p66 = scmp.eq.s32.totalorder %s23, 1
    %p67 = por %p65, %p66
    %p68 = scmp.ne.s32.totalorder %s57, %s58
    %p69 = scmp.eq.s32.totalorder %s23, 0
    %p70 = por %p68, %p69
    %p71 = scmp.ne.s32.totalorder %s57, %s58
    %p72 = scmp.eq.s32.totalorder %s24, 1
    %p73 = por %p71, %p72
    %p75 = scmp.ne.s32.totalorder %s58, %s74
    %p76 = scmp.eq.s32.totalorder %s24, 0
    %p77 = por %p75, %p76
    %s79 = sadd.s32 %s78, 1
    %p82 = scmp.eq.s32.totalorder %s18, 1
    %p83 = scmp.ne.s32.totalorder %s78, %s80
    %p84 = scmp.eq.s32.totalorder %s18, 0
    %p85 = por %p83, %p84
    %p86 = scmp.ne.s32.totalorder %s78, %s80
    %p87 = scmp.eq.s32.totalorder %s23, 1
    %p88 = por %p86, %p87
    %p89 = scmp.ne.s32.totalorder %s80, %s81
    %p90 = scmp.eq.s32.totalorder %s23, 0
    %p91 = por %p89, %p90
    %p92 = scmp.ne.s32.totalorder %s80, %s81
    %p93 = scmp.eq.s32.totalorder %s24, 1
    %p94 = por %p92, %p93
    %p96 = scmp.ne.s32.totalorder %s81, %s95
    %p97 = scmp.eq.s32.totalorder %s24, 0
    %p98 = por %p96, %p97
    %s100 = sadd.s32 %s99, 1
    %p103 = scmp.eq.s32.totalorder %s18, 1
    %p104 = scmp.ne.s32.totalorder %s99, %s101
    %p105 = scmp.eq.s32.totalorder %s18, 0
    %p106 = por %p104, %p105
    %p107 = scmp.ne.s32.totalorder %s99, %s101
    %p108 = scmp.eq.s32.totalorder %s23, 1
    %p109 = por %p107, %p108
    %p110 = scmp.ne.s32.totalorder %s101, %s102
    %p111 = scmp.eq.s32.totalorder %s23, 0
    %p112 = por %p110, %p111
    %p113 = scmp.ne.s32.totalorder %s101, %s102
    %p114 = scmp.eq.s32.totalorder %s24, 1
    %p115 = por %p113, %p114
    %p117 = scmp.ne.s32.totalorder %s102, %s116
    %p118 = scmp.eq.s32.totalorder %s24, 0
    %p119 = por %p117, %p118
    %s121 = sadd.s32 %s120, 1
    %p124 = scmp.eq.s32.totalorder %s18, 1
    %p125 = scmp.ne.s32.totalorder %s120, %s122
    %p126 = scmp.eq.s32.totalorder %s18, 0
    %p127 = por %p125, %p126
    %p128 = scmp.ne.s32.totalorder %s120, %s122
    %p129 = scmp.eq.s32.totalorder %s23, 1
    %p130 = por %p128, %p129
    %p131 = scmp.ne.s32.totalorder %s122, %s123
    %p132 = scmp.eq.s32.totalorder %s23, 0
    %p133 = por %p131, %p132
    %p134 = scmp.ne.s32.totalorder %s122, %s123
    %p135 = scmp.eq.s32.totalorder %s24, 1
    %p136 = por %p134, %p135
    %p138 = scmp.ne.s32.totalorder %s123, %s137
    %p139 = scmp.eq.s32.totalorder %s24, 0
    %p140 = por %p138, %p139
    %s142 = sadd.s32 %s141, 1
    %p145 = scmp.eq.s32.totalorder %s18, 1
    %p146 = scmp.ne.s32.totalorder %s141, %s143
    %p147 = scmp.eq.s32.totalorder %s18, 0
    %p148 = por %p146, %p147
    %p149 = scmp.ne.s32.totalorder %s141, %s143
    %p150 = scmp.eq.s32.totalorder %s23, 1
    %p151 = por %p149, %p150
    %p152 = scmp.ne.s32.totalorder %s143, %s144
    %p153 = scmp.eq.s32.totalorder %s23, 0
    %p154 = por %p152, %p153
    %p155 = scmp.ne.s32.totalorder %s143, %s144
    %p156 = scmp.eq.s32.totalorder %s24, 1
    %p157 = por %p155, %p156
    %p159 = scmp.ne.s32.totalorder %s144, %s158
    %p160 = scmp.eq.s32.totalorder %s24, 0
    %p161 = por %p159, %p160
    %s163 = sadd.s32 %s162, 1
    %p166 = scmp.eq.s32.totalorder %s18, 1
    %p167 = scmp.ne.s32.totalorder %s162, %s164
    %p168 = scmp.eq.s32.totalorder %s18, 0
    %p169 = por %p167, %p168
    %p170 = scmp.ne.s32.totalorder %s162, %s164
    %p171 = scmp.eq.s32.totalorder %s23, 1
    %p172 = por %p170, %p171
    %p173 = scmp.ne.s32.totalorder %s164, %s165
    %p174 = scmp.eq.s32.totalorder %s23, 0
    %p175 = por %p173, %p174
    %p176 = scmp.ne.s32.totalorder %s164, %s165
    %p177 = scmp.eq.s32.totalorder %s24, 1
    %p178 = por %p176, %p177
    %p180 = scmp.ne.s32.totalorder %s165, %s179
    %p181 = scmp.eq.s32.totalorder %s24, 0
    %p182 = por %p180, %p181
    %s184 = sadd.s32 %s183, 1
    %p187 = scmp.eq.s32.totalorder %s18, 1
    %p188 = scmp.ne.s32.totalorder %s183, %s185
    %p189 = scmp.eq.s32.totalorder %s18, 0
    %p190 = por %p188, %p189
    %p191 = scmp.ne.s32.totalorder %s183, %s185
    %p192 = scmp.eq.s32.totalorder %s23, 1
    %p193 = por %p191, %p192
    %p194 = scmp.ne.s32.totalorder %s185, %s186
    %p195 = scmp.eq.s32.totalorder %s23, 0
    %p196 = por %p194, %p195
    %p197 = scmp.ne.s32.totalorder %s185, %s186
    %p198 = scmp.eq.s32.totalorder %s24, 1
    %p199 = por %p197, %p198
    %p201 = scmp.ne.s32.totalorder %s186, %s200
    %p202 = scmp.eq.s32.totalorder %s24, 0
    %p203 = por %p201, %p202
    %s205 = sadd.s32 %s204, 1
    %p208 = scmp.eq.s32.totalorder %s18, 1
    %p209 = scmp.ne.s32.totalorder %s204, %s206
    %p210 = scmp.eq.s32.totalorder %s18, 0
    %p211 = por %p209, %p210
    %p212 = scmp.ne.s32.totalorder %s204, %s206
    %p213 = scmp.eq.s32.totalorder %s23, 1
    %p214 = por %p212, %p213
    %p215 = scmp.ne.s32.totalorder %s206, %s207
    %p216 = scmp.eq.s32.totalorder %s23, 0
    %p217 = por %p215, %p216
    %p218 = scmp.ne.s32.totalorder %s206, %s207
    %p219 = scmp.eq.s32.totalorder %s24, 1
    %p220 = por %p218, %p219
    %p222 = scmp.ne.s32.totalorder %s207, %s221
    %p223 = scmp.eq.s32.totalorder %s24, 0
    %p224 = por %p222, %p223
    %s226 = sadd.s32 %s225, 1
    %p229 = scmp.eq.s32.totalorder %s18, 1
    %p230 = scmp.ne.s32.totalorder %s225, %s227
    %p231 = scmp.eq.s32.totalorder %s18, 0
    %p232 = por %p230, %p231
    %p233 = scmp.ne.s32.totalorder %s225, %s227
    %p234 = scmp.eq.s32.totalorder %s23, 1
    %p235 = por %p233, %p234
    %p236 = scmp.ne.s32.totalorder %s227, %s228
    %p237 = scmp.eq.s32.totalorder %s23, 0
    %p238 = por %p236, %p237
    %p239 = scmp.ne.s32.totalorder %s227, %s228
    %p240 = scmp.eq.s32.totalorder %s24, 1
    %p241 = por %p239, %p240
    %p243 = scmp.ne.s32.totalorder %s228, %s242
    %p244 = scmp.eq.s32.totalorder %s24, 0
    %p245 = por %p243, %p244
    %s247 = sadd.s32 %s246, 1
    %p250 = scmp.eq.s32.totalorder %s18, 1
    %p251 = scmp.ne.s32.totalorder %s246, %s248
    %p252 = scmp.eq.s32.totalorder %s18, 0
    %p253 = por %p251, %p252
    %p254 = scmp.ne.s32.totalorder %s246, %s248
    %p255 = scmp.eq.s32.totalorder %s23, 1
    %p256 = por %p254, %p255
    %p257 = scmp.ne.s32.totalorder %s248, %s249
    %p258 = scmp.eq.s32.totalorder %s23, 0
    %p259 = por %p257, %p258
    %p260 = scmp.ne.s32.totalorder %s248, %s249
    %p261 = scmp.eq.s32.totalorder %s24, 1
    %p262 = por %p260, %p261
    %p264 = scmp.ne.s32.totalorder %s249, %s263
    %p265 = scmp.eq.s32.totalorder %s24, 0
    %p266 = por %p264, %p265
    %s268 = sadd.s32 %s267, 1
    %p271 = scmp.eq.s32.totalorder %s18, 1
    %p272 = scmp.ne.s32.totalorder %s267, %s269
    %p273 = scmp.eq.s32.totalorder %s18, 0
    %p274 = por %p272, %p273
    %p275 = scmp.ne.s32.totalorder %s267, %s269
    %p276 = scmp.eq.s32.totalorder %s23, 1
    %p277 = por %p275, %p276
    %p278 = scmp.ne.s32.totalorder %s269, %s270
    %p279 = scmp.eq.s32.totalorder %s23, 0
    %p280 = por %p278, %p279
    %p281 = scmp.ne.s32.totalorder %s269, %s270
    %p282 = scmp.eq.s32.totalorder %s24, 1
    %p283 = por %p281, %p282
    %p285 = scmp.ne.s32.totalorder %s270, %s284
    %p286 = scmp.eq.s32.totalorder %s24, 0
    %p287 = por %p285, %p286
    %s288 = ssub.s32 %s18, %s25
    %p289 = scmp.eq.s32.totalorder %s288, 0
    %s291 = sadd.s32 %s290, 1
    %s292 = scalar_select %p289, %s290, %s291
    %p295 = pneg %p289
    %p296 = scmp.eq.s32.totalorder %s18, 1
    %p297 = por %p295, %p296
    %p298 = scmp.ne.s32.totalorder %s290, %s293
    %p299 = scmp.eq.s32.totalorder %s18, 0
    %p300 = por %p298, %p299
    %p301 = scmp.ne.s32.totalorder %s290, %s293
    %p302 = scmp.eq.s32.totalorder %s23, 1
    %p303 = por %p301, %p302
    %p304 = scmp.ne.s32.totalorder %s293, %s294
    %p305 = scmp.eq.s32.totalorder %s23, 0
    %p306 = por %p304, %p305
    %p307 = scmp.ne.s32.totalorder %s293, %s294
    %p308 = scmp.eq.s32.totalorder %s24, 1
    %p309 = por %p307, %p308
    %p311 = scmp.ne.s32.totalorder %s294, %s310
    %p312 = scmp.eq.s32.totalorder %s24, 0
    %p313 = por %p311, %p312
    %p314 = scmp.le.s32.totalorder 1, %s18
    %p315 = scmp.lt.s32.totalorder %s18, 3
    %p316 = pnand %p314, %p315
    %p317 = pneg %p316
    // Predicated region
    $region9: #{forward.12} parent=5 // pred_check
      _
    $region10: #{forward.12} parent=5 // pred_check_branch
      %319 = sbr.rel (%p316) target = $region12
    $region11: #{forward.12} parent=5 // pred_region
      %s320 = ssub.s32 %s18, 1
      // Predicated region
      $region13: #{forward.12} parent=11 // pred_check
        %p321 = pneg %p91
      $region14: #{forward.12} parent=11 // pred_check_branch
        %323 = sbr.rel (%p321) target = $region16
      $region15: #{forward.12} parent=11 // pred_region
        _
      $region16: #{forward.12} parent=11 // pred_fallthru
        _
      // Predicated region
      $region17: #{forward.12} parent=11 // pred_check
        %p324 = pneg %p112
      $region18: #{forward.12} parent=11 // pred_check_branch
        %326 = sbr.rel (%p324) target = $region20
      $region19: #{forward.12} parent=11 // pred_region
        _
      $region20: #{forward.12} parent=11 // pred_fallthru
        _
      // Predicated region
      $region21: #{forward.12} parent=11 // pred_check
        %p327 = pneg %p133
      $region22: #{forward.12} parent=11 // pred_check_branch
        %329 = sbr.rel (%p327) target = $region24
      $region23: #{forward.12} parent=11 // pred_region
        _
      $region24: #{forward.12} parent=11 // pred_fallthru
        _
      // Predicated region
      $region25: #{forward.12} parent=11 // pred_check
        %p330 = pneg %p154
      $region26: #{forward.12} parent=11 // pred_check_branch
        %332 = sbr.rel (%p330) target = $region28
      $region27: #{forward.12} parent=11 // pred_region
        _
      $region28: #{forward.12} parent=11 // pred_fallthru
        _
      // Predicated region
      $region29: #{forward.12} parent=11 // pred_check
        %p333 = pneg %p175
      $region30: #{forward.12} parent=11 // pred_check_branch
        %335 = sbr.rel (%p333) target = $region32
      $region31: #{forward.12} parent=11 // pred_region
        _
      $region32: #{forward.12} parent=11 // pred_fallthru
        _
      // Predicated region
      $region33: #{forward.12} parent=11 // pred_check
        %p336 = pneg %p196
      $region34: #{forward.12} parent=11 // pred_check_branch
        %338 = sbr.rel (%p336) target = $region36
      $region35: #{forward.12} parent=11 // pred_region
        _
      $region36: #{forward.12} parent=11 // pred_fallthru
        _
      // Predicated region
      $region37: #{forward.12} parent=11 // pred_check
        %p339 = pneg %p217
      $region38: #{forward.12} parent=11 // pred_check_branch
        %341 = sbr.rel (%p339) target = $region40
      $region39: #{forward.12} parent=11 // pred_region
        _
      $region40: #{forward.12} parent=11 // pred_fallthru
        _
      // Predicated region
      $region41: #{forward.12} parent=11 // pred_check
        %p342 = pneg %p238
      $region42: #{forward.12} parent=11 // pred_check_branch
        %344 = sbr.rel (%p342) target = $region44
      $region43: #{forward.12} parent=11 // pred_region
        _
      $region44: #{forward.12} parent=11 // pred_fallthru
        _
      // Predicated region
      $region45: #{forward.12} parent=11 // pred_check
        %p345 = pneg %p259
      $region46: #{forward.12} parent=11 // pred_check_branch
        %347 = sbr.rel (%p345) target = $region48
      $region47: #{forward.12} parent=11 // pred_region
        _
      $region48: #{forward.12} parent=11 // pred_fallthru
        _
      // Predicated region
      $region49: #{forward.12} parent=11 // pred_check
        %p348 = pneg %p280
      $region50: #{forward.12} parent=11 // pred_check_branch
        %350 = sbr.rel (%p348) target = $region52
      $region51: #{forward.12} parent=11 // pred_region
        _
      $region52: #{forward.12} parent=11 // pred_fallthru
        _
    $region12: #{forward.12} parent=5 // pred_fallthru
      _
    %p351 = scmp.lt.s32.totalorder %s18, 2
    // Predicated region
    $region53: #{forward.12} parent=5 // pred_check
      %p352 = pneg %p351
    $region54: #{forward.12} parent=5 // pred_check_branch
      %354 = sbr.rel (%p352) target = $region56
    $region55: #{forward.12} parent=5 // pred_region
      // Predicated region
      $region57: #{forward.12} parent=55 // pred_check
        %p355 = pneg %p38
      $region58: #{forward.12} parent=55 // pred_check_branch
        %357 = sbr.rel (%p355) target = $region60
      $region59: #{forward.12} parent=55 // pred_region
        %p358 = scmp.lt.s32.totalorder %s18, 1
        %s359 = scalar_select %p358, %s18, 1
        %s360 = smul.addr %s359, 8
        %s361 = scalar_lea.vmem %s0, %s360
      $region60: #{forward.12} parent=55 // pred_fallthru
        _
      // Predicated region
      $region61: #{forward.12} parent=55 // pred_check
        %p362 = pneg %p64
      $region62: #{forward.12} parent=55 // pred_check_branch
        %364 = sbr.rel (%p362) target = $region64
      $region63: #{forward.12} parent=55 // pred_region
        %p365 = scmp.lt.s32.totalorder %s18, 1
        %s366 = scalar_select %p365, %s18, 1
        %s367 = smul.addr %s366, 2
        %s368 = smul.addr %s367, 8
        %s369 = scalar_lea.vmem %s1, %s368
      $region64: #{forward.12} parent=55 // pred_fallthru
        _
    $region56: #{forward.12} parent=5 // pred_fallthru
      _
    %p370 = scmp.le.s32.totalorder 1, %s18
    %p371 = scmp.lt.s32.totalorder %s18, 3
    %p372 = pnand %p370, %p371
    %p373 = pneg %p372
    // Predicated region
    $region65: #{forward.12} parent=5 // pred_check
      _
    $region66: #{forward.12} parent=5 // pred_check_branch
      %375 = sbr.rel (%p372) target = $region68
    $region67: #{forward.12} parent=5 // pred_region
      %s376 = ssub.s32 %s18, 1
      %p377 = scmp.lt.s32.totalorder %s23, 1
      %s378 = scalar_select %p377, %s23, 1
      %s379 = smul.addr %s378, 8
      %s380 = scalar_lea.vmem %s0, %s379
      %p381 = pneg %p44
      %p382 = pneg %p41
      %p383 = scmp.lt.s32.totalorder %s23, 1
      %s384 = scalar_select %p383, %s23, 1
      %s385 = smul.addr %s384, 2
      %s386 = smul.addr %s385, 8
      %s387 = scalar_lea.vmem %s1, %s386
      %p388 = pneg %p70
      %p389 = pneg %p67
      %p390 = pneg %p91
      %p391 = pneg %p88
      %p392 = pneg %p112
      %p393 = pneg %p109
      %p394 = pneg %p133
      %p395 = pneg %p130
      %p396 = pneg %p154
      %p397 = pneg %p151
      %p398 = pneg %p175
      %p399 = pneg %p172
      %p400 = pneg %p196
      %p401 = pneg %p193
      %p402 = pneg %p217
      %p403 = pneg %p214
      %p404 = pneg %p238
      %p405 = pneg %p235
      %p406 = pneg %p259
      %p407 = pneg %p256
      %p408 = pneg %p280
      %p409 = pneg %p277
      %p410 = pneg %p306
      %p411 = pneg %p303
      %p412 = scmp.lt.s32.totalorder %s23, 1
      %s413 = scalar_select %p412, %s23, 1
      %s414 = smul.addr %s413, 2
      %s415 = smul.addr %s414, 8
      %s416 = scalar_lea.vmem %s12, %s415
      %p417 = scmp.lt.s32.totalorder %s23, 1
      %s418 = scalar_select %p417, %s23, 1
      %s419 = smul.addr %s418, 8
      %s420 = scalar_lea.vmem %s0, %s419
      %p421 = scmp.lt.s32.totalorder %s23, 1
      %s422 = scalar_select %p421, %s23, 1
      %s423 = smul.addr %s422, 2
      %s424 = smul.addr %s423, 8
      %s425 = scalar_lea.vmem %s1, %s424
      %p426 = scmp.lt.s32.totalorder %s23, 1
      %s427 = scalar_select %p426, %s23, 1
      %s428 = smul.addr %s427, 2
      %s429 = smul.addr %s428, 8
      %s430 = scalar_lea.vmem %s12, %s429
      %v431 = vld [vmem:[%s420] sm:$0xff]
      %vm432 = vcmask 130048
      %v433 = vsel %vm432, %v431, -inf
      %434 = vmax.xlane.f32.xlu0 %v433
      %v435 = vpop.xlane.xlu0 %434
      %v436 = vsub.f32 %v431, %v435
      %v437 = vmul.f32 %v436, 1.442695
      %v438 = vpow.pop %v437
      %v439 = vsel %vm432, %v438, 0.0
      %440 = vadd.xlane.f32.xlu0 %v439
      %v441 = vpop.xlane.xlu0 %440
      %v442 = vrcp.pop %v441
      %v443 = vmul.f32 %v438, %v442
      %v444 = vld [vmem:[%s425] sm:$0xff]
      %v445 = vld [vmem:[%s425 + $0x8] sm:$0xff]
      %v447 = vsel %vm432, %v443, 0
      %449 = vmatprep.subr.mxu0 0.0
      %450 = vmatpush1.msra.mxu0 0.0
      %451 = vmatprep.subr.mxu0 0.0
      %452 = vmatpush1.msra.mxu0 0.0
      %453 = vmatprep.subr.mxu0 0.0
      %454 = vmatpush1.msra.mxu0 0.0
      %455 = vmatprep.subr.mxu0 0.0
      %456 = vmatpush1.msra.mxu0 0.0
      %457 = vmatprep.subr.mxu0 0.0
      %458 = vmatpush1.msra.mxu0 0.0
      %459 = vmatprep.subr.mxu0 0.0
      %460 = vmatpush1.msra.mxu0 0.0
      %461 = vmatprep.subr.mxu0 0.0
      %462 = vmatpush1.msra.mxu0 0.0
      %463 = vmatprep.subr.mxu0 0.0
      %464 = vmatpush1.msra.mxu0 0.0
      %465 = vmatprep.subr.mxu0 0.0
      %466 = vmatpush1.msra.mxu0 0.0
      %467 = vmatprep.subr.mxu0 0.0
      %468 = vmatpush1.msra.mxu0 0.0
      %469 = vmatprep.subr.mxu0 0.0
      %470 = vmatpush1.msra.mxu0 0.0
      %471 = vmatprep.subr.mxu0 0.0
      %472 = vmatpush1.msra.mxu0 0.0
      %473 = vmatprep.subr.mxu0 0.0
      %474 = vmatpush1.msra.mxu0 0.0
      %475 = vmatprep.subr.mxu0 0.0
      %476 = vmatpush1.msra.mxu0 0.0
      %477 = vmatprep.subr.mxu0 0.0
      %478 = vmatpush1.msra.mxu0 %v445
      %479 = vmatprep.subr.mxu0 0.0
      %480 = vmatpush1.msra.mxu0 %v444
      %481 = vmatprep.subr.mxu0 0.0
      %482 = vmatpush2.msra.mxu0 0.0
      %483 = vmatprep.subr.mxu0 0.0
      %484 = vmatpush2.msra.mxu0 0.0
      %485 = vmatprep.subr.mxu0 0.0
      %486 = vmatpush2.msra.mxu0 0.0
      %487 = vmatprep.subr.mxu0 0.0
      %488 = vmatpush2.msra.mxu0 0.0
      %489 = vmatprep.subr.mxu0 0.0
      %490 = vmatpush2.msra.mxu0 0.0
      %491 = vmatprep.subr.mxu0 0.0
      %492 = vmatpush2.msra.mxu0 0.0
      %493 = vmatprep.subr.mxu0 0.0
      %494 = vmatpush2.msra.mxu0 0.0
      %495 = vmatprep.subr.mxu0 0.0
      %496 = vmatpush2.msra.mxu0 0.0
      %497 = vmatprep.subr.mxu0 0.0
      %498 = vmatpush2.msra.mxu0 0.0
      %499 = vmatprep.subr.mxu0 0.0
      %500 = vmatpush2.msra.mxu0 0.0
      %501 = vmatprep.subr.mxu0 0.0
      %502 = vmatpush2.msra.mxu0 0.0
      %503 = vmatprep.subr.mxu0 0.0
      %504 = vmatpush2.msra.mxu0 0.0
      %505 = vmatprep.subr.mxu0 0.0
      %506 = vmatpush2.msra.mxu0 0.0
      %507 = vmatprep.subr.mxu0 0.0
      %508 = vmatpush2.msra.mxu0 0.0
      %509 = vmatprep.subr.mxu0 0.0
      %510 = vmatpush2.msra.mxu0 0.0
      %511 = vmatprep.subr.mxu0 0.0
      %512 = vmatpush2.msra.mxu0 0.0
      %513 = vmatprep.mubr.f32.mxu0 0.0
      %514 = vmatmul.mubr.f32.gmra.mxu0 %v447
      %v515 = vpop.f32.mrf.mxu0
      %v516 = vadd.f32 0.0, %v515
      %v517 = vpop.f32.mrf.mxu0
      %518 = vdwg.mxu0
      %v519 = vld [vmem:[%s2] sm:$0xff]
      %v520 = vld [vmem:[%s2 + $0x8] sm:$0xff]
      %v521 = vld [vmem:[%s3] sm:$0x1]
      %v523 = vlaneseq
      %v524 = vshrl.u32 %v523, 7
      %v525 = vsub.s32 0, %v524
      %v526 = vrot.slane %v521, %v525
      %v529 = vsel %vm432, %v444, 0
      %v532 = vsel %vm432, %v445, 0
      %534 = vmatprep.subr.mxu0 0.0
      %535 = vmatpush1.msra.mxu0 0.0
      %536 = vmatprep.subr.mxu0 0.0
      %537 = vmatpush1.msra.mxu0 0.0
      %538 = vmatprep.subr.mxu0 0.0
      %539 = vmatpush1.msra.mxu0 0.0
      %540 = vmatprep.subr.mxu0 0.0
      %541 = vmatpush1.msra.mxu0 0.0
      %542 = vmatprep.subr.mxu0 0.0
      %543 = vmatpush1.msra.mxu0 0.0
      %544 = vmatprep.subr.mxu0 0.0
      %545 = vmatpush1.msra.mxu0 0.0
      %546 = vmatprep.subr.mxu0 0.0
      %547 = vmatpush1.msra.mxu0 0.0
      %548 = vmatprep.subr.mxu0 0.0
      %549 = vmatpush1.msra.mxu0 0.0
      %550 = vmatprep.subr.mxu0 0.0
      %551 = vmatpush1.msra.mxu0 0.0
      %552 = vmatprep.subr.mxu0 0.0
      %553 = vmatpush1.msra.mxu0 0.0
      %554 = vmatprep.subr.mxu0 0.0
      %555 = vmatpush1.msra.mxu0 0.0
      %556 = vmatprep.subr.mxu0 0.0
      %557 = vmatpush1.msra.mxu0 0.0
      %558 = vmatprep.subr.mxu0 0.0
      %559 = vmatpush1.msra.mxu0 0.0
      %560 = vmatprep.subr.mxu0 0.0
      %561 = vmatpush1.msra.mxu0 0.0
      %562 = vmatprep.subr.mxu0 0.0
      %563 = vmatpush1.msra.mxu0 %v520
      %564 = vmatprep.subr.mxu0 0.0
      %565 = vmatpush1.msra.mxu0 %v519
      %566 = vmatprep.subr.mxu0 0.0
      %567 = vmatpush2.msra.mxu0 0.0
      %568 = vmatprep.subr.mxu0 0.0
      %569 = vmatpush2.msra.mxu0 0.0
      %570 = vmatprep.subr.mxu0 0.0
      %571 = vmatpush2.msra.mxu0 0.0
      %572 = vmatprep.subr.mxu0 0.0
      %573 = vmatpush2.msra.mxu0 0.0
      %574 = vmatprep.subr.mxu0 0.0
      %575 = vmatpush2.msra.mxu0 0.0
      %576 = vmatprep.subr.mxu0 0.0
      %577 = vmatpush2.msra.mxu0 0.0
      %578 = vmatprep.subr.mxu0 0.0
      %579 = vmatpush2.msra.mxu0 0.0
      %580 = vmatprep.subr.mxu0 0.0
      %581 = vmatpush2.msra.mxu0 0.0
      %582 = vmatprep.subr.mxu0 0.0
      %583 = vmatpush2.msra.mxu0 0.0
      %584 = vmatprep.subr.mxu0 0.0
      %585 = vmatpush2.msra.mxu0 0.0
      %586 = vmatprep.subr.mxu0 0.0
      %587 = vmatpush2.msra.mxu0 0.0
      %588 = vmatprep.subr.mxu0 0.0
      %589 = vmatpush2.msra.mxu0 0.0
      %590 = vmatprep.subr.mxu0 0.0
      %591 = vmatpush2.msra.mxu0 0.0
      %592 = vmatprep.subr.mxu0 0.0
      %593 = vmatpush2.msra.mxu0 0.0
      %594 = vmatprep.subr.mxu0 0.0
      %595 = vmatpush2.msra.mxu0 0.0
      %596 = vmatprep.subr.mxu0 0.0
      %597 = vmatpush2.msra.mxu0 0.0
      %598 = vmatprep.mubr.f32.mxu0 0.0
      %599 = vmatmul.mubr.f32.gmra.mxu0 %v529
      %v600 = vpop.f32.mrf.mxu0
      %v601 = vadd.f32 %v526, %v600
      %v602 = vpop.f32.mrf.mxu0
      %603 = vmatprep.mubr.f32.mxu0 0.0
      %604 = vmatmul.mubr.f32.gmra.mxu0 %v532
      %v605 = vpop.f32.mrf.mxu0
      %v606 = vadd.f32 %v526, %v605
      %v607 = vpop.f32.mrf.mxu0
      %608 = vdwg.mxu0
      %v609 = vmax.f32 %v601, 0.0
      %v610 = vmax.f32 %v606, 0.0
      %v611 = vld [vmem:[%s4] sm:$0xff]
      %v612 = vld [vmem:[%s5] sm:$0x1]
      %v614 = vlaneseq
      %v615 = vshrl.u32 %v614, 7
      %v616 = vsub.s32 0, %v615
      %v617 = vrot.slane %v612, %v616
      %vm619 = vcmask 64512
      %v621 = vsel %vm619, %v609, 0
      %v624 = vsel %vm619, %v610, 0
      %626 = vmatprep.subr.mxu0 0.0
      %627 = vmatpush1.msra.mxu0 0.0
      %628 = vmatprep.subr.mxu0 0.0
      %629 = vmatpush1.msra.mxu0 0.0
      %630 = vmatprep.subr.mxu0 0.0
      %631 = vmatpush1.msra.mxu0 0.0
      %632 = vmatprep.subr.mxu0 0.0
      %633 = vmatpush1.msra.mxu0 0.0
      %634 = vmatprep.subr.mxu0 0.0
      %635 = vmatpush1.msra.mxu0 0.0
      %636 = vmatprep.subr.mxu0 0.0
      %637 = vmatpush1.msra.mxu0 0.0
      %638 = vmatprep.subr.mxu0 0.0
      %639 = vmatpush1.msra.mxu0 0.0
      %640 = vmatprep.subr.mxu0 0.0
      %641 = vmatpush1.msra.mxu0 0.0
      %642 = vmatprep.subr.mxu0 0.0
      %643 = vmatpush1.msra.mxu0 0.0
      %644 = vmatprep.subr.mxu0 0.0
      %645 = vmatpush1.msra.mxu0 0.0
      %646 = vmatprep.subr.mxu0 0.0
      %647 = vmatpush1.msra.mxu0 0.0
      %648 = vmatprep.subr.mxu0 0.0
      %649 = vmatpush1.msra.mxu0 0.0
      %650 = vmatprep.subr.mxu0 0.0
      %651 = vmatpush1.msra.mxu0 0.0
      %652 = vmatprep.subr.mxu0 0.0
      %653 = vmatpush1.msra.mxu0 0.0
      %654 = vmatprep.subr.mxu0 0.0
      %655 = vmatpush1.msra.mxu0 0.0
      %656 = vmatprep.subr.mxu0 0.0
      %657 = vmatpush1.msra.mxu0 %v611
      %658 = vmatprep.subr.mxu0 0.0
      %659 = vmatpush2.msra.mxu0 0.0
      %660 = vmatprep.subr.mxu0 0.0
      %661 = vmatpush2.msra.mxu0 0.0
      %662 = vmatprep.subr.mxu0 0.0
      %663 = vmatpush2.msra.mxu0 0.0
      %664 = vmatprep.subr.mxu0 0.0
      %665 = vmatpush2.msra.mxu0 0.0
      %666 = vmatprep.subr.mxu0 0.0
      %667 = vmatpush2.msra.mxu0 0.0
      %668 = vmatprep.subr.mxu0 0.0
      %669 = vmatpush2.msra.mxu0 0.0
      %670 = vmatprep.subr.mxu0 0.0
      %671 = vmatpush2.msra.mxu0 0.0
      %672 = vmatprep.subr.mxu0 0.0
      %673 = vmatpush2.msra.mxu0 0.0
      %674 = vmatprep.subr.mxu0 0.0
      %675 = vmatpush2.msra.mxu0 0.0
      %676 = vmatprep.subr.mxu0 0.0
      %677 = vmatpush2.msra.mxu0 0.0
      %678 = vmatprep.subr.mxu0 0.0
      %679 = vmatpush2.msra.mxu0 0.0
      %680 = vmatprep.subr.mxu0 0.0
      %681 = vmatpush2.msra.mxu0 0.0
      %682 = vmatprep.subr.mxu0 0.0
      %683 = vmatpush2.msra.mxu0 0.0
      %684 = vmatprep.subr.mxu0 0.0
      %685 = vmatpush2.msra.mxu0 0.0
      %686 = vmatprep.subr.mxu0 0.0
      %687 = vmatpush2.msra.mxu0 0.0
      %688 = vmatprep.subr.mxu0 0.0
      %689 = vmatpush2.msra.mxu0 0.0
      %690 = vmatprep.mubr.f32.mxu0 0.0
      %691 = vmatmul.mubr.f32.gmra.mxu0 %v621
      %v692 = vpop.f32.mrf.mxu0
      %v693 = vadd.f32 %v617, %v692
      %v694 = vpop.f32.mrf.mxu0
      %695 = vmatprep.mubr.f32.mxu0 0.0
      %696 = vmatmul.mubr.f32.gmra.mxu0 %v624
      %v697 = vpop.f32.mrf.mxu0
      %v698 = vadd.f32 %v617, %v697
      %v699 = vpop.f32.mrf.mxu0
      %700 = vdwg.mxu0
      %v701 = vmax.f32 %v693, 0.0
      %v702 = vmax.f32 %v698, 0.0
      %v703 = vld [vmem:[%s6] sm:$0xff]
      %v704 = vld [vmem:[%s6 + $0x8] sm:$0xff]
      %v705 = vld [vmem:[%s7] sm:$0x1]
      %v707 = vlaneseq
      %v708 = vshrl.u32 %v707, 7
      %v709 = vsub.s32 0, %v708
      %v710 = vrot.slane %v705, %v709
      %v713 = vsel %vm432, %v516, 0
      %715 = vmatprep.subr.mxu0 0.0
      %716 = vmatpush1.msra.mxu0 0.0
      %717 = vmatprep.subr.mxu0 0.0
      %718 = vmatpush1.msra.mxu0 0.0
      %719 = vmatprep.subr.mxu0 0.0
      %720 = vmatpush1.msra.mxu0 0.0
      %721 = vmatprep.subr.mxu0 0.0
      %722 = vmatpush1.msra.mxu0 0.0
      %723 = vmatprep.subr.mxu0 0.0
      %724 = vmatpush1.msra.mxu0 0.0
      %725 = vmatprep.subr.mxu0 0.0
      %726 = vmatpush1.msra.mxu0 0.0
      %727 = vmatprep.subr.mxu0 0.0
      %728 = vmatpush1.msra.mxu0 0.0
      %729 = vmatprep.subr.mxu0 0.0
      %730 = vmatpush1.msra.mxu0 0.0
      %731 = vmatprep.subr.mxu0 0.0
      %732 = vmatpush1.msra.mxu0 0.0
      %733 = vmatprep.subr.mxu0 0.0
      %734 = vmatpush1.msra.mxu0 0.0
      %735 = vmatprep.subr.mxu0 0.0
      %736 = vmatpush1.msra.mxu0 0.0
      %737 = vmatprep.subr.mxu0 0.0
      %738 = vmatpush1.msra.mxu0 0.0
      %739 = vmatprep.subr.mxu0 0.0
      %740 = vmatpush1.msra.mxu0 0.0
      %741 = vmatprep.subr.mxu0 0.0
      %742 = vmatpush1.msra.mxu0 0.0
      %743 = vmatprep.subr.mxu0 0.0
      %744 = vmatpush1.msra.mxu0 %v704
      %745 = vmatprep.subr.mxu0 0.0
      %746 = vmatpush1.msra.mxu0 %v703
      %747 = vmatprep.subr.mxu0 0.0
      %748 = vmatpush2.msra.mxu0 0.0
      %749 = vmatprep.subr.mxu0 0.0
      %750 = vmatpush2.msra.mxu0 0.0
      %751 = vmatprep.subr.mxu0 0.0
      %752 = vmatpush2.msra.mxu0 0.0
      %753 = vmatprep.subr.mxu0 0.0
      %754 = vmatpush2.msra.mxu0 0.0
      %755 = vmatprep.subr.mxu0 0.0
      %756 = vmatpush2.msra.mxu0 0.0
      %757 = vmatprep.subr.mxu0 0.0
      %758 = vmatpush2.msra.mxu0 0.0
      %759 = vmatprep.subr.mxu0 0.0
      %760 = vmatpush2.msra.mxu0 0.0
      %761 = vmatprep.subr.mxu0 0.0
      %762 = vmatpush2.msra.mxu0 0.0
      %763 = vmatprep.subr.mxu0 0.0
      %764 = vmatpush2.msra.mxu0 0.0
      %765 = vmatprep.subr.mxu0 0.0
      %766 = vmatpush2.msra.mxu0 0.0
      %767 = vmatprep.subr.mxu0 0.0
      %768 = vmatpush2.msra.mxu0 0.0
      %769 = vmatprep.subr.mxu0 0.0
      %770 = vmatpush2.msra.mxu0 0.0
      %771 = vmatprep.subr.mxu0 0.0
      %772 = vmatpush2.msra.mxu0 0.0
      %773 = vmatprep.subr.mxu0 0.0
      %774 = vmatpush2.msra.mxu0 0.0
      %775 = vmatprep.subr.mxu0 0.0
      %776 = vmatpush2.msra.mxu0 0.0
      %777 = vmatprep.subr.mxu0 0.0
      %778 = vmatpush2.msra.mxu0 0.0
      %779 = vmatprep.mubr.f32.mxu0 0.0
      %780 = vmatmul.mubr.f32.gmra.mxu0 %v713
      %v781 = vpop.f32.mrf.mxu0
      %v782 = vadd.f32 %v710, %v781
      %v783 = vpop.f32.mrf.mxu0
      %784 = vdwg.mxu0
      %v785 = vmax.f32 %v782, 0.0
      %v786 = vld [vmem:[%s8] sm:$0xff]
      %v787 = vld [vmem:[%s9] sm:$0x1]
      %v789 = vlaneseq
      %v790 = vshrl.u32 %v789, 7
      %v791 = vsub.s32 0, %v790
      %v792 = vrot.slane %v787, %v791
      %v795 = vsel %vm619, %v785, 0
      %797 = vmatprep.subr.mxu0 0.0
      %798 = vmatpush1.msra.mxu0 0.0
      %799 = vmatprep.subr.mxu0 0.0
      %800 = vmatpush1.msra.mxu0 0.0
      %801 = vmatprep.subr.mxu0 0.0
      %802 = vmatpush1.msra.mxu0 0.0
      %803 = vmatprep.subr.mxu0 0.0
      %804 = vmatpush1.msra.mxu0 0.0
      %805 = vmatprep.subr.mxu0 0.0
      %806 = vmatpush1.msra.mxu0 0.0
      %807 = vmatprep.subr.mxu0 0.0
      %808 = vmatpush1.msra.mxu0 0.0
      %809 = vmatprep.subr.mxu0 0.0
      %810 = vmatpush1.msra.mxu0 0.0
      %811 = vmatprep.subr.mxu0 0.0
      %812 = vmatpush1.msra.mxu0 0.0
      %813 = vmatprep.subr.mxu0 0.0
      %814 = vmatpush1.msra.mxu0 0.0
      %815 = vmatprep.subr.mxu0 0.0
      %816 = vmatpush1.msra.mxu0 0.0
      %817 = vmatprep.subr.mxu0 0.0
      %818 = vmatpush1.msra.mxu0 0.0
      %819 = vmatprep.subr.mxu0 0.0
      %820 = vmatpush1.msra.mxu0 0.0
      %821 = vmatprep.subr.mxu0 0.0
      %822 = vmatpush1.msra.mxu0 0.0
      %823 = vmatprep.subr.mxu0 0.0
      %824 = vmatpush1.msra.mxu0 0.0
      %825 = vmatprep.subr.mxu0 0.0
      %826 = vmatpush1.msra.mxu0 0.0
      %827 = vmatprep.subr.mxu0 0.0
      %828 = vmatpush1.msra.mxu0 %v786
      %829 = vmatprep.subr.mxu0 0.0
      %830 = vmatpush2.msra.mxu0 0.0
      %831 = vmatprep.subr.mxu0 0.0
      %832 = vmatpush2.msra.mxu0 0.0
      %833 = vmatprep.subr.mxu0 0.0
      %834 = vmatpush2.msra.mxu0 0.0
      %835 = vmatprep.subr.mxu0 0.0
      %836 = vmatpush2.msra.mxu0 0.0
      %837 = vmatprep.subr.mxu0 0.0
      %838 = vmatpush2.msra.mxu0 0.0
      %839 = vmatprep.subr.mxu0 0.0
      %840 = vmatpush2.msra.mxu0 0.0
      %841 = vmatprep.subr.mxu0 0.0
      %842 = vmatpush2.msra.mxu0 0.0
      %843 = vmatprep.subr.mxu0 0.0
      %844 = vmatpush2.msra.mxu0 0.0
      %845 = vmatprep.subr.mxu0 0.0
      %846 = vmatpush2.msra.mxu0 0.0
      %847 = vmatprep.subr.mxu0 0.0
      %848 = vmatpush2.msra.mxu0 0.0
      %849 = vmatprep.subr.mxu0 0.0
      %850 = vmatpush2.msra.mxu0 0.0
      %851 = vmatprep.subr.mxu0 0.0
      %852 = vmatpush2.msra.mxu0 0.0
      %853 = vmatprep.subr.mxu0 0.0
      %854 = vmatpush2.msra.mxu0 0.0
      %855 = vmatprep.subr.mxu0 0.0
      %856 = vmatpush2.msra.mxu0 0.0
      %857 = vmatprep.subr.mxu0 0.0
      %858 = vmatpush2.msra.mxu0 0.0
      %859 = vmatprep.subr.mxu0 0.0
      %860 = vmatpush2.msra.mxu0 0.0
      %861 = vmatprep.mubr.f32.mxu0 0.0
      %862 = vmatmul.mubr.f32.gmra.mxu0 %v795
      %v863 = vpop.f32.mrf.mxu0
      %v864 = vadd.f32 %v792, %v863
      %v865 = vpop.f32.mrf.mxu0
      %866 = vdwg.mxu0
      %v867 = vmax.f32 %v864, 0.0
      %v869 = vsel %vm619, %v701, 0
      %v872 = vsel %vm619, %v702, 0
      %v875 = vsel %vm619, %v867, 0
      %877 = vmatprep.subr.mxu0 0.0
      %878 = vmatpush1.xpose.msra.mxu0 0.0
      %879 = vmatprep.subr.mxu0 0.0
      %880 = vmatpush1.xpose.msra.mxu0 0.0
      %881 = vmatprep.subr.mxu0 0.0
      %882 = vmatpush1.xpose.msra.mxu0 0.0
      %883 = vmatprep.subr.mxu0 0.0
      %884 = vmatpush1.xpose.msra.mxu0 0.0
      %885 = vmatprep.subr.mxu0 0.0
      %886 = vmatpush1.xpose.msra.mxu0 0.0
      %887 = vmatprep.subr.mxu0 0.0
      %888 = vmatpush1.xpose.msra.mxu0 0.0
      %889 = vmatprep.subr.mxu0 0.0
      %890 = vmatpush1.xpose.msra.mxu0 0.0
      %891 = vmatprep.subr.mxu0 0.0
      %892 = vmatpush1.xpose.msra.mxu0 0.0
      %893 = vmatprep.subr.mxu0 0.0
      %894 = vmatpush1.xpose.msra.mxu0 0.0
      %895 = vmatprep.subr.mxu0 0.0
      %896 = vmatpush1.xpose.msra.mxu0 0.0
      %897 = vmatprep.subr.mxu0 0.0
      %898 = vmatpush1.xpose.msra.mxu0 0.0
      %899 = vmatprep.subr.mxu0 0.0
      %900 = vmatpush1.xpose.msra.mxu0 0.0
      %901 = vmatprep.subr.mxu0 0.0
      %902 = vmatpush1.xpose.msra.mxu0 0.0
      %903 = vmatprep.subr.mxu0 0.0
      %904 = vmatpush1.xpose.msra.mxu0 0.0
      %905 = vmatprep.subr.mxu0 0.0
      %906 = vmatpush1.xpose.msra.mxu0 0.0
      %907 = vmatprep.subr.mxu0 0.0
      %908 = vmatpush1.xpose.msra.mxu0 %v875
      %909 = vmatprep.subr.mxu0 0.0
      %910 = vmatpush2.xpose.msra.mxu0 0.0
      %911 = vmatprep.subr.mxu0 0.0
      %912 = vmatpush2.xpose.msra.mxu0 0.0
      %913 = vmatprep.subr.mxu0 0.0
      %914 = vmatpush2.xpose.msra.mxu0 0.0
      %915 = vmatprep.subr.mxu0 0.0
      %916 = vmatpush2.xpose.msra.mxu0 0.0
      %917 = vmatprep.subr.mxu0 0.0
      %918 = vmatpush2.xpose.msra.mxu0 0.0
      %919 = vmatprep.subr.mxu0 0.0
      %920 = vmatpush2.xpose.msra.mxu0 0.0
      %921 = vmatprep.subr.mxu0 0.0
      %922 = vmatpush2.xpose.msra.mxu0 0.0
      %923 = vmatprep.subr.mxu0 0.0
      %924 = vmatpush2.xpose.msra.mxu0 0.0
      %925 = vmatprep.subr.mxu0 0.0
      %926 = vmatpush2.xpose.msra.mxu0 0.0
      %927 = vmatprep.subr.mxu0 0.0
      %928 = vmatpush2.xpose.msra.mxu0 0.0
      %929 = vmatprep.subr.mxu0 0.0
      %930 = vmatpush2.xpose.msra.mxu0 0.0
      %931 = vmatprep.subr.mxu0 0.0
      %932 = vmatpush2.xpose.msra.mxu0 0.0
      %933 = vmatprep.subr.mxu0 0.0
      %934 = vmatpush2.xpose.msra.mxu0 0.0
      %935 = vmatprep.subr.mxu0 0.0
      %936 = vmatpush2.xpose.msra.mxu0 0.0
      %937 = vmatprep.subr.mxu0 0.0
      %938 = vmatpush2.xpose.msra.mxu0 0.0
      %939 = vmatprep.subr.mxu0 0.0
      %940 = vmatpush2.xpose.msra.mxu0 0.0
      %941 = vmatprep.mubr.f32.mxu0 0.0
      %942 = vmatmul.mubr.f32.gmra.mxu0 %v869
      %v943 = vpop.f32.mrf.mxu0
      %v944 = vadd.f32 0.0, %v943
      %v945 = vpop.f32.mrf.mxu0
      %946 = vmatprep.mubr.f32.mxu0 0.0
      %947 = vmatmul.mubr.f32.gmra.mxu0 %v872
      %v948 = vpop.f32.mrf.mxu0
      %v949 = vadd.f32 0.0, %v948
      %v950 = vpop.f32.mrf.mxu0
      %951 = vdwg.mxu0
      %v952 = vmul.f32 %v944, 0.35355338
      %v953 = vmul.f32 %v949, 0.35355338
      %v954 = vsel %vm619, %v952, -inf
      %955 = vmax.xlane.f32.xlu0 %v954
      %v956 = vpop.xlane.xlu0 %955
      %v957 = vsel %vm619, %v953, -inf
      %958 = vmax.xlane.f32.xlu0 %v957
      %v959 = vpop.xlane.xlu0 %958
      %v960 = vsub.f32 %v952, %v956
      %v961 = vsub.f32 %v953, %v959
      %v962 = vmul.f32 %v960, 1.442695
      %v963 = vpow.pop %v962
      %v964 = vmul.f32 %v961, 1.442695
      %v965 = vpow.pop %v964
      %v966 = vsel %vm619, %v963, 0.0
      %967 = vadd.xlane.f32.xlu0 %v966
      %v968 = vpop.xlane.xlu0 %967
      %v969 = vsel %vm619, %v965, 0.0
      %970 = vadd.xlane.f32.xlu0 %v969
      %v971 = vpop.xlane.xlu0 %970
      %v972 = vrcp.pop %v968
      %v973 = vmul.f32 %v963, %v972
      %v974 = vrcp.pop %v971
      %v975 = vmul.f32 %v965, %v974
      %976 = vrot.lane.b32.xlu0 %v785, 120
      %v977 = vpop.permute.xlu0 %976
      %v980 = vsel %vm619, %v973, 0
      %v983 = vsel %vm619, %v975, 0
      %985 = vmatprep.subr.mxu0 0.0
      %986 = vmatpush1.msra.mxu0 0.0
      %987 = vmatprep.subr.mxu0 0.0
      %988 = vmatpush1.msra.mxu0 0.0
      %989 = vmatprep.subr.mxu0 0.0
      %990 = vmatpush1.msra.mxu0 0.0
      %991 = vmatprep.subr.mxu0 0.0
      %992 = vmatpush1.msra.mxu0 0.0
      %993 = vmatprep.subr.mxu0 0.0
      %994 = vmatpush1.msra.mxu0 0.0
      %995 = vmatprep.subr.mxu0 0.0
      %996 = vmatpush1.msra.mxu0 0.0
      %997 = vmatprep.subr.mxu0 0.0
      %998 = vmatpush1.msra.mxu0 0.0
      %999 = vmatprep.subr.mxu0 0.0
      %1000 = vmatpush1.msra.mxu0 0.0
      %1001 = vmatprep.subr.mxu0 0.0
      %1002 = vmatpush1.msra.mxu0 0.0
      %1003 = vmatprep.subr.mxu0 0.0
      %1004 = vmatpush1.msra.mxu0 0.0
      %1005 = vmatprep.subr.mxu0 0.0
      %1006 = vmatpush1.msra.mxu0 0.0
      %1007 = vmatprep.subr.mxu0 0.0
      %1008 = vmatpush1.msra.mxu0 0.0
      %1009 = vmatprep.subr.mxu0 0.0
      %1010 = vmatpush1.msra.mxu0 0.0
      %1011 = vmatprep.subr.mxu0 0.0
      %1012 = vmatpush1.msra.mxu0 0.0
      %1013 = vmatprep.subr.mxu0 0.0
      %1014 = vmatpush1.msra.mxu0 0.0
      %1015 = vmatprep.subr.mxu0 0.0
      %1016 = vmatpush1.msra.mxu0 %v977
      %1017 = vmatprep.subr.mxu0 0.0
      %1018 = vmatpush2.msra.mxu0 0.0
      %1019 = vmatprep.subr.mxu0 0.0
      %1020 = vmatpush2.msra.mxu0 0.0
      %1021 = vmatprep.subr.mxu0 0.0
      %1022 = vmatpush2.msra.mxu0 0.0
      %1023 = vmatprep.subr.mxu0 0.0
      %1024 = vmatpush2.msra.mxu0 0.0
      %1025 = vmatprep.subr.mxu0 0.0
      %1026 = vmatpush2.msra.mxu0 0.0
      %1027 = vmatprep.subr.mxu0 0.0
      %1028 = vmatpush2.msra.mxu0 0.0
      %1029 = vmatprep.subr.mxu0 0.0
      %1030 = vmatpush2.msra.mxu0 0.0
      %1031 = vmatprep.subr.mxu0 0.0
      %1032 = vmatpush2.msra.mxu0 0.0
      %1033 = vmatprep.subr.mxu0 0.0
      %1034 = vmatpush2.msra.mxu0 0.0
      %1035 = vmatprep.subr.mxu0 0.0
      %1036 = vmatpush2.msra.mxu0 0.0
      %1037 = vmatprep.subr.mxu0 0.0
      %1038 = vmatpush2.msra.mxu0 0.0
      %1039 = vmatprep.subr.mxu0 0.0
      %1040 = vmatpush2.msra.mxu0 0.0
      %1041 = vmatprep.subr.mxu0 0.0
      %1042 = vmatpush2.msra.mxu0 0.0
      %1043 = vmatprep.subr.mxu0 0.0
      %1044 = vmatpush2.msra.mxu0 0.0
      %1045 = vmatprep.subr.mxu0 0.0
      %1046 = vmatpush2.msra.mxu0 0.0
      %1047 = vmatprep.subr.mxu0 0.0
      %1048 = vmatpush2.msra.mxu0 0.0
      %1049 = vmatprep.mubr.f32.mxu0 0.0
      %1050 = vmatmul.mubr.f32.gmra.mxu0 %v980
      %v1051 = vpop.f32.mrf.mxu0
      %v1052 = vadd.f32 0.0, %v1051
      %v1053 = vpop.f32.mrf.mxu0
      %1054 = vmatprep.mubr.f32.mxu0 0.0
      %1055 = vmatmul.mubr.f32.gmra.mxu0 %v983
      %v1056 = vpop.f32.mrf.mxu0
      %v1057 = vadd.f32 0.0, %v1056
      %v1058 = vpop.f32.mrf.mxu0
      %1059 = vdwg.mxu0
      %v1060 = vld [vmem:[%s10] sm:$0xff]
      %v1061 = vld [vmem:[%s11] sm:$0x1]
      %v1063 = vlaneseq
      %v1064 = vshrl.u32 %v1063, 7
      %v1065 = vsub.s32 0, %v1064
      %v1066 = vrot.slane %v1061, %v1065
      %v1069 = vsel %vm619, %v1052, 0
      %v1072 = vsel %vm619, %v1057, 0
      %1074 = vmatprep.subr.mxu0 0.0
      %1075 = vmatpush1.msra.mxu0 0.0
      %1076 = vmatprep.subr.mxu0 0.0
      %1077 = vmatpush1.msra.mxu0 0.0
      %1078 = vmatprep.subr.mxu0 0.0
      %1079 = vmatpush1.msra.mxu0 0.0
      %1080 = vmatprep.subr.mxu0 0.0
      %1081 = vmatpush1.msra.mxu0 0.0
      %1082 = vmatprep.subr.mxu0 0.0
      %1083 = vmatpush1.msra.mxu0 0.0
      %1084 = vmatprep.subr.mxu0 0.0
      %1085 = vmatpush1.msra.mxu0 0.0
      %1086 = vmatprep.subr.mxu0 0.0
      %1087 = vmatpush1.msra.mxu0 0.0
      %1088 = vmatprep.subr.mxu0 0.0
      %1089 = vmatpush1.msra.mxu0 0.0
      %1090 = vmatprep.subr.mxu0 0.0
      %1091 = vmatpush1.msra.mxu0 0.0
      %1092 = vmatprep.subr.mxu0 0.0
      %1093 = vmatpush1.msra.mxu0 0.0
      %1094 = vmatprep.subr.mxu0 0.0
      %1095 = vmatpush1.msra.mxu0 0.0
      %1096 = vmatprep.subr.mxu0 0.0
      %1097 = vmatpush1.msra.mxu0 0.0
      %1098 = vmatprep.subr.mxu0 0.0
      %1099 = vmatpush1.msra.mxu0 0.0
      %1100 = vmatprep.subr.mxu0 0.0
      %1101 = vmatpush1.msra.mxu0 0.0
      %1102 = vmatprep.subr.mxu0 0.0
      %1103 = vmatpush1.msra.mxu0 0.0
      %1104 = vmatprep.subr.mxu0 0.0
      %1105 = vmatpush1.msra.mxu0 %v1060
      %1106 = vmatprep.subr.mxu0 0.0
      %1107 = vmatpush2.msra.mxu0 0.0
      %1108 = vmatprep.subr.mxu0 0.0
      %1109 = vmatpush2.msra.mxu0 0.0
      %1110 = vmatprep.subr.mxu0 0.0
      %1111 = vmatpush2.msra.mxu0 0.0
      %1112 = vmatprep.subr.mxu0 0.0
      %1113 = vmatpush2.msra.mxu0 0.0
      %1114 = vmatprep.subr.mxu0 0.0
      %1115 = vmatpush2.msra.mxu0 0.0
      %1116 = vmatprep.subr.mxu0 0.0
      %1117 = vmatpush2.msra.mxu0 0.0
      %1118 = vmatprep.subr.mxu0 0.0
      %1119 = vmatpush2.msra.mxu0 0.0
      %1120 = vmatprep.subr.mxu0 0.0
      %1121 = vmatpush2.msra.mxu0 0.0
      %1122 = vmatprep.subr.mxu0 0.0
      %1123 = vmatpush2.msra.mxu0 0.0
      %1124 = vmatprep.subr.mxu0 0.0
      %1125 = vmatpush2.msra.mxu0 0.0
      %1126 = vmatprep.subr.mxu0 0.0
      %1127 = vmatpush2.msra.mxu0 0.0
      %1128 = vmatprep.subr.mxu0 0.0
      %1129 = vmatpush2.msra.mxu0 0.0
      %1130 = vmatprep.subr.mxu0 0.0
      %1131 = vmatpush2.msra.mxu0 0.0
      %1132 = vmatprep.subr.mxu0 0.0
      %1133 = vmatpush2.msra.mxu0 0.0
      %1134 = vmatprep.subr.mxu0 0.0
      %1135 = vmatpush2.msra.mxu0 0.0
      %1136 = vmatprep.subr.mxu0 0.0
      %1137 = vmatpush2.msra.mxu0 0.0
      %1138 = vmatprep.mubr.f32.mxu0 0.0
      %1139 = vmatmul.mubr.f32.gmra.mxu0 %v1069
      %v1140 = vpop.f32.mrf.mxu0
      %v1141 = vadd.f32 %v1066, %v1140
      %v1142 = vpop.f32.mrf.mxu0
      %1143 = vmatprep.mubr.f32.mxu0 0.0
      %1144 = vmatmul.mubr.f32.gmra.mxu0 %v1072
      %v1145 = vpop.f32.mrf.mxu0
      %v1146 = vadd.f32 %v1066, %v1145
      %v1147 = vpop.f32.mrf.mxu0
      %1148 = vdwg.mxu0
      %v1149 = vmax.f32 %v1141, 0.0
      %v1150 = vmax.f32 %v1146, 0.0
      %1151 = vst [vmem:[%s430] sm:$0xff] %v1149
      %1152 = vst [vmem:[%s430 + $0x8] sm:$0xff] %v1150
      %p1153 = scmp.lt.s32.totalorder %s23, 1
      %s1154 = scalar_select %p1153, %s23, 1
      %s1155 = smul.addr %s1154, 2
      %s1156 = smul.addr %s1155, 8
      %s1157 = scalar_lea.vmem %s12, %s1156
      // Predicated region
      $region69: #{forward.12} parent=67 // pred_check
        %p1158 = pneg %p303
      $region70: #{forward.12} parent=67 // pred_check_branch
        %1160 = sbr.rel (%p1158) target = $region72
      $region71: #{forward.12} parent=67 // pred_region
        _
      $region72: #{forward.12} parent=67 // pred_fallthru
        _
    $region68: #{forward.12} parent=5 // pred_fallthru
      _
    %p1161 = scmp.le.s32.totalorder 2, %s18
    // Predicated region
    $region73: #{forward.12} parent=5 // pred_check
      %p1162 = pneg %p1161
    $region74: #{forward.12} parent=5 // pred_check_branch
      %1164 = sbr.rel (%p1162) target = $region76
    $region75: #{forward.12} parent=5 // pred_region
      %s1165 = ssub.s32 %s18, 2
      // Predicated region
      $region77: #{forward.12} parent=75 // pred_check
        %p1166 = pneg %p309
      $region78: #{forward.12} parent=75 // pred_check_branch
        %1168 = sbr.rel (%p1166) target = $region80
      $region79: #{forward.12} parent=75 // pred_region
        %p1169 = scmp.lt.s32.totalorder %s24, 1
        %s1170 = scalar_select %p1169, %s24, 1
        %s1171 = smul.addr %s1170, 2
        %s1172 = smul.addr %s1171, 8
        %s1173 = scalar_lea.vmem %s12, %s1172
      $region80: #{forward.12} parent=75 // pred_fallthru
        _
    $region76: #{forward.12} parent=5 // pred_fallthru
      _
  $region6: #{forward.12} parent=0 // loop_footer
    %s22 = sadd.s32 1, %s18
  $region7: #{forward.12} parent=0 // loop_footer_branch
    %17 = sbr.rel target = $region3
  $region8: #{forward.12} parent=0 // loop_exit
    _

// kernel: forward.15
$region0: #{forward.15}
  #allocation0 [shape = 'u32[]', space=smem, size = 0x4, offset = 0x4, fixed_abs, tag = 'smem constant byte address 0x4 - core index']
  #allocation1 [shape = 'u32[144,128]{1,0:T(1,128)}', space=vmem, size = 0x12000, scoped, tag = 'internal scratch']
  %s0 = inlined_call_operand.vmem [shape: bf16[64,16], index: 0, kind: input, shape index: {}]
  %s1 = inlined_call_operand.vmem [shape: bf16[2,16,128], index: 1, kind: input, shape index: {}]
  %s2 = inlined_call_operand.vmem [shape: f32[2,64,128], index: 2, kind: output, shape index: {}]
  %s3 = sld [smem:[#allocation0]]
  $region41: #{forward.15} parent=0
    _
  %s5 = ssub.s32 1, %s3
  %s6 = scalar_select 0, %s5, %s3
  loop: start=0, step=1, limit=4
  $region2: #{forward.15} parent=0 // loop_pre_header
    _
  $region3: #{forward.15} parent=0 // loop_header
    %s8 = sphi 0, %s12
    %p9 = scmp.ge.s32.totalorder %s8, 4
    %s16 = sphi 0, %s16
    %s18 = sphi 0, %s16
    %s19 = sphi 0, %s18
    %s33 = sphi 0, %s19
    %s39 = sphi 0, %s41
    %s42 = sphi 0, %s39
    %s43 = sphi 0, %s42
    %s59 = sphi 0, %s43
    %s65 = sphi 0, %s67
    %s68 = sphi 0, %s65
    %s69 = sphi 0, %s68
    %s85 = sphi 0, %s69
  $region4: #{forward.15} parent=0 // loop_header_branch
    %11 = sbr.rel (%p9) target = $region8
  $region5: #{forward.15} parent=0 // loop_body
    %s13 = ssub.s32 %s8, 1
    %s14 = ssub.s32 %s8, 2
    %s15 = sadd.s32 %s8, 1
    %s17 = sadd.s32 %s16, 1
    %p20 = scmp.eq.s32.totalorder %s8, 1
    %p21 = scmp.ne.s32.totalorder %s16, %s18
    %p22 = scmp.eq.s32.totalorder %s8, 0
    %p23 = por %p21, %p22
    %p24 = scmp.ne.s32.totalorder %s16, %s18
    %p25 = scmp.eq.s32.totalorder %s13, 1
    %p26 = por %p24, %p25
    %p27 = scmp.ne.s32.totalorder %s18, %s19
    %p28 = scmp.eq.s32.totalorder %s13, 0
    %p29 = por %p27, %p28
    %p30 = scmp.ne.s32.totalorder %s18, %s19
    %p31 = scmp.eq.s32.totalorder %s14, 1
    %p32 = por %p30, %p31
    %p34 = scmp.ne.s32.totalorder %s19, %s33
    %p35 = scmp.eq.s32.totalorder %s14, 0
    %p36 = por %p34, %p35
    %s37 = ssub.s32 %s8, %s15
    %p38 = scmp.eq.s32.totalorder %s37, 0
    %s40 = sadd.s32 %s39, 1
    %s41 = scalar_select %p38, %s39, %s40
    %p44 = pneg %p38
    %p45 = scmp.eq.s32.totalorder %s8, 1
    %p46 = por %p44, %p45
    %p47 = scmp.ne.s32.totalorder %s39, %s42
    %p48 = scmp.eq.s32.totalorder %s8, 0
    %p49 = por %p47, %p48
    %p50 = scmp.ne.s32.totalorder %s39, %s42
    %p51 = scmp.eq.s32.totalorder %s13, 1
    %p52 = por %p50, %p51
    %p53 = scmp.ne.s32.totalorder %s42, %s43
    %p54 = scmp.eq.s32.totalorder %s13, 0
    %p55 = por %p53, %p54
    %p56 = scmp.ne.s32.totalorder %s42, %s43
    %p57 = scmp.eq.s32.totalorder %s14, 1
    %p58 = por %p56, %p57
    %p60 = scmp.ne.s32.totalorder %s43, %s59
    %p61 = scmp.eq.s32.totalorder %s14, 0
    %p62 = por %p60, %p61
    %s63 = ssub.s32 %s8, %s15
    %p64 = scmp.eq.s32.totalorder %s63, 0
    %s66 = sadd.s32 %s65, 1
    %s67 = scalar_select %p64, %s65, %s66
    %p70 = pneg %p64
    %p71 = scmp.eq.s32.totalorder %s8, 1
    %p72 = por %p70, %p71
    %p73 = scmp.ne.s32.totalorder %s65, %s68
    %p74 = scmp.eq.s32.totalorder %s8, 0
    %p75 = por %p73, %p74
    %p76 = scmp.ne.s32.totalorder %s65, %s68
    %p77 = scmp.eq.s32.totalorder %s13, 1
    %p78 = por %p76, %p77
    %p79 = scmp.ne.s32.totalorder %s68, %s69
    %p80 = scmp.eq.s32.totalorder %s13, 0
    %p81 = por %p79, %p80
    %p82 = scmp.ne.s32.totalorder %s68, %s69
    %p83 = scmp.eq.s32.totalorder %s14, 1
    %p84 = por %p82, %p83
    %p86 = scmp.ne.s32.totalorder %s69, %s85
    %p87 = scmp.eq.s32.totalorder %s14, 0
    %p88 = por %p86, %p87
    %p89 = scmp.le.s32.totalorder 1, %s8
    %p90 = scmp.lt.s32.totalorder %s8, 3
    %p91 = pnand %p89, %p90
    %p92 = pneg %p91
    // Predicated region
    $region9: #{forward.15} parent=5 // pred_check
      _
    $region10: #{forward.15} parent=5 // pred_check_branch
      %94 = sbr.rel (%p91) target = $region12
    $region11: #{forward.15} parent=5 // pred_region
      %s95 = ssub.s32 %s8, 1
      // Predicated region
      $region13: #{forward.15} parent=11 // pred_check
        %p96 = pneg %p29
      $region14: #{forward.15} parent=11 // pred_check_branch
        %98 = sbr.rel (%p96) target = $region16
      $region15: #{forward.15} parent=11 // pred_region
        _
      $region16: #{forward.15} parent=11 // pred_fallthru
        _
    $region12: #{forward.15} parent=5 // pred_fallthru
      _
    %p99 = scmp.lt.s32.totalorder %s8, 2
    // Predicated region
    $region17: #{forward.15} parent=5 // pred_check
      %p100 = pneg %p99
    $region18: #{forward.15} parent=5 // pred_check_branch
      %102 = sbr.rel (%p100) target = $region20
    $region19: #{forward.15} parent=5 // pred_region
      // Predicated region
      $region21: #{forward.15} parent=19 // pred_check
        %p103 = pneg %p49
      $region22: #{forward.15} parent=19 // pred_check_branch
        %105 = sbr.rel (%p103) target = $region24
      $region23: #{forward.15} parent=19 // pred_region
        %p106 = scmp.lt.s32.totalorder %s8, 1
        %s107 = scalar_select %p106, %s8, 1
        %s108 = smul.addr %s107, 2
        %s109 = smul.addr %s108, 4
        %s110 = scalar_lea.vmem %s1, %s109
      $region24: #{forward.15} parent=19 // pred_fallthru
        _
    $region20: #{forward.15} parent=5 // pred_fallthru
      _
    %p111 = scmp.le.s32.totalorder 1, %s8
    %p112 = scmp.lt.s32.totalorder %s8, 3
    %p113 = pnand %p111, %p112
    %p114 = pneg %p113
    // Predicated region
    $region25: #{forward.15} parent=5 // pred_check
      _
    $region26: #{forward.15} parent=5 // pred_check_branch
      %116 = sbr.rel (%p113) target = $region28
    $region27: #{forward.15} parent=5 // pred_region
      %s117 = ssub.s32 %s8, 1
      %p118 = pneg %p29
      %p119 = pneg %p26
      %p120 = scmp.lt.s32.totalorder %s13, 1
      %s121 = scalar_select %p120, %s13, 1
      %s122 = smul.addr %s121, 2
      %s123 = smul.addr %s122, 4
      %s124 = scalar_lea.vmem %s1, %s123
      %p125 = pneg %p55
      %p126 = pneg %p52
      %p127 = pneg %p81
      %p128 = pneg %p78
      %p129 = scmp.lt.s32.totalorder %s13, 1
      %s130 = scalar_select %p129, %s13, 1
      %s131 = smul.addr %s130, 8
      %s132 = smul.addr %s131, 8
      %s133 = scalar_lea.vmem %s2, %s132
      %p134 = scmp.lt.s32.totalorder %s13, 1
      %s135 = scalar_select %p134, %s13, 1
      %s136 = smul.addr %s135, 2
      %s137 = smul.addr %s136, 4
      %s138 = scalar_lea.vmem %s1, %s137
      %p139 = scmp.lt.s32.totalorder %s13, 1
      %s140 = scalar_select %p139, %s13, 1
      %s141 = smul.addr %s140, 8
      %s142 = smul.addr %s141, 8
      %s143 = scalar_lea.vmem %s2, %s142
      %v145 = vld [vmem:[%s0] sm:$0xf]
      %v146 = vld [vmem:[%s0 + $0x4] sm:$0xf]
      %v147 = vld [vmem:[%s0 + $0x8] sm:$0xf]
      %v148 = vld [vmem:[%s0 + $0xc] sm:$0xf]
      %v149 = vld [vmem:[%s0 + $0x10] sm:$0xf]
      %v150 = vld [vmem:[%s0 + $0x14] sm:$0xf]
      %v151 = vld [vmem:[%s0 + $0x18] sm:$0xf]
      %v152 = vld [vmem:[%s0 + $0x1c] sm:$0xf]
      %v153 = vld [vmem:[%s138] sm:$0xf]
      %v154 = vld [vmem:[%s138 + $0x4] sm:$0xf]
      %v163 = vunpack.c.l.b16 %v145
      %v164 = vunpack.c.l.b16 %v146
      %v165 = vunpack.c.l.b16 %v147
      %v166 = vunpack.c.l.b16 %v148
      %v167 = vunpack.c.l.b16 %v149
      %v168 = vunpack.c.l.b16 %v150
      %v169 = vunpack.c.l.b16 %v151
      %v170 = vunpack.c.l.b16 %v152
      %v171 = vpack.c.b16 %v164, %v163
      %v172 = vpack.c.b16 %v166, %v165
      %v173 = vpack.c.b16 %v168, %v167
      %v174 = vpack.c.b16 %v170, %v169
      %v177 = vunpack.c.l.b16 %v153
      %v178 = vunpack.c.l.b16 %v154
      %v179 = vpack.c.b16 %v178, %v177
      %vm181 = vcmask 130048
      %v183 = vsel %vm181, %v171, 0
      %v186 = vsel %vm181, %v172, 0
      %v189 = vsel %vm181, %v173, 0
      %v192 = vsel %vm181, %v174, 0
      %194 = vmatprep.subr.bf16.mxu0 0
      %195 = vmatpush1.bf16.msra.mxu0 0
      %196 = vmatprep.subr.bf16.mxu0 0
      %197 = vmatpush1.bf16.msra.mxu0 0
      %198 = vmatprep.subr.bf16.mxu0 0
      %199 = vmatpush1.bf16.msra.mxu0 0
      %200 = vmatprep.subr.bf16.mxu0 0
      %201 = vmatpush1.bf16.msra.mxu0 0
      %202 = vmatprep.subr.bf16.mxu0 0
      %203 = vmatpush1.bf16.msra.mxu0 0
      %204 = vmatprep.subr.bf16.mxu0 0
      %205 = vmatpush1.bf16.msra.mxu0 0
      %206 = vmatprep.subr.bf16.mxu0 0
      %207 = vmatpush1.bf16.msra.mxu0 0
      %208 = vmatprep.subr.bf16.mxu0 0
      %209 = vmatpush1.bf16.msra.mxu0 %v179
      %210 = vmatprep.subr.bf16.mxu0 0
      %211 = vmatpush2.bf16.msra.mxu0 0
      %212 = vmatprep.subr.bf16.mxu0 0
      %213 = vmatpush2.bf16.msra.mxu0 0
      %214 = vmatprep.subr.bf16.mxu0 0
      %215 = vmatpush2.bf16.msra.mxu0 0
      %216 = vmatprep.subr.bf16.mxu0 0
      %217 = vmatpush2.bf16.msra.mxu0 0
      %218 = vmatprep.subr.bf16.mxu0 0
      %219 = vmatpush2.bf16.msra.mxu0 0
      %220 = vmatprep.subr.bf16.mxu0 0
      %221 = vmatpush2.bf16.msra.mxu0 0
      %222 = vmatprep.subr.bf16.mxu0 0
      %223 = vmatpush2.bf16.msra.mxu0 0
      %224 = vmatprep.subr.bf16.mxu0 0
      %225 = vmatpush2.bf16.msra.mxu0 0
      %226 = vmatprep.mubr.bf16.mxu0 0
      %227 = vmatmul.mubr.bf16.gmra.mxu0 %v183
      %v228 = vpop.f32.mrf.mxu0
      %v229 = vadd.f32 0.0, %v228
      %v230 = vpop.f32.mrf.mxu0
      %v231 = vpop.f32.mrf.mxu0
      %v232 = vadd.f32 0.0, %v231
      %v233 = vpop.f32.mrf.mxu0
      %234 = vmatprep.mubr.bf16.mxu0 0
      %235 = vmatmul.mubr.bf16.gmra.mxu0 %v186
      %v236 = vpop.f32.mrf.mxu0
      %v237 = vadd.f32 0.0, %v236
      %v238 = vpop.f32.mrf.mxu0
      %v239 = vpop.f32.mrf.mxu0
      %v240 = vadd.f32 0.0, %v239
      %v241 = vpop.f32.mrf.mxu0
      %242 = vmatprep.mubr.bf16.mxu0 0
      %243 = vmatmul.mubr.bf16.gmra.mxu0 %v189
      %v244 = vpop.f32.mrf.mxu0
      %v245 = vadd.f32 0.0, %v244
      %v246 = vpop.f32.mrf.mxu0
      %v247 = vpop.f32.mrf.mxu0
      %v248 = vadd.f32 0.0, %v247
      %v249 = vpop.f32.mrf.mxu0
      %250 = vmatprep.mubr.bf16.mxu0 0
      %251 = vmatmul.mubr.bf16.gmra.mxu0 %v192
      %v252 = vpop.f32.mrf.mxu0
      %v253 = vadd.f32 0.0, %v252
      %v254 = vpop.f32.mrf.mxu0
      %v255 = vpop.f32.mrf.mxu0
      %v256 = vadd.f32 0.0, %v255
      %v257 = vpop.f32.mrf.mxu0
      %258 = vdwg.mxu0
      %259 = vst [vmem:[%s143] sm:$0xff] %v229
      %260 = vst [vmem:[%s143 + $0x8] sm:$0xff] %v232
      %261 = vst [vmem:[%s143 + $0x10] sm:$0xff] %v237
      %262 = vst [vmem:[%s143 + $0x18] sm:$0xff] %v240
      %263 = vst [vmem:[%s143 + $0x20] sm:$0xff] %v245
      %264 = vst [vmem:[%s143 + $0x28] sm:$0xff] %v248
      %265 = vst [vmem:[%s143 + $0x30] sm:$0xff] %v253
      %266 = vst [vmem:[%s143 + $0x38] sm:$0xff] %v256
      %p267 = scmp.lt.s32.totalorder %s13, 1
      %s268 = scalar_select %p267, %s13, 1
      %s269 = smul.addr %s268, 8
      %s270 = smul.addr %s269, 8
      %s271 = scalar_lea.vmem %s2, %s270
      // Predicated region
      $region29: #{forward.15} parent=27 // pred_check
        %p272 = pneg %p78
      $region30: #{forward.15} parent=27 // pred_check_branch
        %274 = sbr.rel (%p272) target = $region32
      $region31: #{forward.15} parent=27 // pred_region
        _
      $region32: #{forward.15} parent=27 // pred_fallthru
        _
    $region28: #{forward.15} parent=5 // pred_fallthru
      _
    %p275 = scmp.le.s32.totalorder 2, %s8
    // Predicated region
    $region33: #{forward.15} parent=5 // pred_check
      %p276 = pneg %p275
    $region34: #{forward.15} parent=5 // pred_check_branch
      %278 = sbr.rel (%p276) target = $region36
    $region35: #{forward.15} parent=5 // pred_region
      %s279 = ssub.s32 %s8, 2
      // Predicated region
      $region37: #{forward.15} parent=35 // pred_check
        %p280 = pneg %p84
      $region38: #{forward.15} parent=35 // pred_check_branch
        %282 = sbr.rel (%p280) target = $region40
      $region39: #{forward.15} parent=35 // pred_region
        %p283 = scmp.lt.s32.totalorder %s14, 1
        %s284 = scalar_select %p283, %s14, 1
        %s285 = smul.addr %s284, 8
        %s286 = smul.addr %s285, 8
        %s287 = scalar_lea.vmem %s2, %s286
      $region40: #{forward.15} parent=35 // pred_fallthru
        _
    $region36: #{forward.15} parent=5 // pred_fallthru
      _
  $region6: #{forward.15} parent=0 // loop_footer
    %s12 = sadd.s32 1, %s8
  $region7: #{forward.15} parent=0 // loop_footer_branch
    %7 = sbr.rel target = $region3
  $region8: #{forward.15} parent=0 // loop_exit
    _

// kernel: forward.14
$region0: #{forward.14}
  #allocation0 [shape = 'u32[]', space=smem, size = 0x4, offset = 0x4, fixed_abs, tag = 'smem constant byte address 0x4 - core index']
  #allocation1 [shape = 'u32[144,128]{1,0:T(1,128)}', space=vmem, size = 0x12000, scoped, tag = 'internal scratch']
  %s0 = inlined_call_operand.vmem [shape: bf16[192,256], index: 0, kind: input, shape index: {}]
  %s1 = inlined_call_operand.vmem [shape: bf16[256,128], index: 1, kind: input, shape index: {}]
  %s2 = inlined_call_operand.vmem [shape: f32[1,128], index: 2, kind: input, shape index: {}]
  %s3 = inlined_call_operand.vmem [shape: f32[192,128], index: 3, kind: output, shape index: {}]
  %s4 = sld [smem:[#allocation0]]
  $region22: #{forward.14} parent=0
    _
  %s6 = ssub.s32 1, %s4
  %s7 = scalar_select 0, %s6, %s4
  // Predicated region
  $region2: #{forward.14} parent=0 // pred_check
    _
  $region3: #{forward.14} parent=0 // pred_check_branch
    %9 = sbr.rel (0) target = $region5
  $region4: #{forward.14} parent=0 // pred_region
    _
  $region5: #{forward.14} parent=0 // pred_fallthru
    _
  // Predicated region
  $region6: #{forward.14} parent=0 // pred_check
    _
  $region7: #{forward.14} parent=0 // pred_check_branch
    %11 = sbr.rel (0) target = $region9
  $region8: #{forward.14} parent=0 // pred_region
    _
  $region9: #{forward.14} parent=0 // pred_fallthru
    _
  // Predicated region
  $region10: #{forward.14} parent=0 // pred_check
    _
  $region11: #{forward.14} parent=0 // pred_check_branch
    %13 = sbr.rel (0) target = $region13
  $region12: #{forward.14} parent=0 // pred_region
    _
  $region13: #{forward.14} parent=0 // pred_fallthru
    _
  %v15 = vld [vmem:[%s0] sm:$0xff]
  %v16 = vld [vmem:[%s0 + $0x8] sm:$0xff]
  %v17 = vld [vmem:[%s0 + $0x10] sm:$0xff]
  %v18 = vld [vmem:[%s0 + $0x18] sm:$0xff]
  %v19 = vld [vmem:[%s0 + $0x20] sm:$0xff]
  %v20 = vld [vmem:[%s0 + $0x28] sm:$0xff]
  %v21 = vld [vmem:[%s0 + $0x30] sm:$0xff]
  %v22 = vld [vmem:[%s0 + $0x38] sm:$0xff]
  %v23 = vld [vmem:[%s0 + $0x40] sm:$0xff]
  %v24 = vld [vmem:[%s0 + $0x48] sm:$0xff]
  %v25 = vld [vmem:[%s0 + $0x50] sm:$0xff]
  %v26 = vld [vmem:[%s0 + $0x58] sm:$0xff]
  %v27 = vld [vmem:[%s0 + $0x60] sm:$0xff]
  %v28 = vld [vmem:[%s0 + $0x68] sm:$0xff]
  %v29 = vld [vmem:[%s0 + $0x70] sm:$0xff]
  %v30 = vld [vmem:[%s0 + $0x78] sm:$0xff]
  %v31 = vld [vmem:[%s0 + $0x80] sm:$0xff]
  %v32 = vld [vmem:[%s0 + $0x88] sm:$0xff]
  %v33 = vld [vmem:[%s0 + $0x90] sm:$0xff]
  %v34 = vld [vmem:[%s0 + $0x98] sm:$0xff]
  %v35 = vld [vmem:[%s0 + $0xa0] sm:$0xff]
  %v36 = vld [vmem:[%s0 + $0xa8] sm:$0xff]
  %v37 = vld [vmem:[%s0 + $0xb0] sm:$0xff]
  %v38 = vld [vmem:[%s0 + $0xb8] sm:$0xff]
  %v39 = vld [vmem:[%s1] sm:$0xf]
  %v40 = vld [vmem:[%s1 + $0x4] sm:$0xf]
  %v41 = vld [vmem:[%s1 + $0x8] sm:$0xf]
  %v42 = vld [vmem:[%s1 + $0xc] sm:$0xf]
  %v43 = vld [vmem:[%s1 + $0x10] sm:$0xf]
  %v44 = vld [vmem:[%s1 + $0x14] sm:$0xf]
  %v45 = vld [vmem:[%s1 + $0x18] sm:$0xf]
  %v46 = vld [vmem:[%s1 + $0x1c] sm:$0xf]
  %v47 = vld [vmem:[%s1 + $0x20] sm:$0xf]
  %v48 = vld [vmem:[%s1 + $0x24] sm:$0xf]
  %v49 = vld [vmem:[%s1 + $0x28] sm:$0xf]
  %v50 = vld [vmem:[%s1 + $0x2c] sm:$0xf]
  %v51 = vld [vmem:[%s1 + $0x30] sm:$0xf]
  %v52 = vld [vmem:[%s1 + $0x34] sm:$0xf]
  %v53 = vld [vmem:[%s1 + $0x38] sm:$0xf]
  %v54 = vld [vmem:[%s1 + $0x3c] sm:$0xf]
  %v55 = vld [vmem:[%s1 + $0x40] sm:$0xf]
  %v56 = vld [vmem:[%s1 + $0x44] sm:$0xf]
  %v57 = vld [vmem:[%s1 + $0x48] sm:$0xf]
  %v58 = vld [vmem:[%s1 + $0x4c] sm:$0xf]
  %v59 = vld [vmem:[%s1 + $0x50] sm:$0xf]
  %v60 = vld [vmem:[%s1 + $0x54] sm:$0xf]
  %v61 = vld [vmem:[%s1 + $0x58] sm:$0xf]
  %v62 = vld [vmem:[%s1 + $0x5c] sm:$0xf]
  %v63 = vld [vmem:[%s1 + $0x60] sm:$0xf]
  %v64 = vld [vmem:[%s1 + $0x64] sm:$0xf]
  %v65 = vld [vmem:[%s1 + $0x68] sm:$0xf]
  %v66 = vld [vmem:[%s1 + $0x6c] sm:$0xf]
  %v67 = vld [vmem:[%s1 + $0x70] sm:$0xf]
  %v68 = vld [vmem:[%s1 + $0x74] sm:$0xf]
  %v69 = vld [vmem:[%s1 + $0x78] sm:$0xf]
  %v70 = vld [vmem:[%s1 + $0x7c] sm:$0xf]
  %v71 = vld [vmem:[%s2] sm:$0x1]
  %v73 = vlaneseq
  %v74 = vshrl.u32 %v73, 7
  %v75 = vsub.s32 0, %v74
  %v76 = vrot.slane %v71, %v75
  %v102 = vunpack.c.l.b16 %v15
  %v103 = vunpack.c.h.b16 %v15
  %v104 = vunpack.c.l.b16 %v16
  %v105 = vunpack.c.h.b16 %v16
  %v106 = vunpack.c.l.b16 %v17
  %v107 = vunpack.c.h.b16 %v17
  %v108 = vunpack.c.l.b16 %v18
  %v109 = vunpack.c.h.b16 %v18
  %v110 = vunpack.c.l.b16 %v19
  %v111 = vunpack.c.h.b16 %v19
  %v112 = vunpack.c.l.b16 %v20
  %v113 = vunpack.c.h.b16 %v20
  %v114 = vunpack.c.l.b16 %v21
  %v115 = vunpack.c.h.b16 %v21
  %v116 = vunpack.c.l.b16 %v22
  %v117 = vunpack.c.h.b16 %v22
  %v118 = vunpack.c.l.b16 %v23
  %v119 = vunpack.c.h.b16 %v23
  %v120 = vunpack.c.l.b16 %v24
  %v121 = vunpack.c.h.b16 %v24
  %v122 = vunpack.c.l.b16 %v25
  %v123 = vunpack.c.h.b16 %v25
  %v124 = vunpack.c.l.b16 %v26
  %v125 = vunpack.c.h.b16 %v26
  %v126 = vunpack.c.l.b16 %v27
  %v127 = vunpack.c.h.b16 %v27
  %v128 = vunpack.c.l.b16 %v28
  %v129 = vunpack.c.h.b16 %v28
  %v130 = vunpack.c.l.b16 %v29
  %v131 = vunpack.c.h.b16 %v29
  %v132 = vunpack.c.l.b16 %v30
  %v133 = vunpack.c.h.b16 %v30
  %v134 = vunpack.c.l.b16 %v31
  %v135 = vunpack.c.h.b16 %v31
  %v136 = vunpack.c.l.b16 %v32
  %v137 = vunpack.c.h.b16 %v32
  %v138 = vunpack.c.l.b16 %v33
  %v139 = vunpack.c.h.b16 %v33
  %v140 = vunpack.c.l.b16 %v34
  %v141 = vunpack.c.h.b16 %v34
  %v142 = vunpack.c.l.b16 %v35
  %v143 = vunpack.c.h.b16 %v35
  %v144 = vunpack.c.l.b16 %v36
  %v145 = vunpack.c.h.b16 %v36
  %v146 = vunpack.c.l.b16 %v37
  %v147 = vunpack.c.h.b16 %v37
  %v148 = vunpack.c.l.b16 %v38
  %v149 = vunpack.c.h.b16 %v38
  %v150 = vpack.c.b16 %v104, %v102
  %v151 = vpack.c.b16 %v105, %v103
  %v152 = vpack.c.b16 %v108, %v106
  %v153 = vpack.c.b16 %v109, %v107
  %v154 = vpack.c.b16 %v112, %v110
  %v155 = vpack.c.b16 %v113, %v111
  %v156 = vpack.c.b16 %v116, %v114
  %v157 = vpack.c.b16 %v117, %v115
  %v158 = vpack.c.b16 %v120, %v118
  %v159 = vpack.c.b16 %v121, %v119
  %v160 = vpack.c.b16 %v124, %v122
  %v161 = vpack.c.b16 %v125, %v123
  %v162 = vpack.c.b16 %v128, %v126
  %v163 = vpack.c.b16 %v129, %v127
  %v164 = vpack.c.b16 %v132, %v130
  %v165 = vpack.c.b16 %v133, %v131
  %v166 = vpack.c.b16 %v136, %v134
  %v167 = vpack.c.b16 %v137, %v135
  %v168 = vpack.c.b16 %v140, %v138
  %v169 = vpack.c.b16 %v141, %v139
  %v170 = vpack.c.b16 %v144, %v142
  %v171 = vpack.c.b16 %v145, %v143
  %v172 = vpack.c.b16 %v148, %v146
  %v173 = vpack.c.b16 %v149, %v147
  %v230 = vunpack.c.l.b16 %v39
  %v231 = vunpack.c.l.b16 %v40
  %v232 = vunpack.c.l.b16 %v41
  %v233 = vunpack.c.l.b16 %v42
  %v234 = vunpack.c.l.b16 %v43
  %v235 = vunpack.c.l.b16 %v44
  %v236 = vunpack.c.l.b16 %v45
  %v237 = vunpack.c.l.b16 %v46
  %v238 = vunpack.c.l.b16 %v47
  %v239 = vunpack.c.l.b16 %v48
  %v240 = vunpack.c.l.b16 %v49
  %v241 = vunpack.c.l.b16 %v50
  %v242 = vunpack.c.l.b16 %v51
  %v243 = vunpack.c.l.b16 %v52
  %v244 = vunpack.c.l.b16 %v53
  %v245 = vunpack.c.l.b16 %v54
  %v246 = vunpack.c.l.b16 %v55
  %v247 = vunpack.c.l.b16 %v56
  %v248 = vunpack.c.l.b16 %v57
  %v249 = vunpack.c.l.b16 %v58
  %v250 = vunpack.c.l.b16 %v59
  %v251 = vunpack.c.l.b16 %v60
  %v252 = vunpack.c.l.b16 %v61
  %v253 = vunpack.c.l.b16 %v62
  %v254 = vunpack.c.l.b16 %v63
  %v255 = vunpack.c.l.b16 %v64
  %v256 = vunpack.c.l.b16 %v65
  %v257 = vunpack.c.l.b16 %v66
  %v258 = vunpack.c.l.b16 %v67
  %v259 = vunpack.c.l.b16 %v68
  %v260 = vunpack.c.l.b16 %v69
  %v261 = vunpack.c.l.b16 %v70
  %v262 = vpack.c.b16 %v231, %v230
  %v263 = vpack.c.b16 %v233, %v232
  %v264 = vpack.c.b16 %v235, %v234
  %v265 = vpack.c.b16 %v237, %v236
  %v266 = vpack.c.b16 %v239, %v238
  %v267 = vpack.c.b16 %v241, %v240
  %v268 = vpack.c.b16 %v243, %v242
  %v269 = vpack.c.b16 %v245, %v244
  %v270 = vpack.c.b16 %v247, %v246
  %v271 = vpack.c.b16 %v249, %v248
  %v272 = vpack.c.b16 %v251, %v250
  %v273 = vpack.c.b16 %v253, %v252
  %v274 = vpack.c.b16 %v255, %v254
  %v275 = vpack.c.b16 %v257, %v256
  %v276 = vpack.c.b16 %v259, %v258
  %v277 = vpack.c.b16 %v261, %v260
  %294 = vmatprep.subr.bf16.mxu0 0
  %295 = vmatpush1.bf16.msra.mxu0 %v269
  %296 = vmatprep.subr.bf16.mxu0 0
  %297 = vmatpush1.bf16.msra.mxu0 %v268
  %298 = vmatprep.subr.bf16.mxu0 0
  %299 = vmatpush1.bf16.msra.mxu0 %v267
  %300 = vmatprep.subr.bf16.mxu0 0
  %301 = vmatpush1.bf16.msra.mxu0 %v266
  %302 = vmatprep.subr.bf16.mxu0 0
  %303 = vmatpush1.bf16.msra.mxu0 %v265
  %304 = vmatprep.subr.bf16.mxu0 0
  %305 = vmatpush1.bf16.msra.mxu0 %v264
  %306 = vmatprep.subr.bf16.mxu0 0
  %307 = vmatpush1.bf16.msra.mxu0 %v263
  %308 = vmatprep.subr.bf16.mxu0 0
  %309 = vmatpush1.bf16.msra.mxu0 %v262
  %310 = vmatprep.subr.bf16.mxu0 0
  %311 = vmatpush2.bf16.msra.mxu0 %v277
  %312 = vmatprep.subr.bf16.mxu0 0
  %313 = vmatpush2.bf16.msra.mxu0 %v276
  %314 = vmatprep.subr.bf16.mxu0 0
  %315 = vmatpush2.bf16.msra.mxu0 %v275
  %316 = vmatprep.subr.bf16.mxu0 0
  %317 = vmatpush2.bf16.msra.mxu0 %v274
  %318 = vmatprep.subr.bf16.mxu0 0
  %319 = vmatpush2.bf16.msra.mxu0 %v273
  %320 = vmatprep.subr.bf16.mxu0 0
  %321 = vmatpush2.bf16.msra.mxu0 %v272
  %322 = vmatprep.subr.bf16.mxu0 0
  %323 = vmatpush2.bf16.msra.mxu0 %v271
  %324 = vmatprep.subr.bf16.mxu0 0
  %325 = vmatpush2.bf16.msra.mxu0 %v270
  %326 = vmatprep.mubr.bf16.mxu0 %v151
  %327 = vmatmul.mubr.bf16.gmra.mxu0 %v150
  %v328 = vpop.f32.mrf.mxu0
  %v329 = vadd.f32 %v76, %v328
  %v330 = vpop.f32.mrf.mxu0
  %v331 = vpop.f32.mrf.mxu0
  %v332 = vadd.f32 %v76, %v331
  %v333 = vpop.f32.mrf.mxu0
  %334 = vmatprep.mubr.bf16.mxu0 %v153
  %335 = vmatmul.mubr.bf16.gmra.mxu0 %v152
  %v336 = vpop.f32.mrf.mxu0
  %v337 = vadd.f32 %v76, %v336
  %v338 = vpop.f32.mrf.mxu0
  %v339 = vpop.f32.mrf.mxu0
  %v340 = vadd.f32 %v76, %v339
  %v341 = vpop.f32.mrf.mxu0
  %342 = vmatprep.mubr.bf16.mxu0 %v155
  %343 = vmatmul.mubr.bf16.gmra.mxu0 %v154
  %v344 = vpop.f32.mrf.mxu0
  %v345 = vadd.f32 %v76, %v344
  %v346 = vpop.f32.mrf.mxu0
  %v347 = vpop.f32.mrf.mxu0
  %v348 = vadd.f32 %v76, %v347
  %v349 = vpop.f32.mrf.mxu0
  %350 = vmatprep.mubr.bf16.mxu0 %v157
  %351 = vmatmul.mubr.bf16.gmra.mxu0 %v156
  %v352 = vpop.f32.mrf.mxu0
  %v353 = vadd.f32 %v76, %v352
  %v354 = vpop.f32.mrf.mxu0
  %v355 = vpop.f32.mrf.mxu0
  %v356 = vadd.f32 %v76, %v355
  %v357 = vpop.f32.mrf.mxu0
  %358 = vmatprep.mubr.bf16.mxu0 %v159
  %359 = vmatmul.mubr.bf16.gmra.mxu0 %v158
  %v360 = vpop.f32.mrf.mxu0
  %v361 = vadd.f32 %v76, %v360
  %v362 = vpop.f32.mrf.mxu0
  %v363 = vpop.f32.mrf.mxu0
  %v364 = vadd.f32 %v76, %v363
  %v365 = vpop.f32.mrf.mxu0
  %366 = vmatprep.mubr.bf16.mxu0 %v161
  %367 = vmatmul.mubr.bf16.gmra.mxu0 %v160
  %v368 = vpop.f32.mrf.mxu0
  %v369 = vadd.f32 %v76, %v368
  %v370 = vpop.f32.mrf.mxu0
  %v371 = vpop.f32.mrf.mxu0
  %v372 = vadd.f32 %v76, %v371
  %v373 = vpop.f32.mrf.mxu0
  %374 = vmatprep.mubr.bf16.mxu0 %v163
  %375 = vmatmul.mubr.bf16.gmra.mxu0 %v162
  %v376 = vpop.f32.mrf.mxu0
  %v377 = vadd.f32 %v76, %v376
  %v378 = vpop.f32.mrf.mxu0
  %v379 = vpop.f32.mrf.mxu0
  %v380 = vadd.f32 %v76, %v379
  %v381 = vpop.f32.mrf.mxu0
  %382 = vmatprep.mubr.bf16.mxu0 %v165
  %383 = vmatmul.mubr.bf16.gmra.mxu0 %v164
  %v384 = vpop.f32.mrf.mxu0
  %v385 = vadd.f32 %v76, %v384
  %v386 = vpop.f32.mrf.mxu0
  %v387 = vpop.f32.mrf.mxu0
  %v388 = vadd.f32 %v76, %v387
  %v389 = vpop.f32.mrf.mxu0
  %390 = vmatprep.mubr.bf16.mxu0 %v167
  %391 = vmatmul.mubr.bf16.gmra.mxu0 %v166
  %v392 = vpop.f32.mrf.mxu0
  %v393 = vadd.f32 %v76, %v392
  %v394 = vpop.f32.mrf.mxu0
  %v395 = vpop.f32.mrf.mxu0
  %v396 = vadd.f32 %v76, %v395
  %v397 = vpop.f32.mrf.mxu0
  %398 = vmatprep.mubr.bf16.mxu0 %v169
  %399 = vmatmul.mubr.bf16.gmra.mxu0 %v168
  %v400 = vpop.f32.mrf.mxu0
  %v401 = vadd.f32 %v76, %v400
  %v402 = vpop.f32.mrf.mxu0
  %v403 = vpop.f32.mrf.mxu0
  %v404 = vadd.f32 %v76, %v403
  %v405 = vpop.f32.mrf.mxu0
  %406 = vmatprep.mubr.bf16.mxu0 %v171
  %407 = vmatmul.mubr.bf16.gmra.mxu0 %v170
  %v408 = vpop.f32.mrf.mxu0
  %v409 = vadd.f32 %v76, %v408
  %v410 = vpop.f32.mrf.mxu0
  %v411 = vpop.f32.mrf.mxu0
  %v412 = vadd.f32 %v76, %v411
  %v413 = vpop.f32.mrf.mxu0
  %414 = vmatprep.mubr.bf16.mxu0 %v173
  %415 = vmatmul.mubr.bf16.gmra.mxu0 %v172
  %v416 = vpop.f32.mrf.mxu0
  %v417 = vadd.f32 %v76, %v416
  %v418 = vpop.f32.mrf.mxu0
  %v419 = vpop.f32.mrf.mxu0
  %v420 = vadd.f32 %v76, %v419
  %v421 = vpop.f32.mrf.mxu0
  %422 = vdwg.mxu0
  %423 = vst [vmem:[%s3] sm:$0xff] %v329
  %424 = vst [vmem:[%s3 + $0x8] sm:$0xff] %v332
  %425 = vst [vmem:[%s3 + $0x10] sm:$0xff] %v337
  %426 = vst [vmem:[%s3 + $0x18] sm:$0xff] %v340
  %427 = vst [vmem:[%s3 + $0x20] sm:$0xff] %v345
  %428 = vst [vmem:[%s3 + $0x28] sm:$0xff] %v348
  %429 = vst [vmem:[%s3 + $0x30] sm:$0xff] %v353
  %430 = vst [vmem:[%s3 + $0x38] sm:$0xff] %v356
  %431 = vst [vmem:[%s3 + $0x40] sm:$0xff] %v361
  %432 = vst [vmem:[%s3 + $0x48] sm:$0xff] %v364
  %433 = vst [vmem:[%s3 + $0x50] sm:$0xff] %v369
  %434 = vst [vmem:[%s3 + $0x58] sm:$0xff] %v372
  %435 = vst [vmem:[%s3 + $0x60] sm:$0xff] %v377
  %436 = vst [vmem:[%s3 + $0x68] sm:$0xff] %v380
  %437 = vst [vmem:[%s3 + $0x70] sm:$0xff] %v385
  %438 = vst [vmem:[%s3 + $0x78] sm:$0xff] %v388
  %439 = vst [vmem:[%s3 + $0x80] sm:$0xff] %v393
  %440 = vst [vmem:[%s3 + $0x88] sm:$0xff] %v396
  %441 = vst [vmem:[%s3 + $0x90] sm:$0xff] %v401
  %442 = vst [vmem:[%s3 + $0x98] sm:$0xff] %v404
  %443 = vst [vmem:[%s3 + $0xa0] sm:$0xff] %v409
  %444 = vst [vmem:[%s3 + $0xa8] sm:$0xff] %v412
  %445 = vst [vmem:[%s3 + $0xb0] sm:$0xff] %v417
  %446 = vst [vmem:[%s3 + $0xb8] sm:$0xff] %v420
  // Predicated region
  $region14: #{forward.14} parent=0 // pred_check
    _
  $region15: #{forward.14} parent=0 // pred_check_branch
    %448 = sbr.rel (0) target = $region17
  $region16: #{forward.14} parent=0 // pred_region
    _
  $region17: #{forward.14} parent=0 // pred_fallthru
    _
  // Predicated region
  $region18: #{forward.14} parent=0 // pred_check
    _
  $region19: #{forward.14} parent=0 // pred_check_branch
    %450 = sbr.rel (0) target = $region21
  $region20: #{forward.14} parent=0 // pred_region
    _
  $region21: #{forward.14} parent=0 // pred_fallthru
    _

// kernel: forward.11
$region0: #{forward.11}
  #allocation0 [shape = 'u32[]', space=smem, size = 0x4, offset = 0x4, fixed_abs, tag = 'smem constant byte address 0x4 - core index']
  #allocation1 [shape = 'u32[144,128]{1,0:T(1,128)}', space=vmem, size = 0x12000, scoped, tag = 'internal scratch']
  %s0 = inlined_call_operand.vmem [shape: bf16[32,5248], index: 0, kind: input, shape index: {}]
  %s1 = inlined_call_operand.vmem [shape: bf16[5248,128], index: 1, kind: input, shape index: {}]
  %s2 = inlined_call_operand.vmem [shape: f32[1,128], index: 2, kind: input, shape index: {}]
  %s3 = inlined_call_operand.vmem [shape: bf16[128,128], index: 3, kind: input, shape index: {}]
  %s4 = inlined_call_operand.vmem [shape: f32[1,128], index: 4, kind: input, shape index: {}]
  %s5 = inlined_call_operand.vmem [shape: f32[32,128], index: 5, kind: output, shape index: {0}]
  %s6 = inlined_call_operand.vmem [shape: f32[32,128], index: 6, kind: output, shape index: {1}]
  %7 = xla_tuple %s5, %s6
  %s8 = sld [smem:[#allocation0]]
  $region38: #{forward.11} parent=0
    _
  %s10 = ssub.s32 1, %s8
  %s11 = scalar_select 0, %s10, %s8
  // Predicated region
  $region2: #{forward.11} parent=0 // pred_check
    _
  $region3: #{forward.11} parent=0 // pred_check_branch
    %13 = sbr.rel (0) target = $region5
  $region4: #{forward.11} parent=0 // pred_region
    _
  $region5: #{forward.11} parent=0 // pred_fallthru
    _
  // Predicated region
  $region6: #{forward.11} parent=0 // pred_check
    _
  $region7: #{forward.11} parent=0 // pred_check_branch
    %15 = sbr.rel (0) target = $region9
  $region8: #{forward.11} parent=0 // pred_region
    _
  $region9: #{forward.11} parent=0 // pred_fallthru
    _
  // Predicated region
  $region10: #{forward.11} parent=0 // pred_check
    _
  $region11: #{forward.11} parent=0 // pred_check_branch
    %17 = sbr.rel (0) target = $region13
  $region12: #{forward.11} parent=0 // pred_region
    _
  $region13: #{forward.11} parent=0 // pred_fallthru
    _
  // Predicated region
  $region14: #{forward.11} parent=0 // pred_check
    _
  $region15: #{forward.11} parent=0 // pred_check_branch
    %19 = sbr.rel (0) target = $region17
  $region16: #{forward.11} parent=0 // pred_region
    _
  $region17: #{forward.11} parent=0 // pred_fallthru
    _
  // Predicated region
  $region18: #{forward.11} parent=0 // pred_check
    _
  $region19: #{forward.11} parent=0 // pred_check_branch
    %21 = sbr.rel (0) target = $region21
  $region20: #{forward.11} parent=0 // pred_region
    _
  $region21: #{forward.11} parent=0 // pred_fallthru
    _
  %v23 = vld [vmem:[%s0] sm:$0xff]
  %v24 = vld [vmem:[%s0 + $0x8] sm:$0xff]
  %v25 = vld [vmem:[%s0 + $0x10] sm:$0xff]
  %v26 = vld [vmem:[%s0 + $0x18] sm:$0xff]
  %v27 = vld [vmem:[%s0 + $0x20] sm:$0xff]
  %v28 = vld [vmem:[%s0 + $0x28] sm:$0xff]
  %v29 = vld [vmem:[%s0 + $0x30] sm:$0xff]
  %v30 = vld [vmem:[%s0 + $0x38] sm:$0xff]
  %v31 = vld [vmem:[%s0 + $0x40] sm:$0xff]
  %v32 = vld [vmem:[%s0 + $0x48] sm:$0xff]
  %v33 = vld [vmem:[%s0 + $0x50] sm:$0xff]
  %v34 = vld [vmem:[%s0 + $0x58] sm:$0xff]
  %v35 = vld [vmem:[%s0 + $0x60] sm:$0xff]
  %v36 = vld [vmem:[%s0 + $0x68] sm:$0xff]
  %v37 = vld [vmem:[%s0 + $0x70] sm:$0xff]
  %v38 = vld [vmem:[%s0 + $0x78] sm:$0xff]
  %v39 = vld [vmem:[%s0 + $0x80] sm:$0xff]
  %v40 = vld [vmem:[%s0 + $0x88] sm:$0xff]
  %v41 = vld [vmem:[%s0 + $0x90] sm:$0xff]
  %v42 = vld [vmem:[%s0 + $0x98] sm:$0xff]
  %v43 = vld [vmem:[%s0 + $0xa0] sm:$0xf]
  %v44 = vld [vmem:[%s0 + $0xa4] sm:$0xff]
  %v45 = vld [vmem:[%s0 + $0xac] sm:$0xff]
  %v46 = vld [vmem:[%s0 + $0xb4] sm:$0xff]
  %v47 = vld [vmem:[%s0 + $0xbc] sm:$0xff]
  %v48 = vld [vmem:[%s0 + $0xc4] sm:$0xff]
  %v49 = vld [vmem:[%s0 + $0xcc] sm:$0xff]
  %v50 = vld [vmem:[%s0 + $0xd4] sm:$0xff]
  %v51 = vld [vmem:[%s0 + $0xdc] sm:$0xff]
  %v52 = vld [vmem:[%s0 + $0xe4] sm:$0xff]
  %v53 = vld [vmem:[%s0 + $0xec] sm:$0xff]
  %v54 = vld [vmem:[%s0 + $0xf4] sm:$0xff]
  %v55 = vld [vmem:[%s0 + $0xfc] sm:$0xff]
  %v56 = vld [vmem:[%s0 + $0x104] sm:$0xff]
  %v57 = vld [vmem:[%s0 + $0x10c] sm:$0xff]
  %v58 = vld [vmem:[%s0 + $0x114] sm:$0xff]
  %v59 = vld [vmem:[%s0 + $0x11c] sm:$0xff]
  %v60 = vld [vmem:[%s0 + $0x124] sm:$0xff]
  %v61 = vld [vmem:[%s0 + $0x12c] sm:$0xff]
  %v62 = vld [vmem:[%s0 + $0x134] sm:$0xff]
  %v63 = vld [vmem:[%s0 + $0x13c] sm:$0xff]
  %v64 = vld [vmem:[%s0 + $0x144] sm:$0xf]
  %v65 = vld [vmem:[%s0 + $0x148] sm:$0xff]
  %v66 = vld [vmem:[%s0 + $0x150] sm:$0xff]
  %v67 = vld [vmem:[%s0 + $0x158] sm:$0xff]
  %v68 = vld [vmem:[%s0 + $0x160] sm:$0xff]
  %v69 = vld [vmem:[%s0 + $0x168] sm:$0xff]
  %v70 = vld [vmem:[%s0 + $0x170] sm:$0xff]
  %v71 = vld [vmem:[%s0 + $0x178] sm:$0xff]
  %v72 = vld [vmem:[%s0 + $0x180] sm:$0xff]
  %v73 = vld [vmem:[%s0 + $0x188] sm:$0xff]
  %v74 = vld [vmem:[%s0 + $0x190] sm:$0xff]
  %v75 = vld [vmem:[%s0 + $0x198] sm:$0xff]
  %v76 = vld [vmem:[%s0 + $0x1a0] sm:$0xff]
  %v77 = vld [vmem:[%s0 + $0x1a8] sm:$0xff]
  %v78 = vld [vmem:[%s0 + $0x1b0] sm:$0xff]
  %v79 = vld [vmem:[%s0 + $0x1b8] sm:$0xff]
  %v80 = vld [vmem:[%s0 + $0x1c0] sm:$0xff]
  %v81 = vld [vmem:[%s0 + $0x1c8] sm:$0xff]
  %v82 = vld [vmem:[%s0 + $0x1d0] sm:$0xff]
  %v83 = vld [vmem:[%s0 + $0x1d8] sm:$0xff]
  %v84 = vld [vmem:[%s0 + $0x1e0] sm:$0xff]
  %v85 = vld [vmem:[%s0 + $0x1e8] sm:$0xf]
  %v86 = vld [vmem:[%s0 + $0x1ec] sm:$0xff]
  %v87 = vld [vmem:[%s0 + $0x1f4] sm:$0xff]
  %v88 = vld [vmem:[%s0 + $0x1fc] sm:$0xff]
  %v89 = vld [vmem:[%s0 + $0x204] sm:$0xff]
  %v90 = vld [vmem:[%s0 + $0x20c] sm:$0xff]
  %v91 = vld [vmem:[%s0 + $0x214] sm:$0xff]
  %v92 = vld [vmem:[%s0 + $0x21c] sm:$0xff]
  %v93 = vld [vmem:[%s0 + $0x224] sm:$0xff]
  %v94 = vld [vmem:[%s0 + $0x22c] sm:$0xff]
  %v95 = vld [vmem:[%s0 + $0x234] sm:$0xff]
  %v96 = vld [vmem:[%s0 + $0x23c] sm:$0xff]
  %v97 = vld [vmem:[%s0 + $0x244] sm:$0xff]
  %v98 = vld [vmem:[%s0 + $0x24c] sm:$0xff]
  %v99 = vld [vmem:[%s0 + $0x254] sm:$0xff]
  %v100 = vld [vmem:[%s0 + $0x25c] sm:$0xff]
  %v101 = vld [vmem:[%s0 + $0x264] sm:$0xff]
  %v102 = vld [vmem:[%s0 + $0x26c] sm:$0xff]
  %v103 = vld [vmem:[%s0 + $0x274] sm:$0xff]
  %v104 = vld [vmem:[%s0 + $0x27c] sm:$0xff]
  %v105 = vld [vmem:[%s0 + $0x284] sm:$0xff]
  %v106 = vld [vmem:[%s0 + $0x28c] sm:$0xf]
  %v107 = vld [vmem:[%s1] sm:$0xf]
  %v108 = vld [vmem:[%s1 + $0x4] sm:$0xf]
  %v109 = vld [vmem:[%s1 + $0x8] sm:$0xf]
  %v110 = vld [vmem:[%s1 + $0xc] sm:$0xf]
  %v111 = vld [vmem:[%s1 + $0x10] sm:$0xf]
  %v112 = vld [vmem:[%s1 + $0x14] sm:$0xf]
  %v113 = vld [vmem:[%s1 + $0x18] sm:$0xf]
  %v114 = vld [vmem:[%s1 + $0x1c] sm:$0xf]
  %v115 = vld [vmem:[%s1 + $0x20] sm:$0xf]
  %v116 = vld [vmem:[%s1 + $0x24] sm:$0xf]
  %v117 = vld [vmem:[%s1 + $0x28] sm:$0xf]
  %v118 = vld [vmem:[%s1 + $0x2c] sm:$0xf]
  %v119 = vld [vmem:[%s1 + $0x30] sm:$0xf]
  %v120 = vld [vmem:[%s1 + $0x34] sm:$0xf]
  %v121 = vld [vmem:[%s1 + $0x38] sm:$0xf]
  %v122 = vld [vmem:[%s1 + $0x3c] sm:$0xf]
  %v123 = vld [vmem:[%s1 + $0x40] sm:$0xf]
  %v124 = vld [vmem:[%s1 + $0x44] sm:$0xf]
  %v125 = vld [vmem:[%s1 + $0x48] sm:$0xf]
  %v126 = vld [vmem:[%s1 + $0x4c] sm:$0xf]
  %v127 = vld [vmem:[%s1 + $0x50] sm:$0xf]
  %v128 = vld [vmem:[%s1 + $0x54] sm:$0xf]
  %v129 = vld [vmem:[%s1 + $0x58] sm:$0xf]
  %v130 = vld [vmem:[%s1 + $0x5c] sm:$0xf]
  %v131 = vld [vmem:[%s1 + $0x60] sm:$0xf]
  %v132 = vld [vmem:[%s1 + $0x64] sm:$0xf]
  %v133 = vld [vmem:[%s1 + $0x68] sm:$0xf]
  %v134 = vld [vmem:[%s1 + $0x6c] sm:$0xf]
  %v135 = vld [vmem:[%s1 + $0x70] sm:$0xf]
  %v136 = vld [vmem:[%s1 + $0x74] sm:$0xf]
  %v137 = vld [vmem:[%s1 + $0x78] sm:$0xf]
  %v138 = vld [vmem:[%s1 + $0x7c] sm:$0xf]
  %v139 = vld [vmem:[%s1 + $0x80] sm:$0xf]
  %v140 = vld [vmem:[%s1 + $0x84] sm:$0xf]
  %v141 = vld [vmem:[%s1 + $0x88] sm:$0xf]
  %v142 = vld [vmem:[%s1 + $0x8c] sm:$0xf]
  %v143 = vld [vmem:[%s1 + $0x90] sm:$0xf]
  %v144 = vld [vmem:[%s1 + $0x94] sm:$0xf]
  %v145 = vld [vmem:[%s1 + $0x98] sm:$0xf]
  %v146 = vld [vmem:[%s1 + $0x9c] sm:$0xf]
  %v147 = vld [vmem:[%s1 + $0xa0] sm:$0xf]
  %v148 = vld [vmem:[%s1 + $0xa4] sm:$0xf]
  %v149 = vld [vmem:[%s1 + $0xa8] sm:$0xf]
  %v150 = vld [vmem:[%s1 + $0xac] sm:$0xf]
  %v151 = vld [vmem:[%s1 + $0xb0] sm:$0xf]
  %v152 = vld [vmem:[%s1 + $0xb4] sm:$0xf]
  %v153 = vld [vmem:[%s1 + $0xb8] sm:$0xf]
  %v154 = vld [vmem:[%s1 + $0xbc] sm:$0xf]
  %v155 = vld [vmem:[%s1 + $0xc0] sm:$0xf]
  %v156 = vld [vmem:[%s1 + $0xc4] sm:$0xf]
  %v157 = vld [vmem:[%s1 + $0xc8] sm:$0xf]
  %v158 = vld [vmem:[%s1 + $0xcc] sm:$0xf]
  %v159 = vld [vmem:[%s1 + $0xd0] sm:$0xf]
  %v160 = vld [vmem:[%s1 + $0xd4] sm:$0xf]
  %v161 = vld [vmem:[%s1 + $0xd8] sm:$0xf]
  %v162 = vld [vmem:[%s1 + $0xdc] sm:$0xf]
  %v163 = vld [vmem:[%s1 + $0xe0] sm:$0xf]
  %v164 = vld [vmem:[%s1 + $0xe4] sm:$0xf]
  %v165 = vld [vmem:[%s1 + $0xe8] sm:$0xf]
  %v166 = vld [vmem:[%s1 + $0xec] sm:$0xf]
  %v167 = vld [vmem:[%s1 + $0xf0] sm:$0xf]
  %v168 = vld [vmem:[%s1 + $0xf4] sm:$0xf]
  %v169 = vld [vmem:[%s1 + $0xf8] sm:$0xf]
  %v170 = vld [vmem:[%s1 + $0xfc] sm:$0xf]
  %v171 = vld [vmem:[%s1 + $0x100] sm:$0xf]
  %v172 = vld [vmem:[%s1 + $0x104] sm:$0xf]
  %v173 = vld [vmem:[%s1 + $0x108] sm:$0xf]
  %v174 = vld [vmem:[%s1 + $0x10c] sm:$0xf]
  %v175 = vld [vmem:[%s1 + $0x110] sm:$0xf]
  %v176 = vld [vmem:[%s1 + $0x114] sm:$0xf]
  %v177 = vld [vmem:[%s1 + $0x118] sm:$0xf]
  %v178 = vld [vmem:[%s1 + $0x11c] sm:$0xf]
  %v179 = vld [vmem:[%s1 + $0x120] sm:$0xf]
  %v180 = vld [vmem:[%s1 + $0x124] sm:$0xf]
  %v181 = vld [vmem:[%s1 + $0x128] sm:$0xf]
  %v182 = vld [vmem:[%s1 + $0x12c] sm:$0xf]
  %v183 = vld [vmem:[%s1 + $0x130] sm:$0xf]
  %v184 = vld [vmem:[%s1 + $0x134] sm:$0xf]
  %v185 = vld [vmem:[%s1 + $0x138] sm:$0xf]
  %v186 = vld [vmem:[%s1 + $0x13c] sm:$0xf]
  %v187 = vld [vmem:[%s1 + $0x140] sm:$0xf]
  %v188 = vld [vmem:[%s1 + $0x144] sm:$0xf]
  %v189 = vld [vmem:[%s1 + $0x148] sm:$0xf]
  %v190 = vld [vmem:[%s1 + $0x14c] sm:$0xf]
  %v191 = vld [vmem:[%s1 + $0x150] sm:$0xf]
  %v192 = vld [vmem:[%s1 + $0x154] sm:$0xf]
  %v193 = vld [vmem:[%s1 + $0x158] sm:$0xf]
  %v194 = vld [vmem:[%s1 + $0x15c] sm:$0xf]
  %v195 = vld [vmem:[%s1 + $0x160] sm:$0xf]
  %v196 = vld [vmem:[%s1 + $0x164] sm:$0xf]
  %v197 = vld [vmem:[%s1 + $0x168] sm:$0xf]
  %v198 = vld [vmem:[%s1 + $0x16c] sm:$0xf]
  %v199 = vld [vmem:[%s1 + $0x170] sm:$0xf]
  %v200 = vld [vmem:[%s1 + $0x174] sm:$0xf]
  %v201 = vld [vmem:[%s1 + $0x178] sm:$0xf]
  %v202 = vld [vmem:[%s1 + $0x17c] sm:$0xf]
  %v203 = vld [vmem:[%s1 + $0x180] sm:$0xf]
  %v204 = vld [vmem:[%s1 + $0x184] sm:$0xf]
  %v205 = vld [vmem:[%s1 + $0x188] sm:$0xf]
  %v206 = vld [vmem:[%s1 + $0x18c] sm:$0xf]
  %v207 = vld [vmem:[%s1 + $0x190] sm:$0xf]
  %v208 = vld [vmem:[%s1 + $0x194] sm:$0xf]
  %v209 = vld [vmem:[%s1 + $0x198] sm:$0xf]
  %v210 = vld [vmem:[%s1 + $0x19c] sm:$0xf]
  %v211 = vld [vmem:[%s1 + $0x1a0] sm:$0xf]
  %v212 = vld [vmem:[%s1 + $0x1a4] sm:$0xf]
  %v213 = vld [vmem:[%s1 + $0x1a8] sm:$0xf]
  %v214 = vld [vmem:[%s1 + $0x1ac] sm:$0xf]
  %v215 = vld [vmem:[%s1 + $0x1b0] sm:$0xf]
  %v216 = vld [vmem:[%s1 + $0x1b4] sm:$0xf]
  %v217 = vld [vmem:[%s1 + $0x1b8] sm:$0xf]
  %v218 = vld [vmem:[%s1 + $0x1bc] sm:$0xf]
  %v219 = vld [vmem:[%s1 + $0x1c0] sm:$0xf]
  %v220 = vld [vmem:[%s1 + $0x1c4] sm:$0xf]
  %v221 = vld [vmem:[%s1 + $0x1c8] sm:$0xf]
  %v222 = vld [vmem:[%s1 + $0x1cc] sm:$0xf]
  %v223 = vld [vmem:[%s1 + $0x1d0] sm:$0xf]
  %v224 = vld [vmem:[%s1 + $0x1d4] sm:$0xf]
  %v225 = vld [vmem:[%s1 + $0x1d8] sm:$0xf]
  %v226 = vld [vmem:[%s1 + $0x1dc] sm:$0xf]
  %v227 = vld [vmem:[%s1 + $0x1e0] sm:$0xf]
  %v228 = vld [vmem:[%s1 + $0x1e4] sm:$0xf]
  %v229 = vld [vmem:[%s1 + $0x1e8] sm:$0xf]
  %v230 = vld [vmem:[%s1 + $0x1ec] sm:$0xf]
  %v231 = vld [vmem:[%s1 + $0x1f0] sm:$0xf]
  %v232 = vld [vmem:[%s1 + $0x1f4] sm:$0xf]
  %v233 = vld [vmem:[%s1 + $0x1f8] sm:$0xf]
  %v234 = vld [vmem:[%s1 + $0x1fc] sm:$0xf]
  %v235 = vld [vmem:[%s1 + $0x200] sm:$0xf]
  %v236 = vld [vmem:[%s1 + $0x204] sm:$0xf]
  %v237 = vld [vmem:[%s1 + $0x208] sm:$0xf]
  %v238 = vld [vmem:[%s1 + $0x20c] sm:$0xf]
  %v239 = vld [vmem:[%s1 + $0x210] sm:$0xf]
  %v240 = vld [vmem:[%s1 + $0x214] sm:$0xf]
  %v241 = vld [vmem:[%s1 + $0x218] sm:$0xf]
  %v242 = vld [vmem:[%s1 + $0x21c] sm:$0xf]
  %v243 = vld [vmem:[%s1 + $0x220] sm:$0xf]
  %v244 = vld [vmem:[%s1 + $0x224] sm:$0xf]
  %v245 = vld [vmem:[%s1 + $0x228] sm:$0xf]
  %v246 = vld [vmem:[%s1 + $0x22c] sm:$0xf]
  %v247 = vld [vmem:[%s1 + $0x230] sm:$0xf]
  %v248 = vld [vmem:[%s1 + $0x234] sm:$0xf]
  %v249 = vld [vmem:[%s1 + $0x238] sm:$0xf]
  %v250 = vld [vmem:[%s1 + $0x23c] sm:$0xf]
  %v251 = vld [vmem:[%s1 + $0x240] sm:$0xf]
  %v252 = vld [vmem:[%s1 + $0x244] sm:$0xf]
  %v253 = vld [vmem:[%s1 + $0x248] sm:$0xf]
  %v254 = vld [vmem:[%s1 + $0x24c] sm:$0xf]
  %v255 = vld [vmem:[%s1 + $0x250] sm:$0xf]
  %v256 = vld [vmem:[%s1 + $0x254] sm:$0xf]
  %v257 = vld [vmem:[%s1 + $0x258] sm:$0xf]
  %v258 = vld [vmem:[%s1 + $0x25c] sm:$0xf]
  %v259 = vld [vmem:[%s1 + $0x260] sm:$0xf]
  %v260 = vld [vmem:[%s1 + $0x264] sm:$0xf]
  %v261 = vld [vmem:[%s1 + $0x268] sm:$0xf]
  %v262 = vld [vmem:[%s1 + $0x26c] sm:$0xf]
  %v263 = vld [vmem:[%s1 + $0x270] sm:$0xf]
  %v264 = vld [vmem:[%s1 + $0x274] sm:$0xf]
  %v265 = vld [vmem:[%s1 + $0x278] sm:$0xf]
  %v266 = vld [vmem:[%s1 + $0x27c] sm:$0xf]
  %v267 = vld [vmem:[%s1 + $0x280] sm:$0xf]
  %v268 = vld [vmem:[%s1 + $0x284] sm:$0xf]
  %v269 = vld [vmem:[%s1 + $0x288] sm:$0xf]
  %v270 = vld [vmem:[%s1 + $0x28c] sm:$0xf]
  %v271 = vld [vmem:[%s1 + $0x290] sm:$0xf]
  %v272 = vld [vmem:[%s1 + $0x294] sm:$0xf]
  %v273 = vld [vmem:[%s1 + $0x298] sm:$0xf]
  %v274 = vld [vmem:[%s1 + $0x29c] sm:$0xf]
  %v275 = vld [vmem:[%s1 + $0x2a0] sm:$0xf]
  %v276 = vld [vmem:[%s1 + $0x2a4] sm:$0xf]
  %v277 = vld [vmem:[%s1 + $0x2a8] sm:$0xf]
  %v278 = vld [vmem:[%s1 + $0x2ac] sm:$0xf]
  %v279 = vld [vmem:[%s1 + $0x2b0] sm:$0xf]
  %v280 = vld [vmem:[%s1 + $0x2b4] sm:$0xf]
  %v281 = vld [vmem:[%s1 + $0x2b8] sm:$0xf]
  %v282 = vld [vmem:[%s1 + $0x2bc] sm:$0xf]
  %v283 = vld [vmem:[%s1 + $0x2c0] sm:$0xf]
  %v284 = vld [vmem:[%s1 + $0x2c4] sm:$0xf]
  %v285 = vld [vmem:[%s1 + $0x2c8] sm:$0xf]
  %v286 = vld [vmem:[%s1 + $0x2cc] sm:$0xf]
  %v287 = vld [vmem:[%s1 + $0x2d0] sm:$0xf]
  %v288 = vld [vmem:[%s1 + $0x2d4] sm:$0xf]
  %v289 = vld [vmem:[%s1 + $0x2d8] sm:$0xf]
  %v290 = vld [vmem:[%s1 + $0x2dc] sm:$0xf]
  %v291 = vld [vmem:[%s1 + $0x2e0] sm:$0xf]
  %v292 = vld [vmem:[%s1 + $0x2e4] sm:$0xf]
  %v293 = vld [vmem:[%s1 + $0x2e8] sm:$0xf]
  %v294 = vld [vmem:[%s1 + $0x2ec] sm:$0xf]
  %v295 = vld [vmem:[%s1 + $0x2f0] sm:$0xf]
  %v296 = vld [vmem:[%s1 + $0x2f4] sm:$0xf]
  %v297 = vld [vmem:[%s1 + $0x2f8] sm:$0xf]
  %v298 = vld [vmem:[%s1 + $0x2fc] sm:$0xf]
  %v299 = vld [vmem:[%s1 + $0x300] sm:$0xf]
  %v300 = vld [vmem:[%s1 + $0x304] sm:$0xf]
  %v301 = vld [vmem:[%s1 + $0x308] sm:$0xf]
  %v302 = vld [vmem:[%s1 + $0x30c] sm:$0xf]
  %v303 = vld [vmem:[%s1 + $0x310] sm:$0xf]
  %v304 = vld [vmem:[%s1 + $0x314] sm:$0xf]
  %v305 = vld [vmem:[%s1 + $0x318] sm:$0xf]
  %v306 = vld [vmem:[%s1 + $0x31c] sm:$0xf]
  %v307 = vld [vmem:[%s1 + $0x320] sm:$0xf]
  %v308 = vld [vmem:[%s1 + $0x324] sm:$0xf]
  %v309 = vld [vmem:[%s1 + $0x328] sm:$0xf]
  %v310 = vld [vmem:[%s1 + $0x32c] sm:$0xf]
  %v311 = vld [vmem:[%s1 + $0x330] sm:$0xf]
  %v312 = vld [vmem:[%s1 + $0x334] sm:$0xf]
  %v313 = vld [vmem:[%s1 + $0x338] sm:$0xf]
  %v314 = vld [vmem:[%s1 + $0x33c] sm:$0xf]
  %v315 = vld [vmem:[%s1 + $0x340] sm:$0xf]
  %v316 = vld [vmem:[%s1 + $0x344] sm:$0xf]
  %v317 = vld [vmem:[%s1 + $0x348] sm:$0xf]
  %v318 = vld [vmem:[%s1 + $0x34c] sm:$0xf]
  %v319 = vld [vmem:[%s1 + $0x350] sm:$0xf]
  %v320 = vld [vmem:[%s1 + $0x354] sm:$0xf]
  %v321 = vld [vmem:[%s1 + $0x358] sm:$0xf]
  %v322 = vld [vmem:[%s1 + $0x35c] sm:$0xf]
  %v323 = vld [vmem:[%s1 + $0x360] sm:$0xf]
  %v324 = vld [vmem:[%s1 + $0x364] sm:$0xf]
  %v325 = vld [vmem:[%s1 + $0x368] sm:$0xf]
  %v326 = vld [vmem:[%s1 + $0x36c] sm:$0xf]
  %v327 = vld [vmem:[%s1 + $0x370] sm:$0xf]
  %v328 = vld [vmem:[%s1 + $0x374] sm:$0xf]
  %v329 = vld [vmem:[%s1 + $0x378] sm:$0xf]
  %v330 = vld [vmem:[%s1 + $0x37c] sm:$0xf]
  %v331 = vld [vmem:[%s1 + $0x380] sm:$0xf]
  %v332 = vld [vmem:[%s1 + $0x384] sm:$0xf]
  %v333 = vld [vmem:[%s1 + $0x388] sm:$0xf]
  %v334 = vld [vmem:[%s1 + $0x38c] sm:$0xf]
  %v335 = vld [vmem:[%s1 + $0x390] sm:$0xf]
  %v336 = vld [vmem:[%s1 + $0x394] sm:$0xf]
  %v337 = vld [vmem:[%s1 + $0x398] sm:$0xf]
  %v338 = vld [vmem:[%s1 + $0x39c] sm:$0xf]
  %v339 = vld [vmem:[%s1 + $0x3a0] sm:$0xf]
  %v340 = vld [vmem:[%s1 + $0x3a4] sm:$0xf]
  %v341 = vld [vmem:[%s1 + $0x3a8] sm:$0xf]
  %v342 = vld [vmem:[%s1 + $0x3ac] sm:$0xf]
  %v343 = vld [vmem:[%s1 + $0x3b0] sm:$0xf]
  %v344 = vld [vmem:[%s1 + $0x3b4] sm:$0xf]
  %v345 = vld [vmem:[%s1 + $0x3b8] sm:$0xf]
  %v346 = vld [vmem:[%s1 + $0x3bc] sm:$0xf]
  %v347 = vld [vmem:[%s1 + $0x3c0] sm:$0xf]
  %v348 = vld [vmem:[%s1 + $0x3c4] sm:$0xf]
  %v349 = vld [vmem:[%s1 + $0x3c8] sm:$0xf]
  %v350 = vld [vmem:[%s1 + $0x3cc] sm:$0xf]
  %v351 = vld [vmem:[%s1 + $0x3d0] sm:$0xf]
  %v352 = vld [vmem:[%s1 + $0x3d4] sm:$0xf]
  %v353 = vld [vmem:[%s1 + $0x3d8] sm:$0xf]
  %v354 = vld [vmem:[%s1 + $0x3dc] sm:$0xf]
  %v355 = vld [vmem:[%s1 + $0x3e0] sm:$0xf]
  %v356 = vld [vmem:[%s1 + $0x3e4] sm:$0xf]
  %v357 = vld [vmem:[%s1 + $0x3e8] sm:$0xf]
  %v358 = vld [vmem:[%s1 + $0x3ec] sm:$0xf]
  %v359 = vld [vmem:[%s1 + $0x3f0] sm:$0xf]
  %v360 = vld [vmem:[%s1 + $0x3f4] sm:$0xf]
  %v361 = vld [vmem:[%s1 + $0x3f8] sm:$0xf]
  %v362 = vld [vmem:[%s1 + $0x3fc] sm:$0xf]
  %v363 = vld [vmem:[%s1 + $0x400] sm:$0xf]
  %v364 = vld [vmem:[%s1 + $0x404] sm:$0xf]
  %v365 = vld [vmem:[%s1 + $0x408] sm:$0xf]
  %v366 = vld [vmem:[%s1 + $0x40c] sm:$0xf]
  %v367 = vld [vmem:[%s1 + $0x410] sm:$0xf]
  %v368 = vld [vmem:[%s1 + $0x414] sm:$0xf]
  %v369 = vld [vmem:[%s1 + $0x418] sm:$0xf]
  %v370 = vld [vmem:[%s1 + $0x41c] sm:$0xf]
  %v371 = vld [vmem:[%s1 + $0x420] sm:$0xf]
  %v372 = vld [vmem:[%s1 + $0x424] sm:$0xf]
  %v373 = vld [vmem:[%s1 + $0x428] sm:$0xf]
  %v374 = vld [vmem:[%s1 + $0x42c] sm:$0xf]
  %v375 = vld [vmem:[%s1 + $0x430] sm:$0xf]
  %v376 = vld [vmem:[%s1 + $0x434] sm:$0xf]
  %v377 = vld [vmem:[%s1 + $0x438] sm:$0xf]
  %v378 = vld [vmem:[%s1 + $0x43c] sm:$0xf]
  %v379 = vld [vmem:[%s1 + $0x440] sm:$0xf]
  %v380 = vld [vmem:[%s1 + $0x444] sm:$0xf]
  %v381 = vld [vmem:[%s1 + $0x448] sm:$0xf]
  %v382 = vld [vmem:[%s1 + $0x44c] sm:$0xf]
  %v383 = vld [vmem:[%s1 + $0x450] sm:$0xf]
  %v384 = vld [vmem:[%s1 + $0x454] sm:$0xf]
  %v385 = vld [vmem:[%s1 + $0x458] sm:$0xf]
  %v386 = vld [vmem:[%s1 + $0x45c] sm:$0xf]
  %v387 = vld [vmem:[%s1 + $0x460] sm:$0xf]
  %v388 = vld [vmem:[%s1 + $0x464] sm:$0xf]
  %v389 = vld [vmem:[%s1 + $0x468] sm:$0xf]
  %v390 = vld [vmem:[%s1 + $0x46c] sm:$0xf]
  %v391 = vld [vmem:[%s1 + $0x470] sm:$0xf]
  %v392 = vld [vmem:[%s1 + $0x474] sm:$0xf]
  %v393 = vld [vmem:[%s1 + $0x478] sm:$0xf]
  %v394 = vld [vmem:[%s1 + $0x47c] sm:$0xf]
  %v395 = vld [vmem:[%s1 + $0x480] sm:$0xf]
  %v396 = vld [vmem:[%s1 + $0x484] sm:$0xf]
  %v397 = vld [vmem:[%s1 + $0x488] sm:$0xf]
  %v398 = vld [vmem:[%s1 + $0x48c] sm:$0xf]
  %v399 = vld [vmem:[%s1 + $0x490] sm:$0xf]
  %v400 = vld [vmem:[%s1 + $0x494] sm:$0xf]
  %v401 = vld [vmem:[%s1 + $0x498] sm:$0xf]
  %v402 = vld [vmem:[%s1 + $0x49c] sm:$0xf]
  %v403 = vld [vmem:[%s1 + $0x4a0] sm:$0xf]
  %v404 = vld [vmem:[%s1 + $0x4a4] sm:$0xf]
  %v405 = vld [vmem:[%s1 + $0x4a8] sm:$0xf]
  %v406 = vld [vmem:[%s1 + $0x4ac] sm:$0xf]
  %v407 = vld [vmem:[%s1 + $0x4b0] sm:$0xf]
  %v408 = vld [vmem:[%s1 + $0x4b4] sm:$0xf]
  %v409 = vld [vmem:[%s1 + $0x4b8] sm:$0xf]
  %v410 = vld [vmem:[%s1 + $0x4bc] sm:$0xf]
  %v411 = vld [vmem:[%s1 + $0x4c0] sm:$0xf]
  %v412 = vld [vmem:[%s1 + $0x4c4] sm:$0xf]
  %v413 = vld [vmem:[%s1 + $0x4c8] sm:$0xf]
  %v414 = vld [vmem:[%s1 + $0x4cc] sm:$0xf]
  %v415 = vld [vmem:[%s1 + $0x4d0] sm:$0xf]
  %v416 = vld [vmem:[%s1 + $0x4d4] sm:$0xf]
  %v417 = vld [vmem:[%s1 + $0x4d8] sm:$0xf]
  %v418 = vld [vmem:[%s1 + $0x4dc] sm:$0xf]
  %v419 = vld [vmem:[%s1 + $0x4e0] sm:$0xf]
  %v420 = vld [vmem:[%s1 + $0x4e4] sm:$0xf]
  %v421 = vld [vmem:[%s1 + $0x4e8] sm:$0xf]
  %v422 = vld [vmem:[%s1 + $0x4ec] sm:$0xf]
  %v423 = vld [vmem:[%s1 + $0x4f0] sm:$0xf]
  %v424 = vld [vmem:[%s1 + $0x4f4] sm:$0xf]
  %v425 = vld [vmem:[%s1 + $0x4f8] sm:$0xf]
  %v426 = vld [vmem:[%s1 + $0x4fc] sm:$0xf]
  %v427 = vld [vmem:[%s1 + $0x500] sm:$0xf]
  %v428 = vld [vmem:[%s1 + $0x504] sm:$0xf]
  %v429 = vld [vmem:[%s1 + $0x508] sm:$0xf]
  %v430 = vld [vmem:[%s1 + $0x50c] sm:$0xf]
  %v431 = vld [vmem:[%s1 + $0x510] sm:$0xf]
  %v432 = vld [vmem:[%s1 + $0x514] sm:$0xf]
  %v433 = vld [vmem:[%s1 + $0x518] sm:$0xf]
  %v434 = vld [vmem:[%s1 + $0x51c] sm:$0xf]
  %v435 = vld [vmem:[%s1 + $0x520] sm:$0xf]
  %v436 = vld [vmem:[%s1 + $0x524] sm:$0xf]
  %v437 = vld [vmem:[%s1 + $0x528] sm:$0xf]
  %v438 = vld [vmem:[%s1 + $0x52c] sm:$0xf]
  %v439 = vld [vmem:[%s1 + $0x530] sm:$0xf]
  %v440 = vld [vmem:[%s1 + $0x534] sm:$0xf]
  %v441 = vld [vmem:[%s1 + $0x538] sm:$0xf]
  %v442 = vld [vmem:[%s1 + $0x53c] sm:$0xf]
  %v443 = vld [vmem:[%s1 + $0x540] sm:$0xf]
  %v444 = vld [vmem:[%s1 + $0x544] sm:$0xf]
  %v445 = vld [vmem:[%s1 + $0x548] sm:$0xf]
  %v446 = vld [vmem:[%s1 + $0x54c] sm:$0xf]
  %v447 = vld [vmem:[%s1 + $0x550] sm:$0xf]
  %v448 = vld [vmem:[%s1 + $0x554] sm:$0xf]
  %v449 = vld [vmem:[%s1 + $0x558] sm:$0xf]
  %v450 = vld [vmem:[%s1 + $0x55c] sm:$0xf]
  %v451 = vld [vmem:[%s1 + $0x560] sm:$0xf]
  %v452 = vld [vmem:[%s1 + $0x564] sm:$0xf]
  %v453 = vld [vmem:[%s1 + $0x568] sm:$0xf]
  %v454 = vld [vmem:[%s1 + $0x56c] sm:$0xf]
  %v455 = vld [vmem:[%s1 + $0x570] sm:$0xf]
  %v456 = vld [vmem:[%s1 + $0x574] sm:$0xf]
  %v457 = vld [vmem:[%s1 + $0x578] sm:$0xf]
  %v458 = vld [vmem:[%s1 + $0x57c] sm:$0xf]
  %v459 = vld [vmem:[%s1 + $0x580] sm:$0xf]
  %v460 = vld [vmem:[%s1 + $0x584] sm:$0xf]
  %v461 = vld [vmem:[%s1 + $0x588] sm:$0xf]
  %v462 = vld [vmem:[%s1 + $0x58c] sm:$0xf]
  %v463 = vld [vmem:[%s1 + $0x590] sm:$0xf]
  %v464 = vld [vmem:[%s1 + $0x594] sm:$0xf]
  %v465 = vld [vmem:[%s1 + $0x598] sm:$0xf]
  %v466 = vld [vmem:[%s1 + $0x59c] sm:$0xf]
  %v467 = vld [vmem:[%s1 + $0x5a0] sm:$0xf]
  %v468 = vld [vmem:[%s1 + $0x5a4] sm:$0xf]
  %v469 = vld [vmem:[%s1 + $0x5a8] sm:$0xf]
  %v470 = vld [vmem:[%s1 + $0x5ac] sm:$0xf]
  %v471 = vld [vmem:[%s1 + $0x5b0] sm:$0xf]
  %v472 = vld [vmem:[%s1 + $0x5b4] sm:$0xf]
  %v473 = vld [vmem:[%s1 + $0x5b8] sm:$0xf]
  %v474 = vld [vmem:[%s1 + $0x5bc] sm:$0xf]
  %v475 = vld [vmem:[%s1 + $0x5c0] sm:$0xf]
  %v476 = vld [vmem:[%s1 + $0x5c4] sm:$0xf]
  %v477 = vld [vmem:[%s1 + $0x5c8] sm:$0xf]
  %v478 = vld [vmem:[%s1 + $0x5cc] sm:$0xf]
  %v479 = vld [vmem:[%s1 + $0x5d0] sm:$0xf]
  %v480 = vld [vmem:[%s1 + $0x5d4] sm:$0xf]
  %v481 = vld [vmem:[%s1 + $0x5d8] sm:$0xf]
  %v482 = vld [vmem:[%s1 + $0x5dc] sm:$0xf]
  %v483 = vld [vmem:[%s1 + $0x5e0] sm:$0xf]
  %v484 = vld [vmem:[%s1 + $0x5e4] sm:$0xf]
  %v485 = vld [vmem:[%s1 + $0x5e8] sm:$0xf]
  %v486 = vld [vmem:[%s1 + $0x5ec] sm:$0xf]
  %v487 = vld [vmem:[%s1 + $0x5f0] sm:$0xf]
  %v488 = vld [vmem:[%s1 + $0x5f4] sm:$0xf]
  %v489 = vld [vmem:[%s1 + $0x5f8] sm:$0xf]
  %v490 = vld [vmem:[%s1 + $0x5fc] sm:$0xf]
  %v491 = vld [vmem:[%s1 + $0x600] sm:$0xf]
  %v492 = vld [vmem:[%s1 + $0x604] sm:$0xf]
  %v493 = vld [vmem:[%s1 + $0x608] sm:$0xf]
  %v494 = vld [vmem:[%s1 + $0x60c] sm:$0xf]
  %v495 = vld [vmem:[%s1 + $0x610] sm:$0xf]
  %v496 = vld [vmem:[%s1 + $0x614] sm:$0xf]
  %v497 = vld [vmem:[%s1 + $0x618] sm:$0xf]
  %v498 = vld [vmem:[%s1 + $0x61c] sm:$0xf]
  %v499 = vld [vmem:[%s1 + $0x620] sm:$0xf]
  %v500 = vld [vmem:[%s1 + $0x624] sm:$0xf]
  %v501 = vld [vmem:[%s1 + $0x628] sm:$0xf]
  %v502 = vld [vmem:[%s1 + $0x62c] sm:$0xf]
  %v503 = vld [vmem:[%s1 + $0x630] sm:$0xf]
  %v504 = vld [vmem:[%s1 + $0x634] sm:$0xf]
  %v505 = vld [vmem:[%s1 + $0x638] sm:$0xf]
  %v506 = vld [vmem:[%s1 + $0x63c] sm:$0xf]
  %v507 = vld [vmem:[%s1 + $0x640] sm:$0xf]
  %v508 = vld [vmem:[%s1 + $0x644] sm:$0xf]
  %v509 = vld [vmem:[%s1 + $0x648] sm:$0xf]
  %v510 = vld [vmem:[%s1 + $0x64c] sm:$0xf]
  %v511 = vld [vmem:[%s1 + $0x650] sm:$0xf]
  %v512 = vld [vmem:[%s1 + $0x654] sm:$0xf]
  %v513 = vld [vmem:[%s1 + $0x658] sm:$0xf]
  %v514 = vld [vmem:[%s1 + $0x65c] sm:$0xf]
  %v515 = vld [vmem:[%s1 + $0x660] sm:$0xf]
  %v516 = vld [vmem:[%s1 + $0x664] sm:$0xf]
  %v517 = vld [vmem:[%s1 + $0x668] sm:$0xf]
  %v518 = vld [vmem:[%s1 + $0x66c] sm:$0xf]
  %v519 = vld [vmem:[%s1 + $0x670] sm:$0xf]
  %v520 = vld [vmem:[%s1 + $0x674] sm:$0xf]
  %v521 = vld [vmem:[%s1 + $0x678] sm:$0xf]
  %v522 = vld [vmem:[%s1 + $0x67c] sm:$0xf]
  %v523 = vld [vmem:[%s1 + $0x680] sm:$0xf]
  %v524 = vld [vmem:[%s1 + $0x684] sm:$0xf]
  %v525 = vld [vmem:[%s1 + $0x688] sm:$0xf]
  %v526 = vld [vmem:[%s1 + $0x68c] sm:$0xf]
  %v527 = vld [vmem:[%s1 + $0x690] sm:$0xf]
  %v528 = vld [vmem:[%s1 + $0x694] sm:$0xf]
  %v529 = vld [vmem:[%s1 + $0x698] sm:$0xf]
  %v530 = vld [vmem:[%s1 + $0x69c] sm:$0xf]
  %v531 = vld [vmem:[%s1 + $0x6a0] sm:$0xf]
  %v532 = vld [vmem:[%s1 + $0x6a4] sm:$0xf]
  %v533 = vld [vmem:[%s1 + $0x6a8] sm:$0xf]
  %v534 = vld [vmem:[%s1 + $0x6ac] sm:$0xf]
  %v535 = vld [vmem:[%s1 + $0x6b0] sm:$0xf]
  %v536 = vld [vmem:[%s1 + $0x6b4] sm:$0xf]
  %v537 = vld [vmem:[%s1 + $0x6b8] sm:$0xf]
  %v538 = vld [vmem:[%s1 + $0x6bc] sm:$0xf]
  %v539 = vld [vmem:[%s1 + $0x6c0] sm:$0xf]
  %v540 = vld [vmem:[%s1 + $0x6c4] sm:$0xf]
  %v541 = vld [vmem:[%s1 + $0x6c8] sm:$0xf]
  %v542 = vld [vmem:[%s1 + $0x6cc] sm:$0xf]
  %v543 = vld [vmem:[%s1 + $0x6d0] sm:$0xf]
  %v544 = vld [vmem:[%s1 + $0x6d4] sm:$0xf]
  %v545 = vld [vmem:[%s1 + $0x6d8] sm:$0xf]
  %v546 = vld [vmem:[%s1 + $0x6dc] sm:$0xf]
  %v547 = vld [vmem:[%s1 + $0x6e0] sm:$0xf]
  %v548 = vld [vmem:[%s1 + $0x6e4] sm:$0xf]
  %v549 = vld [vmem:[%s1 + $0x6e8] sm:$0xf]
  %v550 = vld [vmem:[%s1 + $0x6ec] sm:$0xf]
  %v551 = vld [vmem:[%s1 + $0x6f0] sm:$0xf]
  %v552 = vld [vmem:[%s1 + $0x6f4] sm:$0xf]
  %v553 = vld [vmem:[%s1 + $0x6f8] sm:$0xf]
  %v554 = vld [vmem:[%s1 + $0x6fc] sm:$0xf]
  %v555 = vld [vmem:[%s1 + $0x700] sm:$0xf]
  %v556 = vld [vmem:[%s1 + $0x704] sm:$0xf]
  %v557 = vld [vmem:[%s1 + $0x708] sm:$0xf]
  %v558 = vld [vmem:[%s1 + $0x70c] sm:$0xf]
  %v559 = vld [vmem:[%s1 + $0x710] sm:$0xf]
  %v560 = vld [vmem:[%s1 + $0x714] sm:$0xf]
  %v561 = vld [vmem:[%s1 + $0x718] sm:$0xf]
  %v562 = vld [vmem:[%s1 + $0x71c] sm:$0xf]
  %v563 = vld [vmem:[%s1 + $0x720] sm:$0xf]
  %v564 = vld [vmem:[%s1 + $0x724] sm:$0xf]
  %v565 = vld [vmem:[%s1 + $0x728] sm:$0xf]
  %v566 = vld [vmem:[%s1 + $0x72c] sm:$0xf]
  %v567 = vld [vmem:[%s1 + $0x730] sm:$0xf]
  %v568 = vld [vmem:[%s1 + $0x734] sm:$0xf]
  %v569 = vld [vmem:[%s1 + $0x738] sm:$0xf]
  %v570 = vld [vmem:[%s1 + $0x73c] sm:$0xf]
  %v571 = vld [vmem:[%s1 + $0x740] sm:$0xf]
  %v572 = vld [vmem:[%s1 + $0x744] sm:$0xf]
  %v573 = vld [vmem:[%s1 + $0x748] sm:$0xf]
  %v574 = vld [vmem:[%s1 + $0x74c] sm:$0xf]
  %v575 = vld [vmem:[%s1 + $0x750] sm:$0xf]
  %v576 = vld [vmem:[%s1 + $0x754] sm:$0xf]
  %v577 = vld [vmem:[%s1 + $0x758] sm:$0xf]
  %v578 = vld [vmem:[%s1 + $0x75c] sm:$0xf]
  %v579 = vld [vmem:[%s1 + $0x760] sm:$0xf]
  %v580 = vld [vmem:[%s1 + $0x764] sm:$0xf]
  %v581 = vld [vmem:[%s1 + $0x768] sm:$0xf]
  %v582 = vld [vmem:[%s1 + $0x76c] sm:$0xf]
  %v583 = vld [vmem:[%s1 + $0x770] sm:$0xf]
  %v584 = vld [vmem:[%s1 + $0x774] sm:$0xf]
  %v585 = vld [vmem:[%s1 + $0x778] sm:$0xf]
  %v586 = vld [vmem:[%s1 + $0x77c] sm:$0xf]
  %v587 = vld [vmem:[%s1 + $0x780] sm:$0xf]
  %v588 = vld [vmem:[%s1 + $0x784] sm:$0xf]
  %v589 = vld [vmem:[%s1 + $0x788] sm:$0xf]
  %v590 = vld [vmem:[%s1 + $0x78c] sm:$0xf]
  %v591 = vld [vmem:[%s1 + $0x790] sm:$0xf]
  %v592 = vld [vmem:[%s1 + $0x794] sm:$0xf]
  %v593 = vld [vmem:[%s1 + $0x798] sm:$0xf]
  %v594 = vld [vmem:[%s1 + $0x79c] sm:$0xf]
  %v595 = vld [vmem:[%s1 + $0x7a0] sm:$0xf]
  %v596 = vld [vmem:[%s1 + $0x7a4] sm:$0xf]
  %v597 = vld [vmem:[%s1 + $0x7a8] sm:$0xf]
  %v598 = vld [vmem:[%s1 + $0x7ac] sm:$0xf]
  %v599 = vld [vmem:[%s1 + $0x7b0] sm:$0xf]
  %v600 = vld [vmem:[%s1 + $0x7b4] sm:$0xf]
  %v601 = vld [vmem:[%s1 + $0x7b8] sm:$0xf]
  %v602 = vld [vmem:[%s1 + $0x7bc] sm:$0xf]
  %v603 = vld [vmem:[%s1 + $0x7c0] sm:$0xf]
  %v604 = vld [vmem:[%s1 + $0x7c4] sm:$0xf]
  %v605 = vld [vmem:[%s1 + $0x7c8] sm:$0xf]
  %v606 = vld [vmem:[%s1 + $0x7cc] sm:$0xf]
  %v607 = vld [vmem:[%s1 + $0x7d0] sm:$0xf]
  %v608 = vld [vmem:[%s1 + $0x7d4] sm:$0xf]
  %v609 = vld [vmem:[%s1 + $0x7d8] sm:$0xf]
  %v610 = vld [vmem:[%s1 + $0x7dc] sm:$0xf]
  %v611 = vld [vmem:[%s1 + $0x7e0] sm:$0xf]
  %v612 = vld [vmem:[%s1 + $0x7e4] sm:$0xf]
  %v613 = vld [vmem:[%s1 + $0x7e8] sm:$0xf]
  %v614 = vld [vmem:[%s1 + $0x7ec] sm:$0xf]
  %v615 = vld [vmem:[%s1 + $0x7f0] sm:$0xf]
  %v616 = vld [vmem:[%s1 + $0x7f4] sm:$0xf]
  %v617 = vld [vmem:[%s1 + $0x7f8] sm:$0xf]
  %v618 = vld [vmem:[%s1 + $0x7fc] sm:$0xf]
  %v619 = vld [vmem:[%s1 + $0x800] sm:$0xf]
  %v620 = vld [vmem:[%s1 + $0x804] sm:$0xf]
  %v621 = vld [vmem:[%s1 + $0x808] sm:$0xf]
  %v622 = vld [vmem:[%s1 + $0x80c] sm:$0xf]
  %v623 = vld [vmem:[%s1 + $0x810] sm:$0xf]
  %v624 = vld [vmem:[%s1 + $0x814] sm:$0xf]
  %v625 = vld [vmem:[%s1 + $0x818] sm:$0xf]
  %v626 = vld [vmem:[%s1 + $0x81c] sm:$0xf]
  %v627 = vld [vmem:[%s1 + $0x820] sm:$0xf]
  %v628 = vld [vmem:[%s1 + $0x824] sm:$0xf]
  %v629 = vld [vmem:[%s1 + $0x828] sm:$0xf]
  %v630 = vld [vmem:[%s1 + $0x82c] sm:$0xf]
  %v631 = vld [vmem:[%s1 + $0x830] sm:$0xf]
  %v632 = vld [vmem:[%s1 + $0x834] sm:$0xf]
  %v633 = vld [vmem:[%s1 + $0x838] sm:$0xf]
  %v634 = vld [vmem:[%s1 + $0x83c] sm:$0xf]
  %v635 = vld [vmem:[%s1 + $0x840] sm:$0xf]
  %v636 = vld [vmem:[%s1 + $0x844] sm:$0xf]
  %v637 = vld [vmem:[%s1 + $0x848] sm:$0xf]
  %v638 = vld [vmem:[%s1 + $0x84c] sm:$0xf]
  %v639 = vld [vmem:[%s1 + $0x850] sm:$0xf]
  %v640 = vld [vmem:[%s1 + $0x854] sm:$0xf]
  %v641 = vld [vmem:[%s1 + $0x858] sm:$0xf]
  %v642 = vld [vmem:[%s1 + $0x85c] sm:$0xf]
  %v643 = vld [vmem:[%s1 + $0x860] sm:$0xf]
  %v644 = vld [vmem:[%s1 + $0x864] sm:$0xf]
  %v645 = vld [vmem:[%s1 + $0x868] sm:$0xf]
  %v646 = vld [vmem:[%s1 + $0x86c] sm:$0xf]
  %v647 = vld [vmem:[%s1 + $0x870] sm:$0xf]
  %v648 = vld [vmem:[%s1 + $0x874] sm:$0xf]
  %v649 = vld [vmem:[%s1 + $0x878] sm:$0xf]
  %v650 = vld [vmem:[%s1 + $0x87c] sm:$0xf]
  %v651 = vld [vmem:[%s1 + $0x880] sm:$0xf]
  %v652 = vld [vmem:[%s1 + $0x884] sm:$0xf]
  %v653 = vld [vmem:[%s1 + $0x888] sm:$0xf]
  %v654 = vld [vmem:[%s1 + $0x88c] sm:$0xf]
  %v655 = vld [vmem:[%s1 + $0x890] sm:$0xf]
  %v656 = vld [vmem:[%s1 + $0x894] sm:$0xf]
  %v657 = vld [vmem:[%s1 + $0x898] sm:$0xf]
  %v658 = vld [vmem:[%s1 + $0x89c] sm:$0xf]
  %v659 = vld [vmem:[%s1 + $0x8a0] sm:$0xf]
  %v660 = vld [vmem:[%s1 + $0x8a4] sm:$0xf]
  %v661 = vld [vmem:[%s1 + $0x8a8] sm:$0xf]
  %v662 = vld [vmem:[%s1 + $0x8ac] sm:$0xf]
  %v663 = vld [vmem:[%s1 + $0x8b0] sm:$0xf]
  %v664 = vld [vmem:[%s1 + $0x8b4] sm:$0xf]
  %v665 = vld [vmem:[%s1 + $0x8b8] sm:$0xf]
  %v666 = vld [vmem:[%s1 + $0x8bc] sm:$0xf]
  %v667 = vld [vmem:[%s1 + $0x8c0] sm:$0xf]
  %v668 = vld [vmem:[%s1 + $0x8c4] sm:$0xf]
  %v669 = vld [vmem:[%s1 + $0x8c8] sm:$0xf]
  %v670 = vld [vmem:[%s1 + $0x8cc] sm:$0xf]
  %v671 = vld [vmem:[%s1 + $0x8d0] sm:$0xf]
  %v672 = vld [vmem:[%s1 + $0x8d4] sm:$0xf]
  %v673 = vld [vmem:[%s1 + $0x8d8] sm:$0xf]
  %v674 = vld [vmem:[%s1 + $0x8dc] sm:$0xf]
  %v675 = vld [vmem:[%s1 + $0x8e0] sm:$0xf]
  %v676 = vld [vmem:[%s1 + $0x8e4] sm:$0xf]
  %v677 = vld [vmem:[%s1 + $0x8e8] sm:$0xf]
  %v678 = vld [vmem:[%s1 + $0x8ec] sm:$0xf]
  %v679 = vld [vmem:[%s1 + $0x8f0] sm:$0xf]
  %v680 = vld [vmem:[%s1 + $0x8f4] sm:$0xf]
  %v681 = vld [vmem:[%s1 + $0x8f8] sm:$0xf]
  %v682 = vld [vmem:[%s1 + $0x8fc] sm:$0xf]
  %v683 = vld [vmem:[%s1 + $0x900] sm:$0xf]
  %v684 = vld [vmem:[%s1 + $0x904] sm:$0xf]
  %v685 = vld [vmem:[%s1 + $0x908] sm:$0xf]
  %v686 = vld [vmem:[%s1 + $0x90c] sm:$0xf]
  %v687 = vld [vmem:[%s1 + $0x910] sm:$0xf]
  %v688 = vld [vmem:[%s1 + $0x914] sm:$0xf]
  %v689 = vld [vmem:[%s1 + $0x918] sm:$0xf]
  %v690 = vld [vmem:[%s1 + $0x91c] sm:$0xf]
  %v691 = vld [vmem:[%s1 + $0x920] sm:$0xf]
  %v692 = vld [vmem:[%s1 + $0x924] sm:$0xf]
  %v693 = vld [vmem:[%s1 + $0x928] sm:$0xf]
  %v694 = vld [vmem:[%s1 + $0x92c] sm:$0xf]
  %v695 = vld [vmem:[%s1 + $0x930] sm:$0xf]
  %v696 = vld [vmem:[%s1 + $0x934] sm:$0xf]
  %v697 = vld [vmem:[%s1 + $0x938] sm:$0xf]
  %v698 = vld [vmem:[%s1 + $0x93c] sm:$0xf]
  %v699 = vld [vmem:[%s1 + $0x940] sm:$0xf]
  %v700 = vld [vmem:[%s1 + $0x944] sm:$0xf]
  %v701 = vld [vmem:[%s1 + $0x948] sm:$0xf]
  %v702 = vld [vmem:[%s1 + $0x94c] sm:$0xf]
  %v703 = vld [vmem:[%s1 + $0x950] sm:$0xf]
  %v704 = vld [vmem:[%s1 + $0x954] sm:$0xf]
  %v705 = vld [vmem:[%s1 + $0x958] sm:$0xf]
  %v706 = vld [vmem:[%s1 + $0x95c] sm:$0xf]
  %v707 = vld [vmem:[%s1 + $0x960] sm:$0xf]
  %v708 = vld [vmem:[%s1 + $0x964] sm:$0xf]
  %v709 = vld [vmem:[%s1 + $0x968] sm:$0xf]
  %v710 = vld [vmem:[%s1 + $0x96c] sm:$0xf]
  %v711 = vld [vmem:[%s1 + $0x970] sm:$0xf]
  %v712 = vld [vmem:[%s1 + $0x974] sm:$0xf]
  %v713 = vld [vmem:[%s1 + $0x978] sm:$0xf]
  %v714 = vld [vmem:[%s1 + $0x97c] sm:$0xf]
  %v715 = vld [vmem:[%s1 + $0x980] sm:$0xf]
  %v716 = vld [vmem:[%s1 + $0x984] sm:$0xf]
  %v717 = vld [vmem:[%s1 + $0x988] sm:$0xf]
  %v718 = vld [vmem:[%s1 + $0x98c] sm:$0xf]
  %v719 = vld [vmem:[%s1 + $0x990] sm:$0xf]
  %v720 = vld [vmem:[%s1 + $0x994] sm:$0xf]
  %v721 = vld [vmem:[%s1 + $0x998] sm:$0xf]
  %v722 = vld [vmem:[%s1 + $0x99c] sm:$0xf]
  %v723 = vld [vmem:[%s1 + $0x9a0] sm:$0xf]
  %v724 = vld [vmem:[%s1 + $0x9a4] sm:$0xf]
  %v725 = vld [vmem:[%s1 + $0x9a8] sm:$0xf]
  %v726 = vld [vmem:[%s1 + $0x9ac] sm:$0xf]
  %v727 = vld [vmem:[%s1 + $0x9b0] sm:$0xf]
  %v728 = vld [vmem:[%s1 + $0x9b4] sm:$0xf]
  %v729 = vld [vmem:[%s1 + $0x9b8] sm:$0xf]
  %v730 = vld [vmem:[%s1 + $0x9bc] sm:$0xf]
  %v731 = vld [vmem:[%s1 + $0x9c0] sm:$0xf]
  %v732 = vld [vmem:[%s1 + $0x9c4] sm:$0xf]
  %v733 = vld [vmem:[%s1 + $0x9c8] sm:$0xf]
  %v734 = vld [vmem:[%s1 + $0x9cc] sm:$0xf]
  %v735 = vld [vmem:[%s1 + $0x9d0] sm:$0xf]
  %v736 = vld [vmem:[%s1 + $0x9d4] sm:$0xf]
  %v737 = vld [vmem:[%s1 + $0x9d8] sm:$0xf]
  %v738 = vld [vmem:[%s1 + $0x9dc] sm:$0xf]
  %v739 = vld [vmem:[%s1 + $0x9e0] sm:$0xf]
  %v740 = vld [vmem:[%s1 + $0x9e4] sm:$0xf]
  %v741 = vld [vmem:[%s1 + $0x9e8] sm:$0xf]
  %v742 = vld [vmem:[%s1 + $0x9ec] sm:$0xf]
  %v743 = vld [vmem:[%s1 + $0x9f0] sm:$0xf]
  %v744 = vld [vmem:[%s1 + $0x9f4] sm:$0xf]
  %v745 = vld [vmem:[%s1 + $0x9f8] sm:$0xf]
  %v746 = vld [vmem:[%s1 + $0x9fc] sm:$0xf]
  %v747 = vld [vmem:[%s1 + $0xa00] sm:$0xf]
  %v748 = vld [vmem:[%s1 + $0xa04] sm:$0xf]
  %v749 = vld [vmem:[%s1 + $0xa08] sm:$0xf]
  %v750 = vld [vmem:[%s1 + $0xa0c] sm:$0xf]
  %v751 = vld [vmem:[%s1 + $0xa10] sm:$0xf]
  %v752 = vld [vmem:[%s1 + $0xa14] sm:$0xf]
  %v753 = vld [vmem:[%s1 + $0xa18] sm:$0xf]
  %v754 = vld [vmem:[%s1 + $0xa1c] sm:$0xf]
  %v755 = vld [vmem:[%s1 + $0xa20] sm:$0xf]
  %v756 = vld [vmem:[%s1 + $0xa24] sm:$0xf]
  %v757 = vld [vmem:[%s1 + $0xa28] sm:$0xf]
  %v758 = vld [vmem:[%s1 + $0xa2c] sm:$0xf]
  %v759 = vld [vmem:[%s1 + $0xa30] sm:$0xf]
  %v760 = vld [vmem:[%s1 + $0xa34] sm:$0xf]
  %v761 = vld [vmem:[%s1 + $0xa38] sm:$0xf]
  %v762 = vld [vmem:[%s1 + $0xa3c] sm:$0xf]
  %v763 = vld [vmem:[%s2] sm:$0x1]
  %v765 = vlaneseq
  %v766 = vshrl.u32 %v765, 7
  %v767 = vsub.s32 0, %v766
  %v768 = vrot.slane %v763, %v767
  %v854 = vunpack.c.l.b16 %v23
  %v855 = vunpack.c.h.b16 %v23
  %v856 = vunpack.c.l.b16 %v24
  %v857 = vunpack.c.h.b16 %v24
  %v858 = vunpack.c.l.b16 %v25
  %v859 = vunpack.c.h.b16 %v25
  %v860 = vunpack.c.l.b16 %v26
  %v861 = vunpack.c.h.b16 %v26
  %v862 = vunpack.c.l.b16 %v27
  %v863 = vunpack.c.h.b16 %v27
  %v864 = vunpack.c.l.b16 %v28
  %v865 = vunpack.c.h.b16 %v28
  %v866 = vunpack.c.l.b16 %v29
  %v867 = vunpack.c.h.b16 %v29
  %v868 = vunpack.c.l.b16 %v30
  %v869 = vunpack.c.h.b16 %v30
  %v870 = vunpack.c.l.b16 %v31
  %v871 = vunpack.c.h.b16 %v31
  %v872 = vunpack.c.l.b16 %v32
  %v873 = vunpack.c.h.b16 %v32
  %v874 = vunpack.c.l.b16 %v33
  %v875 = vunpack.c.h.b16 %v33
  %v876 = vunpack.c.l.b16 %v34
  %v877 = vunpack.c.h.b16 %v34
  %v878 = vunpack.c.l.b16 %v35
  %v879 = vunpack.c.h.b16 %v35
  %v880 = vunpack.c.l.b16 %v36
  %v881 = vunpack.c.h.b16 %v36
  %v882 = vunpack.c.l.b16 %v37
  %v883 = vunpack.c.h.b16 %v37
  %v884 = vunpack.c.l.b16 %v38
  %v885 = vunpack.c.h.b16 %v38
  %v886 = vunpack.c.l.b16 %v39
  %v887 = vunpack.c.h.b16 %v39
  %v888 = vunpack.c.l.b16 %v40
  %v889 = vunpack.c.h.b16 %v40
  %v890 = vunpack.c.l.b16 %v41
  %v891 = vunpack.c.h.b16 %v41
  %v892 = vunpack.c.l.b16 %v42
  %v893 = vunpack.c.h.b16 %v42
  %v894 = vunpack.c.l.b16 %v43
  %v895 = vunpack.c.l.b16 %v44
  %v896 = vunpack.c.h.b16 %v44
  %v897 = vunpack.c.l.b16 %v45
  %v898 = vunpack.c.h.b16 %v45
  %v899 = vunpack.c.l.b16 %v46
  %v900 = vunpack.c.h.b16 %v46
  %v901 = vunpack.c.l.b16 %v47
  %v902 = vunpack.c.h.b16 %v47
  %v903 = vunpack.c.l.b16 %v48
  %v904 = vunpack.c.h.b16 %v48
  %v905 = vunpack.c.l.b16 %v49
  %v906 = vunpack.c.h.b16 %v49
  %v907 = vunpack.c.l.b16 %v50
  %v908 = vunpack.c.h.b16 %v50
  %v909 = vunpack.c.l.b16 %v51
  %v910 = vunpack.c.h.b16 %v51
  %v911 = vunpack.c.l.b16 %v52
  %v912 = vunpack.c.h.b16 %v52
  %v913 = vunpack.c.l.b16 %v53
  %v914 = vunpack.c.h.b16 %v53
  %v915 = vunpack.c.l.b16 %v54
  %v916 = vunpack.c.h.b16 %v54
  %v917 = vunpack.c.l.b16 %v55
  %v918 = vunpack.c.h.b16 %v55
  %v919 = vunpack.c.l.b16 %v56
  %v920 = vunpack.c.h.b16 %v56
  %v921 = vunpack.c.l.b16 %v57
  %v922 = vunpack.c.h.b16 %v57
  %v923 = vunpack.c.l.b16 %v58
  %v924 = vunpack.c.h.b16 %v58
  %v925 = vunpack.c.l.b16 %v59
  %v926 = vunpack.c.h.b16 %v59
  %v927 = vunpack.c.l.b16 %v60
  %v928 = vunpack.c.h.b16 %v60
  %v929 = vunpack.c.l.b16 %v61
  %v930 = vunpack.c.h.b16 %v61
  %v931 = vunpack.c.l.b16 %v62
  %v932 = vunpack.c.h.b16 %v62
  %v933 = vunpack.c.l.b16 %v63
  %v934 = vunpack.c.h.b16 %v63
  %v935 = vunpack.c.l.b16 %v64
  %v936 = vunpack.c.l.b16 %v65
  %v937 = vunpack.c.h.b16 %v65
  %v938 = vunpack.c.l.b16 %v66
  %v939 = vunpack.c.h.b16 %v66
  %v940 = vunpack.c.l.b16 %v67
  %v941 = vunpack.c.h.b16 %v67
  %v942 = vunpack.c.l.b16 %v68
  %v943 = vunpack.c.h.b16 %v68
  %v944 = vunpack.c.l.b16 %v69
  %v945 = vunpack.c.h.b16 %v69
  %v946 = vunpack.c.l.b16 %v70
  %v947 = vunpack.c.h.b16 %v70
  %v948 = vunpack.c.l.b16 %v71
  %v949 = vunpack.c.h.b16 %v71
  %v950 = vunpack.c.l.b16 %v72
  %v951 = vunpack.c.h.b16 %v72
  %v952 = vunpack.c.l.b16 %v73
  %v953 = vunpack.c.h.b16 %v73
  %v954 = vunpack.c.l.b16 %v74
  %v955 = vunpack.c.h.b16 %v74
  %v956 = vunpack.c.l.b16 %v75
  %v957 = vunpack.c.h.b16 %v75
  %v958 = vunpack.c.l.b16 %v76
  %v959 = vunpack.c.h.b16 %v76
  %v960 = vunpack.c.l.b16 %v77
  %v961 = vunpack.c.h.b16 %v77
  %v962 = vunpack.c.l.b16 %v78
  %v963 = vunpack.c.h.b16 %v78
  %v964 = vunpack.c.l.b16 %v79
  %v965 = vunpack.c.h.b16 %v79
  %v966 = vunpack.c.l.b16 %v80
  %v967 = vunpack.c.h.b16 %v80
  %v968 = vunpack.c.l.b16 %v81
  %v969 = vunpack.c.h.b16 %v81
  %v970 = vunpack.c.l.b16 %v82
  %v971 = vunpack.c.h.b16 %v82
  %v972 = vunpack.c.l.b16 %v83
  %v973 = vunpack.c.h.b16 %v83
  %v974 = vunpack.c.l.b16 %v84
  %v975 = vunpack.c.h.b16 %v84
  %v976 = vunpack.c.l.b16 %v85
  %v977 = vunpack.c.l.b16 %v86
  %v978 = vunpack.c.h.b16 %v86
  %v979 = vunpack.c.l.b16 %v87
  %v980 = vunpack.c.h.b16 %v87
  %v981 = vunpack.c.l.b16 %v88
  %v982 = vunpack.c.h.b16 %v88
  %v983 = vunpack.c.l.b16 %v89
  %v984 = vunpack.c.h.b16 %v89
  %v985 = vunpack.c.l.b16 %v90
  %v986 = vunpack.c.h.b16 %v90
  %v987 = vunpack.c.l.b16 %v91
  %v988 = vunpack.c.h.b16 %v91
  %v989 = vunpack.c.l.b16 %v92
  %v990 = vunpack.c.h.b16 %v92
  %v991 = vunpack.c.l.b16 %v93
  %v992 = vunpack.c.h.b16 %v93
  %v993 = vunpack.c.l.b16 %v94
  %v994 = vunpack.c.h.b16 %v94
  %v995 = vunpack.c.l.b16 %v95
  %v996 = vunpack.c.h.b16 %v95
  %v997 = vunpack.c.l.b16 %v96
  %v998 = vunpack.c.h.b16 %v96
  %v999 = vunpack.c.l.b16 %v97
  %v1000 = vunpack.c.h.b16 %v97
  %v1001 = vunpack.c.l.b16 %v98
  %v1002 = vunpack.c.h.b16 %v98
  %v1003 = vunpack.c.l.b16 %v99
  %v1004 = vunpack.c.h.b16 %v99
  %v1005 = vunpack.c.l.b16 %v100
  %v1006 = vunpack.c.h.b16 %v100
  %v1007 = vunpack.c.l.b16 %v101
  %v1008 = vunpack.c.h.b16 %v101
  %v1009 = vunpack.c.l.b16 %v102
  %v1010 = vunpack.c.h.b16 %v102
  %v1011 = vunpack.c.l.b16 %v103
  %v1012 = vunpack.c.h.b16 %v103
  %v1013 = vunpack.c.l.b16 %v104
  %v1014 = vunpack.c.h.b16 %v104
  %v1015 = vunpack.c.l.b16 %v105
  %v1016 = vunpack.c.h.b16 %v105
  %v1017 = vunpack.c.l.b16 %v106
  %v1018 = vpack.c.b16 %v895, %v854
  %v1019 = vpack.c.b16 %v896, %v855
  %v1020 = vpack.c.b16 %v897, %v856
  %v1021 = vpack.c.b16 %v898, %v857
  %v1022 = vpack.c.b16 %v899, %v858
  %v1023 = vpack.c.b16 %v900, %v859
  %v1024 = vpack.c.b16 %v901, %v860
  %v1025 = vpack.c.b16 %v902, %v861
  %v1026 = vpack.c.b16 %v903, %v862
  %v1027 = vpack.c.b16 %v904, %v863
  %v1028 = vpack.c.b16 %v905, %v864
  %v1029 = vpack.c.b16 %v906, %v865
  %v1030 = vpack.c.b16 %v907, %v866
  %v1031 = vpack.c.b16 %v908, %v867
  %v1032 = vpack.c.b16 %v909, %v868
  %v1033 = vpack.c.b16 %v910, %v869
  %v1034 = vpack.c.b16 %v911, %v870
  %v1035 = vpack.c.b16 %v912, %v871
  %v1036 = vpack.c.b16 %v913, %v872
  %v1037 = vpack.c.b16 %v914, %v873
  %v1038 = vpack.c.b16 %v915, %v874
  %v1039 = vpack.c.b16 %v916, %v875
  %v1040 = vpack.c.b16 %v917, %v876
  %v1041 = vpack.c.b16 %v918, %v877
  %v1042 = vpack.c.b16 %v919, %v878
  %v1043 = vpack.c.b16 %v920, %v879
  %v1044 = vpack.c.b16 %v921, %v880
  %v1045 = vpack.c.b16 %v922, %v881
  %v1046 = vpack.c.b16 %v923, %v882
  %v1047 = vpack.c.b16 %v924, %v883
  %v1048 = vpack.c.b16 %v925, %v884
  %v1049 = vpack.c.b16 %v926, %v885
  %v1050 = vpack.c.b16 %v927, %v886
  %v1051 = vpack.c.b16 %v928, %v887
  %v1052 = vpack.c.b16 %v929, %v888
  %v1053 = vpack.c.b16 %v930, %v889
  %v1054 = vpack.c.b16 %v931, %v890
  %v1055 = vpack.c.b16 %v932, %v891
  %v1056 = vpack.c.b16 %v933, %v892
  %v1057 = vpack.c.b16 %v934, %v893
  %v1058 = vpack.c.b16 %v935, %v894
  %v1059 = vpack.c.b16 %v977, %v936
  %v1060 = vpack.c.b16 %v978, %v937
  %v1061 = vpack.c.b16 %v979, %v938
  %v1062 = vpack.c.b16 %v980, %v939
  %v1063 = vpack.c.b16 %v981, %v940
  %v1064 = vpack.c.b16 %v982, %v941
  %v1065 = vpack.c.b16 %v983, %v942
  %v1066 = vpack.c.b16 %v984, %v943
  %v1067 = vpack.c.b16 %v985, %v944
  %v1068 = vpack.c.b16 %v986, %v945
  %v1069 = vpack.c.b16 %v987, %v946
  %v1070 = vpack.c.b16 %v988, %v947
  %v1071 = vpack.c.b16 %v989, %v948
  %v1072 = vpack.c.b16 %v990, %v949
  %v1073 = vpack.c.b16 %v991, %v950
  %v1074 = vpack.c.b16 %v992, %v951
  %v1075 = vpack.c.b16 %v993, %v952
  %v1076 = vpack.c.b16 %v994, %v953
  %v1077 = vpack.c.b16 %v995, %v954
  %v1078 = vpack.c.b16 %v996, %v955
  %v1079 = vpack.c.b16 %v997, %v956
  %v1080 = vpack.c.b16 %v998, %v957
  %v1081 = vpack.c.b16 %v999, %v958
  %v1082 = vpack.c.b16 %v1000, %v959
  %v1083 = vpack.c.b16 %v1001, %v960
  %v1084 = vpack.c.b16 %v1002, %v961
  %v1085 = vpack.c.b16 %v1003, %v962
  %v1086 = vpack.c.b16 %v1004, %v963
  %v1087 = vpack.c.b16 %v1005, %v964
  %v1088 = vpack.c.b16 %v1006, %v965
  %v1089 = vpack.c.b16 %v1007, %v966
  %v1090 = vpack.c.b16 %v1008, %v967
  %v1091 = vpack.c.b16 %v1009, %v968
  %v1092 = vpack.c.b16 %v1010, %v969
  %v1093 = vpack.c.b16 %v1011, %v970
  %v1094 = vpack.c.b16 %v1012, %v971
  %v1095 = vpack.c.b16 %v1013, %v972
  %v1096 = vpack.c.b16 %v1014, %v973
  %v1097 = vpack.c.b16 %v1015, %v974
  %v1098 = vpack.c.b16 %v1016, %v975
  %v1099 = vpack.c.b16 %v1017, %v976
  %v1838 = vunpack.c.l.b16 %v107
  %v1839 = vunpack.c.l.b16 %v108
  %v1840 = vunpack.c.l.b16 %v109
  %v1841 = vunpack.c.l.b16 %v110
  %v1842 = vunpack.c.l.b16 %v111
  %v1843 = vunpack.c.l.b16 %v112
  %v1844 = vunpack.c.l.b16 %v113
  %v1845 = vunpack.c.l.b16 %v114
  %v1846 = vunpack.c.l.b16 %v115
  %v1847 = vunpack.c.l.b16 %v116
  %v1848 = vunpack.c.l.b16 %v117
  %v1849 = vunpack.c.l.b16 %v118
  %v1850 = vunpack.c.l.b16 %v119
  %v1851 = vunpack.c.l.b16 %v120
  %v1852 = vunpack.c.l.b16 %v121
  %v1853 = vunpack.c.l.b16 %v122
  %v1854 = vunpack.c.l.b16 %v123
  %v1855 = vunpack.c.l.b16 %v124
  %v1856 = vunpack.c.l.b16 %v125
  %v1857 = vunpack.c.l.b16 %v126
  %v1858 = vunpack.c.l.b16 %v127
  %v1859 = vunpack.c.l.b16 %v128
  %v1860 = vunpack.c.l.b16 %v129
  %v1861 = vunpack.c.l.b16 %v130
  %v1862 = vunpack.c.l.b16 %v131
  %v1863 = vunpack.c.l.b16 %v132
  %v1864 = vunpack.c.l.b16 %v133
  %v1865 = vunpack.c.l.b16 %v134
  %v1866 = vunpack.c.l.b16 %v135
  %v1867 = vunpack.c.l.b16 %v136
  %v1868 = vunpack.c.l.b16 %v137
  %v1869 = vunpack.c.l.b16 %v138
  %v1870 = vunpack.c.l.b16 %v139
  %v1871 = vunpack.c.l.b16 %v140
  %v1872 = vunpack.c.l.b16 %v141
  %v1873 = vunpack.c.l.b16 %v142
  %v1874 = vunpack.c.l.b16 %v143
  %v1875 = vunpack.c.l.b16 %v144
  %v1876 = vunpack.c.l.b16 %v145
  %v1877 = vunpack.c.l.b16 %v146
  %v1878 = vunpack.c.l.b16 %v147
  %v1879 = vunpack.c.l.b16 %v148
  %v1880 = vunpack.c.l.b16 %v149
  %v1881 = vunpack.c.l.b16 %v150
  %v1882 = vunpack.c.l.b16 %v151
  %v1883 = vunpack.c.l.b16 %v152
  %v1884 = vunpack.c.l.b16 %v153
  %v1885 = vunpack.c.l.b16 %v154
  %v1886 = vunpack.c.l.b16 %v155
  %v1887 = vunpack.c.l.b16 %v156
  %v1888 = vunpack.c.l.b16 %v157
  %v1889 = vunpack.c.l.b16 %v158
  %v1890 = vunpack.c.l.b16 %v159
  %v1891 = vunpack.c.l.b16 %v160
  %v1892 = vunpack.c.l.b16 %v161
  %v1893 = vunpack.c.l.b16 %v162
  %v1894 = vunpack.c.l.b16 %v163
  %v1895 = vunpack.c.l.b16 %v164
  %v1896 = vunpack.c.l.b16 %v165
  %v1897 = vunpack.c.l.b16 %v166
  %v1898 = vunpack.c.l.b16 %v167
  %v1899 = vunpack.c.l.b16 %v168
  %v1900 = vunpack.c.l.b16 %v169
  %v1901 = vunpack.c.l.b16 %v170
  %v1902 = vunpack.c.l.b16 %v171
  %v1903 = vunpack.c.l.b16 %v172
  %v1904 = vunpack.c.l.b16 %v173
  %v1905 = vunpack.c.l.b16 %v174
  %v1906 = vunpack.c.l.b16 %v175
  %v1907 = vunpack.c.l.b16 %v176
  %v1908 = vunpack.c.l.b16 %v177
  %v1909 = vunpack.c.l.b16 %v178
  %v1910 = vunpack.c.l.b16 %v179
  %v1911 = vunpack.c.l.b16 %v180
  %v1912 = vunpack.c.l.b16 %v181
  %v1913 = vunpack.c.l.b16 %v182
  %v1914 = vunpack.c.l.b16 %v183
  %v1915 = vunpack.c.l.b16 %v184
  %v1916 = vunpack.c.l.b16 %v185
  %v1917 = vunpack.c.l.b16 %v186
  %v1918 = vunpack.c.l.b16 %v187
  %v1919 = vunpack.c.l.b16 %v188
  %v1920 = vunpack.c.l.b16 %v189
  %v1921 = vunpack.c.l.b16 %v190
  %v1922 = vunpack.c.l.b16 %v191
  %v1923 = vunpack.c.l.b16 %v192
  %v1924 = vunpack.c.l.b16 %v193
  %v1925 = vunpack.c.l.b16 %v194
  %v1926 = vunpack.c.l.b16 %v195
  %v1927 = vunpack.c.l.b16 %v196
  %v1928 = vunpack.c.l.b16 %v197
  %v1929 = vunpack.c.l.b16 %v198
  %v1930 = vunpack.c.l.b16 %v199
  %v1931 = vunpack.c.l.b16 %v200
  %v1932 = vunpack.c.l.b16 %v201
  %v1933 = vunpack.c.l.b16 %v202
  %v1934 = vunpack.c.l.b16 %v203
  %v1935 = vunpack.c.l.b16 %v204
  %v1936 = vunpack.c.l.b16 %v205
  %v1937 = vunpack.c.l.b16 %v206
  %v1938 = vunpack.c.l.b16 %v207
  %v1939 = vunpack.c.l.b16 %v208
  %v1940 = vunpack.c.l.b16 %v209
  %v1941 = vunpack.c.l.b16 %v210
  %v1942 = vunpack.c.l.b16 %v211
  %v1943 = vunpack.c.l.b16 %v212
  %v1944 = vunpack.c.l.b16 %v213
  %v1945 = vunpack.c.l.b16 %v214
  %v1946 = vunpack.c.l.b16 %v215
  %v1947 = vunpack.c.l.b16 %v216
  %v1948 = vunpack.c.l.b16 %v217
  %v1949 = vunpack.c.l.b16 %v218
  %v1950 = vunpack.c.l.b16 %v219
  %v1951 = vunpack.c.l.b16 %v220
  %v1952 = vunpack.c.l.b16 %v221
  %v1953 = vunpack.c.l.b16 %v222
  %v1954 = vunpack.c.l.b16 %v223
  %v1955 = vunpack.c.l.b16 %v224
  %v1956 = vunpack.c.l.b16 %v225
  %v1957 = vunpack.c.l.b16 %v226
  %v1958 = vunpack.c.l.b16 %v227
  %v1959 = vunpack.c.l.b16 %v228
  %v1960 = vunpack.c.l.b16 %v229
  %v1961 = vunpack.c.l.b16 %v230
  %v1962 = vunpack.c.l.b16 %v231
  %v1963 = vunpack.c.l.b16 %v232
  %v1964 = vunpack.c.l.b16 %v233
  %v1965 = vunpack.c.l.b16 %v234
  %v1966 = vunpack.c.l.b16 %v235
  %v1967 = vunpack.c.l.b16 %v236
  %v1968 = vunpack.c.l.b16 %v237
  %v1969 = vunpack.c.l.b16 %v238
  %v1970 = vunpack.c.l.b16 %v239
  %v1971 = vunpack.c.l.b16 %v240
  %v1972 = vunpack.c.l.b16 %v241
  %v1973 = vunpack.c.l.b16 %v242
  %v1974 = vunpack.c.l.b16 %v243
  %v1975 = vunpack.c.l.b16 %v244
  %v1976 = vunpack.c.l.b16 %v245
  %v1977 = vunpack.c.l.b16 %v246
  %v1978 = vunpack.c.l.b16 %v247
  %v1979 = vunpack.c.l.b16 %v248
  %v1980 = vunpack.c.l.b16 %v249
  %v1981 = vunpack.c.l.b16 %v250
  %v1982 = vunpack.c.l.b16 %v251
  %v1983 = vunpack.c.l.b16 %v252
  %v1984 = vunpack.c.l.b16 %v253
  %v1985 = vunpack.c.l.b16 %v254
  %v1986 = vunpack.c.l.b16 %v255
  %v1987 = vunpack.c.l.b16 %v256
  %v1988 = vunpack.c.l.b16 %v257
  %v1989 = vunpack.c.l.b16 %v258
  %v1990 = vunpack.c.l.b16 %v259
  %v1991 = vunpack.c.l.b16 %v260
  %v1992 = vunpack.c.l.b16 %v261
  %v1993 = vunpack.c.l.b16 %v262
  %v1994 = vunpack.c.l.b16 %v263
  %v1995 = vunpack.c.l.b16 %v264
  %v1996 = vunpack.c.l.b16 %v265
  %v1997 = vunpack.c.l.b16 %v266
  %v1998 = vunpack.c.l.b16 %v267
  %v1999 = vunpack.c.l.b16 %v268
  %v2000 = vunpack.c.l.b16 %v269
  %v2001 = vunpack.c.l.b16 %v270
  %v2002 = vunpack.c.l.b16 %v271
  %v2003 = vunpack.c.l.b16 %v272
  %v2004 = vunpack.c.l.b16 %v273
  %v2005 = vunpack.c.l.b16 %v274
  %v2006 = vunpack.c.l.b16 %v275
  %v2007 = vunpack.c.l.b16 %v276
  %v2008 = vunpack.c.l.b16 %v277
  %v2009 = vunpack.c.l.b16 %v278
  %v2010 = vunpack.c.l.b16 %v279
  %v2011 = vunpack.c.l.b16 %v280
  %v2012 = vunpack.c.l.b16 %v281
  %v2013 = vunpack.c.l.b16 %v282
  %v2014 = vunpack.c.l.b16 %v283
  %v2015 = vunpack.c.l.b16 %v284
  %v2016 = vunpack.c.l.b16 %v285
  %v2017 = vunpack.c.l.b16 %v286
  %v2018 = vunpack.c.l.b16 %v287
  %v2019 = vunpack.c.l.b16 %v288
  %v2020 = vunpack.c.l.b16 %v289
  %v2021 = vunpack.c.l.b16 %v290
  %v2022 = vunpack.c.l.b16 %v291
  %v2023 = vunpack.c.l.b16 %v292
  %v2024 = vunpack.c.l.b16 %v293
  %v2025 = vunpack.c.l.b16 %v294
  %v2026 = vunpack.c.l.b16 %v295
  %v2027 = vunpack.c.l.b16 %v296
  %v2028 = vunpack.c.l.b16 %v297
  %v2029 = vunpack.c.l.b16 %v298
  %v2030 = vunpack.c.l.b16 %v299
  %v2031 = vunpack.c.l.b16 %v300
  %v2032 = vunpack.c.l.b16 %v301
  %v2033 = vunpack.c.l.b16 %v302
  %v2034 = vunpack.c.l.b16 %v303
  %v2035 = vunpack.c.l.b16 %v304
  %v2036 = vunpack.c.l.b16 %v305
  %v2037 = vunpack.c.l.b16 %v306
  %v2038 = vunpack.c.l.b16 %v307
  %v2039 = vunpack.c.l.b16 %v308
  %v2040 = vunpack.c.l.b16 %v309
  %v2041 = vunpack.c.l.b16 %v310
  %v2042 = vunpack.c.l.b16 %v311
  %v2043 = vunpack.c.l.b16 %v312
  %v2044 = vunpack.c.l.b16 %v313
  %v2045 = vunpack.c.l.b16 %v314
  %v2046 = vunpack.c.l.b16 %v315
  %v2047 = vunpack.c.l.b16 %v316
  %v2048 = vunpack.c.l.b16 %v317
  %v2049 = vunpack.c.l.b16 %v318
  %v2050 = vunpack.c.l.b16 %v319
  %v2051 = vunpack.c.l.b16 %v320
  %v2052 = vunpack.c.l.b16 %v321
  %v2053 = vunpack.c.l.b16 %v322
  %v2054 = vunpack.c.l.b16 %v323
  %v2055 = vunpack.c.l.b16 %v324
  %v2056 = vunpack.c.l.b16 %v325
  %v2057 = vunpack.c.l.b16 %v326
  %v2058 = vunpack.c.l.b16 %v327
  %v2059 = vunpack.c.l.b16 %v328
  %v2060 = vunpack.c.l.b16 %v329
  %v2061 = vunpack.c.l.b16 %v330
  %v2062 = vunpack.c.l.b16 %v331
  %v2063 = vunpack.c.l.b16 %v332
  %v2064 = vunpack.c.l.b16 %v333
  %v2065 = vunpack.c.l.b16 %v334
  %v2066 = vunpack.c.l.b16 %v335
  %v2067 = vunpack.c.l.b16 %v336
  %v2068 = vunpack.c.l.b16 %v337
  %v2069 = vunpack.c.l.b16 %v338
  %v2070 = vunpack.c.l.b16 %v339
  %v2071 = vunpack.c.l.b16 %v340
  %v2072 = vunpack.c.l.b16 %v341
  %v2073 = vunpack.c.l.b16 %v342
  %v2074 = vunpack.c.l.b16 %v343
  %v2075 = vunpack.c.l.b16 %v344
  %v2076 = vunpack.c.l.b16 %v345
  %v2077 = vunpack.c.l.b16 %v346
  %v2078 = vunpack.c.l.b16 %v347
  %v2079 = vunpack.c.l.b16 %v348
  %v2080 = vunpack.c.l.b16 %v349
  %v2081 = vunpack.c.l.b16 %v350
  %v2082 = vunpack.c.l.b16 %v351
  %v2083 = vunpack.c.l.b16 %v352
  %v2084 = vunpack.c.l.b16 %v353
  %v2085 = vunpack.c.l.b16 %v354
  %v2086 = vunpack.c.l.b16 %v355
  %v2087 = vunpack.c.l.b16 %v356
  %v2088 = vunpack.c.l.b16 %v357
  %v2089 = vunpack.c.l.b16 %v358
  %v2090 = vunpack.c.l.b16 %v359
  %v2091 = vunpack.c.l.b16 %v360
  %v2092 = vunpack.c.l.b16 %v361
  %v2093 = vunpack.c.l.b16 %v362
  %v2094 = vunpack.c.l.b16 %v363
  %v2095 = vunpack.c.l.b16 %v364
  %v2096 = vunpack.c.l.b16 %v365
  %v2097 = vunpack.c.l.b16 %v366
  %v2098 = vunpack.c.l.b16 %v367
  %v2099 = vunpack.c.l.b16 %v368
  %v2100 = vunpack.c.l.b16 %v369
  %v2101 = vunpack.c.l.b16 %v370
  %v2102 = vunpack.c.l.b16 %v371
  %v2103 = vunpack.c.l.b16 %v372
  %v2104 = vunpack.c.l.b16 %v373
  %v2105 = vunpack.c.l.b16 %v374
  %v2106 = vunpack.c.l.b16 %v375
  %v2107 = vunpack.c.l.b16 %v376
  %v2108 = vunpack.c.l.b16 %v377
  %v2109 = vunpack.c.l.b16 %v378
  %v2110 = vunpack.c.l.b16 %v379
  %v2111 = vunpack.c.l.b16 %v380
  %v2112 = vunpack.c.l.b16 %v381
  %v2113 = vunpack.c.l.b16 %v382
  %v2114 = vunpack.c.l.b16 %v383
  %v2115 = vunpack.c.l.b16 %v384
  %v2116 = vunpack.c.l.b16 %v385
  %v2117 = vunpack.c.l.b16 %v386
  %v2118 = vunpack.c.l.b16 %v387
  %v2119 = vunpack.c.l.b16 %v388
  %v2120 = vunpack.c.l.b16 %v389
  %v2121 = vunpack.c.l.b16 %v390
  %v2122 = vunpack.c.l.b16 %v391
  %v2123 = vunpack.c.l.b16 %v392
  %v2124 = vunpack.c.l.b16 %v393
  %v2125 = vunpack.c.l.b16 %v394
  %v2126 = vunpack.c.l.b16 %v395
  %v2127 = vunpack.c.l.b16 %v396
  %v2128 = vunpack.c.l.b16 %v397
  %v2129 = vunpack.c.l.b16 %v398
  %v2130 = vunpack.c.l.b16 %v399
  %v2131 = vunpack.c.l.b16 %v400
  %v2132 = vunpack.c.l.b16 %v401
  %v2133 = vunpack.c.l.b16 %v402
  %v2134 = vunpack.c.l.b16 %v403
  %v2135 = vunpack.c.l.b16 %v404
  %v2136 = vunpack.c.l.b16 %v405
  %v2137 = vunpack.c.l.b16 %v406
  %v2138 = vunpack.c.l.b16 %v407
  %v2139 = vunpack.c.l.b16 %v408
  %v2140 = vunpack.c.l.b16 %v409
  %v2141 = vunpack.c.l.b16 %v410
  %v2142 = vunpack.c.l.b16 %v411
  %v2143 = vunpack.c.l.b16 %v412
  %v2144 = vunpack.c.l.b16 %v413
  %v2145 = vunpack.c.l.b16 %v414
  %v2146 = vunpack.c.l.b16 %v415
  %v2147 = vunpack.c.l.b16 %v416
  %v2148 = vunpack.c.l.b16 %v417
  %v2149 = vunpack.c.l.b16 %v418
  %v2150 = vunpack.c.l.b16 %v419
  %v2151 = vunpack.c.l.b16 %v420
  %v2152 = vunpack.c.l.b16 %v421
  %v2153 = vunpack.c.l.b16 %v422
  %v2154 = vunpack.c.l.b16 %v423
  %v2155 = vunpack.c.l.b16 %v424
  %v2156 = vunpack.c.l.b16 %v425
  %v2157 = vunpack.c.l.b16 %v426
  %v2158 = vunpack.c.l.b16 %v427
  %v2159 = vunpack.c.l.b16 %v428
  %v2160 = vunpack.c.l.b16 %v429
  %v2161 = vunpack.c.l.b16 %v430
  %v2162 = vunpack.c.l.b16 %v431
  %v2163 = vunpack.c.l.b16 %v432
  %v2164 = vunpack.c.l.b16 %v433
  %v2165 = vunpack.c.l.b16 %v434
  %v2166 = vunpack.c.l.b16 %v435
  %v2167 = vunpack.c.l.b16 %v436
  %v2168 = vunpack.c.l.b16 %v437
  %v2169 = vunpack.c.l.b16 %v438
  %v2170 = vunpack.c.l.b16 %v439
  %v2171 = vunpack.c.l.b16 %v440
  %v2172 = vunpack.c.l.b16 %v441
  %v2173 = vunpack.c.l.b16 %v442
  %v2174 = vunpack.c.l.b16 %v443
  %v2175 = vunpack.c.l.b16 %v444
  %v2176 = vunpack.c.l.b16 %v445
  %v2177 = vunpack.c.l.b16 %v446
  %v2178 = vunpack.c.l.b16 %v447
  %v2179 = vunpack.c.l.b16 %v448
  %v2180 = vunpack.c.l.b16 %v449
  %v2181 = vunpack.c.l.b16 %v450
  %v2182 = vunpack.c.l.b16 %v451
  %v2183 = vunpack.c.l.b16 %v452
  %v2184 = vunpack.c.l.b16 %v453
  %v2185 = vunpack.c.l.b16 %v454
  %v2186 = vunpack.c.l.b16 %v455
  %v2187 = vunpack.c.l.b16 %v456
  %v2188 = vunpack.c.l.b16 %v457
  %v2189 = vunpack.c.l.b16 %v458
  %v2190 = vunpack.c.l.b16 %v459
  %v2191 = vunpack.c.l.b16 %v460
  %v2192 = vunpack.c.l.b16 %v461
  %v2193 = vunpack.c.l.b16 %v462
  %v2194 = vunpack.c.l.b16 %v463
  %v2195 = vunpack.c.l.b16 %v464
  %v2196 = vunpack.c.l.b16 %v465
  %v2197 = vunpack.c.l.b16 %v466
  %v2198 = vunpack.c.l.b16 %v467
  %v2199 = vunpack.c.l.b16 %v468
  %v2200 = vunpack.c.l.b16 %v469
  %v2201 = vunpack.c.l.b16 %v470
  %v2202 = vunpack.c.l.b16 %v471
  %v2203 = vunpack.c.l.b16 %v472
  %v2204 = vunpack.c.l.b16 %v473
  %v2205 = vunpack.c.l.b16 %v474
  %v2206 = vunpack.c.l.b16 %v475
  %v2207 = vunpack.c.l.b16 %v476
  %v2208 = vunpack.c.l.b16 %v477
  %v2209 = vunpack.c.l.b16 %v478
  %v2210 = vunpack.c.l.b16 %v479
  %v2211 = vunpack.c.l.b16 %v480
  %v2212 = vunpack.c.l.b16 %v481
  %v2213 = vunpack.c.l.b16 %v482
  %v2214 = vunpack.c.l.b16 %v483
  %v2215 = vunpack.c.l.b16 %v484
  %v2216 = vunpack.c.l.b16 %v485
  %v2217 = vunpack.c.l.b16 %v486
  %v2218 = vunpack.c.l.b16 %v487
  %v2219 = vunpack.c.l.b16 %v488
  %v2220 = vunpack.c.l.b16 %v489
  %v2221 = vunpack.c.l.b16 %v490
  %v2222 = vunpack.c.l.b16 %v491
  %v2223 = vunpack.c.l.b16 %v492
  %v2224 = vunpack.c.l.b16 %v493
  %v2225 = vunpack.c.l.b16 %v494
  %v2226 = vunpack.c.l.b16 %v495
  %v2227 = vunpack.c.l.b16 %v496
  %v2228 = vunpack.c.l.b16 %v497
  %v2229 = vunpack.c.l.b16 %v498
  %v2230 = vunpack.c.l.b16 %v499
  %v2231 = vunpack.c.l.b16 %v500
  %v2232 = vunpack.c.l.b16 %v501
  %v2233 = vunpack.c.l.b16 %v502
  %v2234 = vunpack.c.l.b16 %v503
  %v2235 = vunpack.c.l.b16 %v504
  %v2236 = vunpack.c.l.b16 %v505
  %v2237 = vunpack.c.l.b16 %v506
  %v2238 = vunpack.c.l.b16 %v507
  %v2239 = vunpack.c.l.b16 %v508
  %v2240 = vunpack.c.l.b16 %v509
  %v2241 = vunpack.c.l.b16 %v510
  %v2242 = vunpack.c.l.b16 %v511
  %v2243 = vunpack.c.l.b16 %v512
  %v2244 = vunpack.c.l.b16 %v513
  %v2245 = vunpack.c.l.b16 %v514
  %v2246 = vunpack.c.l.b16 %v515
  %v2247 = vunpack.c.l.b16 %v516
  %v2248 = vunpack.c.l.b16 %v517
  %v2249 = vunpack.c.l.b16 %v518
  %v2250 = vunpack.c.l.b16 %v519
  %v2251 = vunpack.c.l.b16 %v520
  %v2252 = vunpack.c.l.b16 %v521
  %v2253 = vunpack.c.l.b16 %v522
  %v2254 = vunpack.c.l.b16 %v523
  %v2255 = vunpack.c.l.b16 %v524
  %v2256 = vunpack.c.l.b16 %v525
  %v2257 = vunpack.c.l.b16 %v526
  %v2258 = vunpack.c.l.b16 %v527
  %v2259 = vunpack.c.l.b16 %v528
  %v2260 = vunpack.c.l.b16 %v529
  %v2261 = vunpack.c.l.b16 %v530
  %v2262 = vunpack.c.l.b16 %v531
  %v2263 = vunpack.c.l.b16 %v532
  %v2264 = vunpack.c.l.b16 %v533
  %v2265 = vunpack.c.l.b16 %v534
  %v2266 = vunpack.c.l.b16 %v535
  %v2267 = vunpack.c.l.b16 %v536
  %v2268 = vunpack.c.l.b16 %v537
  %v2269 = vunpack.c.l.b16 %v538
  %v2270 = vunpack.c.l.b16 %v539
  %v2271 = vunpack.c.l.b16 %v540
  %v2272 = vunpack.c.l.b16 %v541
  %v2273 = vunpack.c.l.b16 %v542
  %v2274 = vunpack.c.l.b16 %v543
  %v2275 = vunpack.c.l.b16 %v544
  %v2276 = vunpack.c.l.b16 %v545
  %v2277 = vunpack.c.l.b16 %v546
  %v2278 = vunpack.c.l.b16 %v547
  %v2279 = vunpack.c.l.b16 %v548
  %v2280 = vunpack.c.l.b16 %v549
  %v2281 = vunpack.c.l.b16 %v550
  %v2282 = vunpack.c.l.b16 %v551
  %v2283 = vunpack.c.l.b16 %v552
  %v2284 = vunpack.c.l.b16 %v553
  %v2285 = vunpack.c.l.b16 %v554
  %v2286 = vunpack.c.l.b16 %v555
  %v2287 = vunpack.c.l.b16 %v556
  %v2288 = vunpack.c.l.b16 %v557
  %v2289 = vunpack.c.l.b16 %v558
  %v2290 = vunpack.c.l.b16 %v559
  %v2291 = vunpack.c.l.b16 %v560
  %v2292 = vunpack.c.l.b16 %v561
  %v2293 = vunpack.c.l.b16 %v562
  %v2294 = vunpack.c.l.b16 %v563
  %v2295 = vunpack.c.l.b16 %v564
  %v2296 = vunpack.c.l.b16 %v565
  %v2297 = vunpack.c.l.b16 %v566
  %v2298 = vunpack.c.l.b16 %v567
  %v2299 = vunpack.c.l.b16 %v568
  %v2300 = vunpack.c.l.b16 %v569
  %v2301 = vunpack.c.l.b16 %v570
  %v2302 = vunpack.c.l.b16 %v571
  %v2303 = vunpack.c.l.b16 %v572
  %v2304 = vunpack.c.l.b16 %v573
  %v2305 = vunpack.c.l.b16 %v574
  %v2306 = vunpack.c.l.b16 %v575
  %v2307 = vunpack.c.l.b16 %v576
  %v2308 = vunpack.c.l.b16 %v577
  %v2309 = vunpack.c.l.b16 %v578
  %v2310 = vunpack.c.l.b16 %v579
  %v2311 = vunpack.c.l.b16 %v580
  %v2312 = vunpack.c.l.b16 %v581
  %v2313 = vunpack.c.l.b16 %v582
  %v2314 = vunpack.c.l.b16 %v583
  %v2315 = vunpack.c.l.b16 %v584
  %v2316 = vunpack.c.l.b16 %v585
  %v2317 = vunpack.c.l.b16 %v586
  %v2318 = vunpack.c.l.b16 %v587
  %v2319 = vunpack.c.l.b16 %v588
  %v2320 = vunpack.c.l.b16 %v589
  %v2321 = vunpack.c.l.b16 %v590
  %v2322 = vunpack.c.l.b16 %v591
  %v2323 = vunpack.c.l.b16 %v592
  %v2324 = vunpack.c.l.b16 %v593
  %v2325 = vunpack.c.l.b16 %v594
  %v2326 = vunpack.c.l.b16 %v595
  %v2327 = vunpack.c.l.b16 %v596
  %v2328 = vunpack.c.l.b16 %v597
  %v2329 = vunpack.c.l.b16 %v598
  %v2330 = vunpack.c.l.b16 %v599
  %v2331 = vunpack.c.l.b16 %v600
  %v2332 = vunpack.c.l.b16 %v601
  %v2333 = vunpack.c.l.b16 %v602
  %v2334 = vunpack.c.l.b16 %v603
  %v2335 = vunpack.c.l.b16 %v604
  %v2336 = vunpack.c.l.b16 %v605
  %v2337 = vunpack.c.l.b16 %v606
  %v2338 = vunpack.c.l.b16 %v607
  %v2339 = vunpack.c.l.b16 %v608
  %v2340 = vunpack.c.l.b16 %v609
  %v2341 = vunpack.c.l.b16 %v610
  %v2342 = vunpack.c.l.b16 %v611
  %v2343 = vunpack.c.l.b16 %v612
  %v2344 = vunpack.c.l.b16 %v613
  %v2345 = vunpack.c.l.b16 %v614
  %v2346 = vunpack.c.l.b16 %v615
  %v2347 = vunpack.c.l.b16 %v616
  %v2348 = vunpack.c.l.b16 %v617
  %v2349 = vunpack.c.l.b16 %v618
  %v2350 = vunpack.c.l.b16 %v619
  %v2351 = vunpack.c.l.b16 %v620
  %v2352 = vunpack.c.l.b16 %v621
  %v2353 = vunpack.c.l.b16 %v622
  %v2354 = vunpack.c.l.b16 %v623
  %v2355 = vunpack.c.l.b16 %v624
  %v2356 = vunpack.c.l.b16 %v625
  %v2357 = vunpack.c.l.b16 %v626
  %v2358 = vunpack.c.l.b16 %v627
  %v2359 = vunpack.c.l.b16 %v628
  %v2360 = vunpack.c.l.b16 %v629
  %v2361 = vunpack.c.l.b16 %v630
  %v2362 = vunpack.c.l.b16 %v631
  %v2363 = vunpack.c.l.b16 %v632
  %v2364 = vunpack.c.l.b16 %v633
  %v2365 = vunpack.c.l.b16 %v634
  %v2366 = vunpack.c.l.b16 %v635
  %v2367 = vunpack.c.l.b16 %v636
  %v2368 = vunpack.c.l.b16 %v637
  %v2369 = vunpack.c.l.b16 %v638
  %v2370 = vunpack.c.l.b16 %v639
  %v2371 = vunpack.c.l.b16 %v640
  %v2372 = vunpack.c.l.b16 %v641
  %v2373 = vunpack.c.l.b16 %v642
  %v2374 = vunpack.c.l.b16 %v643
  %v2375 = vunpack.c.l.b16 %v644
  %v2376 = vunpack.c.l.b16 %v645
  %v2377 = vunpack.c.l.b16 %v646
  %v2378 = vunpack.c.l.b16 %v647
  %v2379 = vunpack.c.l.b16 %v648
  %v2380 = vunpack.c.l.b16 %v649
  %v2381 = vunpack.c.l.b16 %v650
  %v2382 = vunpack.c.l.b16 %v651
  %v2383 = vunpack.c.l.b16 %v652
  %v2384 = vunpack.c.l.b16 %v653
  %v2385 = vunpack.c.l.b16 %v654
  %v2386 = vunpack.c.l.b16 %v655
  %v2387 = vunpack.c.l.b16 %v656
  %v2388 = vunpack.c.l.b16 %v657
  %v2389 = vunpack.c.l.b16 %v658
  %v2390 = vunpack.c.l.b16 %v659
  %v2391 = vunpack.c.l.b16 %v660
  %v2392 = vunpack.c.l.b16 %v661
  %v2393 = vunpack.c.l.b16 %v662
  %v2394 = vunpack.c.l.b16 %v663
  %v2395 = vunpack.c.l.b16 %v664
  %v2396 = vunpack.c.l.b16 %v665
  %v2397 = vunpack.c.l.b16 %v666
  %v2398 = vunpack.c.l.b16 %v667
  %v2399 = vunpack.c.l.b16 %v668
  %v2400 = vunpack.c.l.b16 %v669
  %v2401 = vunpack.c.l.b16 %v670
  %v2402 = vunpack.c.l.b16 %v671
  %v2403 = vunpack.c.l.b16 %v672
  %v2404 = vunpack.c.l.b16 %v673
  %v2405 = vunpack.c.l.b16 %v674
  %v2406 = vunpack.c.l.b16 %v675
  %v2407 = vunpack.c.l.b16 %v676
  %v2408 = vunpack.c.l.b16 %v677
  %v2409 = vunpack.c.l.b16 %v678
  %v2410 = vunpack.c.l.b16 %v679
  %v2411 = vunpack.c.l.b16 %v680
  %v2412 = vunpack.c.l.b16 %v681
  %v2413 = vunpack.c.l.b16 %v682
  %v2414 = vunpack.c.l.b16 %v683
  %v2415 = vunpack.c.l.b16 %v684
  %v2416 = vunpack.c.l.b16 %v685
  %v2417 = vunpack.c.l.b16 %v686
  %v2418 = vunpack.c.l.b16 %v687
  %v2419 = vunpack.c.l.b16 %v688
  %v2420 = vunpack.c.l.b16 %v689
  %v2421 = vunpack.c.l.b16 %v690
  %v2422 = vunpack.c.l.b16 %v691
  %v2423 = vunpack.c.l.b16 %v692
  %v2424 = vunpack.c.l.b16 %v693
  %v2425 = vunpack.c.l.b16 %v694
  %v2426 = vunpack.c.l.b16 %v695
  %v2427 = vunpack.c.l.b16 %v696
  %v2428 = vunpack.c.l.b16 %v697
  %v2429 = vunpack.c.l.b16 %v698
  %v2430 = vunpack.c.l.b16 %v699
  %v2431 = vunpack.c.l.b16 %v700
  %v2432 = vunpack.c.l.b16 %v701
  %v2433 = vunpack.c.l.b16 %v702
  %v2434 = vunpack.c.l.b16 %v703
  %v2435 = vunpack.c.l.b16 %v704
  %v2436 = vunpack.c.l.b16 %v705
  %v2437 = vunpack.c.l.b16 %v706
  %v2438 = vunpack.c.l.b16 %v707
  %v2439 = vunpack.c.l.b16 %v708
  %v2440 = vunpack.c.l.b16 %v709
  %v2441 = vunpack.c.l.b16 %v710
  %v2442 = vunpack.c.l.b16 %v711
  %v2443 = vunpack.c.l.b16 %v712
  %v2444 = vunpack.c.l.b16 %v713
  %v2445 = vunpack.c.l.b16 %v714
  %v2446 = vunpack.c.l.b16 %v715
  %v2447 = vunpack.c.l.b16 %v716
  %v2448 = vunpack.c.l.b16 %v717
  %v2449 = vunpack.c.l.b16 %v718
  %v2450 = vunpack.c.l.b16 %v719
  %v2451 = vunpack.c.l.b16 %v720
  %v2452 = vunpack.c.l.b16 %v721
  %v2453 = vunpack.c.l.b16 %v722
  %v2454 = vunpack.c.l.b16 %v723
  %v2455 = vunpack.c.l.b16 %v724
  %v2456 = vunpack.c.l.b16 %v725
  %v2457 = vunpack.c.l.b16 %v726
  %v2458 = vunpack.c.l.b16 %v727
  %v2459 = vunpack.c.l.b16 %v728
  %v2460 = vunpack.c.l.b16 %v729
  %v2461 = vunpack.c.l.b16 %v730
  %v2462 = vunpack.c.l.b16 %v731
  %v2463 = vunpack.c.l.b16 %v732
  %v2464 = vunpack.c.l.b16 %v733
  %v2465 = vunpack.c.l.b16 %v734
  %v2466 = vunpack.c.l.b16 %v735
  %v2467 = vunpack.c.l.b16 %v736
  %v2468 = vunpack.c.l.b16 %v737
  %v2469 = vunpack.c.l.b16 %v738
  %v2470 = vunpack.c.l.b16 %v739
  %v2471 = vunpack.c.l.b16 %v740
  %v2472 = vunpack.c.l.b16 %v741
  %v2473 = vunpack.c.l.b16 %v742
  %v2474 = vunpack.c.l.b16 %v743
  %v2475 = vunpack.c.l.b16 %v744
  %v2476 = vunpack.c.l.b16 %v745
  %v2477 = vunpack.c.l.b16 %v746
  %v2478 = vunpack.c.l.b16 %v747
  %v2479 = vunpack.c.l.b16 %v748
  %v2480 = vunpack.c.l.b16 %v749
  %v2481 = vunpack.c.l.b16 %v750
  %v2482 = vunpack.c.l.b16 %v751
  %v2483 = vunpack.c.l.b16 %v752
  %v2484 = vunpack.c.l.b16 %v753
  %v2485 = vunpack.c.l.b16 %v754
  %v2486 = vunpack.c.l.b16 %v755
  %v2487 = vunpack.c.l.b16 %v756
  %v2488 = vunpack.c.l.b16 %v757
  %v2489 = vunpack.c.l.b16 %v758
  %v2490 = vunpack.c.l.b16 %v759
  %v2491 = vunpack.c.l.b16 %v760
  %v2492 = vunpack.c.l.b16 %v761
  %v2493 = vunpack.c.l.b16 %v762
  %v2494 = vpack.c.b16 %v1839, %v1838
  %v2495 = vpack.c.b16 %v1841, %v1840
  %v2496 = vpack.c.b16 %v1843, %v1842
  %v2497 = vpack.c.b16 %v1845, %v1844
  %v2498 = vpack.c.b16 %v1847, %v1846
  %v2499 = vpack.c.b16 %v1849, %v1848
  %v2500 = vpack.c.b16 %v1851, %v1850
  %v2501 = vpack.c.b16 %v1853, %v1852
  %v2502 = vpack.c.b16 %v1855, %v1854
  %v2503 = vpack.c.b16 %v1857, %v1856
  %v2504 = vpack.c.b16 %v1859, %v1858
  %v2505 = vpack.c.b16 %v1861, %v1860
  %v2506 = vpack.c.b16 %v1863, %v1862
  %v2507 = vpack.c.b16 %v1865, %v1864
  %v2508 = vpack.c.b16 %v1867, %v1866
  %v2509 = vpack.c.b16 %v1869, %v1868
  %v2510 = vpack.c.b16 %v1871, %v1870
  %v2511 = vpack.c.b16 %v1873, %v1872
  %v2512 = vpack.c.b16 %v1875, %v1874
  %v2513 = vpack.c.b16 %v1877, %v1876
  %v2514 = vpack.c.b16 %v1879, %v1878
  %v2515 = vpack.c.b16 %v1881, %v1880
  %v2516 = vpack.c.b16 %v1883, %v1882
  %v2517 = vpack.c.b16 %v1885, %v1884
  %v2518 = vpack.c.b16 %v1887, %v1886
  %v2519 = vpack.c.b16 %v1889, %v1888
  %v2520 = vpack.c.b16 %v1891, %v1890
  %v2521 = vpack.c.b16 %v1893, %v1892
  %v2522 = vpack.c.b16 %v1895, %v1894
  %v2523 = vpack.c.b16 %v1897, %v1896
  %v2524 = vpack.c.b16 %v1899, %v1898
  %v2525 = vpack.c.b16 %v1901, %v1900
  %v2526 = vpack.c.b16 %v1903, %v1902
  %v2527 = vpack.c.b16 %v1905, %v1904
  %v2528 = vpack.c.b16 %v1907, %v1906
  %v2529 = vpack.c.b16 %v1909, %v1908
  %v2530 = vpack.c.b16 %v1911, %v1910
  %v2531 = vpack.c.b16 %v1913, %v1912
  %v2532 = vpack.c.b16 %v1915, %v1914
  %v2533 = vpack.c.b16 %v1917, %v1916
  %v2534 = vpack.c.b16 %v1919, %v1918
  %v2535 = vpack.c.b16 %v1921, %v1920
  %v2536 = vpack.c.b16 %v1923, %v1922
  %v2537 = vpack.c.b16 %v1925, %v1924
  %v2538 = vpack.c.b16 %v1927, %v1926
  %v2539 = vpack.c.b16 %v1929, %v1928
  %v2540 = vpack.c.b16 %v1931, %v1930
  %v2541 = vpack.c.b16 %v1933, %v1932
  %v2542 = vpack.c.b16 %v1935, %v1934
  %v2543 = vpack.c.b16 %v1937, %v1936
  %v2544 = vpack.c.b16 %v1939, %v1938
  %v2545 = vpack.c.b16 %v1941, %v1940
  %v2546 = vpack.c.b16 %v1943, %v1942
  %v2547 = vpack.c.b16 %v1945, %v1944
  %v2548 = vpack.c.b16 %v1947, %v1946
  %v2549 = vpack.c.b16 %v1949, %v1948
  %v2550 = vpack.c.b16 %v1951, %v1950
  %v2551 = vpack.c.b16 %v1953, %v1952
  %v2552 = vpack.c.b16 %v1955, %v1954
  %v2553 = vpack.c.b16 %v1957, %v1956
  %v2554 = vpack.c.b16 %v1959, %v1958
  %v2555 = vpack.c.b16 %v1961, %v1960
  %v2556 = vpack.c.b16 %v1963, %v1962
  %v2557 = vpack.c.b16 %v1965, %v1964
  %v2558 = vpack.c.b16 %v1967, %v1966
  %v2559 = vpack.c.b16 %v1969, %v1968
  %v2560 = vpack.c.b16 %v1971, %v1970
  %v2561 = vpack.c.b16 %v1973, %v1972
  %v2562 = vpack.c.b16 %v1975, %v1974
  %v2563 = vpack.c.b16 %v1977, %v1976
  %v2564 = vpack.c.b16 %v1979, %v1978
  %v2565 = vpack.c.b16 %v1981, %v1980
  %v2566 = vpack.c.b16 %v1983, %v1982
  %v2567 = vpack.c.b16 %v1985, %v1984
  %v2568 = vpack.c.b16 %v1987, %v1986
  %v2569 = vpack.c.b16 %v1989, %v1988
  %v2570 = vpack.c.b16 %v1991, %v1990
  %v2571 = vpack.c.b16 %v1993, %v1992
  %v2572 = vpack.c.b16 %v1995, %v1994
  %v2573 = vpack.c.b16 %v1997, %v1996
  %v2574 = vpack.c.b16 %v1999, %v1998
  %v2575 = vpack.c.b16 %v2001, %v2000
  %v2576 = vpack.c.b16 %v2003, %v2002
  %v2577 = vpack.c.b16 %v2005, %v2004
  %v2578 = vpack.c.b16 %v2007, %v2006
  %v2579 = vpack.c.b16 %v2009, %v2008
  %v2580 = vpack.c.b16 %v2011, %v2010
  %v2581 = vpack.c.b16 %v2013, %v2012
  %v2582 = vpack.c.b16 %v2015, %v2014
  %v2583 = vpack.c.b16 %v2017, %v2016
  %v2584 = vpack.c.b16 %v2019, %v2018
  %v2585 = vpack.c.b16 %v2021, %v2020
  %v2586 = vpack.c.b16 %v2023, %v2022
  %v2587 = vpack.c.b16 %v2025, %v2024
  %v2588 = vpack.c.b16 %v2027, %v2026
  %v2589 = vpack.c.b16 %v2029, %v2028
  %v2590 = vpack.c.b16 %v2031, %v2030
  %v2591 = vpack.c.b16 %v2033, %v2032
  %v2592 = vpack.c.b16 %v2035, %v2034
  %v2593 = vpack.c.b16 %v2037, %v2036
  %v2594 = vpack.c.b16 %v2039, %v2038
  %v2595 = vpack.c.b16 %v2041, %v2040
  %v2596 = vpack.c.b16 %v2043, %v2042
  %v2597 = vpack.c.b16 %v2045, %v2044
  %v2598 = vpack.c.b16 %v2047, %v2046
  %v2599 = vpack.c.b16 %v2049, %v2048
  %v2600 = vpack.c.b16 %v2051, %v2050
  %v2601 = vpack.c.b16 %v2053, %v2052
  %v2602 = vpack.c.b16 %v2055, %v2054
  %v2603 = vpack.c.b16 %v2057, %v2056
  %v2604 = vpack.c.b16 %v2059, %v2058
  %v2605 = vpack.c.b16 %v2061, %v2060
  %v2606 = vpack.c.b16 %v2063, %v2062
  %v2607 = vpack.c.b16 %v2065, %v2064
  %v2608 = vpack.c.b16 %v2067, %v2066
  %v2609 = vpack.c.b16 %v2069, %v2068
  %v2610 = vpack.c.b16 %v2071, %v2070
  %v2611 = vpack.c.b16 %v2073, %v2072
  %v2612 = vpack.c.b16 %v2075, %v2074
  %v2613 = vpack.c.b16 %v2077, %v2076
  %v2614 = vpack.c.b16 %v2079, %v2078
  %v2615 = vpack.c.b16 %v2081, %v2080
  %v2616 = vpack.c.b16 %v2083, %v2082
  %v2617 = vpack.c.b16 %v2085, %v2084
  %v2618 = vpack.c.b16 %v2087, %v2086
  %v2619 = vpack.c.b16 %v2089, %v2088
  %v2620 = vpack.c.b16 %v2091, %v2090
  %v2621 = vpack.c.b16 %v2093, %v2092
  %v2622 = vpack.c.b16 %v2095, %v2094
  %v2623 = vpack.c.b16 %v2097, %v2096
  %v2624 = vpack.c.b16 %v2099, %v2098
  %v2625 = vpack.c.b16 %v2101, %v2100
  %v2626 = vpack.c.b16 %v2103, %v2102
  %v2627 = vpack.c.b16 %v2105, %v2104
  %v2628 = vpack.c.b16 %v2107, %v2106
  %v2629 = vpack.c.b16 %v2109, %v2108
  %v2630 = vpack.c.b16 %v2111, %v2110
  %v2631 = vpack.c.b16 %v2113, %v2112
  %v2632 = vpack.c.b16 %v2115, %v2114
  %v2633 = vpack.c.b16 %v2117, %v2116
  %v2634 = vpack.c.b16 %v2119, %v2118
  %v2635 = vpack.c.b16 %v2121, %v2120
  %v2636 = vpack.c.b16 %v2123, %v2122
  %v2637 = vpack.c.b16 %v2125, %v2124
  %v2638 = vpack.c.b16 %v2127, %v2126
  %v2639 = vpack.c.b16 %v2129, %v2128
  %v2640 = vpack.c.b16 %v2131, %v2130
  %v2641 = vpack.c.b16 %v2133, %v2132
  %v2642 = vpack.c.b16 %v2135, %v2134
  %v2643 = vpack.c.b16 %v2137, %v2136
  %v2644 = vpack.c.b16 %v2139, %v2138
  %v2645 = vpack.c.b16 %v2141, %v2140
  %v2646 = vpack.c.b16 %v2143, %v2142
  %v2647 = vpack.c.b16 %v2145, %v2144
  %v2648 = vpack.c.b16 %v2147, %v2146
  %v2649 = vpack.c.b16 %v2149, %v2148
  %v2650 = vpack.c.b16 %v2151, %v2150
  %v2651 = vpack.c.b16 %v2153, %v2152
  %v2652 = vpack.c.b16 %v2155, %v2154
  %v2653 = vpack.c.b16 %v2157, %v2156
  %v2654 = vpack.c.b16 %v2159, %v2158
  %v2655 = vpack.c.b16 %v2161, %v2160
  %v2656 = vpack.c.b16 %v2163, %v2162
  %v2657 = vpack.c.b16 %v2165, %v2164
  %v2658 = vpack.c.b16 %v2167, %v2166
  %v2659 = vpack.c.b16 %v2169, %v2168
  %v2660 = vpack.c.b16 %v2171, %v2170
  %v2661 = vpack.c.b16 %v2173, %v2172
  %v2662 = vpack.c.b16 %v2175, %v2174
  %v2663 = vpack.c.b16 %v2177, %v2176
  %v2664 = vpack.c.b16 %v2179, %v2178
  %v2665 = vpack.c.b16 %v2181, %v2180
  %v2666 = vpack.c.b16 %v2183, %v2182
  %v2667 = vpack.c.b16 %v2185, %v2184
  %v2668 = vpack.c.b16 %v2187, %v2186
  %v2669 = vpack.c.b16 %v2189, %v2188
  %v2670 = vpack.c.b16 %v2191, %v2190
  %v2671 = vpack.c.b16 %v2193, %v2192
  %v2672 = vpack.c.b16 %v2195, %v2194
  %v2673 = vpack.c.b16 %v2197, %v2196
  %v2674 = vpack.c.b16 %v2199, %v2198
  %v2675 = vpack.c.b16 %v2201, %v2200
  %v2676 = vpack.c.b16 %v2203, %v2202
  %v2677 = vpack.c.b16 %v2205, %v2204
  %v2678 = vpack.c.b16 %v2207, %v2206
  %v2679 = vpack.c.b16 %v2209, %v2208
  %v2680 = vpack.c.b16 %v2211, %v2210
  %v2681 = vpack.c.b16 %v2213, %v2212
  %v2682 = vpack.c.b16 %v2215, %v2214
  %v2683 = vpack.c.b16 %v2217, %v2216
  %v2684 = vpack.c.b16 %v2219, %v2218
  %v2685 = vpack.c.b16 %v2221, %v2220
  %v2686 = vpack.c.b16 %v2223, %v2222
  %v2687 = vpack.c.b16 %v2225, %v2224
  %v2688 = vpack.c.b16 %v2227, %v2226
  %v2689 = vpack.c.b16 %v2229, %v2228
  %v2690 = vpack.c.b16 %v2231, %v2230
  %v2691 = vpack.c.b16 %v2233, %v2232
  %v2692 = vpack.c.b16 %v2235, %v2234
  %v2693 = vpack.c.b16 %v2237, %v2236
  %v2694 = vpack.c.b16 %v2239, %v2238
  %v2695 = vpack.c.b16 %v2241, %v2240
  %v2696 = vpack.c.b16 %v2243, %v2242
  %v2697 = vpack.c.b16 %v2245, %v2244
  %v2698 = vpack.c.b16 %v2247, %v2246
  %v2699 = vpack.c.b16 %v2249, %v2248
  %v2700 = vpack.c.b16 %v2251, %v2250
  %v2701 = vpack.c.b16 %v2253, %v2252
  %v2702 = vpack.c.b16 %v2255, %v2254
  %v2703 = vpack.c.b16 %v2257, %v2256
  %v2704 = vpack.c.b16 %v2259, %v2258
  %v2705 = vpack.c.b16 %v2261, %v2260
  %v2706 = vpack.c.b16 %v2263, %v2262
  %v2707 = vpack.c.b16 %v2265, %v2264
  %v2708 = vpack.c.b16 %v2267, %v2266
  %v2709 = vpack.c.b16 %v2269, %v2268
  %v2710 = vpack.c.b16 %v2271, %v2270
  %v2711 = vpack.c.b16 %v2273, %v2272
  %v2712 = vpack.c.b16 %v2275, %v2274
  %v2713 = vpack.c.b16 %v2277, %v2276
  %v2714 = vpack.c.b16 %v2279, %v2278
  %v2715 = vpack.c.b16 %v2281, %v2280
  %v2716 = vpack.c.b16 %v2283, %v2282
  %v2717 = vpack.c.b16 %v2285, %v2284
  %v2718 = vpack.c.b16 %v2287, %v2286
  %v2719 = vpack.c.b16 %v2289, %v2288
  %v2720 = vpack.c.b16 %v2291, %v2290
  %v2721 = vpack.c.b16 %v2293, %v2292
  %v2722 = vpack.c.b16 %v2295, %v2294
  %v2723 = vpack.c.b16 %v2297, %v2296
  %v2724 = vpack.c.b16 %v2299, %v2298
  %v2725 = vpack.c.b16 %v2301, %v2300
  %v2726 = vpack.c.b16 %v2303, %v2302
  %v2727 = vpack.c.b16 %v2305, %v2304
  %v2728 = vpack.c.b16 %v2307, %v2306
  %v2729 = vpack.c.b16 %v2309, %v2308
  %v2730 = vpack.c.b16 %v2311, %v2310
  %v2731 = vpack.c.b16 %v2313, %v2312
  %v2732 = vpack.c.b16 %v2315, %v2314
  %v2733 = vpack.c.b16 %v2317, %v2316
  %v2734 = vpack.c.b16 %v2319, %v2318
  %v2735 = vpack.c.b16 %v2321, %v2320
  %v2736 = vpack.c.b16 %v2323, %v2322
  %v2737 = vpack.c.b16 %v2325, %v2324
  %v2738 = vpack.c.b16 %v2327, %v2326
  %v2739 = vpack.c.b16 %v2329, %v2328
  %v2740 = vpack.c.b16 %v2331, %v2330
  %v2741 = vpack.c.b16 %v2333, %v2332
  %v2742 = vpack.c.b16 %v2335, %v2334
  %v2743 = vpack.c.b16 %v2337, %v2336
  %v2744 = vpack.c.b16 %v2339, %v2338
  %v2745 = vpack.c.b16 %v2341, %v2340
  %v2746 = vpack.c.b16 %v2343, %v2342
  %v2747 = vpack.c.b16 %v2345, %v2344
  %v2748 = vpack.c.b16 %v2347, %v2346
  %v2749 = vpack.c.b16 %v2349, %v2348
  %v2750 = vpack.c.b16 %v2351, %v2350
  %v2751 = vpack.c.b16 %v2353, %v2352
  %v2752 = vpack.c.b16 %v2355, %v2354
  %v2753 = vpack.c.b16 %v2357, %v2356
  %v2754 = vpack.c.b16 %v2359, %v2358
  %v2755 = vpack.c.b16 %v2361, %v2360
  %v2756 = vpack.c.b16 %v2363, %v2362
  %v2757 = vpack.c.b16 %v2365, %v2364
  %v2758 = vpack.c.b16 %v2367, %v2366
  %v2759 = vpack.c.b16 %v2369, %v2368
  %v2760 = vpack.c.b16 %v2371, %v2370
  %v2761 = vpack.c.b16 %v2373, %v2372
  %v2762 = vpack.c.b16 %v2375, %v2374
  %v2763 = vpack.c.b16 %v2377, %v2376
  %v2764 = vpack.c.b16 %v2379, %v2378
  %v2765 = vpack.c.b16 %v2381, %v2380
  %v2766 = vpack.c.b16 %v2383, %v2382
  %v2767 = vpack.c.b16 %v2385, %v2384
  %v2768 = vpack.c.b16 %v2387, %v2386
  %v2769 = vpack.c.b16 %v2389, %v2388
  %v2770 = vpack.c.b16 %v2391, %v2390
  %v2771 = vpack.c.b16 %v2393, %v2392
  %v2772 = vpack.c.b16 %v2395, %v2394
  %v2773 = vpack.c.b16 %v2397, %v2396
  %v2774 = vpack.c.b16 %v2399, %v2398
  %v2775 = vpack.c.b16 %v2401, %v2400
  %v2776 = vpack.c.b16 %v2403, %v2402
  %v2777 = vpack.c.b16 %v2405, %v2404
  %v2778 = vpack.c.b16 %v2407, %v2406
  %v2779 = vpack.c.b16 %v2409, %v2408
  %v2780 = vpack.c.b16 %v2411, %v2410
  %v2781 = vpack.c.b16 %v2413, %v2412
  %v2782 = vpack.c.b16 %v2415, %v2414
  %v2783 = vpack.c.b16 %v2417, %v2416
  %v2784 = vpack.c.b16 %v2419, %v2418
  %v2785 = vpack.c.b16 %v2421, %v2420
  %v2786 = vpack.c.b16 %v2423, %v2422
  %v2787 = vpack.c.b16 %v2425, %v2424
  %v2788 = vpack.c.b16 %v2427, %v2426
  %v2789 = vpack.c.b16 %v2429, %v2428
  %v2790 = vpack.c.b16 %v2431, %v2430
  %v2791 = vpack.c.b16 %v2433, %v2432
  %v2792 = vpack.c.b16 %v2435, %v2434
  %v2793 = vpack.c.b16 %v2437, %v2436
  %v2794 = vpack.c.b16 %v2439, %v2438
  %v2795 = vpack.c.b16 %v2441, %v2440
  %v2796 = vpack.c.b16 %v2443, %v2442
  %v2797 = vpack.c.b16 %v2445, %v2444
  %v2798 = vpack.c.b16 %v2447, %v2446
  %v2799 = vpack.c.b16 %v2449, %v2448
  %v2800 = vpack.c.b16 %v2451, %v2450
  %v2801 = vpack.c.b16 %v2453, %v2452
  %v2802 = vpack.c.b16 %v2455, %v2454
  %v2803 = vpack.c.b16 %v2457, %v2456
  %v2804 = vpack.c.b16 %v2459, %v2458
  %v2805 = vpack.c.b16 %v2461, %v2460
  %v2806 = vpack.c.b16 %v2463, %v2462
  %v2807 = vpack.c.b16 %v2465, %v2464
  %v2808 = vpack.c.b16 %v2467, %v2466
  %v2809 = vpack.c.b16 %v2469, %v2468
  %v2810 = vpack.c.b16 %v2471, %v2470
  %v2811 = vpack.c.b16 %v2473, %v2472
  %v2812 = vpack.c.b16 %v2475, %v2474
  %v2813 = vpack.c.b16 %v2477, %v2476
  %v2814 = vpack.c.b16 %v2479, %v2478
  %v2815 = vpack.c.b16 %v2481, %v2480
  %v2816 = vpack.c.b16 %v2483, %v2482
  %v2817 = vpack.c.b16 %v2485, %v2484
  %v2818 = vpack.c.b16 %v2487, %v2486
  %v2819 = vpack.c.b16 %v2489, %v2488
  %v2820 = vpack.c.b16 %v2491, %v2490
  %v2821 = vpack.c.b16 %v2493, %v2492
  %3150 = vmatprep.subr.bf16.mxu0 0
  %3151 = vmatpush1.bf16.msra.mxu0 %v2501
  %3152 = vmatprep.subr.bf16.mxu0 0
  %3153 = vmatpush1.bf16.msra.mxu0 %v2500
  %3154 = vmatprep.subr.bf16.mxu0 0
  %3155 = vmatpush1.bf16.msra.mxu0 %v2499
  %3156 = vmatprep.subr.bf16.mxu0 0
  %3157 = vmatpush1.bf16.msra.mxu0 %v2498
  %3158 = vmatprep.subr.bf16.mxu0 0
  %3159 = vmatpush1.bf16.msra.mxu0 %v2497
  %3160 = vmatprep.subr.bf16.mxu0 0
  %3161 = vmatpush1.bf16.msra.mxu0 %v2496
  %3162 = vmatprep.subr.bf16.mxu0 0
  %3163 = vmatpush1.bf16.msra.mxu0 %v2495
  %3164 = vmatprep.subr.bf16.mxu0 0
  %3165 = vmatpush1.bf16.msra.mxu0 %v2494
  %3166 = vmatprep.subr.bf16.mxu0 0
  %3167 = vmatpush2.bf16.msra.mxu0 %v2509
  %3168 = vmatprep.subr.bf16.mxu0 0
  %3169 = vmatpush2.bf16.msra.mxu0 %v2508
  %3170 = vmatprep.subr.bf16.mxu0 0
  %3171 = vmatpush2.bf16.msra.mxu0 %v2507
  %3172 = vmatprep.subr.bf16.mxu0 0
  %3173 = vmatpush2.bf16.msra.mxu0 %v2506
  %3174 = vmatprep.subr.bf16.mxu0 0
  %3175 = vmatpush2.bf16.msra.mxu0 %v2505
  %3176 = vmatprep.subr.bf16.mxu0 0
  %3177 = vmatpush2.bf16.msra.mxu0 %v2504
  %3178 = vmatprep.subr.bf16.mxu0 0
  %3179 = vmatpush2.bf16.msra.mxu0 %v2503
  %3180 = vmatprep.subr.bf16.mxu0 0
  %3181 = vmatpush2.bf16.msra.mxu0 %v2502
  %3182 = vmatprep.mubr.bf16.mxu0 %v1019
  %3183 = vmatmul.mubr.bf16.gmra.mxu0 %v1018
  %v3184 = vpop.f32.mrf.mxu0
  %v3185 = vadd.f32 %v768, %v3184
  %v3186 = vpop.f32.mrf.mxu0
  %v3187 = vpop.f32.mrf.mxu0
  %v3188 = vadd.f32 %v768, %v3187
  %v3189 = vpop.f32.mrf.mxu0
  %3190 = vmatprep.mubr.bf16.mxu0 %v1060
  %3191 = vmatmul.mubr.bf16.gmra.mxu0 %v1059
  %v3192 = vpop.f32.mrf.mxu0
  %v3193 = vadd.f32 %v768, %v3192
  %v3194 = vpop.f32.mrf.mxu0
  %v3195 = vpop.f32.mrf.mxu0
  %v3196 = vadd.f32 %v768, %v3195
  %v3197 = vpop.f32.mrf.mxu0
  %3198 = vdwg.mxu0
  %3199 = vmatprep.subr.bf16.mxu0 0
  %3200 = vmatpush1.bf16.msra.mxu0 %v2517
  %3201 = vmatprep.subr.bf16.mxu0 0
  %3202 = vmatpush1.bf16.msra.mxu0 %v2516
  %3203 = vmatprep.subr.bf16.mxu0 0
  %3204 = vmatpush1.bf16.msra.mxu0 %v2515
  %3205 = vmatprep.subr.bf16.mxu0 0
  %3206 = vmatpush1.bf16.msra.mxu0 %v2514
  %3207 = vmatprep.subr.bf16.mxu0 0
  %3208 = vmatpush1.bf16.msra.mxu0 %v2513
  %3209 = vmatprep.subr.bf16.mxu0 0
  %3210 = vmatpush1.bf16.msra.mxu0 %v2512
  %3211 = vmatprep.subr.bf16.mxu0 0
  %3212 = vmatpush1.bf16.msra.mxu0 %v2511
  %3213 = vmatprep.subr.bf16.mxu0 0
  %3214 = vmatpush1.bf16.msra.mxu0 %v2510
  %3215 = vmatprep.subr.bf16.mxu0 0
  %3216 = vmatpush2.bf16.msra.mxu0 %v2525
  %3217 = vmatprep.subr.bf16.mxu0 0
  %3218 = vmatpush2.bf16.msra.mxu0 %v2524
  %3219 = vmatprep.subr.bf16.mxu0 0
  %3220 = vmatpush2.bf16.msra.mxu0 %v2523
  %3221 = vmatprep.subr.bf16.mxu0 0
  %3222 = vmatpush2.bf16.msra.mxu0 %v2522
  %3223 = vmatprep.subr.bf16.mxu0 0
  %3224 = vmatpush2.bf16.msra.mxu0 %v2521
  %3225 = vmatprep.subr.bf16.mxu0 0
  %3226 = vmatpush2.bf16.msra.mxu0 %v2520
  %3227 = vmatprep.subr.bf16.mxu0 0
  %3228 = vmatpush2.bf16.msra.mxu0 %v2519
  %3229 = vmatprep.subr.bf16.mxu0 0
  %3230 = vmatpush2.bf16.msra.mxu0 %v2518
  %3231 = vmatprep.mubr.bf16.mxu0 %v1021
  %3232 = vmatmul.mubr.bf16.gmra.mxu0 %v1020
  %v3233 = vpop.f32.mrf.mxu0
  %v3234 = vadd.f32 %v3185, %v3233
  %v3235 = vpop.f32.mrf.mxu0
  %v3236 = vpop.f32.mrf.mxu0
  %v3237 = vadd.f32 %v3188, %v3236
  %v3238 = vpop.f32.mrf.mxu0
  %3239 = vmatprep.mubr.bf16.mxu0 %v1062
  %3240 = vmatmul.mubr.bf16.gmra.mxu0 %v1061
  %v3241 = vpop.f32.mrf.mxu0
  %v3242 = vadd.f32 %v3193, %v3241
  %v3243 = vpop.f32.mrf.mxu0
  %v3244 = vpop.f32.mrf.mxu0
  %v3245 = vadd.f32 %v3196, %v3244
  %v3246 = vpop.f32.mrf.mxu0
  %3247 = vdwg.mxu0
  %3248 = vmatprep.subr.bf16.mxu0 0
  %3249 = vmatpush1.bf16.msra.mxu0 %v2533
  %3250 = vmatprep.subr.bf16.mxu0 0
  %3251 = vmatpush1.bf16.msra.mxu0 %v2532
  %3252 = vmatprep.subr.bf16.mxu0 0
  %3253 = vmatpush1.bf16.msra.mxu0 %v2531
  %3254 = vmatprep.subr.bf16.mxu0 0
  %3255 = vmatpush1.bf16.msra.mxu0 %v2530
  %3256 = vmatprep.subr.bf16.mxu0 0
  %3257 = vmatpush1.bf16.msra.mxu0 %v2529
  %3258 = vmatprep.subr.bf16.mxu0 0
  %3259 = vmatpush1.bf16.msra.mxu0 %v2528
  %3260 = vmatprep.subr.bf16.mxu0 0
  %3261 = vmatpush1.bf16.msra.mxu0 %v2527
  %3262 = vmatprep.subr.bf16.mxu0 0
  %3263 = vmatpush1.bf16.msra.mxu0 %v2526
  %3264 = vmatprep.subr.bf16.mxu0 0
  %3265 = vmatpush2.bf16.msra.mxu0 %v2541
  %3266 = vmatprep.subr.bf16.mxu0 0
  %3267 = vmatpush2.bf16.msra.mxu0 %v2540
  %3268 = vmatprep.subr.bf16.mxu0 0
  %3269 = vmatpush2.bf16.msra.mxu0 %v2539
  %3270 = vmatprep.subr.bf16.mxu0 0
  %3271 = vmatpush2.bf16.msra.mxu0 %v2538
  %3272 = vmatprep.subr.bf16.mxu0 0
  %3273 = vmatpush2.bf16.msra.mxu0 %v2537
  %3274 = vmatprep.subr.bf16.mxu0 0
  %3275 = vmatpush2.bf16.msra.mxu0 %v2536
  %3276 = vmatprep.subr.bf16.mxu0 0
  %3277 = vmatpush2.bf16.msra.mxu0 %v2535
  %3278 = vmatprep.subr.bf16.mxu0 0
  %3279 = vmatpush2.bf16.msra.mxu0 %v2534
  %3280 = vmatprep.mubr.bf16.mxu0 %v1023
  %3281 = vmatmul.mubr.bf16.gmra.mxu0 %v1022
  %v3282 = vpop.f32.mrf.mxu0
  %v3283 = vadd.f32 %v3234, %v3282
  %v3284 = vpop.f32.mrf.mxu0
  %v3285 = vpop.f32.mrf.mxu0
  %v3286 = vadd.f32 %v3237, %v3285
  %v3287 = vpop.f32.mrf.mxu0
  %3288 = vmatprep.mubr.bf16.mxu0 %v1064
  %3289 = vmatmul.mubr.bf16.gmra.mxu0 %v1063
  %v3290 = vpop.f32.mrf.mxu0
  %v3291 = vadd.f32 %v3242, %v3290
  %v3292 = vpop.f32.mrf.mxu0
  %v3293 = vpop.f32.mrf.mxu0
  %v3294 = vadd.f32 %v3245, %v3293
  %v3295 = vpop.f32.mrf.mxu0
  %3296 = vdwg.mxu0
  %3297 = vmatprep.subr.bf16.mxu0 0
  %3298 = vmatpush1.bf16.msra.mxu0 %v2549
  %3299 = vmatprep.subr.bf16.mxu0 0
  %3300 = vmatpush1.bf16.msra.mxu0 %v2548
  %3301 = vmatprep.subr.bf16.mxu0 0
  %3302 = vmatpush1.bf16.msra.mxu0 %v2547
  %3303 = vmatprep.subr.bf16.mxu0 0
  %3304 = vmatpush1.bf16.msra.mxu0 %v2546
  %3305 = vmatprep.subr.bf16.mxu0 0
  %3306 = vmatpush1.bf16.msra.mxu0 %v2545
  %3307 = vmatprep.subr.bf16.mxu0 0
  %3308 = vmatpush1.bf16.msra.mxu0 %v2544
  %3309 = vmatprep.subr.bf16.mxu0 0
  %3310 = vmatpush1.bf16.msra.mxu0 %v2543
  %3311 = vmatprep.subr.bf16.mxu0 0
  %3312 = vmatpush1.bf16.msra.mxu0 %v2542
  %3313 = vmatprep.subr.bf16.mxu0 0
  %3314 = vmatpush2.bf16.msra.mxu0 %v2557
  %3315 = vmatprep.subr.bf16.mxu0 0
  %3316 = vmatpush2.bf16.msra.mxu0 %v2556
  %3317 = vmatprep.subr.bf16.mxu0 0
  %3318 = vmatpush2.bf16.msra.mxu0 %v2555
  %3319 = vmatprep.subr.bf16.mxu0 0
  %3320 = vmatpush2.bf16.msra.mxu0 %v2554
  %3321 = vmatprep.subr.bf16.mxu0 0
  %3322 = vmatpush2.bf16.msra.mxu0 %v2553
  %3323 = vmatprep.subr.bf16.mxu0 0
  %3324 = vmatpush2.bf16.msra.mxu0 %v2552
  %3325 = vmatprep.subr.bf16.mxu0 0
  %3326 = vmatpush2.bf16.msra.mxu0 %v2551
  %3327 = vmatprep.subr.bf16.mxu0 0
  %3328 = vmatpush2.bf16.msra.mxu0 %v2550
  %3329 = vmatprep.mubr.bf16.mxu0 %v1025
  %3330 = vmatmul.mubr.bf16.gmra.mxu0 %v1024
  %v3331 = vpop.f32.mrf.mxu0
  %v3332 = vadd.f32 %v3283, %v3331
  %v3333 = vpop.f32.mrf.mxu0
  %v3334 = vpop.f32.mrf.mxu0
  %v3335 = vadd.f32 %v3286, %v3334
  %v3336 = vpop.f32.mrf.mxu0
  %3337 = vmatprep.mubr.bf16.mxu0 %v1066
  %3338 = vmatmul.mubr.bf16.gmra.mxu0 %v1065
  %v3339 = vpop.f32.mrf.mxu0
  %v3340 = vadd.f32 %v3291, %v3339
  %v3341 = vpop.f32.mrf.mxu0
  %v3342 = vpop.f32.mrf.mxu0
  %v3343 = vadd.f32 %v3294, %v3342
  %v3344 = vpop.f32.mrf.mxu0
  %3345 = vdwg.mxu0
  %3346 = vmatprep.subr.bf16.mxu0 0
  %3347 = vmatpush1.bf16.msra.mxu0 %v2565
  %3348 = vmatprep.subr.bf16.mxu0 0
  %3349 = vmatpush1.bf16.msra.mxu0 %v2564
  %3350 = vmatprep.subr.bf16.mxu0 0
  %3351 = vmatpush1.bf16.msra.mxu0 %v2563
  %3352 = vmatprep.subr.bf16.mxu0 0
  %3353 = vmatpush1.bf16.msra.mxu0 %v2562
  %3354 = vmatprep.subr.bf16.mxu0 0
  %3355 = vmatpush1.bf16.msra.mxu0 %v2561
  %3356 = vmatprep.subr.bf16.mxu0 0
  %3357 = vmatpush1.bf16.msra.mxu0 %v2560
  %3358 = vmatprep.subr.bf16.mxu0 0
  %3359 = vmatpush1.bf16.msra.mxu0 %v2559
  %3360 = vmatprep.subr.bf16.mxu0 0
  %3361 = vmatpush1.bf16.msra.mxu0 %v2558
  %3362 = vmatprep.subr.bf16.mxu0 0
  %3363 = vmatpush2.bf16.msra.mxu0 %v2573
  %3364 = vmatprep.subr.bf16.mxu0 0
  %3365 = vmatpush2.bf16.msra.mxu0 %v2572
  %3366 = vmatprep.subr.bf16.mxu0 0
  %3367 = vmatpush2.bf16.msra.mxu0 %v2571
  %3368 = vmatprep.subr.bf16.mxu0 0
  %3369 = vmatpush2.bf16.msra.mxu0 %v2570
  %3370 = vmatprep.subr.bf16.mxu0 0
  %3371 = vmatpush2.bf16.msra.mxu0 %v2569
  %3372 = vmatprep.subr.bf16.mxu0 0
  %3373 = vmatpush2.bf16.msra.mxu0 %v2568
  %3374 = vmatprep.subr.bf16.mxu0 0
  %3375 = vmatpush2.bf16.msra.mxu0 %v2567
  %3376 = vmatprep.subr.bf16.mxu0 0
  %3377 = vmatpush2.bf16.msra.mxu0 %v2566
  %3378 = vmatprep.mubr.bf16.mxu0 %v1027
  %3379 = vmatmul.mubr.bf16.gmra.mxu0 %v1026
  %v3380 = vpop.f32.mrf.mxu0
  %v3381 = vadd.f32 %v3332, %v3380
  %v3382 = vpop.f32.mrf.mxu0
  %v3383 = vpop.f32.mrf.mxu0
  %v3384 = vadd.f32 %v3335, %v3383
  %v3385 = vpop.f32.mrf.mxu0
  %3386 = vmatprep.mubr.bf16.mxu0 %v1068
  %3387 = vmatmul.mubr.bf16.gmra.mxu0 %v1067
  %v3388 = vpop.f32.mrf.mxu0
  %v3389 = vadd.f32 %v3340, %v3388
  %v3390 = vpop.f32.mrf.mxu0
  %v3391 = vpop.f32.mrf.mxu0
  %v3392 = vadd.f32 %v3343, %v3391
  %v3393 = vpop.f32.mrf.mxu0
  %3394 = vdwg.mxu0
  %3395 = vmatprep.subr.bf16.mxu0 0
  %3396 = vmatpush1.bf16.msra.mxu0 %v2581
  %3397 = vmatprep.subr.bf16.mxu0 0
  %3398 = vmatpush1.bf16.msra.mxu0 %v2580
  %3399 = vmatprep.subr.bf16.mxu0 0
  %3400 = vmatpush1.bf16.msra.mxu0 %v2579
  %3401 = vmatprep.subr.bf16.mxu0 0
  %3402 = vmatpush1.bf16.msra.mxu0 %v2578
  %3403 = vmatprep.subr.bf16.mxu0 0
  %3404 = vmatpush1.bf16.msra.mxu0 %v2577
  %3405 = vmatprep.subr.bf16.mxu0 0
  %3406 = vmatpush1.bf16.msra.mxu0 %v2576
  %3407 = vmatprep.subr.bf16.mxu0 0
  %3408 = vmatpush1.bf16.msra.mxu0 %v2575
  %3409 = vmatprep.subr.bf16.mxu0 0
  %3410 = vmatpush1.bf16.msra.mxu0 %v2574
  %3411 = vmatprep.subr.bf16.mxu0 0
  %3412 = vmatpush2.bf16.msra.mxu0 %v2589
  %3413 = vmatprep.subr.bf16.mxu0 0
  %3414 = vmatpush2.bf16.msra.mxu0 %v2588
  %3415 = vmatprep.subr.bf16.mxu0 0
  %3416 = vmatpush2.bf16.msra.mxu0 %v2587
  %3417 = vmatprep.subr.bf16.mxu0 0
  %3418 = vmatpush2.bf16.msra.mxu0 %v2586
  %3419 = vmatprep.subr.bf16.mxu0 0
  %3420 = vmatpush2.bf16.msra.mxu0 %v2585
  %3421 = vmatprep.subr.bf16.mxu0 0
  %3422 = vmatpush2.bf16.msra.mxu0 %v2584
  %3423 = vmatprep.subr.bf16.mxu0 0
  %3424 = vmatpush2.bf16.msra.mxu0 %v2583
  %3425 = vmatprep.subr.bf16.mxu0 0
  %3426 = vmatpush2.bf16.msra.mxu0 %v2582
  %3427 = vmatprep.mubr.bf16.mxu0 %v1029
  %3428 = vmatmul.mubr.bf16.gmra.mxu0 %v1028
  %v3429 = vpop.f32.mrf.mxu0
  %v3430 = vadd.f32 %v3381, %v3429
  %v3431 = vpop.f32.mrf.mxu0
  %v3432 = vpop.f32.mrf.mxu0
  %v3433 = vadd.f32 %v3384, %v3432
  %v3434 = vpop.f32.mrf.mxu0
  %3435 = vmatprep.mubr.bf16.mxu0 %v1070
  %3436 = vmatmul.mubr.bf16.gmra.mxu0 %v1069
  %v3437 = vpop.f32.mrf.mxu0
  %v3438 = vadd.f32 %v3389, %v3437
  %v3439 = vpop.f32.mrf.mxu0
  %v3440 = vpop.f32.mrf.mxu0
  %v3441 = vadd.f32 %v3392, %v3440
  %v3442 = vpop.f32.mrf.mxu0
  %3443 = vdwg.mxu0
  %3444 = vmatprep.subr.bf16.mxu0 0
  %3445 = vmatpush1.bf16.msra.mxu0 %v2597
  %3446 = vmatprep.subr.bf16.mxu0 0
  %3447 = vmatpush1.bf16.msra.mxu0 %v2596
  %3448 = vmatprep.subr.bf16.mxu0 0
  %3449 = vmatpush1.bf16.msra.mxu0 %v2595
  %3450 = vmatprep.subr.bf16.mxu0 0
  %3451 = vmatpush1.bf16.msra.mxu0 %v2594
  %3452 = vmatprep.subr.bf16.mxu0 0
  %3453 = vmatpush1.bf16.msra.mxu0 %v2593
  %3454 = vmatprep.subr.bf16.mxu0 0
  %3455 = vmatpush1.bf16.msra.mxu0 %v2592
  %3456 = vmatprep.subr.bf16.mxu0 0
  %3457 = vmatpush1.bf16.msra.mxu0 %v2591
  %3458 = vmatprep.subr.bf16.mxu0 0
  %3459 = vmatpush1.bf16.msra.mxu0 %v2590
  %3460 = vmatprep.subr.bf16.mxu0 0
  %3461 = vmatpush2.bf16.msra.mxu0 %v2605
  %3462 = vmatprep.subr.bf16.mxu0 0
  %3463 = vmatpush2.bf16.msra.mxu0 %v2604
  %3464 = vmatprep.subr.bf16.mxu0 0
  %3465 = vmatpush2.bf16.msra.mxu0 %v2603
  %3466 = vmatprep.subr.bf16.mxu0 0
  %3467 = vmatpush2.bf16.msra.mxu0 %v2602
  %3468 = vmatprep.subr.bf16.mxu0 0
  %3469 = vmatpush2.bf16.msra.mxu0 %v2601
  %3470 = vmatprep.subr.bf16.mxu0 0
  %3471 = vmatpush2.bf16.msra.mxu0 %v2600
  %3472 = vmatprep.subr.bf16.mxu0 0
  %3473 = vmatpush2.bf16.msra.mxu0 %v2599
  %3474 = vmatprep.subr.bf16.mxu0 0
  %3475 = vmatpush2.bf16.msra.mxu0 %v2598
  %3476 = vmatprep.mubr.bf16.mxu0 %v1031
  %3477 = vmatmul.mubr.bf16.gmra.mxu0 %v1030
  %v3478 = vpop.f32.mrf.mxu0
  %v3479 = vadd.f32 %v3430, %v3478
  %v3480 = vpop.f32.mrf.mxu0
  %v3481 = vpop.f32.mrf.mxu0
  %v3482 = vadd.f32 %v3433, %v3481
  %v3483 = vpop.f32.mrf.mxu0
  %3484 = vmatprep.mubr.bf16.mxu0 %v1072
  %3485 = vmatmul.mubr.bf16.gmra.mxu0 %v1071
  %v3486 = vpop.f32.mrf.mxu0
  %v3487 = vadd.f32 %v3438, %v3486
  %v3488 = vpop.f32.mrf.mxu0
  %v3489 = vpop.f32.mrf.mxu0
  %v3490 = vadd.f32 %v3441, %v3489
  %v3491 = vpop.f32.mrf.mxu0
  %3492 = vdwg.mxu0
  %3493 = vmatprep.subr.bf16.mxu0 0
  %3494 = vmatpush1.bf16.msra.mxu0 %v2613
  %3495 = vmatprep.subr.bf16.mxu0 0
  %3496 = vmatpush1.bf16.msra.mxu0 %v2612
  %3497 = vmatprep.subr.bf16.mxu0 0
  %3498 = vmatpush1.bf16.msra.mxu0 %v2611
  %3499 = vmatprep.subr.bf16.mxu0 0
  %3500 = vmatpush1.bf16.msra.mxu0 %v2610
  %3501 = vmatprep.subr.bf16.mxu0 0
  %3502 = vmatpush1.bf16.msra.mxu0 %v2609
  %3503 = vmatprep.subr.bf16.mxu0 0
  %3504 = vmatpush1.bf16.msra.mxu0 %v2608
  %3505 = vmatprep.subr.bf16.mxu0 0
  %3506 = vmatpush1.bf16.msra.mxu0 %v2607
  %3507 = vmatprep.subr.bf16.mxu0 0
  %3508 = vmatpush1.bf16.msra.mxu0 %v2606
  %3509 = vmatprep.subr.bf16.mxu0 0
  %3510 = vmatpush2.bf16.msra.mxu0 %v2621
  %3511 = vmatprep.subr.bf16.mxu0 0
  %3512 = vmatpush2.bf16.msra.mxu0 %v2620
  %3513 = vmatprep.subr.bf16.mxu0 0
  %3514 = vmatpush2.bf16.msra.mxu0 %v2619
  %3515 = vmatprep.subr.bf16.mxu0 0
  %3516 = vmatpush2.bf16.msra.mxu0 %v2618
  %3517 = vmatprep.subr.bf16.mxu0 0
  %3518 = vmatpush2.bf16.msra.mxu0 %v2617
  %3519 = vmatprep.subr.bf16.mxu0 0
  %3520 = vmatpush2.bf16.msra.mxu0 %v2616
  %3521 = vmatprep.subr.bf16.mxu0 0
  %3522 = vmatpush2.bf16.msra.mxu0 %v2615
  %3523 = vmatprep.subr.bf16.mxu0 0
  %3524 = vmatpush2.bf16.msra.mxu0 %v2614
  %3525 = vmatprep.mubr.bf16.mxu0 %v1033
  %3526 = vmatmul.mubr.bf16.gmra.mxu0 %v1032
  %v3527 = vpop.f32.mrf.mxu0
  %v3528 = vadd.f32 %v3479, %v3527
  %v3529 = vpop.f32.mrf.mxu0
  %v3530 = vpop.f32.mrf.mxu0
  %v3531 = vadd.f32 %v3482, %v3530
  %v3532 = vpop.f32.mrf.mxu0
  %3533 = vmatprep.mubr.bf16.mxu0 %v1074
  %3534 = vmatmul.mubr.bf16.gmra.mxu0 %v1073
  %v3535 = vpop.f32.mrf.mxu0
  %v3536 = vadd.f32 %v3487, %v3535
  %v3537 = vpop.f32.mrf.mxu0
  %v3538 = vpop.f32.mrf.mxu0
  %v3539 = vadd.f32 %v3490, %v3538
  %v3540 = vpop.f32.mrf.mxu0
  %3541 = vdwg.mxu0
  %3542 = vmatprep.subr.bf16.mxu0 0
  %3543 = vmatpush1.bf16.msra.mxu0 %v2629
  %3544 = vmatprep.subr.bf16.mxu0 0
  %3545 = vmatpush1.bf16.msra.mxu0 %v2628
  %3546 = vmatprep.subr.bf16.mxu0 0
  %3547 = vmatpush1.bf16.msra.mxu0 %v2627
  %3548 = vmatprep.subr.bf16.mxu0 0
  %3549 = vmatpush1.bf16.msra.mxu0 %v2626
  %3550 = vmatprep.subr.bf16.mxu0 0
  %3551 = vmatpush1.bf16.msra.mxu0 %v2625
  %3552 = vmatprep.subr.bf16.mxu0 0
  %3553 = vmatpush1.bf16.msra.mxu0 %v2624
  %3554 = vmatprep.subr.bf16.mxu0 0
  %3555 = vmatpush1.bf16.msra.mxu0 %v2623
  %3556 = vmatprep.subr.bf16.mxu0 0
  %3557 = vmatpush1.bf16.msra.mxu0 %v2622
  %3558 = vmatprep.subr.bf16.mxu0 0
  %3559 = vmatpush2.bf16.msra.mxu0 %v2637
  %3560 = vmatprep.subr.bf16.mxu0 0
  %3561 = vmatpush2.bf16.msra.mxu0 %v2636
  %3562 = vmatprep.subr.bf16.mxu0 0
  %3563 = vmatpush2.bf16.msra.mxu0 %v2635
  %3564 = vmatprep.subr.bf16.mxu0 0
  %3565 = vmatpush2.bf16.msra.mxu0 %v2634
  %3566 = vmatprep.subr.bf16.mxu0 0
  %3567 = vmatpush2.bf16.msra.mxu0 %v2633
  %3568 = vmatprep.subr.bf16.mxu0 0
  %3569 = vmatpush2.bf16.msra.mxu0 %v2632
  %3570 = vmatprep.subr.bf16.mxu0 0
  %3571 = vmatpush2.bf16.msra.mxu0 %v2631
  %3572 = vmatprep.subr.bf16.mxu0 0
  %3573 = vmatpush2.bf16.msra.mxu0 %v2630
  %3574 = vmatprep.mubr.bf16.mxu0 %v1035
  %3575 = vmatmul.mubr.bf16.gmra.mxu0 %v1034
  %v3576 = vpop.f32.mrf.mxu0
  %v3577 = vadd.f32 %v3528, %v3576
  %v3578 = vpop.f32.mrf.mxu0
  %v3579 = vpop.f32.mrf.mxu0
  %v3580 = vadd.f32 %v3531, %v3579
  %v3581 = vpop.f32.mrf.mxu0
  %3582 = vmatprep.mubr.bf16.mxu0 %v1076
  %3583 = vmatmul.mubr.bf16.gmra.mxu0 %v1075
  %v3584 = vpop.f32.mrf.mxu0
  %v3585 = vadd.f32 %v3536, %v3584
  %v3586 = vpop.f32.mrf.mxu0
  %v3587 = vpop.f32.mrf.mxu0
  %v3588 = vadd.f32 %v3539, %v3587
  %v3589 = vpop.f32.mrf.mxu0
  %3590 = vdwg.mxu0
  %3591 = vmatprep.subr.bf16.mxu0 0
  %3592 = vmatpush1.bf16.msra.mxu0 %v2645
  %3593 = vmatprep.subr.bf16.mxu0 0
  %3594 = vmatpush1.bf16.msra.mxu0 %v2644
  %3595 = vmatprep.subr.bf16.mxu0 0
  %3596 = vmatpush1.bf16.msra.mxu0 %v2643
  %3597 = vmatprep.subr.bf16.mxu0 0
  %3598 = vmatpush1.bf16.msra.mxu0 %v2642
  %3599 = vmatprep.subr.bf16.mxu0 0
  %3600 = vmatpush1.bf16.msra.mxu0 %v2641
  %3601 = vmatprep.subr.bf16.mxu0 0
  %3602 = vmatpush1.bf16.msra.mxu0 %v2640
  %3603 = vmatprep.subr.bf16.mxu0 0
  %3604 = vmatpush1.bf16.msra.mxu0 %v2639
  %3605 = vmatprep.subr.bf16.mxu0 0
  %3606 = vmatpush1.bf16.msra.mxu0 %v2638
  %3607 = vmatprep.subr.bf16.mxu0 0
  %3608 = vmatpush2.bf16.msra.mxu0 %v2653
  %3609 = vmatprep.subr.bf16.mxu0 0
  %3610 = vmatpush2.bf16.msra.mxu0 %v2652
  %3611 = vmatprep.subr.bf16.mxu0 0
  %3612 = vmatpush2.bf16.msra.mxu0 %v2651
  %3613 = vmatprep.subr.bf16.mxu0 0
  %3614 = vmatpush2.bf16.msra.mxu0 %v2650
  %3615 = vmatprep.subr.bf16.mxu0 0
  %3616 = vmatpush2.bf16.msra.mxu0 %v2649
  %3617 = vmatprep.subr.bf16.mxu0 0
  %3618 = vmatpush2.bf16.msra.mxu0 %v2648
  %3619 = vmatprep.subr.bf16.mxu0 0
  %3620 = vmatpush2.bf16.msra.mxu0 %v2647
  %3621 = vmatprep.subr.bf16.mxu0 0
  %3622 = vmatpush2.bf16.msra.mxu0 %v2646
  %3623 = vmatprep.mubr.bf16.mxu0 %v1037
  %3624 = vmatmul.mubr.bf16.gmra.mxu0 %v1036
  %v3625 = vpop.f32.mrf.mxu0
  %v3626 = vadd.f32 %v3577, %v3625
  %v3627 = vpop.f32.mrf.mxu0
  %v3628 = vpop.f32.mrf.mxu0
  %v3629 = vadd.f32 %v3580, %v3628
  %v3630 = vpop.f32.mrf.mxu0
  %3631 = vmatprep.mubr.bf16.mxu0 %v1078
  %3632 = vmatmul.mubr.bf16.gmra.mxu0 %v1077
  %v3633 = vpop.f32.mrf.mxu0
  %v3634 = vadd.f32 %v3585, %v3633
  %v3635 = vpop.f32.mrf.mxu0
  %v3636 = vpop.f32.mrf.mxu0
  %v3637 = vadd.f32 %v3588, %v3636
  %v3638 = vpop.f32.mrf.mxu0
  %3639 = vdwg.mxu0
  %3640 = vmatprep.subr.bf16.mxu0 0
  %3641 = vmatpush1.bf16.msra.mxu0 %v2661
  %3642 = vmatprep.subr.bf16.mxu0 0
  %3643 = vmatpush1.bf16.msra.mxu0 %v2660
  %3644 = vmatprep.subr.bf16.mxu0 0
  %3645 = vmatpush1.bf16.msra.mxu0 %v2659
  %3646 = vmatprep.subr.bf16.mxu0 0
  %3647 = vmatpush1.bf16.msra.mxu0 %v2658
  %3648 = vmatprep.subr.bf16.mxu0 0
  %3649 = vmatpush1.bf16.msra.mxu0 %v2657
  %3650 = vmatprep.subr.bf16.mxu0 0
  %3651 = vmatpush1.bf16.msra.mxu0 %v2656
  %3652 = vmatprep.subr.bf16.mxu0 0
  %3653 = vmatpush1.bf16.msra.mxu0 %v2655
  %3654 = vmatprep.subr.bf16.mxu0 0
  %3655 = vmatpush1.bf16.msra.mxu0 %v2654
  %3656 = vmatprep.subr.bf16.mxu0 0
  %3657 = vmatpush2.bf16.msra.mxu0 %v2669
  %3658 = vmatprep.subr.bf16.mxu0 0
  %3659 = vmatpush2.bf16.msra.mxu0 %v2668
  %3660 = vmatprep.subr.bf16.mxu0 0
  %3661 = vmatpush2.bf16.msra.mxu0 %v2667
  %3662 = vmatprep.subr.bf16.mxu0 0
  %3663 = vmatpush2.bf16.msra.mxu0 %v2666
  %3664 = vmatprep.subr.bf16.mxu0 0
  %3665 = vmatpush2.bf16.msra.mxu0 %v2665
  %3666 = vmatprep.subr.bf16.mxu0 0
  %3667 = vmatpush2.bf16.msra.mxu0 %v2664
  %3668 = vmatprep.subr.bf16.mxu0 0
  %3669 = vmatpush2.bf16.msra.mxu0 %v2663
  %3670 = vmatprep.subr.bf16.mxu0 0
  %3671 = vmatpush2.bf16.msra.mxu0 %v2662
  %3672 = vmatprep.mubr.bf16.mxu0 %v1039
  %3673 = vmatmul.mubr.bf16.gmra.mxu0 %v1038
  %v3674 = vpop.f32.mrf.mxu0
  %v3675 = vadd.f32 %v3626, %v3674
  %v3676 = vpop.f32.mrf.mxu0
  %v3677 = vpop.f32.mrf.mxu0
  %v3678 = vadd.f32 %v3629, %v3677
  %v3679 = vpop.f32.mrf.mxu0
  %3680 = vmatprep.mubr.bf16.mxu0 %v1080
  %3681 = vmatmul.mubr.bf16.gmra.mxu0 %v1079
  %v3682 = vpop.f32.mrf.mxu0
  %v3683 = vadd.f32 %v3634, %v3682
  %v3684 = vpop.f32.mrf.mxu0
  %v3685 = vpop.f32.mrf.mxu0
  %v3686 = vadd.f32 %v3637, %v3685
  %v3687 = vpop.f32.mrf.mxu0
  %3688 = vdwg.mxu0
  %3689 = vmatprep.subr.bf16.mxu0 0
  %3690 = vmatpush1.bf16.msra.mxu0 %v2677
  %3691 = vmatprep.subr.bf16.mxu0 0
  %3692 = vmatpush1.bf16.msra.mxu0 %v2676
  %3693 = vmatprep.subr.bf16.mxu0 0
  %3694 = vmatpush1.bf16.msra.mxu0 %v2675
  %3695 = vmatprep.subr.bf16.mxu0 0
  %3696 = vmatpush1.bf16.msra.mxu0 %v2674
  %3697 = vmatprep.subr.bf16.mxu0 0
  %3698 = vmatpush1.bf16.msra.mxu0 %v2673
  %3699 = vmatprep.subr.bf16.mxu0 0
  %3700 = vmatpush1.bf16.msra.mxu0 %v2672
  %3701 = vmatprep.subr.bf16.mxu0 0
  %3702 = vmatpush1.bf16.msra.mxu0 %v2671
  %3703 = vmatprep.subr.bf16.mxu0 0
  %3704 = vmatpush1.bf16.msra.mxu0 %v2670
  %3705 = vmatprep.subr.bf16.mxu0 0
  %3706 = vmatpush2.bf16.msra.mxu0 %v2685
  %3707 = vmatprep.subr.bf16.mxu0 0
  %3708 = vmatpush2.bf16.msra.mxu0 %v2684
  %3709 = vmatprep.subr.bf16.mxu0 0
  %3710 = vmatpush2.bf16.msra.mxu0 %v2683
  %3711 = vmatprep.subr.bf16.mxu0 0
  %3712 = vmatpush2.bf16.msra.mxu0 %v2682
  %3713 = vmatprep.subr.bf16.mxu0 0
  %3714 = vmatpush2.bf16.msra.mxu0 %v2681
  %3715 = vmatprep.subr.bf16.mxu0 0
  %3716 = vmatpush2.bf16.msra.mxu0 %v2680
  %3717 = vmatprep.subr.bf16.mxu0 0
  %3718 = vmatpush2.bf16.msra.mxu0 %v2679
  %3719 = vmatprep.subr.bf16.mxu0 0
  %3720 = vmatpush2.bf16.msra.mxu0 %v2678
  %3721 = vmatprep.mubr.bf16.mxu0 %v1041
  %3722 = vmatmul.mubr.bf16.gmra.mxu0 %v1040
  %v3723 = vpop.f32.mrf.mxu0
  %v3724 = vadd.f32 %v3675, %v3723
  %v3725 = vpop.f32.mrf.mxu0
  %v3726 = vpop.f32.mrf.mxu0
  %v3727 = vadd.f32 %v3678, %v3726
  %v3728 = vpop.f32.mrf.mxu0
  %3729 = vmatprep.mubr.bf16.mxu0 %v1082
  %3730 = vmatmul.mubr.bf16.gmra.mxu0 %v1081
  %v3731 = vpop.f32.mrf.mxu0
  %v3732 = vadd.f32 %v3683, %v3731
  %v3733 = vpop.f32.mrf.mxu0
  %v3734 = vpop.f32.mrf.mxu0
  %v3735 = vadd.f32 %v3686, %v3734
  %v3736 = vpop.f32.mrf.mxu0
  %3737 = vdwg.mxu0
  %3738 = vmatprep.subr.bf16.mxu0 0
  %3739 = vmatpush1.bf16.msra.mxu0 %v2693
  %3740 = vmatprep.subr.bf16.mxu0 0
  %3741 = vmatpush1.bf16.msra.mxu0 %v2692
  %3742 = vmatprep.subr.bf16.mxu0 0
  %3743 = vmatpush1.bf16.msra.mxu0 %v2691
  %3744 = vmatprep.subr.bf16.mxu0 0
  %3745 = vmatpush1.bf16.msra.mxu0 %v2690
  %3746 = vmatprep.subr.bf16.mxu0 0
  %3747 = vmatpush1.bf16.msra.mxu0 %v2689
  %3748 = vmatprep.subr.bf16.mxu0 0
  %3749 = vmatpush1.bf16.msra.mxu0 %v2688
  %3750 = vmatprep.subr.bf16.mxu0 0
  %3751 = vmatpush1.bf16.msra.mxu0 %v2687
  %3752 = vmatprep.subr.bf16.mxu0 0
  %3753 = vmatpush1.bf16.msra.mxu0 %v2686
  %3754 = vmatprep.subr.bf16.mxu0 0
  %3755 = vmatpush2.bf16.msra.mxu0 %v2701
  %3756 = vmatprep.subr.bf16.mxu0 0
  %3757 = vmatpush2.bf16.msra.mxu0 %v2700
  %3758 = vmatprep.subr.bf16.mxu0 0
  %3759 = vmatpush2.bf16.msra.mxu0 %v2699
  %3760 = vmatprep.subr.bf16.mxu0 0
  %3761 = vmatpush2.bf16.msra.mxu0 %v2698
  %3762 = vmatprep.subr.bf16.mxu0 0
  %3763 = vmatpush2.bf16.msra.mxu0 %v2697
  %3764 = vmatprep.subr.bf16.mxu0 0
  %3765 = vmatpush2.bf16.msra.mxu0 %v2696
  %3766 = vmatprep.subr.bf16.mxu0 0
  %3767 = vmatpush2.bf16.msra.mxu0 %v2695
  %3768 = vmatprep.subr.bf16.mxu0 0
  %3769 = vmatpush2.bf16.msra.mxu0 %v2694
  %3770 = vmatprep.mubr.bf16.mxu0 %v1043
  %3771 = vmatmul.mubr.bf16.gmra.mxu0 %v1042
  %v3772 = vpop.f32.mrf.mxu0
  %v3773 = vadd.f32 %v3724, %v3772
  %v3774 = vpop.f32.mrf.mxu0
  %v3775 = vpop.f32.mrf.mxu0
  %v3776 = vadd.f32 %v3727, %v3775
  %v3777 = vpop.f32.mrf.mxu0
  %3778 = vmatprep.mubr.bf16.mxu0 %v1084
  %3779 = vmatmul.mubr.bf16.gmra.mxu0 %v1083
  %v3780 = vpop.f32.mrf.mxu0
  %v3781 = vadd.f32 %v3732, %v3780
  %v3782 = vpop.f32.mrf.mxu0
  %v3783 = vpop.f32.mrf.mxu0
  %v3784 = vadd.f32 %v3735, %v3783
  %v3785 = vpop.f32.mrf.mxu0
  %3786 = vdwg.mxu0
  %3787 = vmatprep.subr.bf16.mxu0 0
  %3788 = vmatpush1.bf16.msra.mxu0 %v2709
  %3789 = vmatprep.subr.bf16.mxu0 0
  %3790 = vmatpush1.bf16.msra.mxu0 %v2708
  %3791 = vmatprep.subr.bf16.mxu0 0
  %3792 = vmatpush1.bf16.msra.mxu0 %v2707
  %3793 = vmatprep.subr.bf16.mxu0 0
  %3794 = vmatpush1.bf16.msra.mxu0 %v2706
  %3795 = vmatprep.subr.bf16.mxu0 0
  %3796 = vmatpush1.bf16.msra.mxu0 %v2705
  %3797 = vmatprep.subr.bf16.mxu0 0
  %3798 = vmatpush1.bf16.msra.mxu0 %v2704
  %3799 = vmatprep.subr.bf16.mxu0 0
  %3800 = vmatpush1.bf16.msra.mxu0 %v2703
  %3801 = vmatprep.subr.bf16.mxu0 0
  %3802 = vmatpush1.bf16.msra.mxu0 %v2702
  %3803 = vmatprep.subr.bf16.mxu0 0
  %3804 = vmatpush2.bf16.msra.mxu0 %v2717
  %3805 = vmatprep.subr.bf16.mxu0 0
  %3806 = vmatpush2.bf16.msra.mxu0 %v2716
  %3807 = vmatprep.subr.bf16.mxu0 0
  %3808 = vmatpush2.bf16.msra.mxu0 %v2715
  %3809 = vmatprep.subr.bf16.mxu0 0
  %3810 = vmatpush2.bf16.msra.mxu0 %v2714
  %3811 = vmatprep.subr.bf16.mxu0 0
  %3812 = vmatpush2.bf16.msra.mxu0 %v2713
  %3813 = vmatprep.subr.bf16.mxu0 0
  %3814 = vmatpush2.bf16.msra.mxu0 %v2712
  %3815 = vmatprep.subr.bf16.mxu0 0
  %3816 = vmatpush2.bf16.msra.mxu0 %v2711
  %3817 = vmatprep.subr.bf16.mxu0 0
  %3818 = vmatpush2.bf16.msra.mxu0 %v2710
  %3819 = vmatprep.mubr.bf16.mxu0 %v1045
  %3820 = vmatmul.mubr.bf16.gmra.mxu0 %v1044
  %v3821 = vpop.f32.mrf.mxu0
  %v3822 = vadd.f32 %v3773, %v3821
  %v3823 = vpop.f32.mrf.mxu0
  %v3824 = vpop.f32.mrf.mxu0
  %v3825 = vadd.f32 %v3776, %v3824
  %v3826 = vpop.f32.mrf.mxu0
  %3827 = vmatprep.mubr.bf16.mxu0 %v1086
  %3828 = vmatmul.mubr.bf16.gmra.mxu0 %v1085
  %v3829 = vpop.f32.mrf.mxu0
  %v3830 = vadd.f32 %v3781, %v3829
  %v3831 = vpop.f32.mrf.mxu0
  %v3832 = vpop.f32.mrf.mxu0
  %v3833 = vadd.f32 %v3784, %v3832
  %v3834 = vpop.f32.mrf.mxu0
  %3835 = vdwg.mxu0
  %3836 = vmatprep.subr.bf16.mxu0 0
  %3837 = vmatpush1.bf16.msra.mxu0 %v2725
  %3838 = vmatprep.subr.bf16.mxu0 0
  %3839 = vmatpush1.bf16.msra.mxu0 %v2724
  %3840 = vmatprep.subr.bf16.mxu0 0
  %3841 = vmatpush1.bf16.msra.mxu0 %v2723
  %3842 = vmatprep.subr.bf16.mxu0 0
  %3843 = vmatpush1.bf16.msra.mxu0 %v2722
  %3844 = vmatprep.subr.bf16.mxu0 0
  %3845 = vmatpush1.bf16.msra.mxu0 %v2721
  %3846 = vmatprep.subr.bf16.mxu0 0
  %3847 = vmatpush1.bf16.msra.mxu0 %v2720
  %3848 = vmatprep.subr.bf16.mxu0 0
  %3849 = vmatpush1.bf16.msra.mxu0 %v2719
  %3850 = vmatprep.subr.bf16.mxu0 0
  %3851 = vmatpush1.bf16.msra.mxu0 %v2718
  %3852 = vmatprep.subr.bf16.mxu0 0
  %3853 = vmatpush2.bf16.msra.mxu0 %v2733
  %3854 = vmatprep.subr.bf16.mxu0 0
  %3855 = vmatpush2.bf16.msra.mxu0 %v2732
  %3856 = vmatprep.subr.bf16.mxu0 0
  %3857 = vmatpush2.bf16.msra.mxu0 %v2731
  %3858 = vmatprep.subr.bf16.mxu0 0
  %3859 = vmatpush2.bf16.msra.mxu0 %v2730
  %3860 = vmatprep.subr.bf16.mxu0 0
  %3861 = vmatpush2.bf16.msra.mxu0 %v2729
  %3862 = vmatprep.subr.bf16.mxu0 0
  %3863 = vmatpush2.bf16.msra.mxu0 %v2728
  %3864 = vmatprep.subr.bf16.mxu0 0
  %3865 = vmatpush2.bf16.msra.mxu0 %v2727
  %3866 = vmatprep.subr.bf16.mxu0 0
  %3867 = vmatpush2.bf16.msra.mxu0 %v2726
  %3868 = vmatprep.mubr.bf16.mxu0 %v1047
  %3869 = vmatmul.mubr.bf16.gmra.mxu0 %v1046
  %v3870 = vpop.f32.mrf.mxu0
  %v3871 = vadd.f32 %v3822, %v3870
  %v3872 = vpop.f32.mrf.mxu0
  %v3873 = vpop.f32.mrf.mxu0
  %v3874 = vadd.f32 %v3825, %v3873
  %v3875 = vpop.f32.mrf.mxu0
  %3876 = vmatprep.mubr.bf16.mxu0 %v1088
  %3877 = vmatmul.mubr.bf16.gmra.mxu0 %v1087
  %v3878 = vpop.f32.mrf.mxu0
  %v3879 = vadd.f32 %v3830, %v3878
  %v3880 = vpop.f32.mrf.mxu0
  %v3881 = vpop.f32.mrf.mxu0
  %v3882 = vadd.f32 %v3833, %v3881
  %v3883 = vpop.f32.mrf.mxu0
  %3884 = vdwg.mxu0
  %3885 = vmatprep.subr.bf16.mxu0 0
  %3886 = vmatpush1.bf16.msra.mxu0 %v2741
  %3887 = vmatprep.subr.bf16.mxu0 0
  %3888 = vmatpush1.bf16.msra.mxu0 %v2740
  %3889 = vmatprep.subr.bf16.mxu0 0
  %3890 = vmatpush1.bf16.msra.mxu0 %v2739
  %3891 = vmatprep.subr.bf16.mxu0 0
  %3892 = vmatpush1.bf16.msra.mxu0 %v2738
  %3893 = vmatprep.subr.bf16.mxu0 0
  %3894 = vmatpush1.bf16.msra.mxu0 %v2737
  %3895 = vmatprep.subr.bf16.mxu0 0
  %3896 = vmatpush1.bf16.msra.mxu0 %v2736
  %3897 = vmatprep.subr.bf16.mxu0 0
  %3898 = vmatpush1.bf16.msra.mxu0 %v2735
  %3899 = vmatprep.subr.bf16.mxu0 0
  %3900 = vmatpush1.bf16.msra.mxu0 %v2734
  %3901 = vmatprep.subr.bf16.mxu0 0
  %3902 = vmatpush2.bf16.msra.mxu0 %v2749
  %3903 = vmatprep.subr.bf16.mxu0 0
  %3904 = vmatpush2.bf16.msra.mxu0 %v2748
  %3905 = vmatprep.subr.bf16.mxu0 0
  %3906 = vmatpush2.bf16.msra.mxu0 %v2747
  %3907 = vmatprep.subr.bf16.mxu0 0
  %3908 = vmatpush2.bf16.msra.mxu0 %v2746
  %3909 = vmatprep.subr.bf16.mxu0 0
  %3910 = vmatpush2.bf16.msra.mxu0 %v2745
  %3911 = vmatprep.subr.bf16.mxu0 0
  %3912 = vmatpush2.bf16.msra.mxu0 %v2744
  %3913 = vmatprep.subr.bf16.mxu0 0
  %3914 = vmatpush2.bf16.msra.mxu0 %v2743
  %3915 = vmatprep.subr.bf16.mxu0 0
  %3916 = vmatpush2.bf16.msra.mxu0 %v2742
  %3917 = vmatprep.mubr.bf16.mxu0 %v1049
  %3918 = vmatmul.mubr.bf16.gmra.mxu0 %v1048
  %v3919 = vpop.f32.mrf.mxu0
  %v3920 = vadd.f32 %v3871, %v3919
  %v3921 = vpop.f32.mrf.mxu0
  %v3922 = vpop.f32.mrf.mxu0
  %v3923 = vadd.f32 %v3874, %v3922
  %v3924 = vpop.f32.mrf.mxu0
  %3925 = vmatprep.mubr.bf16.mxu0 %v1090
  %3926 = vmatmul.mubr.bf16.gmra.mxu0 %v1089
  %v3927 = vpop.f32.mrf.mxu0
  %v3928 = vadd.f32 %v3879, %v3927
  %v3929 = vpop.f32.mrf.mxu0
  %v3930 = vpop.f32.mrf.mxu0
  %v3931 = vadd.f32 %v3882, %v3930
  %v3932 = vpop.f32.mrf.mxu0
  %3933 = vdwg.mxu0
  %3934 = vmatprep.subr.bf16.mxu0 0
  %3935 = vmatpush1.bf16.msra.mxu0 %v2757
  %3936 = vmatprep.subr.bf16.mxu0 0
  %3937 = vmatpush1.bf16.msra.mxu0 %v2756
  %3938 = vmatprep.subr.bf16.mxu0 0
  %3939 = vmatpush1.bf16.msra.mxu0 %v2755
  %3940 = vmatprep.subr.bf16.mxu0 0
  %3941 = vmatpush1.bf16.msra.mxu0 %v2754
  %3942 = vmatprep.subr.bf16.mxu0 0
  %3943 = vmatpush1.bf16.msra.mxu0 %v2753
  %3944 = vmatprep.subr.bf16.mxu0 0
  %3945 = vmatpush1.bf16.msra.mxu0 %v2752
  %3946 = vmatprep.subr.bf16.mxu0 0
  %3947 = vmatpush1.bf16.msra.mxu0 %v2751
  %3948 = vmatprep.subr.bf16.mxu0 0
  %3949 = vmatpush1.bf16.msra.mxu0 %v2750
  %3950 = vmatprep.subr.bf16.mxu0 0
  %3951 = vmatpush2.bf16.msra.mxu0 %v2765
  %3952 = vmatprep.subr.bf16.mxu0 0
  %3953 = vmatpush2.bf16.msra.mxu0 %v2764
  %3954 = vmatprep.subr.bf16.mxu0 0
  %3955 = vmatpush2.bf16.msra.mxu0 %v2763
  %3956 = vmatprep.subr.bf16.mxu0 0
  %3957 = vmatpush2.bf16.msra.mxu0 %v2762
  %3958 = vmatprep.subr.bf16.mxu0 0
  %3959 = vmatpush2.bf16.msra.mxu0 %v2761
  %3960 = vmatprep.subr.bf16.mxu0 0
  %3961 = vmatpush2.bf16.msra.mxu0 %v2760
  %3962 = vmatprep.subr.bf16.mxu0 0
  %3963 = vmatpush2.bf16.msra.mxu0 %v2759
  %3964 = vmatprep.subr.bf16.mxu0 0
  %3965 = vmatpush2.bf16.msra.mxu0 %v2758
  %3966 = vmatprep.mubr.bf16.mxu0 %v1051
  %3967 = vmatmul.mubr.bf16.gmra.mxu0 %v1050
  %v3968 = vpop.f32.mrf.mxu0
  %v3969 = vadd.f32 %v3920, %v3968
  %v3970 = vpop.f32.mrf.mxu0
  %v3971 = vpop.f32.mrf.mxu0
  %v3972 = vadd.f32 %v3923, %v3971
  %v3973 = vpop.f32.mrf.mxu0
  %3974 = vmatprep.mubr.bf16.mxu0 %v1092
  %3975 = vmatmul.mubr.bf16.gmra.mxu0 %v1091
  %v3976 = vpop.f32.mrf.mxu0
  %v3977 = vadd.f32 %v3928, %v3976
  %v3978 = vpop.f32.mrf.mxu0
  %v3979 = vpop.f32.mrf.mxu0
  %v3980 = vadd.f32 %v3931, %v3979
  %v3981 = vpop.f32.mrf.mxu0
  %3982 = vdwg.mxu0
  %3983 = vmatprep.subr.bf16.mxu0 0
  %3984 = vmatpush1.bf16.msra.mxu0 %v2773
  %3985 = vmatprep.subr.bf16.mxu0 0
  %3986 = vmatpush1.bf16.msra.mxu0 %v2772
  %3987 = vmatprep.subr.bf16.mxu0 0
  %3988 = vmatpush1.bf16.msra.mxu0 %v2771
  %3989 = vmatprep.subr.bf16.mxu0 0
  %3990 = vmatpush1.bf16.msra.mxu0 %v2770
  %3991 = vmatprep.subr.bf16.mxu0 0
  %3992 = vmatpush1.bf16.msra.mxu0 %v2769
  %3993 = vmatprep.subr.bf16.mxu0 0
  %3994 = vmatpush1.bf16.msra.mxu0 %v2768
  %3995 = vmatprep.subr.bf16.mxu0 0
  %3996 = vmatpush1.bf16.msra.mxu0 %v2767
  %3997 = vmatprep.subr.bf16.mxu0 0
  %3998 = vmatpush1.bf16.msra.mxu0 %v2766
  %3999 = vmatprep.subr.bf16.mxu0 0
  %4000 = vmatpush2.bf16.msra.mxu0 %v2781
  %4001 = vmatprep.subr.bf16.mxu0 0
  %4002 = vmatpush2.bf16.msra.mxu0 %v2780
  %4003 = vmatprep.subr.bf16.mxu0 0
  %4004 = vmatpush2.bf16.msra.mxu0 %v2779
  %4005 = vmatprep.subr.bf16.mxu0 0
  %4006 = vmatpush2.bf16.msra.mxu0 %v2778
  %4007 = vmatprep.subr.bf16.mxu0 0
  %4008 = vmatpush2.bf16.msra.mxu0 %v2777
  %4009 = vmatprep.subr.bf16.mxu0 0
  %4010 = vmatpush2.bf16.msra.mxu0 %v2776
  %4011 = vmatprep.subr.bf16.mxu0 0
  %4012 = vmatpush2.bf16.msra.mxu0 %v2775
  %4013 = vmatprep.subr.bf16.mxu0 0
  %4014 = vmatpush2.bf16.msra.mxu0 %v2774
  %4015 = vmatprep.mubr.bf16.mxu0 %v1053
  %4016 = vmatmul.mubr.bf16.gmra.mxu0 %v1052
  %v4017 = vpop.f32.mrf.mxu0
  %v4018 = vadd.f32 %v3969, %v4017
  %v4019 = vpop.f32.mrf.mxu0
  %v4020 = vpop.f32.mrf.mxu0
  %v4021 = vadd.f32 %v3972, %v4020
  %v4022 = vpop.f32.mrf.mxu0
  %4023 = vmatprep.mubr.bf16.mxu0 %v1094
  %4024 = vmatmul.mubr.bf16.gmra.mxu0 %v1093
  %v4025 = vpop.f32.mrf.mxu0
  %v4026 = vadd.f32 %v3977, %v4025
  %v4027 = vpop.f32.mrf.mxu0
  %v4028 = vpop.f32.mrf.mxu0
  %v4029 = vadd.f32 %v3980, %v4028
  %v4030 = vpop.f32.mrf.mxu0
  %4031 = vdwg.mxu0
  %4032 = vmatprep.subr.bf16.mxu0 0
  %4033 = vmatpush1.bf16.msra.mxu0 %v2789
  %4034 = vmatprep.subr.bf16.mxu0 0
  %4035 = vmatpush1.bf16.msra.mxu0 %v2788
  %4036 = vmatprep.subr.bf16.mxu0 0
  %4037 = vmatpush1.bf16.msra.mxu0 %v2787
  %4038 = vmatprep.subr.bf16.mxu0 0
  %4039 = vmatpush1.bf16.msra.mxu0 %v2786
  %4040 = vmatprep.subr.bf16.mxu0 0
  %4041 = vmatpush1.bf16.msra.mxu0 %v2785
  %4042 = vmatprep.subr.bf16.mxu0 0
  %4043 = vmatpush1.bf16.msra.mxu0 %v2784
  %4044 = vmatprep.subr.bf16.mxu0 0
  %4045 = vmatpush1.bf16.msra.mxu0 %v2783
  %4046 = vmatprep.subr.bf16.mxu0 0
  %4047 = vmatpush1.bf16.msra.mxu0 %v2782
  %4048 = vmatprep.subr.bf16.mxu0 0
  %4049 = vmatpush2.bf16.msra.mxu0 %v2797
  %4050 = vmatprep.subr.bf16.mxu0 0
  %4051 = vmatpush2.bf16.msra.mxu0 %v2796
  %4052 = vmatprep.subr.bf16.mxu0 0
  %4053 = vmatpush2.bf16.msra.mxu0 %v2795
  %4054 = vmatprep.subr.bf16.mxu0 0
  %4055 = vmatpush2.bf16.msra.mxu0 %v2794
  %4056 = vmatprep.subr.bf16.mxu0 0
  %4057 = vmatpush2.bf16.msra.mxu0 %v2793
  %4058 = vmatprep.subr.bf16.mxu0 0
  %4059 = vmatpush2.bf16.msra.mxu0 %v2792
  %4060 = vmatprep.subr.bf16.mxu0 0
  %4061 = vmatpush2.bf16.msra.mxu0 %v2791
  %4062 = vmatprep.subr.bf16.mxu0 0
  %4063 = vmatpush2.bf16.msra.mxu0 %v2790
  %4064 = vmatprep.mubr.bf16.mxu0 %v1055
  %4065 = vmatmul.mubr.bf16.gmra.mxu0 %v1054
  %v4066 = vpop.f32.mrf.mxu0
  %v4067 = vadd.f32 %v4018, %v4066
  %v4068 = vpop.f32.mrf.mxu0
  %v4069 = vpop.f32.mrf.mxu0
  %v4070 = vadd.f32 %v4021, %v4069
  %v4071 = vpop.f32.mrf.mxu0
  %4072 = vmatprep.mubr.bf16.mxu0 %v1096
  %4073 = vmatmul.mubr.bf16.gmra.mxu0 %v1095
  %v4074 = vpop.f32.mrf.mxu0
  %v4075 = vadd.f32 %v4026, %v4074
  %v4076 = vpop.f32.mrf.mxu0
  %v4077 = vpop.f32.mrf.mxu0
  %v4078 = vadd.f32 %v4029, %v4077
  %v4079 = vpop.f32.mrf.mxu0
  %4080 = vdwg.mxu0
  %4081 = vmatprep.subr.bf16.mxu0 0
  %4082 = vmatpush1.bf16.msra.mxu0 %v2805
  %4083 = vmatprep.subr.bf16.mxu0 0
  %4084 = vmatpush1.bf16.msra.mxu0 %v2804
  %4085 = vmatprep.subr.bf16.mxu0 0
  %4086 = vmatpush1.bf16.msra.mxu0 %v2803
  %4087 = vmatprep.subr.bf16.mxu0 0
  %4088 = vmatpush1.bf16.msra.mxu0 %v2802
  %4089 = vmatprep.subr.bf16.mxu0 0
  %4090 = vmatpush1.bf16.msra.mxu0 %v2801
  %4091 = vmatprep.subr.bf16.mxu0 0
  %4092 = vmatpush1.bf16.msra.mxu0 %v2800
  %4093 = vmatprep.subr.bf16.mxu0 0
  %4094 = vmatpush1.bf16.msra.mxu0 %v2799
  %4095 = vmatprep.subr.bf16.mxu0 0
  %4096 = vmatpush1.bf16.msra.mxu0 %v2798
  %4097 = vmatprep.subr.bf16.mxu0 0
  %4098 = vmatpush2.bf16.msra.mxu0 %v2813
  %4099 = vmatprep.subr.bf16.mxu0 0
  %4100 = vmatpush2.bf16.msra.mxu0 %v2812
  %4101 = vmatprep.subr.bf16.mxu0 0
  %4102 = vmatpush2.bf16.msra.mxu0 %v2811
  %4103 = vmatprep.subr.bf16.mxu0 0
  %4104 = vmatpush2.bf16.msra.mxu0 %v2810
  %4105 = vmatprep.subr.bf16.mxu0 0
  %4106 = vmatpush2.bf16.msra.mxu0 %v2809
  %4107 = vmatprep.subr.bf16.mxu0 0
  %4108 = vmatpush2.bf16.msra.mxu0 %v2808
  %4109 = vmatprep.subr.bf16.mxu0 0
  %4110 = vmatpush2.bf16.msra.mxu0 %v2807
  %4111 = vmatprep.subr.bf16.mxu0 0
  %4112 = vmatpush2.bf16.msra.mxu0 %v2806
  %4113 = vmatprep.mubr.bf16.mxu0 %v1057
  %4114 = vmatmul.mubr.bf16.gmra.mxu0 %v1056
  %v4115 = vpop.f32.mrf.mxu0
  %v4116 = vadd.f32 %v4067, %v4115
  %v4117 = vpop.f32.mrf.mxu0
  %v4118 = vpop.f32.mrf.mxu0
  %v4119 = vadd.f32 %v4070, %v4118
  %v4120 = vpop.f32.mrf.mxu0
  %4121 = vmatprep.mubr.bf16.mxu0 %v1098
  %4122 = vmatmul.mubr.bf16.gmra.mxu0 %v1097
  %v4123 = vpop.f32.mrf.mxu0
  %v4124 = vadd.f32 %v4075, %v4123
  %v4125 = vpop.f32.mrf.mxu0
  %v4126 = vpop.f32.mrf.mxu0
  %v4127 = vadd.f32 %v4078, %v4126
  %v4128 = vpop.f32.mrf.mxu0
  %4129 = vdwg.mxu0
  %4130 = vmatprep.subr.bf16.mxu0 0
  %4131 = vmatpush1.bf16.msra.mxu0 %v2821
  %4132 = vmatprep.subr.bf16.mxu0 0
  %4133 = vmatpush1.bf16.msra.mxu0 %v2820
  %4134 = vmatprep.subr.bf16.mxu0 0
  %4135 = vmatpush1.bf16.msra.mxu0 %v2819
  %4136 = vmatprep.subr.bf16.mxu0 0
  %4137 = vmatpush1.bf16.msra.mxu0 %v2818
  %4138 = vmatprep.subr.bf16.mxu0 0
  %4139 = vmatpush1.bf16.msra.mxu0 %v2817
  %4140 = vmatprep.subr.bf16.mxu0 0
  %4141 = vmatpush1.bf16.msra.mxu0 %v2816
  %4142 = vmatprep.subr.bf16.mxu0 0
  %4143 = vmatpush1.bf16.msra.mxu0 %v2815
  %4144 = vmatprep.subr.bf16.mxu0 0
  %4145 = vmatpush1.bf16.msra.mxu0 %v2814
  %4146 = vmatprep.subr.bf16.mxu0 0
  %4147 = vmatpush2.bf16.msra.mxu0 0
  %4148 = vmatprep.subr.bf16.mxu0 0
  %4149 = vmatpush2.bf16.msra.mxu0 0
  %4150 = vmatprep.subr.bf16.mxu0 0
  %4151 = vmatpush2.bf16.msra.mxu0 0
  %4152 = vmatprep.subr.bf16.mxu0 0
  %4153 = vmatpush2.bf16.msra.mxu0 0
  %4154 = vmatprep.subr.bf16.mxu0 0
  %4155 = vmatpush2.bf16.msra.mxu0 0
  %4156 = vmatprep.subr.bf16.mxu0 0
  %4157 = vmatpush2.bf16.msra.mxu0 0
  %4158 = vmatprep.subr.bf16.mxu0 0
  %4159 = vmatpush2.bf16.msra.mxu0 0
  %4160 = vmatprep.subr.bf16.mxu0 0
  %4161 = vmatpush2.bf16.msra.mxu0 0
  %4162 = vmatprep.mubr.bf16.mxu0 0
  %4163 = vmatmul.mubr.bf16.gmra.mxu0 %v1058
  %v4164 = vpop.f32.mrf.mxu0
  %v4165 = vadd.f32 %v4116, %v4164
  %v4166 = vpop.f32.mrf.mxu0
  %v4167 = vpop.f32.mrf.mxu0
  %v4168 = vadd.f32 %v4119, %v4167
  %v4169 = vpop.f32.mrf.mxu0
  %4170 = vmatprep.mubr.bf16.mxu0 0
  %4171 = vmatmul.mubr.bf16.gmra.mxu0 %v1099
  %v4172 = vpop.f32.mrf.mxu0
  %v4173 = vadd.f32 %v4124, %v4172
  %v4174 = vpop.f32.mrf.mxu0
  %v4175 = vpop.f32.mrf.mxu0
  %v4176 = vadd.f32 %v4127, %v4175
  %v4177 = vpop.f32.mrf.mxu0
  %4178 = vdwg.mxu0
  %v4179 = vmax.f32 %v4165, 0.0
  %v4180 = vmax.f32 %v4168, 0.0
  %v4181 = vmax.f32 %v4173, 0.0
  %v4182 = vmax.f32 %v4176, 0.0
  %4183 = vst [vmem:[%s5] sm:$0xff] %v4179
  %4184 = vst [vmem:[%s5 + $0x8] sm:$0xff] %v4180
  %4185 = vst [vmem:[%s5 + $0x10] sm:$0xff] %v4181
  %4186 = vst [vmem:[%s5 + $0x18] sm:$0xff] %v4182
  %v4187 = vpack.c.bf16 %v4180, %v4179
  %v4188 = vpack.c.bf16 %v4182, %v4181
  %v4189 = vld [vmem:[%s3] sm:$0xf]
  %v4190 = vld [vmem:[%s3 + $0x4] sm:$0xf]
  %v4191 = vld [vmem:[%s3 + $0x8] sm:$0xf]
  %v4192 = vld [vmem:[%s3 + $0xc] sm:$0xf]
  %v4193 = vld [vmem:[%s3 + $0x10] sm:$0xf]
  %v4194 = vld [vmem:[%s3 + $0x14] sm:$0xf]
  %v4195 = vld [vmem:[%s3 + $0x18] sm:$0xf]
  %v4196 = vld [vmem:[%s3 + $0x1c] sm:$0xf]
  %v4197 = vld [vmem:[%s3 + $0x20] sm:$0xf]
  %v4198 = vld [vmem:[%s3 + $0x24] sm:$0xf]
  %v4199 = vld [vmem:[%s3 + $0x28] sm:$0xf]
  %v4200 = vld [vmem:[%s3 + $0x2c] sm:$0xf]
  %v4201 = vld [vmem:[%s3 + $0x30] sm:$0xf]
  %v4202 = vld [vmem:[%s3 + $0x34] sm:$0xf]
  %v4203 = vld [vmem:[%s3 + $0x38] sm:$0xf]
  %v4204 = vld [vmem:[%s3 + $0x3c] sm:$0xf]
  %v4205 = vld [vmem:[%s4] sm:$0x1]
  %v4207 = vlaneseq
  %v4208 = vshrl.u32 %v4207, 7
  %v4209 = vsub.s32 0, %v4208
  %v4210 = vrot.slane %v4205, %v4209
  %v4228 = vunpack.c.l.b16 %v4189
  %v4229 = vunpack.c.l.b16 %v4190
  %v4230 = vunpack.c.l.b16 %v4191
  %v4231 = vunpack.c.l.b16 %v4192
  %v4232 = vunpack.c.l.b16 %v4193
  %v4233 = vunpack.c.l.b16 %v4194
  %v4234 = vunpack.c.l.b16 %v4195
  %v4235 = vunpack.c.l.b16 %v4196
  %v4236 = vunpack.c.l.b16 %v4197
  %v4237 = vunpack.c.l.b16 %v4198
  %v4238 = vunpack.c.l.b16 %v4199
  %v4239 = vunpack.c.l.b16 %v4200
  %v4240 = vunpack.c.l.b16 %v4201
  %v4241 = vunpack.c.l.b16 %v4202
  %v4242 = vunpack.c.l.b16 %v4203
  %v4243 = vunpack.c.l.b16 %v4204
  %v4244 = vpack.c.b16 %v4229, %v4228
  %v4245 = vpack.c.b16 %v4231, %v4230
  %v4246 = vpack.c.b16 %v4233, %v4232
  %v4247 = vpack.c.b16 %v4235, %v4234
  %v4248 = vpack.c.b16 %v4237, %v4236
  %v4249 = vpack.c.b16 %v4239, %v4238
  %v4250 = vpack.c.b16 %v4241, %v4240
  %v4251 = vpack.c.b16 %v4243, %v4242
  %4260 = vmatprep.subr.bf16.mxu0 0
  %4261 = vmatpush1.bf16.msra.mxu0 %v4251
  %4262 = vmatprep.subr.bf16.mxu0 0
  %4263 = vmatpush1.bf16.msra.mxu0 %v4250
  %4264 = vmatprep.subr.bf16.mxu0 0
  %4265 = vmatpush1.bf16.msra.mxu0 %v4249
  %4266 = vmatprep.subr.bf16.mxu0 0
  %4267 = vmatpush1.bf16.msra.mxu0 %v4248
  %4268 = vmatprep.subr.bf16.mxu0 0
  %4269 = vmatpush1.bf16.msra.mxu0 %v4247
  %4270 = vmatprep.subr.bf16.mxu0 0
  %4271 = vmatpush1.bf16.msra.mxu0 %v4246
  %4272 = vmatprep.subr.bf16.mxu0 0
  %4273 = vmatpush1.bf16.msra.mxu0 %v4245
  %4274 = vmatprep.subr.bf16.mxu0 0
  %4275 = vmatpush1.bf16.msra.mxu0 %v4244
  %4276 = vmatprep.subr.bf16.mxu0 0
  %4277 = vmatpush2.bf16.msra.mxu0 0
  %4278 = vmatprep.subr.bf16.mxu0 0
  %4279 = vmatpush2.bf16.msra.mxu0 0
  %4280 = vmatprep.subr.bf16.mxu0 0
  %4281 = vmatpush2.bf16.msra.mxu0 0
  %4282 = vmatprep.subr.bf16.mxu0 0
  %4283 = vmatpush2.bf16.msra.mxu0 0
  %4284 = vmatprep.subr.bf16.mxu0 0
  %4285 = vmatpush2.bf16.msra.mxu0 0
  %4286 = vmatprep.subr.bf16.mxu0 0
  %4287 = vmatpush2.bf16.msra.mxu0 0
  %4288 = vmatprep.subr.bf16.mxu0 0
  %4289 = vmatpush2.bf16.msra.mxu0 0
  %4290 = vmatprep.subr.bf16.mxu0 0
  %4291 = vmatpush2.bf16.msra.mxu0 0
  %4292 = vmatprep.mubr.bf16.mxu0 0
  %4293 = vmatmul.mubr.bf16.gmra.mxu0 %v4187
  %v4294 = vpop.f32.mrf.mxu0
  %v4295 = vadd.f32 %v4210, %v4294
  %v4296 = vpop.f32.mrf.mxu0
  %v4297 = vpop.f32.mrf.mxu0
  %v4298 = vadd.f32 %v4210, %v4297
  %v4299 = vpop.f32.mrf.mxu0
  %4300 = vmatprep.mubr.bf16.mxu0 0
  %4301 = vmatmul.mubr.bf16.gmra.mxu0 %v4188
  %v4302 = vpop.f32.mrf.mxu0
  %v4303 = vadd.f32 %v4210, %v4302
  %v4304 = vpop.f32.mrf.mxu0
  %v4305 = vpop.f32.mrf.mxu0
  %v4306 = vadd.f32 %v4210, %v4305
  %v4307 = vpop.f32.mrf.mxu0
  %4308 = vdwg.mxu0
  %4309 = vst [vmem:[%s6] sm:$0xff] %v4295
  %4310 = vst [vmem:[%s6 + $0x8] sm:$0xff] %v4298
  %4311 = vst [vmem:[%s6 + $0x10] sm:$0xff] %v4303
  %4312 = vst [vmem:[%s6 + $0x18] sm:$0xff] %v4306
  // Predicated region
  $region22: #{forward.11} parent=0 // pred_check
    _
  $region23: #{forward.11} parent=0 // pred_check_branch
    %4314 = sbr.rel (0) target = $region25
  $region24: #{forward.11} parent=0 // pred_region
    _
  $region25: #{forward.11} parent=0 // pred_fallthru
    _
  // Predicated region
  $region26: #{forward.11} parent=0 // pred_check
    _
  $region27: #{forward.11} parent=0 // pred_check_branch
    %4316 = sbr.rel (0) target = $region29
  $region28: #{forward.11} parent=0 // pred_region
    _
  $region29: #{forward.11} parent=0 // pred_fallthru
    _
  // Predicated region
  $region30: #{forward.11} parent=0 // pred_check
    _
  $region31: #{forward.11} parent=0 // pred_check_branch
    %4318 = sbr.rel (0) target = $region33
  $region32: #{forward.11} parent=0 // pred_region
    _
  $region33: #{forward.11} parent=0 // pred_fallthru
    _
  // Predicated region
  $region34: #{forward.11} parent=0 // pred_check
    _
  $region35: #{forward.11} parent=0 // pred_check_branch
    %4320 = sbr.rel (0) target = $region37
  $region36: #{forward.11} parent=0 // pred_region
    _
  $region37: #{forward.11} parent=0 // pred_fallthru
    _

// kernel: forward.16
$region0: #{forward.16}
  #allocation0 [shape = 'u32[]', space=smem, size = 0x4, offset = 0x4, fixed_abs, tag = 'smem constant byte address 0x4 - core index']
  #allocation1 [shape = 'u32[144,128]{1,0:T(1,128)}', space=vmem, size = 0x12000, scoped, tag = 'internal scratch']
  %s0 = inlined_call_operand.vmem [shape: bf16[128,128], index: 0, kind: input, shape index: {}]
  %s1 = inlined_call_operand.vmem [shape: bf16[128,128], index: 1, kind: input, shape index: {}]
  %s2 = inlined_call_operand.vmem [shape: f32[1,128], index: 2, kind: input, shape index: {}]
  %s3 = inlined_call_operand.vmem [shape: bf16[128,128], index: 3, kind: input, shape index: {}]
  %s4 = inlined_call_operand.vmem [shape: f32[1,128], index: 4, kind: input, shape index: {}]
  %s5 = inlined_call_operand.vmem [shape: bf16[128,128], index: 5, kind: input, shape index: {}]
  %s6 = inlined_call_operand.vmem [shape: bf16[128,128], index: 6, kind: input, shape index: {}]
  %s7 = inlined_call_operand.vmem [shape: f32[1,128], index: 7, kind: input, shape index: {}]
  %s8 = inlined_call_operand.vmem [shape: bf16[128,128], index: 8, kind: input, shape index: {}]
  %s9 = inlined_call_operand.vmem [shape: f32[1,128], index: 9, kind: input, shape index: {}]
  %s10 = inlined_call_operand.vmem [shape: f32[128,128], index: 10, kind: output, shape index: {0}]
  %s11 = inlined_call_operand.vmem [shape: f32[128,128], index: 11, kind: output, shape index: {1}]
  %s12 = inlined_call_operand.vmem [shape: f32[128,128], index: 12, kind: output, shape index: {2}]
  %13 = xla_tuple %s10, %s11, %s12
  %s14 = sld [smem:[#allocation0]]
  $region66: #{forward.16} parent=0
    _
  %s16 = ssub.s32 1, %s14
  %s17 = scalar_select 0, %s16, %s14
  // Predicated region
  $region2: #{forward.16} parent=0 // pred_check
    _
  $region3: #{forward.16} parent=0 // pred_check_branch
    %19 = sbr.rel (0) target = $region5
  $region4: #{forward.16} parent=0 // pred_region
    _
  $region5: #{forward.16} parent=0 // pred_fallthru
    _
  // Predicated region
  $region6: #{forward.16} parent=0 // pred_check
    _
  $region7: #{forward.16} parent=0 // pred_check_branch
    %21 = sbr.rel (0) target = $region9
  $region8: #{forward.16} parent=0 // pred_region
    _
  $region9: #{forward.16} parent=0 // pred_fallthru
    _
  // Predicated region
  $region10: #{forward.16} parent=0 // pred_check
    _
  $region11: #{forward.16} parent=0 // pred_check_branch
    %23 = sbr.rel (0) target = $region13
  $region12: #{forward.16} parent=0 // pred_region
    _
  $region13: #{forward.16} parent=0 // pred_fallthru
    _
  // Predicated region
  $region14: #{forward.16} parent=0 // pred_check
    _
  $region15: #{forward.16} parent=0 // pred_check_branch
    %25 = sbr.rel (0) target = $region17
  $region16: #{forward.16} parent=0 // pred_region
    _
  $region17: #{forward.16} parent=0 // pred_fallthru
    _
  // Predicated region
  $region18: #{forward.16} parent=0 // pred_check
    _
  $region19: #{forward.16} parent=0 // pred_check_branch
    %27 = sbr.rel (0) target = $region21
  $region20: #{forward.16} parent=0 // pred_region
    _
  $region21: #{forward.16} parent=0 // pred_fallthru
    _
  // Predicated region
  $region22: #{forward.16} parent=0 // pred_check
    _
  $region23: #{forward.16} parent=0 // pred_check_branch
    %29 = sbr.rel (0) target = $region25
  $region24: #{forward.16} parent=0 // pred_region
    _
  $region25: #{forward.16} parent=0 // pred_fallthru
    _
  // Predicated region
  $region26: #{forward.16} parent=0 // pred_check
    _
  $region27: #{forward.16} parent=0 // pred_check_branch
    %31 = sbr.rel (0) target = $region29
  $region28: #{forward.16} parent=0 // pred_region
    _
  $region29: #{forward.16} parent=0 // pred_fallthru
    _
  // Predicated region
  $region30: #{forward.16} parent=0 // pred_check
    _
  $region31: #{forward.16} parent=0 // pred_check_branch
    %33 = sbr.rel (0) target = $region33
  $region32: #{forward.16} parent=0 // pred_region
    _
  $region33: #{forward.16} parent=0 // pred_fallthru
    _
  // Predicated region
  $region34: #{forward.16} parent=0 // pred_check
    _
  $region35: #{forward.16} parent=0 // pred_check_branch
    %35 = sbr.rel (0) target = $region37
  $region36: #{forward.16} parent=0 // pred_region
    _
  $region37: #{forward.16} parent=0 // pred_fallthru
    _
  // Predicated region
  $region38: #{forward.16} parent=0 // pred_check
    _
  $region39: #{forward.16} parent=0 // pred_check_branch
    %37 = sbr.rel (0) target = $region41
  $region40: #{forward.16} parent=0 // pred_region
    _
  $region41: #{forward.16} parent=0 // pred_fallthru
    _
  %v39 = vld [vmem:[%s0] sm:$0xf]
  %v40 = vld [vmem:[%s0 + $0x4] sm:$0xf]
  %v41 = vld [vmem:[%s0 + $0x8] sm:$0xf]
  %v42 = vld [vmem:[%s0 + $0xc] sm:$0xf]
  %v43 = vld [vmem:[%s0 + $0x10] sm:$0xf]
  %v44 = vld [vmem:[%s0 + $0x14] sm:$0xf]
  %v45 = vld [vmem:[%s0 + $0x18] sm:$0xf]
  %v46 = vld [vmem:[%s0 + $0x1c] sm:$0xf]
  %v47 = vld [vmem:[%s0 + $0x20] sm:$0xf]
  %v48 = vld [vmem:[%s0 + $0x24] sm:$0xf]
  %v49 = vld [vmem:[%s0 + $0x28] sm:$0xf]
  %v50 = vld [vmem:[%s0 + $0x2c] sm:$0xf]
  %v51 = vld [vmem:[%s0 + $0x30] sm:$0xf]
  %v52 = vld [vmem:[%s0 + $0x34] sm:$0xf]
  %v53 = vld [vmem:[%s0 + $0x38] sm:$0xf]
  %v54 = vld [vmem:[%s0 + $0x3c] sm:$0xf]
  %v55 = vld [vmem:[%s1] sm:$0xf]
  %v56 = vld [vmem:[%s1 + $0x4] sm:$0xf]
  %v57 = vld [vmem:[%s1 + $0x8] sm:$0xf]
  %v58 = vld [vmem:[%s1 + $0xc] sm:$0xf]
  %v59 = vld [vmem:[%s1 + $0x10] sm:$0xf]
  %v60 = vld [vmem:[%s1 + $0x14] sm:$0xf]
  %v61 = vld [vmem:[%s1 + $0x18] sm:$0xf]
  %v62 = vld [vmem:[%s1 + $0x1c] sm:$0xf]
  %v63 = vld [vmem:[%s1 + $0x20] sm:$0xf]
  %v64 = vld [vmem:[%s1 + $0x24] sm:$0xf]
  %v65 = vld [vmem:[%s1 + $0x28] sm:$0xf]
  %v66 = vld [vmem:[%s1 + $0x2c] sm:$0xf]
  %v67 = vld [vmem:[%s1 + $0x30] sm:$0xf]
  %v68 = vld [vmem:[%s1 + $0x34] sm:$0xf]
  %v69 = vld [vmem:[%s1 + $0x38] sm:$0xf]
  %v70 = vld [vmem:[%s1 + $0x3c] sm:$0xf]
  %v71 = vld [vmem:[%s2] sm:$0x1]
  %v73 = vlaneseq
  %v74 = vshrl.u32 %v73, 7
  %v75 = vsub.s32 0, %v74
  %v76 = vrot.slane %v71, %v75
  %v94 = vunpack.c.l.b16 %v39
  %v95 = vunpack.c.l.b16 %v40
  %v96 = vunpack.c.l.b16 %v41
  %v97 = vunpack.c.l.b16 %v42
  %v98 = vunpack.c.l.b16 %v43
  %v99 = vunpack.c.l.b16 %v44
  %v100 = vunpack.c.l.b16 %v45
  %v101 = vunpack.c.l.b16 %v46
  %v102 = vunpack.c.l.b16 %v47
  %v103 = vunpack.c.l.b16 %v48
  %v104 = vunpack.c.l.b16 %v49
  %v105 = vunpack.c.l.b16 %v50
  %v106 = vunpack.c.l.b16 %v51
  %v107 = vunpack.c.l.b16 %v52
  %v108 = vunpack.c.l.b16 %v53
  %v109 = vunpack.c.l.b16 %v54
  %v110 = vpack.c.b16 %v95, %v94
  %v111 = vpack.c.b16 %v97, %v96
  %v112 = vpack.c.b16 %v99, %v98
  %v113 = vpack.c.b16 %v101, %v100
  %v114 = vpack.c.b16 %v103, %v102
  %v115 = vpack.c.b16 %v105, %v104
  %v116 = vpack.c.b16 %v107, %v106
  %v117 = vpack.c.b16 %v109, %v108
  %v142 = vunpack.c.l.b16 %v55
  %v143 = vunpack.c.l.b16 %v56
  %v144 = vunpack.c.l.b16 %v57
  %v145 = vunpack.c.l.b16 %v58
  %v146 = vunpack.c.l.b16 %v59
  %v147 = vunpack.c.l.b16 %v60
  %v148 = vunpack.c.l.b16 %v61
  %v149 = vunpack.c.l.b16 %v62
  %v150 = vunpack.c.l.b16 %v63
  %v151 = vunpack.c.l.b16 %v64
  %v152 = vunpack.c.l.b16 %v65
  %v153 = vunpack.c.l.b16 %v66
  %v154 = vunpack.c.l.b16 %v67
  %v155 = vunpack.c.l.b16 %v68
  %v156 = vunpack.c.l.b16 %v69
  %v157 = vunpack.c.l.b16 %v70
  %v158 = vpack.c.b16 %v143, %v142
  %v159 = vpack.c.b16 %v145, %v144
  %v160 = vpack.c.b16 %v147, %v146
  %v161 = vpack.c.b16 %v149, %v148
  %v162 = vpack.c.b16 %v151, %v150
  %v163 = vpack.c.b16 %v153, %v152
  %v164 = vpack.c.b16 %v155, %v154
  %v165 = vpack.c.b16 %v157, %v156
  %174 = vmatprep.subr.bf16.mxu0 0
  %175 = vmatpush1.bf16.msra.mxu0 %v165
  %176 = vmatprep.subr.bf16.mxu0 0
  %177 = vmatpush1.bf16.msra.mxu0 %v164
  %178 = vmatprep.subr.bf16.mxu0 0
  %179 = vmatpush1.bf16.msra.mxu0 %v163
  %180 = vmatprep.subr.bf16.mxu0 0
  %181 = vmatpush1.bf16.msra.mxu0 %v162
  %182 = vmatprep.subr.bf16.mxu0 0
  %183 = vmatpush1.bf16.msra.mxu0 %v161
  %184 = vmatprep.subr.bf16.mxu0 0
  %185 = vmatpush1.bf16.msra.mxu0 %v160
  %186 = vmatprep.subr.bf16.mxu0 0
  %187 = vmatpush1.bf16.msra.mxu0 %v159
  %188 = vmatprep.subr.bf16.mxu0 0
  %189 = vmatpush1.bf16.msra.mxu0 %v158
  %190 = vmatprep.subr.bf16.mxu0 0
  %191 = vmatpush2.bf16.msra.mxu0 0
  %192 = vmatprep.subr.bf16.mxu0 0
  %193 = vmatpush2.bf16.msra.mxu0 0
  %194 = vmatprep.subr.bf16.mxu0 0
  %195 = vmatpush2.bf16.msra.mxu0 0
  %196 = vmatprep.subr.bf16.mxu0 0
  %197 = vmatpush2.bf16.msra.mxu0 0
  %198 = vmatprep.subr.bf16.mxu0 0
  %199 = vmatpush2.bf16.msra.mxu0 0
  %200 = vmatprep.subr.bf16.mxu0 0
  %201 = vmatpush2.bf16.msra.mxu0 0
  %202 = vmatprep.subr.bf16.mxu0 0
  %203 = vmatpush2.bf16.msra.mxu0 0
  %204 = vmatprep.subr.bf16.mxu0 0
  %205 = vmatpush2.bf16.msra.mxu0 0
  %206 = vmatprep.mubr.bf16.mxu0 0
  %207 = vmatmul.mubr.bf16.gmra.mxu0 %v110
  %v208 = vpop.f32.mrf.mxu0
  %v209 = vadd.f32 %v76, %v208
  %v210 = vpop.f32.mrf.mxu0
  %v211 = vpop.f32.mrf.mxu0
  %v212 = vadd.f32 %v76, %v211
  %v213 = vpop.f32.mrf.mxu0
  %214 = vmatprep.mubr.bf16.mxu0 0
  %215 = vmatmul.mubr.bf16.gmra.mxu0 %v111
  %v216 = vpop.f32.mrf.mxu0
  %v217 = vadd.f32 %v76, %v216
  %v218 = vpop.f32.mrf.mxu0
  %v219 = vpop.f32.mrf.mxu0
  %v220 = vadd.f32 %v76, %v219
  %v221 = vpop.f32.mrf.mxu0
  %222 = vmatprep.mubr.bf16.mxu0 0
  %223 = vmatmul.mubr.bf16.gmra.mxu0 %v112
  %v224 = vpop.f32.mrf.mxu0
  %v225 = vadd.f32 %v76, %v224
  %v226 = vpop.f32.mrf.mxu0
  %v227 = vpop.f32.mrf.mxu0
  %v228 = vadd.f32 %v76, %v227
  %v229 = vpop.f32.mrf.mxu0
  %230 = vmatprep.mubr.bf16.mxu0 0
  %231 = vmatmul.mubr.bf16.gmra.mxu0 %v113
  %v232 = vpop.f32.mrf.mxu0
  %v233 = vadd.f32 %v76, %v232
  %v234 = vpop.f32.mrf.mxu0
  %v235 = vpop.f32.mrf.mxu0
  %v236 = vadd.f32 %v76, %v235
  %v237 = vpop.f32.mrf.mxu0
  %238 = vmatprep.mubr.bf16.mxu0 0
  %239 = vmatmul.mubr.bf16.gmra.mxu0 %v114
  %v240 = vpop.f32.mrf.mxu0
  %v241 = vadd.f32 %v76, %v240
  %v242 = vpop.f32.mrf.mxu0
  %v243 = vpop.f32.mrf.mxu0
  %v244 = vadd.f32 %v76, %v243
  %v245 = vpop.f32.mrf.mxu0
  %246 = vmatprep.mubr.bf16.mxu0 0
  %247 = vmatmul.mubr.bf16.gmra.mxu0 %v115
  %v248 = vpop.f32.mrf.mxu0
  %v249 = vadd.f32 %v76, %v248
  %v250 = vpop.f32.mrf.mxu0
  %v251 = vpop.f32.mrf.mxu0
  %v252 = vadd.f32 %v76, %v251
  %v253 = vpop.f32.mrf.mxu0
  %254 = vmatprep.mubr.bf16.mxu0 0
  %255 = vmatmul.mubr.bf16.gmra.mxu0 %v116
  %v256 = vpop.f32.mrf.mxu0
  %v257 = vadd.f32 %v76, %v256
  %v258 = vpop.f32.mrf.mxu0
  %v259 = vpop.f32.mrf.mxu0
  %v260 = vadd.f32 %v76, %v259
  %v261 = vpop.f32.mrf.mxu0
  %262 = vmatprep.mubr.bf16.mxu0 0
  %263 = vmatmul.mubr.bf16.gmra.mxu0 %v117
  %v264 = vpop.f32.mrf.mxu0
  %v265 = vadd.f32 %v76, %v264
  %v266 = vpop.f32.mrf.mxu0
  %v267 = vpop.f32.mrf.mxu0
  %v268 = vadd.f32 %v76, %v267
  %v269 = vpop.f32.mrf.mxu0
  %270 = vdwg.mxu0
  %v271 = vlaneseq
  %v272 = vand.u32 %v271, 127
  %vm273 = vcmp.ge.s32.totalorder %v272, 0
  %vm274 = vcmp.lt.s32.totalorder %v272, 2
  %vm275 = vmand %vm273, %vm274
  %v276 = vmax.f32 %v209, 0.0
  %v277 = vmax.f32 %v212, 0.0
  %v278 = vmax.f32 %v217, 0.0
  %v279 = vmax.f32 %v220, 0.0
  %v280 = vmax.f32 %v225, 0.0
  %v281 = vmax.f32 %v228, 0.0
  %v282 = vmax.f32 %v233, 0.0
  %v283 = vmax.f32 %v236, 0.0
  %v284 = vmax.f32 %v241, 0.0
  %v285 = vmax.f32 %v244, 0.0
  %v286 = vmax.f32 %v249, 0.0
  %v287 = vmax.f32 %v252, 0.0
  %v288 = vmax.f32 %v257, 0.0
  %v289 = vmax.f32 %v260, 0.0
  %v290 = vmax.f32 %v265, 0.0
  %v291 = vmax.f32 %v268, 0.0
  %v292 = vsel %vm275, %v209, %v276
  %v293 = vsel %vm275, %v212, %v277
  %v294 = vsel %vm275, %v217, %v278
  %v295 = vsel %vm275, %v220, %v279
  %v296 = vsel %vm275, %v225, %v280
  %v297 = vsel %vm275, %v228, %v281
  %v298 = vsel %vm275, %v233, %v282
  %v299 = vsel %vm275, %v236, %v283
  %v300 = vsel %vm275, %v241, %v284
  %v301 = vsel %vm275, %v244, %v285
  %v302 = vsel %vm275, %v249, %v286
  %v303 = vsel %vm275, %v252, %v287
  %v304 = vsel %vm275, %v257, %v288
  %v305 = vsel %vm275, %v260, %v289
  %v306 = vsel %vm275, %v265, %v290
  %v307 = vsel %vm275, %v268, %v291
  %308 = vst [vmem:[%s10] sm:$0xff] %v292
  %309 = vst [vmem:[%s10 + $0x8] sm:$0xff] %v293
  %310 = vst [vmem:[%s10 + $0x10] sm:$0xff] %v294
  %311 = vst [vmem:[%s10 + $0x18] sm:$0xff] %v295
  %312 = vst [vmem:[%s10 + $0x20] sm:$0xff] %v296
  %313 = vst [vmem:[%s10 + $0x28] sm:$0xff] %v297
  %314 = vst [vmem:[%s10 + $0x30] sm:$0xff] %v298
  %315 = vst [vmem:[%s10 + $0x38] sm:$0xff] %v299
  %316 = vst [vmem:[%s10 + $0x40] sm:$0xff] %v300
  %317 = vst [vmem:[%s10 + $0x48] sm:$0xff] %v301
  %318 = vst [vmem:[%s10 + $0x50] sm:$0xff] %v302
  %319 = vst [vmem:[%s10 + $0x58] sm:$0xff] %v303
  %320 = vst [vmem:[%s10 + $0x60] sm:$0xff] %v304
  %321 = vst [vmem:[%s10 + $0x68] sm:$0xff] %v305
  %322 = vst [vmem:[%s10 + $0x70] sm:$0xff] %v306
  %323 = vst [vmem:[%s10 + $0x78] sm:$0xff] %v307
  %v324 = vpack.c.bf16 %v293, %v292
  %v325 = vpack.c.bf16 %v295, %v294
  %v326 = vpack.c.bf16 %v297, %v296
  %v327 = vpack.c.bf16 %v299, %v298
  %v328 = vpack.c.bf16 %v301, %v300
  %v329 = vpack.c.bf16 %v303, %v302
  %v330 = vpack.c.bf16 %v305, %v304
  %v331 = vpack.c.bf16 %v307, %v306
  %v332 = vld [vmem:[%s3] sm:$0xf]
  %v333 = vld [vmem:[%s3 + $0x4] sm:$0xf]
  %v334 = vld [vmem:[%s3 + $0x8] sm:$0xf]
  %v335 = vld [vmem:[%s3 + $0xc] sm:$0xf]
  %v336 = vld [vmem:[%s3 + $0x10] sm:$0xf]
  %v337 = vld [vmem:[%s3 + $0x14] sm:$0xf]
  %v338 = vld [vmem:[%s3 + $0x18] sm:$0xf]
  %v339 = vld [vmem:[%s3 + $0x1c] sm:$0xf]
  %v340 = vld [vmem:[%s3 + $0x20] sm:$0xf]
  %v341 = vld [vmem:[%s3 + $0x24] sm:$0xf]
  %v342 = vld [vmem:[%s3 + $0x28] sm:$0xf]
  %v343 = vld [vmem:[%s3 + $0x2c] sm:$0xf]
  %v344 = vld [vmem:[%s3 + $0x30] sm:$0xf]
  %v345 = vld [vmem:[%s3 + $0x34] sm:$0xf]
  %v346 = vld [vmem:[%s3 + $0x38] sm:$0xf]
  %v347 = vld [vmem:[%s3 + $0x3c] sm:$0xf]
  %v348 = vld [vmem:[%s4] sm:$0x1]
  %v350 = vlaneseq
  %v351 = vshrl.u32 %v350, 7
  %v352 = vsub.s32 0, %v351
  %v353 = vrot.slane %v348, %v352
  %v371 = vunpack.c.l.b16 %v332
  %v372 = vunpack.c.l.b16 %v333
  %v373 = vunpack.c.l.b16 %v334
  %v374 = vunpack.c.l.b16 %v335
  %v375 = vunpack.c.l.b16 %v336
  %v376 = vunpack.c.l.b16 %v337
  %v377 = vunpack.c.l.b16 %v338
  %v378 = vunpack.c.l.b16 %v339
  %v379 = vunpack.c.l.b16 %v340
  %v380 = vunpack.c.l.b16 %v341
  %v381 = vunpack.c.l.b16 %v342
  %v382 = vunpack.c.l.b16 %v343
  %v383 = vunpack.c.l.b16 %v344
  %v384 = vunpack.c.l.b16 %v345
  %v385 = vunpack.c.l.b16 %v346
  %v386 = vunpack.c.l.b16 %v347
  %v387 = vpack.c.b16 %v372, %v371
  %v388 = vpack.c.b16 %v374, %v373
  %v389 = vpack.c.b16 %v376, %v375
  %v390 = vpack.c.b16 %v378, %v377
  %v391 = vpack.c.b16 %v380, %v379
  %v392 = vpack.c.b16 %v382, %v381
  %v393 = vpack.c.b16 %v384, %v383
  %v394 = vpack.c.b16 %v386, %v385
  %403 = vmatprep.subr.bf16.mxu0 0
  %404 = vmatpush1.bf16.msra.mxu0 %v394
  %405 = vmatprep.subr.bf16.mxu0 0
  %406 = vmatpush1.bf16.msra.mxu0 %v393
  %407 = vmatprep.subr.bf16.mxu0 0
  %408 = vmatpush1.bf16.msra.mxu0 %v392
  %409 = vmatprep.subr.bf16.mxu0 0
  %410 = vmatpush1.bf16.msra.mxu0 %v391
  %411 = vmatprep.subr.bf16.mxu0 0
  %412 = vmatpush1.bf16.msra.mxu0 %v390
  %413 = vmatprep.subr.bf16.mxu0 0
  %414 = vmatpush1.bf16.msra.mxu0 %v389
  %415 = vmatprep.subr.bf16.mxu0 0
  %416 = vmatpush1.bf16.msra.mxu0 %v388
  %417 = vmatprep.subr.bf16.mxu0 0
  %418 = vmatpush1.bf16.msra.mxu0 %v387
  %419 = vmatprep.subr.bf16.mxu0 0
  %420 = vmatpush2.bf16.msra.mxu0 0
  %421 = vmatprep.subr.bf16.mxu0 0
  %422 = vmatpush2.bf16.msra.mxu0 0
  %423 = vmatprep.subr.bf16.mxu0 0
  %424 = vmatpush2.bf16.msra.mxu0 0
  %425 = vmatprep.subr.bf16.mxu0 0
  %426 = vmatpush2.bf16.msra.mxu0 0
  %427 = vmatprep.subr.bf16.mxu0 0
  %428 = vmatpush2.bf16.msra.mxu0 0
  %429 = vmatprep.subr.bf16.mxu0 0
  %430 = vmatpush2.bf16.msra.mxu0 0
  %431 = vmatprep.subr.bf16.mxu0 0
  %432 = vmatpush2.bf16.msra.mxu0 0
  %433 = vmatprep.subr.bf16.mxu0 0
  %434 = vmatpush2.bf16.msra.mxu0 0
  %435 = vmatprep.mubr.bf16.mxu0 0
  %436 = vmatmul.mubr.bf16.gmra.mxu0 %v324
  %v437 = vpop.f32.mrf.mxu0
  %v438 = vadd.f32 %v353, %v437
  %v439 = vpop.f32.mrf.mxu0
  %v440 = vpop.f32.mrf.mxu0
  %v441 = vadd.f32 %v353, %v440
  %v442 = vpop.f32.mrf.mxu0
  %443 = vmatprep.mubr.bf16.mxu0 0
  %444 = vmatmul.mubr.bf16.gmra.mxu0 %v325
  %v445 = vpop.f32.mrf.mxu0
  %v446 = vadd.f32 %v353, %v445
  %v447 = vpop.f32.mrf.mxu0
  %v448 = vpop.f32.mrf.mxu0
  %v449 = vadd.f32 %v353, %v448
  %v450 = vpop.f32.mrf.mxu0
  %451 = vmatprep.mubr.bf16.mxu0 0
  %452 = vmatmul.mubr.bf16.gmra.mxu0 %v326
  %v453 = vpop.f32.mrf.mxu0
  %v454 = vadd.f32 %v353, %v453
  %v455 = vpop.f32.mrf.mxu0
  %v456 = vpop.f32.mrf.mxu0
  %v457 = vadd.f32 %v353, %v456
  %v458 = vpop.f32.mrf.mxu0
  %459 = vmatprep.mubr.bf16.mxu0 0
  %460 = vmatmul.mubr.bf16.gmra.mxu0 %v327
  %v461 = vpop.f32.mrf.mxu0
  %v462 = vadd.f32 %v353, %v461
  %v463 = vpop.f32.mrf.mxu0
  %v464 = vpop.f32.mrf.mxu0
  %v465 = vadd.f32 %v353, %v464
  %v466 = vpop.f32.mrf.mxu0
  %467 = vmatprep.mubr.bf16.mxu0 0
  %468 = vmatmul.mubr.bf16.gmra.mxu0 %v328
  %v469 = vpop.f32.mrf.mxu0
  %v470 = vadd.f32 %v353, %v469
  %v471 = vpop.f32.mrf.mxu0
  %v472 = vpop.f32.mrf.mxu0
  %v473 = vadd.f32 %v353, %v472
  %v474 = vpop.f32.mrf.mxu0
  %475 = vmatprep.mubr.bf16.mxu0 0
  %476 = vmatmul.mubr.bf16.gmra.mxu0 %v329
  %v477 = vpop.f32.mrf.mxu0
  %v478 = vadd.f32 %v353, %v477
  %v479 = vpop.f32.mrf.mxu0
  %v480 = vpop.f32.mrf.mxu0
  %v481 = vadd.f32 %v353, %v480
  %v482 = vpop.f32.mrf.mxu0
  %483 = vmatprep.mubr.bf16.mxu0 0
  %484 = vmatmul.mubr.bf16.gmra.mxu0 %v330
  %v485 = vpop.f32.mrf.mxu0
  %v486 = vadd.f32 %v353, %v485
  %v487 = vpop.f32.mrf.mxu0
  %v488 = vpop.f32.mrf.mxu0
  %v489 = vadd.f32 %v353, %v488
  %v490 = vpop.f32.mrf.mxu0
  %491 = vmatprep.mubr.bf16.mxu0 0
  %492 = vmatmul.mubr.bf16.gmra.mxu0 %v331
  %v493 = vpop.f32.mrf.mxu0
  %v494 = vadd.f32 %v353, %v493
  %v495 = vpop.f32.mrf.mxu0
  %v496 = vpop.f32.mrf.mxu0
  %v497 = vadd.f32 %v353, %v496
  %v498 = vpop.f32.mrf.mxu0
  %499 = vdwg.mxu0
  %v500 = vmax.f32 %v438, 0.0
  %v501 = vmax.f32 %v441, 0.0
  %v502 = vmax.f32 %v446, 0.0
  %v503 = vmax.f32 %v449, 0.0
  %v504 = vmax.f32 %v454, 0.0
  %v505 = vmax.f32 %v457, 0.0
  %v506 = vmax.f32 %v462, 0.0
  %v507 = vmax.f32 %v465, 0.0
  %v508 = vmax.f32 %v470, 0.0
  %v509 = vmax.f32 %v473, 0.0
  %v510 = vmax.f32 %v478, 0.0
  %v511 = vmax.f32 %v481, 0.0
  %v512 = vmax.f32 %v486, 0.0
  %v513 = vmax.f32 %v489, 0.0
  %v514 = vmax.f32 %v494, 0.0
  %v515 = vmax.f32 %v497, 0.0
  %v516 = vpack.c.bf16 %v501, %v500
  %v517 = vpack.c.bf16 %v503, %v502
  %v518 = vpack.c.bf16 %v505, %v504
  %v519 = vpack.c.bf16 %v507, %v506
  %v520 = vpack.c.bf16 %v509, %v508
  %v521 = vpack.c.bf16 %v511, %v510
  %v522 = vpack.c.bf16 %v513, %v512
  %v523 = vpack.c.bf16 %v515, %v514
  %v524 = vld [vmem:[%s5] sm:$0xf]
  %v525 = vld [vmem:[%s5 + $0x4] sm:$0xf]
  %v526 = vld [vmem:[%s5 + $0x8] sm:$0xf]
  %v527 = vld [vmem:[%s5 + $0xc] sm:$0xf]
  %v528 = vld [vmem:[%s5 + $0x10] sm:$0xf]
  %v529 = vld [vmem:[%s5 + $0x14] sm:$0xf]
  %v530 = vld [vmem:[%s5 + $0x18] sm:$0xf]
  %v531 = vld [vmem:[%s5 + $0x1c] sm:$0xf]
  %v532 = vld [vmem:[%s5 + $0x20] sm:$0xf]
  %v533 = vld [vmem:[%s5 + $0x24] sm:$0xf]
  %v534 = vld [vmem:[%s5 + $0x28] sm:$0xf]
  %v535 = vld [vmem:[%s5 + $0x2c] sm:$0xf]
  %v536 = vld [vmem:[%s5 + $0x30] sm:$0xf]
  %v537 = vld [vmem:[%s5 + $0x34] sm:$0xf]
  %v538 = vld [vmem:[%s5 + $0x38] sm:$0xf]
  %v539 = vld [vmem:[%s5 + $0x3c] sm:$0xf]
  %v540 = vld [vmem:[%s6] sm:$0xf]
  %v541 = vld [vmem:[%s6 + $0x4] sm:$0xf]
  %v542 = vld [vmem:[%s6 + $0x8] sm:$0xf]
  %v543 = vld [vmem:[%s6 + $0xc] sm:$0xf]
  %v544 = vld [vmem:[%s6 + $0x10] sm:$0xf]
  %v545 = vld [vmem:[%s6 + $0x14] sm:$0xf]
  %v546 = vld [vmem:[%s6 + $0x18] sm:$0xf]
  %v547 = vld [vmem:[%s6 + $0x1c] sm:$0xf]
  %v548 = vld [vmem:[%s6 + $0x20] sm:$0xf]
  %v549 = vld [vmem:[%s6 + $0x24] sm:$0xf]
  %v550 = vld [vmem:[%s6 + $0x28] sm:$0xf]
  %v551 = vld [vmem:[%s6 + $0x2c] sm:$0xf]
  %v552 = vld [vmem:[%s6 + $0x30] sm:$0xf]
  %v553 = vld [vmem:[%s6 + $0x34] sm:$0xf]
  %v554 = vld [vmem:[%s6 + $0x38] sm:$0xf]
  %v555 = vld [vmem:[%s6 + $0x3c] sm:$0xf]
  %v572 = vunpack.c.l.b16 %v540
  %v573 = vunpack.c.l.b16 %v541
  %v574 = vunpack.c.l.b16 %v542
  %v575 = vunpack.c.l.b16 %v543
  %v576 = vunpack.c.l.b16 %v544
  %v577 = vunpack.c.l.b16 %v545
  %v578 = vunpack.c.l.b16 %v546
  %v579 = vunpack.c.l.b16 %v547
  %v580 = vunpack.c.l.b16 %v548
  %v581 = vunpack.c.l.b16 %v549
  %v582 = vunpack.c.l.b16 %v550
  %v583 = vunpack.c.l.b16 %v551
  %v584 = vunpack.c.l.b16 %v552
  %v585 = vunpack.c.l.b16 %v553
  %v586 = vunpack.c.l.b16 %v554
  %v587 = vunpack.c.l.b16 %v555
  %v588 = vpack.c.b16 %v573, %v572
  %v589 = vpack.c.b16 %v575, %v574
  %v590 = vpack.c.b16 %v577, %v576
  %v591 = vpack.c.b16 %v579, %v578
  %v592 = vpack.c.b16 %v581, %v580
  %v593 = vpack.c.b16 %v583, %v582
  %v594 = vpack.c.b16 %v585, %v584
  %v595 = vpack.c.b16 %v587, %v586
  %604 = vmatprep.subr.bf16.mxu0 0
  %605 = vmatpush1.bf16.msra.mxu0 %v595
  %606 = vmatprep.subr.bf16.mxu0 0
  %607 = vmatpush1.bf16.msra.mxu0 %v594
  %608 = vmatprep.subr.bf16.mxu0 0
  %609 = vmatpush1.bf16.msra.mxu0 %v593
  %610 = vmatprep.subr.bf16.mxu0 0
  %611 = vmatpush1.bf16.msra.mxu0 %v592
  %612 = vmatprep.subr.bf16.mxu0 0
  %613 = vmatpush1.bf16.msra.mxu0 %v591
  %614 = vmatprep.subr.bf16.mxu0 0
  %615 = vmatpush1.bf16.msra.mxu0 %v590
  %616 = vmatprep.subr.bf16.mxu0 0
  %617 = vmatpush1.bf16.msra.mxu0 %v589
  %618 = vmatprep.subr.bf16.mxu0 0
  %619 = vmatpush1.bf16.msra.mxu0 %v588
  %620 = vmatprep.subr.bf16.mxu0 0
  %621 = vmatpush2.bf16.msra.mxu0 0
  %622 = vmatprep.subr.bf16.mxu0 0
  %623 = vmatpush2.bf16.msra.mxu0 0
  %624 = vmatprep.subr.bf16.mxu0 0
  %625 = vmatpush2.bf16.msra.mxu0 0
  %626 = vmatprep.subr.bf16.mxu0 0
  %627 = vmatpush2.bf16.msra.mxu0 0
  %628 = vmatprep.subr.bf16.mxu0 0
  %629 = vmatpush2.bf16.msra.mxu0 0
  %630 = vmatprep.subr.bf16.mxu0 0
  %631 = vmatpush2.bf16.msra.mxu0 0
  %632 = vmatprep.subr.bf16.mxu0 0
  %633 = vmatpush2.bf16.msra.mxu0 0
  %634 = vmatprep.subr.bf16.mxu0 0
  %635 = vmatpush2.bf16.msra.mxu0 0
  %636 = vmatprep.mubr.bf16.mxu0 0
  %637 = vmatmul.mubr.bf16.gmra.mxu0 %v110
  %v638 = vpop.f32.mrf.mxu0
  %v639 = vadd.f32 0.0, %v638
  %v640 = vpop.f32.mrf.mxu0
  %v641 = vpop.f32.mrf.mxu0
  %v642 = vadd.f32 0.0, %v641
  %v643 = vpop.f32.mrf.mxu0
  %644 = vmatprep.mubr.bf16.mxu0 0
  %645 = vmatmul.mubr.bf16.gmra.mxu0 %v111
  %v646 = vpop.f32.mrf.mxu0
  %v647 = vadd.f32 0.0, %v646
  %v648 = vpop.f32.mrf.mxu0
  %v649 = vpop.f32.mrf.mxu0
  %v650 = vadd.f32 0.0, %v649
  %v651 = vpop.f32.mrf.mxu0
  %652 = vmatprep.mubr.bf16.mxu0 0
  %653 = vmatmul.mubr.bf16.gmra.mxu0 %v112
  %v654 = vpop.f32.mrf.mxu0
  %v655 = vadd.f32 0.0, %v654
  %v656 = vpop.f32.mrf.mxu0
  %v657 = vpop.f32.mrf.mxu0
  %v658 = vadd.f32 0.0, %v657
  %v659 = vpop.f32.mrf.mxu0
  %660 = vmatprep.mubr.bf16.mxu0 0
  %661 = vmatmul.mubr.bf16.gmra.mxu0 %v113
  %v662 = vpop.f32.mrf.mxu0
  %v663 = vadd.f32 0.0, %v662
  %v664 = vpop.f32.mrf.mxu0
  %v665 = vpop.f32.mrf.mxu0
  %v666 = vadd.f32 0.0, %v665
  %v667 = vpop.f32.mrf.mxu0
  %668 = vmatprep.mubr.bf16.mxu0 0
  %669 = vmatmul.mubr.bf16.gmra.mxu0 %v114
  %v670 = vpop.f32.mrf.mxu0
  %v671 = vadd.f32 0.0, %v670
  %v672 = vpop.f32.mrf.mxu0
  %v673 = vpop.f32.mrf.mxu0
  %v674 = vadd.f32 0.0, %v673
  %v675 = vpop.f32.mrf.mxu0
  %676 = vmatprep.mubr.bf16.mxu0 0
  %677 = vmatmul.mubr.bf16.gmra.mxu0 %v115
  %v678 = vpop.f32.mrf.mxu0
  %v679 = vadd.f32 0.0, %v678
  %v680 = vpop.f32.mrf.mxu0
  %v681 = vpop.f32.mrf.mxu0
  %v682 = vadd.f32 0.0, %v681
  %v683 = vpop.f32.mrf.mxu0
  %684 = vmatprep.mubr.bf16.mxu0 0
  %685 = vmatmul.mubr.bf16.gmra.mxu0 %v116
  %v686 = vpop.f32.mrf.mxu0
  %v687 = vadd.f32 0.0, %v686
  %v688 = vpop.f32.mrf.mxu0
  %v689 = vpop.f32.mrf.mxu0
  %v690 = vadd.f32 0.0, %v689
  %v691 = vpop.f32.mrf.mxu0
  %692 = vmatprep.mubr.bf16.mxu0 0
  %693 = vmatmul.mubr.bf16.gmra.mxu0 %v117
  %v694 = vpop.f32.mrf.mxu0
  %v695 = vadd.f32 0.0, %v694
  %v696 = vpop.f32.mrf.mxu0
  %v697 = vpop.f32.mrf.mxu0
  %v698 = vadd.f32 0.0, %v697
  %v699 = vpop.f32.mrf.mxu0
  %700 = vdwg.mxu0
  %v717 = vunpack.c.l.b16 %v524
  %v718 = vunpack.c.l.b16 %v525
  %v719 = vunpack.c.l.b16 %v526
  %v720 = vunpack.c.l.b16 %v527
  %v721 = vunpack.c.l.b16 %v528
  %v722 = vunpack.c.l.b16 %v529
  %v723 = vunpack.c.l.b16 %v530
  %v724 = vunpack.c.l.b16 %v531
  %v725 = vunpack.c.l.b16 %v532
  %v726 = vunpack.c.l.b16 %v533
  %v727 = vunpack.c.l.b16 %v534
  %v728 = vunpack.c.l.b16 %v535
  %v729 = vunpack.c.l.b16 %v536
  %v730 = vunpack.c.l.b16 %v537
  %v731 = vunpack.c.l.b16 %v538
  %v732 = vunpack.c.l.b16 %v539
  %v733 = vpack.c.b16 %v718, %v717
  %v734 = vpack.c.b16 %v720, %v719
  %v735 = vpack.c.b16 %v722, %v721
  %v736 = vpack.c.b16 %v724, %v723
  %v737 = vpack.c.b16 %v726, %v725
  %v738 = vpack.c.b16 %v728, %v727
  %v739 = vpack.c.b16 %v730, %v729
  %v740 = vpack.c.b16 %v732, %v731
  %749 = vmatprep.subr.bf16.mxu0 0
  %750 = vmatpush1.bf16.msra.mxu0 %v740
  %751 = vmatprep.subr.bf16.mxu0 0
  %752 = vmatpush1.bf16.msra.mxu0 %v739
  %753 = vmatprep.subr.bf16.mxu0 0
  %754 = vmatpush1.bf16.msra.mxu0 %v738
  %755 = vmatprep.subr.bf16.mxu0 0
  %756 = vmatpush1.bf16.msra.mxu0 %v737
  %757 = vmatprep.subr.bf16.mxu0 0
  %758 = vmatpush1.bf16.msra.mxu0 %v736
  %759 = vmatprep.subr.bf16.mxu0 0
  %760 = vmatpush1.bf16.msra.mxu0 %v735
  %761 = vmatprep.subr.bf16.mxu0 0
  %762 = vmatpush1.bf16.msra.mxu0 %v734
  %763 = vmatprep.subr.bf16.mxu0 0
  %764 = vmatpush1.bf16.msra.mxu0 %v733
  %765 = vmatprep.subr.bf16.mxu0 0
  %766 = vmatpush2.bf16.msra.mxu0 0
  %767 = vmatprep.subr.bf16.mxu0 0
  %768 = vmatpush2.bf16.msra.mxu0 0
  %769 = vmatprep.subr.bf16.mxu0 0
  %770 = vmatpush2.bf16.msra.mxu0 0
  %771 = vmatprep.subr.bf16.mxu0 0
  %772 = vmatpush2.bf16.msra.mxu0 0
  %773 = vmatprep.subr.bf16.mxu0 0
  %774 = vmatpush2.bf16.msra.mxu0 0
  %775 = vmatprep.subr.bf16.mxu0 0
  %776 = vmatpush2.bf16.msra.mxu0 0
  %777 = vmatprep.subr.bf16.mxu0 0
  %778 = vmatpush2.bf16.msra.mxu0 0
  %779 = vmatprep.subr.bf16.mxu0 0
  %780 = vmatpush2.bf16.msra.mxu0 0
  %781 = vmatprep.mubr.bf16.mxu0 0
  %782 = vmatmul.mubr.bf16.gmra.mxu0 %v516
  %v783 = vpop.f32.mrf.mxu0
  %v784 = vadd.f32 %v639, %v783
  %v785 = vpop.f32.mrf.mxu0
  %v786 = vpop.f32.mrf.mxu0
  %v787 = vadd.f32 %v642, %v786
  %v788 = vpop.f32.mrf.mxu0
  %789 = vmatprep.mubr.bf16.mxu0 0
  %790 = vmatmul.mubr.bf16.gmra.mxu0 %v517
  %v791 = vpop.f32.mrf.mxu0
  %v792 = vadd.f32 %v647, %v791
  %v793 = vpop.f32.mrf.mxu0
  %v794 = vpop.f32.mrf.mxu0
  %v795 = vadd.f32 %v650, %v794
  %v796 = vpop.f32.mrf.mxu0
  %797 = vmatprep.mubr.bf16.mxu0 0
  %798 = vmatmul.mubr.bf16.gmra.mxu0 %v518
  %v799 = vpop.f32.mrf.mxu0
  %v800 = vadd.f32 %v655, %v799
  %v801 = vpop.f32.mrf.mxu0
  %v802 = vpop.f32.mrf.mxu0
  %v803 = vadd.f32 %v658, %v802
  %v804 = vpop.f32.mrf.mxu0
  %805 = vmatprep.mubr.bf16.mxu0 0
  %806 = vmatmul.mubr.bf16.gmra.mxu0 %v519
  %v807 = vpop.f32.mrf.mxu0
  %v808 = vadd.f32 %v663, %v807
  %v809 = vpop.f32.mrf.mxu0
  %v810 = vpop.f32.mrf.mxu0
  %v811 = vadd.f32 %v666, %v810
  %v812 = vpop.f32.mrf.mxu0
  %813 = vmatprep.mubr.bf16.mxu0 0
  %814 = vmatmul.mubr.bf16.gmra.mxu0 %v520
  %v815 = vpop.f32.mrf.mxu0
  %v816 = vadd.f32 %v671, %v815
  %v817 = vpop.f32.mrf.mxu0
  %v818 = vpop.f32.mrf.mxu0
  %v819 = vadd.f32 %v674, %v818
  %v820 = vpop.f32.mrf.mxu0
  %821 = vmatprep.mubr.bf16.mxu0 0
  %822 = vmatmul.mubr.bf16.gmra.mxu0 %v521
  %v823 = vpop.f32.mrf.mxu0
  %v824 = vadd.f32 %v679, %v823
  %v825 = vpop.f32.mrf.mxu0
  %v826 = vpop.f32.mrf.mxu0
  %v827 = vadd.f32 %v682, %v826
  %v828 = vpop.f32.mrf.mxu0
  %829 = vmatprep.mubr.bf16.mxu0 0
  %830 = vmatmul.mubr.bf16.gmra.mxu0 %v522
  %v831 = vpop.f32.mrf.mxu0
  %v832 = vadd.f32 %v687, %v831
  %v833 = vpop.f32.mrf.mxu0
  %v834 = vpop.f32.mrf.mxu0
  %v835 = vadd.f32 %v690, %v834
  %v836 = vpop.f32.mrf.mxu0
  %837 = vmatprep.mubr.bf16.mxu0 0
  %838 = vmatmul.mubr.bf16.gmra.mxu0 %v523
  %v839 = vpop.f32.mrf.mxu0
  %v840 = vadd.f32 %v695, %v839
  %v841 = vpop.f32.mrf.mxu0
  %v842 = vpop.f32.mrf.mxu0
  %v843 = vadd.f32 %v698, %v842
  %v844 = vpop.f32.mrf.mxu0
  %845 = vdwg.mxu0
  %v846 = vld [vmem:[%s7] sm:$0x1]
  %v848 = vlaneseq
  %v849 = vshrl.u32 %v848, 7
  %v850 = vsub.s32 0, %v849
  %v851 = vrot.slane %v846, %v850
  %v853 = vadd.f32 %v784, %v851
  %v854 = vadd.f32 %v787, %v851
  %v855 = vadd.f32 %v792, %v851
  %v856 = vadd.f32 %v795, %v851
  %v857 = vadd.f32 %v800, %v851
  %v858 = vadd.f32 %v803, %v851
  %v859 = vadd.f32 %v808, %v851
  %v860 = vadd.f32 %v811, %v851
  %v861 = vadd.f32 %v816, %v851
  %v862 = vadd.f32 %v819, %v851
  %v863 = vadd.f32 %v824, %v851
  %v864 = vadd.f32 %v827, %v851
  %v865 = vadd.f32 %v832, %v851
  %v866 = vadd.f32 %v835, %v851
  %v867 = vadd.f32 %v840, %v851
  %v868 = vadd.f32 %v843, %v851
  %vm869 = vcmp.lt.s32.totalorder %v272, 8
  %vm870 = vmand %vm273, %vm869
  %v871 = vmax.f32 %v853, 0.0
  %v872 = vmax.f32 %v854, 0.0
  %v873 = vmax.f32 %v855, 0.0
  %v874 = vmax.f32 %v856, 0.0
  %v875 = vmax.f32 %v857, 0.0
  %v876 = vmax.f32 %v858, 0.0
  %v877 = vmax.f32 %v859, 0.0
  %v878 = vmax.f32 %v860, 0.0
  %v879 = vmax.f32 %v861, 0.0
  %v880 = vmax.f32 %v862, 0.0
  %v881 = vmax.f32 %v863, 0.0
  %v882 = vmax.f32 %v864, 0.0
  %v883 = vmax.f32 %v865, 0.0
  %v884 = vmax.f32 %v866, 0.0
  %v885 = vmax.f32 %v867, 0.0
  %v886 = vmax.f32 %v868, 0.0
  %v887 = vsel %vm870, %v853, %v871
  %v888 = vsel %vm870, %v854, %v872
  %v889 = vsel %vm870, %v855, %v873
  %v890 = vsel %vm870, %v856, %v874
  %v891 = vsel %vm870, %v857, %v875
  %v892 = vsel %vm870, %v858, %v876
  %v893 = vsel %vm870, %v859, %v877
  %v894 = vsel %vm870, %v860, %v878
  %v895 = vsel %vm870, %v861, %v879
  %v896 = vsel %vm870, %v862, %v880
  %v897 = vsel %vm870, %v863, %v881
  %v898 = vsel %vm870, %v864, %v882
  %v899 = vsel %vm870, %v865, %v883
  %v900 = vsel %vm870, %v866, %v884
  %v901 = vsel %vm870, %v867, %v885
  %v902 = vsel %vm870, %v868, %v886
  %903 = vst [vmem:[%s11] sm:$0xff] %v887
  %904 = vst [vmem:[%s11 + $0x8] sm:$0xff] %v888
  %905 = vst [vmem:[%s11 + $0x10] sm:$0xff] %v889
  %906 = vst [vmem:[%s11 + $0x18] sm:$0xff] %v890
  %907 = vst [vmem:[%s11 + $0x20] sm:$0xff] %v891
  %908 = vst [vmem:[%s11 + $0x28] sm:$0xff] %v892
  %909 = vst [vmem:[%s11 + $0x30] sm:$0xff] %v893
  %910 = vst [vmem:[%s11 + $0x38] sm:$0xff] %v894
  %911 = vst [vmem:[%s11 + $0x40] sm:$0xff] %v895
  %912 = vst [vmem:[%s11 + $0x48] sm:$0xff] %v896
  %913 = vst [vmem:[%s11 + $0x50] sm:$0xff] %v897
  %914 = vst [vmem:[%s11 + $0x58] sm:$0xff] %v898
  %915 = vst [vmem:[%s11 + $0x60] sm:$0xff] %v899
  %916 = vst [vmem:[%s11 + $0x68] sm:$0xff] %v900
  %917 = vst [vmem:[%s11 + $0x70] sm:$0xff] %v901
  %918 = vst [vmem:[%s11 + $0x78] sm:$0xff] %v902
  %v919 = vpack.c.bf16 %v888, %v887
  %v920 = vpack.c.bf16 %v890, %v889
  %v921 = vpack.c.bf16 %v892, %v891
  %v922 = vpack.c.bf16 %v894, %v893
  %v923 = vpack.c.bf16 %v896, %v895
  %v924 = vpack.c.bf16 %v898, %v897
  %v925 = vpack.c.bf16 %v900, %v899
  %v926 = vpack.c.bf16 %v902, %v901
  %v927 = vld [vmem:[%s8] sm:$0xf]
  %v928 = vld [vmem:[%s8 + $0x4] sm:$0xf]
  %v929 = vld [vmem:[%s8 + $0x8] sm:$0xf]
  %v930 = vld [vmem:[%s8 + $0xc] sm:$0xf]
  %v931 = vld [vmem:[%s8 + $0x10] sm:$0xf]
  %v932 = vld [vmem:[%s8 + $0x14] sm:$0xf]
  %v933 = vld [vmem:[%s8 + $0x18] sm:$0xf]
  %v934 = vld [vmem:[%s8 + $0x1c] sm:$0xf]
  %v935 = vld [vmem:[%s8 + $0x20] sm:$0xf]
  %v936 = vld [vmem:[%s8 + $0x24] sm:$0xf]
  %v937 = vld [vmem:[%s8 + $0x28] sm:$0xf]
  %v938 = vld [vmem:[%s8 + $0x2c] sm:$0xf]
  %v939 = vld [vmem:[%s8 + $0x30] sm:$0xf]
  %v940 = vld [vmem:[%s8 + $0x34] sm:$0xf]
  %v941 = vld [vmem:[%s8 + $0x38] sm:$0xf]
  %v942 = vld [vmem:[%s8 + $0x3c] sm:$0xf]
  %v943 = vld [vmem:[%s9] sm:$0x1]
  %v945 = vlaneseq
  %v946 = vshrl.u32 %v945, 7
  %v947 = vsub.s32 0, %v946
  %v948 = vrot.slane %v943, %v947
  %v966 = vunpack.c.l.b16 %v927
  %v967 = vunpack.c.l.b16 %v928
  %v968 = vunpack.c.l.b16 %v929
  %v969 = vunpack.c.l.b16 %v930
  %v970 = vunpack.c.l.b16 %v931
  %v971 = vunpack.c.l.b16 %v932
  %v972 = vunpack.c.l.b16 %v933
  %v973 = vunpack.c.l.b16 %v934
  %v974 = vunpack.c.l.b16 %v935
  %v975 = vunpack.c.l.b16 %v936
  %v976 = vunpack.c.l.b16 %v937
  %v977 = vunpack.c.l.b16 %v938
  %v978 = vunpack.c.l.b16 %v939
  %v979 = vunpack.c.l.b16 %v940
  %v980 = vunpack.c.l.b16 %v941
  %v981 = vunpack.c.l.b16 %v942
  %v982 = vpack.c.b16 %v967, %v966
  %v983 = vpack.c.b16 %v969, %v968
  %v984 = vpack.c.b16 %v971, %v970
  %v985 = vpack.c.b16 %v973, %v972
  %v986 = vpack.c.b16 %v975, %v974
  %v987 = vpack.c.b16 %v977, %v976
  %v988 = vpack.c.b16 %v979, %v978
  %v989 = vpack.c.b16 %v981, %v980
  %998 = vmatprep.subr.bf16.mxu0 0
  %999 = vmatpush1.bf16.msra.mxu0 %v989
  %1000 = vmatprep.subr.bf16.mxu0 0
  %1001 = vmatpush1.bf16.msra.mxu0 %v988
  %1002 = vmatprep.subr.bf16.mxu0 0
  %1003 = vmatpush1.bf16.msra.mxu0 %v987
  %1004 = vmatprep.subr.bf16.mxu0 0
  %1005 = vmatpush1.bf16.msra.mxu0 %v986
  %1006 = vmatprep.subr.bf16.mxu0 0
  %1007 = vmatpush1.bf16.msra.mxu0 %v985
  %1008 = vmatprep.subr.bf16.mxu0 0
  %1009 = vmatpush1.bf16.msra.mxu0 %v984
  %1010 = vmatprep.subr.bf16.mxu0 0
  %1011 = vmatpush1.bf16.msra.mxu0 %v983
  %1012 = vmatprep.subr.bf16.mxu0 0
  %1013 = vmatpush1.bf16.msra.mxu0 %v982
  %1014 = vmatprep.subr.bf16.mxu0 0
  %1015 = vmatpush2.bf16.msra.mxu0 0
  %1016 = vmatprep.subr.bf16.mxu0 0
  %1017 = vmatpush2.bf16.msra.mxu0 0
  %1018 = vmatprep.subr.bf16.mxu0 0
  %1019 = vmatpush2.bf16.msra.mxu0 0
  %1020 = vmatprep.subr.bf16.mxu0 0
  %1021 = vmatpush2.bf16.msra.mxu0 0
  %1022 = vmatprep.subr.bf16.mxu0 0
  %1023 = vmatpush2.bf16.msra.mxu0 0
  %1024 = vmatprep.subr.bf16.mxu0 0
  %1025 = vmatpush2.bf16.msra.mxu0 0
  %1026 = vmatprep.subr.bf16.mxu0 0
  %1027 = vmatpush2.bf16.msra.mxu0 0
  %1028 = vmatprep.subr.bf16.mxu0 0
  %1029 = vmatpush2.bf16.msra.mxu0 0
  %1030 = vmatprep.mubr.bf16.mxu0 0
  %1031 = vmatmul.mubr.bf16.gmra.mxu0 %v919
  %v1032 = vpop.f32.mrf.mxu0
  %v1033 = vadd.f32 %v948, %v1032
  %v1034 = vpop.f32.mrf.mxu0
  %v1035 = vpop.f32.mrf.mxu0
  %v1036 = vadd.f32 %v948, %v1035
  %v1037 = vpop.f32.mrf.mxu0
  %1038 = vmatprep.mubr.bf16.mxu0 0
  %1039 = vmatmul.mubr.bf16.gmra.mxu0 %v920
  %v1040 = vpop.f32.mrf.mxu0
  %v1041 = vadd.f32 %v948, %v1040
  %v1042 = vpop.f32.mrf.mxu0
  %v1043 = vpop.f32.mrf.mxu0
  %v1044 = vadd.f32 %v948, %v1043
  %v1045 = vpop.f32.mrf.mxu0
  %1046 = vmatprep.mubr.bf16.mxu0 0
  %1047 = vmatmul.mubr.bf16.gmra.mxu0 %v921
  %v1048 = vpop.f32.mrf.mxu0
  %v1049 = vadd.f32 %v948, %v1048
  %v1050 = vpop.f32.mrf.mxu0
  %v1051 = vpop.f32.mrf.mxu0
  %v1052 = vadd.f32 %v948, %v1051
  %v1053 = vpop.f32.mrf.mxu0
  %1054 = vmatprep.mubr.bf16.mxu0 0
  %1055 = vmatmul.mubr.bf16.gmra.mxu0 %v922
  %v1056 = vpop.f32.mrf.mxu0
  %v1057 = vadd.f32 %v948, %v1056
  %v1058 = vpop.f32.mrf.mxu0
  %v1059 = vpop.f32.mrf.mxu0
  %v1060 = vadd.f32 %v948, %v1059
  %v1061 = vpop.f32.mrf.mxu0
  %1062 = vmatprep.mubr.bf16.mxu0 0
  %1063 = vmatmul.mubr.bf16.gmra.mxu0 %v923
  %v1064 = vpop.f32.mrf.mxu0
  %v1065 = vadd.f32 %v948, %v1064
  %v1066 = vpop.f32.mrf.mxu0
  %v1067 = vpop.f32.mrf.mxu0
  %v1068 = vadd.f32 %v948, %v1067
  %v1069 = vpop.f32.mrf.mxu0
  %1070 = vmatprep.mubr.bf16.mxu0 0
  %1071 = vmatmul.mubr.bf16.gmra.mxu0 %v924
  %v1072 = vpop.f32.mrf.mxu0
  %v1073 = vadd.f32 %v948, %v1072
  %v1074 = vpop.f32.mrf.mxu0
  %v1075 = vpop.f32.mrf.mxu0
  %v1076 = vadd.f32 %v948, %v1075
  %v1077 = vpop.f32.mrf.mxu0
  %1078 = vmatprep.mubr.bf16.mxu0 0
  %1079 = vmatmul.mubr.bf16.gmra.mxu0 %v925
  %v1080 = vpop.f32.mrf.mxu0
  %v1081 = vadd.f32 %v948, %v1080
  %v1082 = vpop.f32.mrf.mxu0
  %v1083 = vpop.f32.mrf.mxu0
  %v1084 = vadd.f32 %v948, %v1083
  %v1085 = vpop.f32.mrf.mxu0
  %1086 = vmatprep.mubr.bf16.mxu0 0
  %1087 = vmatmul.mubr.bf16.gmra.mxu0 %v926
  %v1088 = vpop.f32.mrf.mxu0
  %v1089 = vadd.f32 %v948, %v1088
  %v1090 = vpop.f32.mrf.mxu0
  %v1091 = vpop.f32.mrf.mxu0
  %v1092 = vadd.f32 %v948, %v1091
  %v1093 = vpop.f32.mrf.mxu0
  %1094 = vdwg.mxu0
  %1095 = vst [vmem:[%s12] sm:$0xff] %v1033
  %1096 = vst [vmem:[%s12 + $0x8] sm:$0xff] %v1036
  %1097 = vst [vmem:[%s12 + $0x10] sm:$0xff] %v1041
  %1098 = vst [vmem:[%s12 + $0x18] sm:$0xff] %v1044
  %1099 = vst [vmem:[%s12 + $0x20] sm:$0xff] %v1049
  %1100 = vst [vmem:[%s12 + $0x28] sm:$0xff] %v1052
  %1101 = vst [vmem:[%s12 + $0x30] sm:$0xff] %v1057
  %1102 = vst [vmem:[%s12 + $0x38] sm:$0xff] %v1060
  %1103 = vst [vmem:[%s12 + $0x40] sm:$0xff] %v1065
  %1104 = vst [vmem:[%s12 + $0x48] sm:$0xff] %v1068
  %1105 = vst [vmem:[%s12 + $0x50] sm:$0xff] %v1073
  %1106 = vst [vmem:[%s12 + $0x58] sm:$0xff] %v1076
  %1107 = vst [vmem:[%s12 + $0x60] sm:$0xff] %v1081
  %1108 = vst [vmem:[%s12 + $0x68] sm:$0xff] %v1084
  %1109 = vst [vmem:[%s12 + $0x70] sm:$0xff] %v1089
  %1110 = vst [vmem:[%s12 + $0x78] sm:$0xff] %v1092
  // Predicated region
  $region42: #{forward.16} parent=0 // pred_check
    _
  $region43: #{forward.16} parent=0 // pred_check_branch
    %1112 = sbr.rel (0) target = $region45
  $region44: #{forward.16} parent=0 // pred_region
    _
  $region45: #{forward.16} parent=0 // pred_fallthru
    _
  // Predicated region
  $region46: #{forward.16} parent=0 // pred_check
    _
  $region47: #{forward.16} parent=0 // pred_check_branch
    %1114 = sbr.rel (0) target = $region49
  $region48: #{forward.16} parent=0 // pred_region
    _
  $region49: #{forward.16} parent=0 // pred_fallthru
    _
  // Predicated region
  $region50: #{forward.16} parent=0 // pred_check
    _
  $region51: #{forward.16} parent=0 // pred_check_branch
    %1116 = sbr.rel (0) target = $region53
  $region52: #{forward.16} parent=0 // pred_region
    _
  $region53: #{forward.16} parent=0 // pred_fallthru
    _
  // Predicated region
  $region54: #{forward.16} parent=0 // pred_check
    _
  $region55: #{forward.16} parent=0 // pred_check_branch
    %1118 = sbr.rel (0) target = $region57
  $region56: #{forward.16} parent=0 // pred_region
    _
  $region57: #{forward.16} parent=0 // pred_fallthru
    _
  // Predicated region
  $region58: #{forward.16} parent=0 // pred_check
    _
  $region59: #{forward.16} parent=0 // pred_check_branch
    %1120 = sbr.rel (0) target = $region61
  $region60: #{forward.16} parent=0 // pred_region
    _
  $region61: #{forward.16} parent=0 // pred_fallthru
    _
  // Predicated region
  $region62: #{forward.16} parent=0 // pred_check
    _
  $region63: #{forward.16} parent=0 // pred_check_branch
    %1122 = sbr.rel (0) target = $region65
  $region64: #{forward.16} parent=0 // pred_region
    _
  $region65: #{forward.16} parent=0 // pred_fallthru
    _

// kernel: forward.17
$region0: #{forward.17}
  #allocation0 [shape = 'u32[]', space=smem, size = 0x4, offset = 0x4, fixed_abs, tag = 'smem constant byte address 0x4 - core index']
  #allocation1 [shape = 'u32[144,128]{1,0:T(1,128)}', space=vmem, size = 0x12000, scoped, tag = 'internal scratch']
  %s0 = inlined_call_operand.vmem [shape: bf16[1024,64], index: 0, kind: input, shape index: {}]
  %s1 = inlined_call_operand.vmem [shape: bf16[2,64,128], index: 1, kind: input, shape index: {}]
  %s2 = inlined_call_operand.vmem [shape: bf16[1024,16], index: 2, kind: input, shape index: {}]
  %s3 = inlined_call_operand.vmem [shape: bf16[2,16,128], index: 3, kind: input, shape index: {}]
  %s4 = inlined_call_operand.vmem [shape: f32[2,1024,128], index: 4, kind: output, shape index: {0}]
  %s5 = inlined_call_operand.vmem [shape: f32[2,1024,128], index: 5, kind: output, shape index: {1}]
  %6 = xla_tuple %s4, %s5
  %s7 = sld [smem:[#allocation0]]
  $region57: #{forward.17} parent=0
    _
  %s9 = ssub.s32 1, %s7
  %s10 = scalar_select 0, %s9, %s7
  loop: start=0, step=1, limit=4
  $region2: #{forward.17} parent=0 // loop_pre_header
    _
  $region3: #{forward.17} parent=0 // loop_header
    %s12 = sphi 0, %s16
    %p13 = scmp.ge.s32.totalorder %s12, 4
    %s20 = sphi 0, %s20
    %s22 = sphi 0, %s20
    %s23 = sphi 0, %s22
    %s37 = sphi 0, %s23
    %s43 = sphi 0, %s45
    %s46 = sphi 0, %s43
    %s47 = sphi 0, %s46
    %s63 = sphi 0, %s47
    %s67 = sphi 0, %s67
    %s69 = sphi 0, %s67
    %s70 = sphi 0, %s69
    %s84 = sphi 0, %s70
    %s90 = sphi 0, %s92
    %s93 = sphi 0, %s90
    %s94 = sphi 0, %s93
    %s110 = sphi 0, %s94
    %s116 = sphi 0, %s118
    %s119 = sphi 0, %s116
    %s120 = sphi 0, %s119
    %s136 = sphi 0, %s120
    %s142 = sphi 0, %s144
    %s145 = sphi 0, %s142
    %s146 = sphi 0, %s145
    %s162 = sphi 0, %s146
  $region4: #{forward.17} parent=0 // loop_header_branch
    %15 = sbr.rel (%p13) target = $region8
  $region5: #{forward.17} parent=0 // loop_body
    %s17 = ssub.s32 %s12, 1
    %s18 = ssub.s32 %s12, 2
    %s19 = sadd.s32 %s12, 1
    %s21 = sadd.s32 %s20, 1
    %p24 = scmp.eq.s32.totalorder %s12, 1
    %p25 = scmp.ne.s32.totalorder %s20, %s22
    %p26 = scmp.eq.s32.totalorder %s12, 0
    %p27 = por %p25, %p26
    %p28 = scmp.ne.s32.totalorder %s20, %s22
    %p29 = scmp.eq.s32.totalorder %s17, 1
    %p30 = por %p28, %p29
    %p31 = scmp.ne.s32.totalorder %s22, %s23
    %p32 = scmp.eq.s32.totalorder %s17, 0
    %p33 = por %p31, %p32
    %p34 = scmp.ne.s32.totalorder %s22, %s23
    %p35 = scmp.eq.s32.totalorder %s18, 1
    %p36 = por %p34, %p35
    %p38 = scmp.ne.s32.totalorder %s23, %s37
    %p39 = scmp.eq.s32.totalorder %s18, 0
    %p40 = por %p38, %p39
    %s41 = ssub.s32 %s12, %s19
    %p42 = scmp.eq.s32.totalorder %s41, 0
    %s44 = sadd.s32 %s43, 1
    %s45 = scalar_select %p42, %s43, %s44
    %p48 = pneg %p42
    %p49 = scmp.eq.s32.totalorder %s12, 1
    %p50 = por %p48, %p49
    %p51 = scmp.ne.s32.totalorder %s43, %s46
    %p52 = scmp.eq.s32.totalorder %s12, 0
    %p53 = por %p51, %p52
    %p54 = scmp.ne.s32.totalorder %s43, %s46
    %p55 = scmp.eq.s32.totalorder %s17, 1
    %p56 = por %p54, %p55
    %p57 = scmp.ne.s32.totalorder %s46, %s47
    %p58 = scmp.eq.s32.totalorder %s17, 0
    %p59 = por %p57, %p58
    %p60 = scmp.ne.s32.totalorder %s46, %s47
    %p61 = scmp.eq.s32.totalorder %s18, 1
    %p62 = por %p60, %p61
    %p64 = scmp.ne.s32.totalorder %s47, %s63
    %p65 = scmp.eq.s32.totalorder %s18, 0
    %p66 = por %p64, %p65
    %s68 = sadd.s32 %s67, 1
    %p71 = scmp.eq.s32.totalorder %s12, 1
    %p72 = scmp.ne.s32.totalorder %s67, %s69
    %p73 = scmp.eq.s32.totalorder %s12, 0
    %p74 = por %p72, %p73
    %p75 = scmp.ne.s32.totalorder %s67, %s69
    %p76 = scmp.eq.s32.totalorder %s17, 1
    %p77 = por %p75, %p76
    %p78 = scmp.ne.s32.totalorder %s69, %s70
    %p79 = scmp.eq.s32.totalorder %s17, 0
    %p80 = por %p78, %p79
    %p81 = scmp.ne.s32.totalorder %s69, %s70
    %p82 = scmp.eq.s32.totalorder %s18, 1
    %p83 = por %p81, %p82
    %p85 = scmp.ne.s32.totalorder %s70, %s84
    %p86 = scmp.eq.s32.totalorder %s18, 0
    %p87 = por %p85, %p86
    %s88 = ssub.s32 %s12, %s19
    %p89 = scmp.eq.s32.totalorder %s88, 0
    %s91 = sadd.s32 %s90, 1
    %s92 = scalar_select %p89, %s90, %s91
    %p95 = pneg %p89
    %p96 = scmp.eq.s32.totalorder %s12, 1
    %p97 = por %p95, %p96
    %p98 = scmp.ne.s32.totalorder %s90, %s93
    %p99 = scmp.eq.s32.totalorder %s12, 0
    %p100 = por %p98, %p99
    %p101 = scmp.ne.s32.totalorder %s90, %s93
    %p102 = scmp.eq.s32.totalorder %s17, 1
    %p103 = por %p101, %p102
    %p104 = scmp.ne.s32.totalorder %s93, %s94
    %p105 = scmp.eq.s32.totalorder %s17, 0
    %p106 = por %p104, %p105
    %p107 = scmp.ne.s32.totalorder %s93, %s94
    %p108 = scmp.eq.s32.totalorder %s18, 1
    %p109 = por %p107, %p108
    %p111 = scmp.ne.s32.totalorder %s94, %s110
    %p112 = scmp.eq.s32.totalorder %s18, 0
    %p113 = por %p111, %p112
    %s114 = ssub.s32 %s12, %s19
    %p115 = scmp.eq.s32.totalorder %s114, 0
    %s117 = sadd.s32 %s116, 1
    %s118 = scalar_select %p115, %s116, %s117
    %p121 = pneg %p115
    %p122 = scmp.eq.s32.totalorder %s12, 1
    %p123 = por %p121, %p122
    %p124 = scmp.ne.s32.totalorder %s116, %s119
    %p125 = scmp.eq.s32.totalorder %s12, 0
    %p126 = por %p124, %p125
    %p127 = scmp.ne.s32.totalorder %s116, %s119
    %p128 = scmp.eq.s32.totalorder %s17, 1
    %p129 = por %p127, %p128
    %p130 = scmp.ne.s32.totalorder %s119, %s120
    %p131 = scmp.eq.s32.totalorder %s17, 0
    %p132 = por %p130, %p131
    %p133 = scmp.ne.s32.totalorder %s119, %s120
    %p134 = scmp.eq.s32.totalorder %s18, 1
    %p135 = por %p133, %p134
    %p137 = scmp.ne.s32.totalorder %s120, %s136
    %p138 = scmp.eq.s32.totalorder %s18, 0
    %p139 = por %p137, %p138
    %s140 = ssub.s32 %s12, %s19
    %p141 = scmp.eq.s32.totalorder %s140, 0
    %s143 = sadd.s32 %s142, 1
    %s144 = scalar_select %p141, %s142, %s143
    %p147 = pneg %p141
    %p148 = scmp.eq.s32.totalorder %s12, 1
    %p149 = por %p147, %p148
    %p150 = scmp.ne.s32.totalorder %s142, %s145
    %p151 = scmp.eq.s32.totalorder %s12, 0
    %p152 = por %p150, %p151
    %p153 = scmp.ne.s32.totalorder %s142, %s145
    %p154 = scmp.eq.s32.totalorder %s17, 1
    %p155 = por %p153, %p154
    %p156 = scmp.ne.s32.totalorder %s145, %s146
    %p157 = scmp.eq.s32.totalorder %s17, 0
    %p158 = por %p156, %p157
    %p159 = scmp.ne.s32.totalorder %s145, %s146
    %p160 = scmp.eq.s32.totalorder %s18, 1
    %p161 = por %p159, %p160
    %p163 = scmp.ne.s32.totalorder %s146, %s162
    %p164 = scmp.eq.s32.totalorder %s18, 0
    %p165 = por %p163, %p164
    %p166 = scmp.le.s32.totalorder 1, %s12
    %p167 = scmp.lt.s32.totalorder %s12, 3
    %p168 = pnand %p166, %p167
    %p169 = pneg %p168
    // Predicated region
    $region9: #{forward.17} parent=5 // pred_check
      _
    $region10: #{forward.17} parent=5 // pred_check_branch
      %171 = sbr.rel (%p168) target = $region12
    $region11: #{forward.17} parent=5 // pred_region
      %s172 = ssub.s32 %s12, 1
      // Predicated region
      $region13: #{forward.17} parent=11 // pred_check
        %p173 = pneg %p33
      $region14: #{forward.17} parent=11 // pred_check_branch
        %175 = sbr.rel (%p173) target = $region16
      $region15: #{forward.17} parent=11 // pred_region
        _
      $region16: #{forward.17} parent=11 // pred_fallthru
        _
      // Predicated region
      $region17: #{forward.17} parent=11 // pred_check
        %p176 = pneg %p80
      $region18: #{forward.17} parent=11 // pred_check_branch
        %178 = sbr.rel (%p176) target = $region20
      $region19: #{forward.17} parent=11 // pred_region
        _
      $region20: #{forward.17} parent=11 // pred_fallthru
        _
    $region12: #{forward.17} parent=5 // pred_fallthru
      _
    %p179 = scmp.lt.s32.totalorder %s12, 2
    // Predicated region
    $region21: #{forward.17} parent=5 // pred_check
      %p180 = pneg %p179
    $region22: #{forward.17} parent=5 // pred_check_branch
      %182 = sbr.rel (%p180) target = $region24
    $region23: #{forward.17} parent=5 // pred_region
      // Predicated region
      $region25: #{forward.17} parent=23 // pred_check
        %p183 = pneg %p53
      $region26: #{forward.17} parent=23 // pred_check_branch
        %185 = sbr.rel (%p183) target = $region28
      $region27: #{forward.17} parent=23 // pred_region
        %p186 = scmp.lt.s32.totalorder %s12, 1
        %s187 = scalar_select %p186, %s12, 1
        %s188 = smul.addr %s187, 8
        %s189 = smul.addr %s188, 4
        %s190 = scalar_lea.vmem %s1, %s189
      $region28: #{forward.17} parent=23 // pred_fallthru
        _
      // Predicated region
      $region29: #{forward.17} parent=23 // pred_check
        %p191 = pneg %p100
      $region30: #{forward.17} parent=23 // pred_check_branch
        %193 = sbr.rel (%p191) target = $region32
      $region31: #{forward.17} parent=23 // pred_region
        %p194 = scmp.lt.s32.totalorder %s12, 1
        %s195 = scalar_select %p194, %s12, 1
        %s196 = smul.addr %s195, 2
        %s197 = smul.addr %s196, 4
        %s198 = scalar_lea.vmem %s3, %s197
      $region32: #{forward.17} parent=23 // pred_fallthru
        _
    $region24: #{forward.17} parent=5 // pred_fallthru
      _
    %p199 = scmp.le.s32.totalorder 1, %s12
    %p200 = scmp.lt.s32.totalorder %s12, 3
    %p201 = pnand %p199, %p200
    %p202 = pneg %p201
    // Predicated region
    $region33: #{forward.17} parent=5 // pred_check
      _
    $region34: #{forward.17} parent=5 // pred_check_branch
      %204 = sbr.rel (%p201) target = $region36
    $region35: #{forward.17} parent=5 // pred_region
      %s205 = ssub.s32 %s12, 1
      %p206 = pneg %p33
      %p207 = pneg %p30
      %p208 = scmp.lt.s32.totalorder %s17, 1
      %s209 = scalar_select %p208, %s17, 1
      %s210 = smul.addr %s209, 8
      %s211 = smul.addr %s210, 4
      %s212 = scalar_lea.vmem %s1, %s211
      %p213 = pneg %p59
      %p214 = pneg %p56
      %p215 = pneg %p80
      %p216 = pneg %p77
      %p217 = scmp.lt.s32.totalorder %s17, 1
      %s218 = scalar_select %p217, %s17, 1
      %s219 = smul.addr %s218, 2
      %s220 = smul.addr %s219, 4
      %s221 = scalar_lea.vmem %s3, %s220
      %p222 = pneg %p106
      %p223 = pneg %p103
      %p224 = pneg %p132
      %p225 = pneg %p129
      %p226 = scmp.lt.s32.totalorder %s17, 1
      %s227 = scalar_select %p226, %s17, 1
      %s228 = smul.addr %s227, 128
      %s229 = smul.addr %s228, 8
      %s230 = scalar_lea.vmem %s4, %s229
      %p231 = pneg %p158
      %p232 = pneg %p155
      %p233 = scmp.lt.s32.totalorder %s17, 1
      %s234 = scalar_select %p233, %s17, 1
      %s235 = smul.addr %s234, 128
      %s236 = smul.addr %s235, 8
      %s237 = scalar_lea.vmem %s5, %s236
      %p238 = scmp.lt.s32.totalorder %s17, 1
      %s239 = scalar_select %p238, %s17, 1
      %s240 = smul.addr %s239, 8
      %s241 = smul.addr %s240, 4
      %s242 = scalar_lea.vmem %s1, %s241
      %p243 = scmp.lt.s32.totalorder %s17, 1
      %s244 = scalar_select %p243, %s17, 1
      %s245 = smul.addr %s244, 2
      %s246 = smul.addr %s245, 4
      %s247 = scalar_lea.vmem %s3, %s246
      %p248 = scmp.lt.s32.totalorder %s17, 1
      %s249 = scalar_select %p248, %s17, 1
      %s250 = smul.addr %s249, 128
      %s251 = smul.addr %s250, 8
      %s252 = scalar_lea.vmem %s4, %s251
      %p253 = scmp.lt.s32.totalorder %s17, 1
      %s254 = scalar_select %p253, %s17, 1
      %s255 = smul.addr %s254, 128
      %s256 = smul.addr %s255, 8
      %s257 = scalar_lea.vmem %s5, %s256
      %v259 = vld [vmem:[%s0] sm:$0xf]
      %v260 = vld [vmem:[%s0 + $0x4] sm:$0xf]
      %v261 = vld [vmem:[%s0 + $0x8] sm:$0xf]
      %v262 = vld [vmem:[%s0 + $0xc] sm:$0xf]
      %v263 = vld [vmem:[%s0 + $0x10] sm:$0xf]
      %v264 = vld [vmem:[%s0 + $0x14] sm:$0xf]
      %v265 = vld [vmem:[%s0 + $0x18] sm:$0xf]
      %v266 = vld [vmem:[%s0 + $0x1c] sm:$0xf]
      %v267 = vld [vmem:[%s0 + $0x20] sm:$0xf]
      %v268 = vld [vmem:[%s0 + $0x24] sm:$0xf]
      %v269 = vld [vmem:[%s0 + $0x28] sm:$0xf]
      %v270 = vld [vmem:[%s0 + $0x2c] sm:$0xf]
      %v271 = vld [vmem:[%s0 + $0x30] sm:$0xf]
      %v272 = vld [vmem:[%s0 + $0x34] sm:$0xf]
      %v273 = vld [vmem:[%s0 + $0x38] sm:$0xf]
      %v274 = vld [vmem:[%s0 + $0x3c] sm:$0xf]
      %v275 = vld [vmem:[%s0 + $0x40] sm:$0xf]
      %v276 = vld [vmem:[%s0 + $0x44] sm:$0xf]
      %v277 = vld [vmem:[%s0 + $0x48] sm:$0xf]
      %v278 = vld [vmem:[%s0 + $0x4c] sm:$0xf]
      %v279 = vld [vmem:[%s0 + $0x50] sm:$0xf]
      %v280 = vld [vmem:[%s0 + $0x54] sm:$0xf]
      %v281 = vld [vmem:[%s0 + $0x58] sm:$0xf]
      %v282 = vld [vmem:[%s0 + $0x5c] sm:$0xf]
      %v283 = vld [vmem:[%s0 + $0x60] sm:$0xf]
      %v284 = vld [vmem:[%s0 + $0x64] sm:$0xf]
      %v285 = vld [vmem:[%s0 + $0x68] sm:$0xf]
      %v286 = vld [vmem:[%s0 + $0x6c] sm:$0xf]
      %v287 = vld [vmem:[%s0 + $0x70] sm:$0xf]
      %v288 = vld [vmem:[%s0 + $0x74] sm:$0xf]
      %v289 = vld [vmem:[%s0 + $0x78] sm:$0xf]
      %v290 = vld [vmem:[%s0 + $0x7c] sm:$0xf]
      %v291 = vld [vmem:[%s0 + $0x80] sm:$0xf]
      %v292 = vld [vmem:[%s0 + $0x84] sm:$0xf]
      %v293 = vld [vmem:[%s0 + $0x88] sm:$0xf]
      %v294 = vld [vmem:[%s0 + $0x8c] sm:$0xf]
      %v295 = vld [vmem:[%s0 + $0x90] sm:$0xf]
      %v296 = vld [vmem:[%s0 + $0x94] sm:$0xf]
      %v297 = vld [vmem:[%s0 + $0x98] sm:$0xf]
      %v298 = vld [vmem:[%s0 + $0x9c] sm:$0xf]
      %v299 = vld [vmem:[%s0 + $0xa0] sm:$0xf]
      %v300 = vld [vmem:[%s0 + $0xa4] sm:$0xf]
      %v301 = vld [vmem:[%s0 + $0xa8] sm:$0xf]
      %v302 = vld [vmem:[%s0 + $0xac] sm:$0xf]
      %v303 = vld [vmem:[%s0 + $0xb0] sm:$0xf]
      %v304 = vld [vmem:[%s0 + $0xb4] sm:$0xf]
      %v305 = vld [vmem:[%s0 + $0xb8] sm:$0xf]
      %v306 = vld [vmem:[%s0 + $0xbc] sm:$0xf]
      %v307 = vld [vmem:[%s0 + $0xc0] sm:$0xf]
      %v308 = vld [vmem:[%s0 + $0xc4] sm:$0xf]
      %v309 = vld [vmem:[%s0 + $0xc8] sm:$0xf]
      %v310 = vld [vmem:[%s0 + $0xcc] sm:$0xf]
      %v311 = vld [vmem:[%s0 + $0xd0] sm:$0xf]
      %v312 = vld [vmem:[%s0 + $0xd4] sm:$0xf]
      %v313 = vld [vmem:[%s0 + $0xd8] sm:$0xf]
      %v314 = vld [vmem:[%s0 + $0xdc] sm:$0xf]
      %v315 = vld [vmem:[%s0 + $0xe0] sm:$0xf]
      %v316 = vld [vmem:[%s0 + $0xe4] sm:$0xf]
      %v317 = vld [vmem:[%s0 + $0xe8] sm:$0xf]
      %v318 = vld [vmem:[%s0 + $0xec] sm:$0xf]
      %v319 = vld [vmem:[%s0 + $0xf0] sm:$0xf]
      %v320 = vld [vmem:[%s0 + $0xf4] sm:$0xf]
      %v321 = vld [vmem:[%s0 + $0xf8] sm:$0xf]
      %v322 = vld [vmem:[%s0 + $0xfc] sm:$0xf]
      %v323 = vld [vmem:[%s0 + $0x100] sm:$0xf]
      %v324 = vld [vmem:[%s0 + $0x104] sm:$0xf]
      %v325 = vld [vmem:[%s0 + $0x108] sm:$0xf]
      %v326 = vld [vmem:[%s0 + $0x10c] sm:$0xf]
      %v327 = vld [vmem:[%s0 + $0x110] sm:$0xf]
      %v328 = vld [vmem:[%s0 + $0x114] sm:$0xf]
      %v329 = vld [vmem:[%s0 + $0x118] sm:$0xf]
      %v330 = vld [vmem:[%s0 + $0x11c] sm:$0xf]
      %v331 = vld [vmem:[%s0 + $0x120] sm:$0xf]
      %v332 = vld [vmem:[%s0 + $0x124] sm:$0xf]
      %v333 = vld [vmem:[%s0 + $0x128] sm:$0xf]
      %v334 = vld [vmem:[%s0 + $0x12c] sm:$0xf]
      %v335 = vld [vmem:[%s0 + $0x130] sm:$0xf]
      %v336 = vld [vmem:[%s0 + $0x134] sm:$0xf]
      %v337 = vld [vmem:[%s0 + $0x138] sm:$0xf]
      %v338 = vld [vmem:[%s0 + $0x13c] sm:$0xf]
      %v339 = vld [vmem:[%s0 + $0x140] sm:$0xf]
      %v340 = vld [vmem:[%s0 + $0x144] sm:$0xf]
      %v341 = vld [vmem:[%s0 + $0x148] sm:$0xf]
      %v342 = vld [vmem:[%s0 + $0x14c] sm:$0xf]
      %v343 = vld [vmem:[%s0 + $0x150] sm:$0xf]
      %v344 = vld [vmem:[%s0 + $0x154] sm:$0xf]
      %v345 = vld [vmem:[%s0 + $0x158] sm:$0xf]
      %v346 = vld [vmem:[%s0 + $0x15c] sm:$0xf]
      %v347 = vld [vmem:[%s0 + $0x160] sm:$0xf]
      %v348 = vld [vmem:[%s0 + $0x164] sm:$0xf]
      %v349 = vld [vmem:[%s0 + $0x168] sm:$0xf]
      %v350 = vld [vmem:[%s0 + $0x16c] sm:$0xf]
      %v351 = vld [vmem:[%s0 + $0x170] sm:$0xf]
      %v352 = vld [vmem:[%s0 + $0x174] sm:$0xf]
      %v353 = vld [vmem:[%s0 + $0x178] sm:$0xf]
      %v354 = vld [vmem:[%s0 + $0x17c] sm:$0xf]
      %v355 = vld [vmem:[%s0 + $0x180] sm:$0xf]
      %v356 = vld [vmem:[%s0 + $0x184] sm:$0xf]
      %v357 = vld [vmem:[%s0 + $0x188] sm:$0xf]
      %v358 = vld [vmem:[%s0 + $0x18c] sm:$0xf]
      %v359 = vld [vmem:[%s0 + $0x190] sm:$0xf]
      %v360 = vld [vmem:[%s0 + $0x194] sm:$0xf]
      %v361 = vld [vmem:[%s0 + $0x198] sm:$0xf]
      %v362 = vld [vmem:[%s0 + $0x19c] sm:$0xf]
      %v363 = vld [vmem:[%s0 + $0x1a0] sm:$0xf]
      %v364 = vld [vmem:[%s0 + $0x1a4] sm:$0xf]
      %v365 = vld [vmem:[%s0 + $0x1a8] sm:$0xf]
      %v366 = vld [vmem:[%s0 + $0x1ac] sm:$0xf]
      %v367 = vld [vmem:[%s0 + $0x1b0] sm:$0xf]
      %v368 = vld [vmem:[%s0 + $0x1b4] sm:$0xf]
      %v369 = vld [vmem:[%s0 + $0x1b8] sm:$0xf]
      %v370 = vld [vmem:[%s0 + $0x1bc] sm:$0xf]
      %v371 = vld [vmem:[%s0 + $0x1c0] sm:$0xf]
      %v372 = vld [vmem:[%s0 + $0x1c4] sm:$0xf]
      %v373 = vld [vmem:[%s0 + $0x1c8] sm:$0xf]
      %v374 = vld [vmem:[%s0 + $0x1cc] sm:$0xf]
      %v375 = vld [vmem:[%s0 + $0x1d0] sm:$0xf]
      %v376 = vld [vmem:[%s0 + $0x1d4] sm:$0xf]
      %v377 = vld [vmem:[%s0 + $0x1d8] sm:$0xf]
      %v378 = vld [vmem:[%s0 + $0x1dc] sm:$0xf]
      %v379 = vld [vmem:[%s0 + $0x1e0] sm:$0xf]
      %v380 = vld [vmem:[%s0 + $0x1e4] sm:$0xf]
      %v381 = vld [vmem:[%s0 + $0x1e8] sm:$0xf]
      %v382 = vld [vmem:[%s0 + $0x1ec] sm:$0xf]
      %v383 = vld [vmem:[%s0 + $0x1f0] sm:$0xf]
      %v384 = vld [vmem:[%s0 + $0x1f4] sm:$0xf]
      %v385 = vld [vmem:[%s0 + $0x1f8] sm:$0xf]
      %v386 = vld [vmem:[%s0 + $0x1fc] sm:$0xf]
      %v387 = vld [vmem:[%s242] sm:$0xf]
      %v388 = vld [vmem:[%s242 + $0x4] sm:$0xf]
      %v389 = vld [vmem:[%s242 + $0x8] sm:$0xf]
      %v390 = vld [vmem:[%s242 + $0xc] sm:$0xf]
      %v391 = vld [vmem:[%s242 + $0x10] sm:$0xf]
      %v392 = vld [vmem:[%s242 + $0x14] sm:$0xf]
      %v393 = vld [vmem:[%s242 + $0x18] sm:$0xf]
      %v394 = vld [vmem:[%s242 + $0x1c] sm:$0xf]
      %v523 = vunpack.c.l.b16 %v259
      %v524 = vunpack.c.l.b16 %v260
      %v525 = vunpack.c.l.b16 %v261
      %v526 = vunpack.c.l.b16 %v262
      %v527 = vunpack.c.l.b16 %v263
      %v528 = vunpack.c.l.b16 %v264
      %v529 = vunpack.c.l.b16 %v265
      %v530 = vunpack.c.l.b16 %v266
      %v531 = vunpack.c.l.b16 %v267
      %v532 = vunpack.c.l.b16 %v268
      %v533 = vunpack.c.l.b16 %v269
      %v534 = vunpack.c.l.b16 %v270
      %v535 = vunpack.c.l.b16 %v271
      %v536 = vunpack.c.l.b16 %v272
      %v537 = vunpack.c.l.b16 %v273
      %v538 = vunpack.c.l.b16 %v274
      %v539 = vunpack.c.l.b16 %v275
      %v540 = vunpack.c.l.b16 %v276
      %v541 = vunpack.c.l.b16 %v277
      %v542 = vunpack.c.l.b16 %v278
      %v543 = vunpack.c.l.b16 %v279
      %v544 = vunpack.c.l.b16 %v280
      %v545 = vunpack.c.l.b16 %v281
      %v546 = vunpack.c.l.b16 %v282
      %v547 = vunpack.c.l.b16 %v283
      %v548 = vunpack.c.l.b16 %v284
      %v549 = vunpack.c.l.b16 %v285
      %v550 = vunpack.c.l.b16 %v286
      %v551 = vunpack.c.l.b16 %v287
      %v552 = vunpack.c.l.b16 %v288
      %v553 = vunpack.c.l.b16 %v289
      %v554 = vunpack.c.l.b16 %v290
      %v555 = vunpack.c.l.b16 %v291
      %v556 = vunpack.c.l.b16 %v292
      %v557 = vunpack.c.l.b16 %v293
      %v558 = vunpack.c.l.b16 %v294
      %v559 = vunpack.c.l.b16 %v295
      %v560 = vunpack.c.l.b16 %v296
      %v561 = vunpack.c.l.b16 %v297
      %v562 = vunpack.c.l.b16 %v298
      %v563 = vunpack.c.l.b16 %v299
      %v564 = vunpack.c.l.b16 %v300
      %v565 = vunpack.c.l.b16 %v301
      %v566 = vunpack.c.l.b16 %v302
      %v567 = vunpack.c.l.b16 %v303
      %v568 = vunpack.c.l.b16 %v304
      %v569 = vunpack.c.l.b16 %v305
      %v570 = vunpack.c.l.b16 %v306
      %v571 = vunpack.c.l.b16 %v307
      %v572 = vunpack.c.l.b16 %v308
      %v573 = vunpack.c.l.b16 %v309
      %v574 = vunpack.c.l.b16 %v310
      %v575 = vunpack.c.l.b16 %v311
      %v576 = vunpack.c.l.b16 %v312
      %v577 = vunpack.c.l.b16 %v313
      %v578 = vunpack.c.l.b16 %v314
      %v579 = vunpack.c.l.b16 %v315
      %v580 = vunpack.c.l.b16 %v316
      %v581 = vunpack.c.l.b16 %v317
      %v582 = vunpack.c.l.b16 %v318
      %v583 = vunpack.c.l.b16 %v319
      %v584 = vunpack.c.l.b16 %v320
      %v585 = vunpack.c.l.b16 %v321
      %v586 = vunpack.c.l.b16 %v322
      %v587 = vunpack.c.l.b16 %v323
      %v588 = vunpack.c.l.b16 %v324
      %v589 = vunpack.c.l.b16 %v325
      %v590 = vunpack.c.l.b16 %v326
      %v591 = vunpack.c.l.b16 %v327
      %v592 = vunpack.c.l.b16 %v328
      %v593 = vunpack.c.l.b16 %v329
      %v594 = vunpack.c.l.b16 %v330
      %v595 = vunpack.c.l.b16 %v331
      %v596 = vunpack.c.l.b16 %v332
      %v597 = vunpack.c.l.b16 %v333
      %v598 = vunpack.c.l.b16 %v334
      %v599 = vunpack.c.l.b16 %v335
      %v600 = vunpack.c.l.b16 %v336
      %v601 = vunpack.c.l.b16 %v337
      %v602 = vunpack.c.l.b16 %v338
      %v603 = vunpack.c.l.b16 %v339
      %v604 = vunpack.c.l.b16 %v340
      %v605 = vunpack.c.l.b16 %v341
      %v606 = vunpack.c.l.b16 %v342
      %v607 = vunpack.c.l.b16 %v343
      %v608 = vunpack.c.l.b16 %v344
      %v609 = vunpack.c.l.b16 %v345
      %v610 = vunpack.c.l.b16 %v346
      %v611 = vunpack.c.l.b16 %v347
      %v612 = vunpack.c.l.b16 %v348
      %v613 = vunpack.c.l.b16 %v349
      %v614 = vunpack.c.l.b16 %v350
      %v615 = vunpack.c.l.b16 %v351
      %v616 = vunpack.c.l.b16 %v352
      %v617 = vunpack.c.l.b16 %v353
      %v618 = vunpack.c.l.b16 %v354
      %v619 = vunpack.c.l.b16 %v355
      %v620 = vunpack.c.l.b16 %v356
      %v621 = vunpack.c.l.b16 %v357
      %v622 = vunpack.c.l.b16 %v358
      %v623 = vunpack.c.l.b16 %v359
      %v624 = vunpack.c.l.b16 %v360
      %v625 = vunpack.c.l.b16 %v361
      %v626 = vunpack.c.l.b16 %v362
      %v627 = vunpack.c.l.b16 %v363
      %v628 = vunpack.c.l.b16 %v364
      %v629 = vunpack.c.l.b16 %v365
      %v630 = vunpack.c.l.b16 %v366
      %v631 = vunpack.c.l.b16 %v367
      %v632 = vunpack.c.l.b16 %v368
      %v633 = vunpack.c.l.b16 %v369
      %v634 = vunpack.c.l.b16 %v370
      %v635 = vunpack.c.l.b16 %v371
      %v636 = vunpack.c.l.b16 %v372
      %v637 = vunpack.c.l.b16 %v373
      %v638 = vunpack.c.l.b16 %v374
      %v639 = vunpack.c.l.b16 %v375
      %v640 = vunpack.c.l.b16 %v376
      %v641 = vunpack.c.l.b16 %v377
      %v642 = vunpack.c.l.b16 %v378
      %v643 = vunpack.c.l.b16 %v379
      %v644 = vunpack.c.l.b16 %v380
      %v645 = vunpack.c.l.b16 %v381
      %v646 = vunpack.c.l.b16 %v382
      %v647 = vunpack.c.l.b16 %v383
      %v648 = vunpack.c.l.b16 %v384
      %v649 = vunpack.c.l.b16 %v385
      %v650 = vunpack.c.l.b16 %v386
      %v651 = vpack.c.b16 %v524, %v523
      %v652 = vpack.c.b16 %v526, %v525
      %v653 = vpack.c.b16 %v528, %v527
      %v654 = vpack.c.b16 %v530, %v529
      %v655 = vpack.c.b16 %v532, %v531
      %v656 = vpack.c.b16 %v534, %v533
      %v657 = vpack.c.b16 %v536, %v535
      %v658 = vpack.c.b16 %v538, %v537
      %v659 = vpack.c.b16 %v540, %v539
      %v660 = vpack.c.b16 %v542, %v541
      %v661 = vpack.c.b16 %v544, %v543
      %v662 = vpack.c.b16 %v546, %v545
      %v663 = vpack.c.b16 %v548, %v547
      %v664 = vpack.c.b16 %v550, %v549
      %v665 = vpack.c.b16 %v552, %v551
      %v666 = vpack.c.b16 %v554, %v553
      %v667 = vpack.c.b16 %v556, %v555
      %v668 = vpack.c.b16 %v558, %v557
      %v669 = vpack.c.b16 %v560, %v559
      %v670 = vpack.c.b16 %v562, %v561
      %v671 = vpack.c.b16 %v564, %v563
      %v672 = vpack.c.b16 %v566, %v565
      %v673 = vpack.c.b16 %v568, %v567
      %v674 = vpack.c.b16 %v570, %v569
      %v675 = vpack.c.b16 %v572, %v571
      %v676 = vpack.c.b16 %v574, %v573
      %v677 = vpack.c.b16 %v576, %v575
      %v678 = vpack.c.b16 %v578, %v577
      %v679 = vpack.c.b16 %v580, %v579
      %v680 = vpack.c.b16 %v582, %v581
      %v681 = vpack.c.b16 %v584, %v583
      %v682 = vpack.c.b16 %v586, %v585
      %v683 = vpack.c.b16 %v588, %v587
      %v684 = vpack.c.b16 %v590, %v589
      %v685 = vpack.c.b16 %v592, %v591
      %v686 = vpack.c.b16 %v594, %v593
      %v687 = vpack.c.b16 %v596, %v595
      %v688 = vpack.c.b16 %v598, %v597
      %v689 = vpack.c.b16 %v600, %v599
      %v690 = vpack.c.b16 %v602, %v601
      %v691 = vpack.c.b16 %v604, %v603
      %v692 = vpack.c.b16 %v606, %v605
      %v693 = vpack.c.b16 %v608, %v607
      %v694 = vpack.c.b16 %v610, %v609
      %v695 = vpack.c.b16 %v612, %v611
      %v696 = vpack.c.b16 %v614, %v613
      %v697 = vpack.c.b16 %v616, %v615
      %v698 = vpack.c.b16 %v618, %v617
      %v699 = vpack.c.b16 %v620, %v619
      %v700 = vpack.c.b16 %v622, %v621
      %v701 = vpack.c.b16 %v624, %v623
      %v702 = vpack.c.b16 %v626, %v625
      %v703 = vpack.c.b16 %v628, %v627
      %v704 = vpack.c.b16 %v630, %v629
      %v705 = vpack.c.b16 %v632, %v631
      %v706 = vpack.c.b16 %v634, %v633
      %v707 = vpack.c.b16 %v636, %v635
      %v708 = vpack.c.b16 %v638, %v637
      %v709 = vpack.c.b16 %v640, %v639
      %v710 = vpack.c.b16 %v642, %v641
      %v711 = vpack.c.b16 %v644, %v643
      %v712 = vpack.c.b16 %v646, %v645
      %v713 = vpack.c.b16 %v648, %v647
      %v714 = vpack.c.b16 %v650, %v649
      %v723 = vunpack.c.l.b16 %v387
      %v724 = vunpack.c.l.b16 %v388
      %v725 = vunpack.c.l.b16 %v389
      %v726 = vunpack.c.l.b16 %v390
      %v727 = vunpack.c.l.b16 %v391
      %v728 = vunpack.c.l.b16 %v392
      %v729 = vunpack.c.l.b16 %v393
      %v730 = vunpack.c.l.b16 %v394
      %v731 = vpack.c.b16 %v724, %v723
      %v732 = vpack.c.b16 %v726, %v725
      %v733 = vpack.c.b16 %v728, %v727
      %v734 = vpack.c.b16 %v730, %v729
      %vm739 = vcmask 523264
      %v741 = vsel %vm739, %v651, 0
      %v744 = vsel %vm739, %v652, 0
      %v747 = vsel %vm739, %v653, 0
      %v750 = vsel %vm739, %v654, 0
      %v753 = vsel %vm739, %v655, 0
      %v756 = vsel %vm739, %v656, 0
      %v759 = vsel %vm739, %v657, 0
      %v762 = vsel %vm739, %v658, 0
      %v765 = vsel %vm739, %v659, 0
      %v768 = vsel %vm739, %v660, 0
      %v771 = vsel %vm739, %v661, 0
      %v774 = vsel %vm739, %v662, 0
      %v777 = vsel %vm739, %v663, 0
      %v780 = vsel %vm739, %v664, 0
      %v783 = vsel %vm739, %v665, 0
      %v786 = vsel %vm739, %v666, 0
      %v789 = vsel %vm739, %v667, 0
      %v792 = vsel %vm739, %v668, 0
      %v795 = vsel %vm739, %v669, 0
      %v798 = vsel %vm739, %v670, 0
      %v801 = vsel %vm739, %v671, 0
      %v804 = vsel %vm739, %v672, 0
      %v807 = vsel %vm739, %v673, 0
      %v810 = vsel %vm739, %v674, 0
      %v813 = vsel %vm739, %v675, 0
      %v816 = vsel %vm739, %v676, 0
      %v819 = vsel %vm739, %v677, 0
      %v822 = vsel %vm739, %v678, 0
      %v825 = vsel %vm739, %v679, 0
      %v828 = vsel %vm739, %v680, 0
      %v831 = vsel %vm739, %v681, 0
      %v834 = vsel %vm739, %v682, 0
      %v837 = vsel %vm739, %v683, 0
      %v840 = vsel %vm739, %v684, 0
      %v843 = vsel %vm739, %v685, 0
      %v846 = vsel %vm739, %v686, 0
      %v849 = vsel %vm739, %v687, 0
      %v852 = vsel %vm739, %v688, 0
      %v855 = vsel %vm739, %v689, 0
      %v858 = vsel %vm739, %v690, 0
      %v861 = vsel %vm739, %v691, 0
      %v864 = vsel %vm739, %v692, 0
      %v867 = vsel %vm739, %v693, 0
      %v870 = vsel %vm739, %v694, 0
      %v873 = vsel %vm739, %v695, 0
      %v876 = vsel %vm739, %v696, 0
      %v879 = vsel %vm739, %v697, 0
      %v882 = vsel %vm739, %v698, 0
      %v885 = vsel %vm739, %v699, 0
      %v888 = vsel %vm739, %v700, 0
      %v891 = vsel %vm739, %v701, 0
      %v894 = vsel %vm739, %v702, 0
      %v897 = vsel %vm739, %v703, 0
      %v900 = vsel %vm739, %v704, 0
      %v903 = vsel %vm739, %v705, 0
      %v906 = vsel %vm739, %v706, 0
      %v909 = vsel %vm739, %v707, 0
      %v912 = vsel %vm739, %v708, 0
      %v915 = vsel %vm739, %v709, 0
      %v918 = vsel %vm739, %v710, 0
      %v921 = vsel %vm739, %v711, 0
      %v924 = vsel %vm739, %v712, 0
      %v927 = vsel %vm739, %v713, 0
      %v930 = vsel %vm739, %v714, 0
      %932 = vmatprep.subr.bf16.mxu0 0
      %933 = vmatpush1.bf16.msra.mxu0 0
      %934 = vmatprep.subr.bf16.mxu0 0
      %935 = vmatpush1.bf16.msra.mxu0 0
      %936 = vmatprep.subr.bf16.mxu0 0
      %937 = vmatpush1.bf16.msra.mxu0 0
      %938 = vmatprep.subr.bf16.mxu0 0
      %939 = vmatpush1.bf16.msra.mxu0 0
      %940 = vmatprep.subr.bf16.mxu0 0
      %941 = vmatpush1.bf16.msra.mxu0 %v734
      %942 = vmatprep.subr.bf16.mxu0 0
      %943 = vmatpush1.bf16.msra.mxu0 %v733
      %944 = vmatprep.subr.bf16.mxu0 0
      %945 = vmatpush1.bf16.msra.mxu0 %v732
      %946 = vmatprep.subr.bf16.mxu0 0
      %947 = vmatpush1.bf16.msra.mxu0 %v731
      %948 = vmatprep.subr.bf16.mxu0 0
      %949 = vmatpush2.bf16.msra.mxu0 0
      %950 = vmatprep.subr.bf16.mxu0 0
      %951 = vmatpush2.bf16.msra.mxu0 0
      %952 = vmatprep.subr.bf16.mxu0 0
      %953 = vmatpush2.bf16.msra.mxu0 0
      %954 = vmatprep.subr.bf16.mxu0 0
      %955 = vmatpush2.bf16.msra.mxu0 0
      %956 = vmatprep.subr.bf16.mxu0 0
      %957 = vmatpush2.bf16.msra.mxu0 0
      %958 = vmatprep.subr.bf16.mxu0 0
      %959 = vmatpush2.bf16.msra.mxu0 0
      %960 = vmatprep.subr.bf16.mxu0 0
      %961 = vmatpush2.bf16.msra.mxu0 0
      %962 = vmatprep.subr.bf16.mxu0 0
      %963 = vmatpush2.bf16.msra.mxu0 0
      %964 = vmatprep.mubr.bf16.mxu0 0
      %965 = vmatmul.mubr.bf16.gmra.mxu0 %v741
      %v966 = vpop.f32.mrf.mxu0
      %v967 = vadd.f32 0.0, %v966
      %v968 = vpop.f32.mrf.mxu0
      %v969 = vpop.f32.mrf.mxu0
      %v970 = vadd.f32 0.0, %v969
      %v971 = vpop.f32.mrf.mxu0
      %972 = vmatprep.mubr.bf16.mxu0 0
      %973 = vmatmul.mubr.bf16.gmra.mxu0 %v744
      %v974 = vpop.f32.mrf.mxu0
      %v975 = vadd.f32 0.0, %v974
      %v976 = vpop.f32.mrf.mxu0
      %v977 = vpop.f32.mrf.mxu0
      %v978 = vadd.f32 0.0, %v977
      %v979 = vpop.f32.mrf.mxu0
      %980 = vmatprep.mubr.bf16.mxu0 0
      %981 = vmatmul.mubr.bf16.gmra.mxu0 %v747
      %v982 = vpop.f32.mrf.mxu0
      %v983 = vadd.f32 0.0, %v982
      %v984 = vpop.f32.mrf.mxu0
      %v985 = vpop.f32.mrf.mxu0
      %v986 = vadd.f32 0.0, %v985
      %v987 = vpop.f32.mrf.mxu0
      %988 = vmatprep.mubr.bf16.mxu0 0
      %989 = vmatmul.mubr.bf16.gmra.mxu0 %v750
      %v990 = vpop.f32.mrf.mxu0
      %v991 = vadd.f32 0.0, %v990
      %v992 = vpop.f32.mrf.mxu0
      %v993 = vpop.f32.mrf.mxu0
      %v994 = vadd.f32 0.0, %v993
      %v995 = vpop.f32.mrf.mxu0
      %996 = vmatprep.mubr.bf16.mxu0 0
      %997 = vmatmul.mubr.bf16.gmra.mxu0 %v753
      %v998 = vpop.f32.mrf.mxu0
      %v999 = vadd.f32 0.0, %v998
      %v1000 = vpop.f32.mrf.mxu0
      %v1001 = vpop.f32.mrf.mxu0
      %v1002 = vadd.f32 0.0, %v1001
      %v1003 = vpop.f32.mrf.mxu0
      %1004 = vmatprep.mubr.bf16.mxu0 0
      %1005 = vmatmul.mubr.bf16.gmra.mxu0 %v756
      %v1006 = vpop.f32.mrf.mxu0
      %v1007 = vadd.f32 0.0, %v1006
      %v1008 = vpop.f32.mrf.mxu0
      %v1009 = vpop.f32.mrf.mxu0
      %v1010 = vadd.f32 0.0, %v1009
      %v1011 = vpop.f32.mrf.mxu0
      %1012 = vmatprep.mubr.bf16.mxu0 0
      %1013 = vmatmul.mubr.bf16.gmra.mxu0 %v759
      %v1014 = vpop.f32.mrf.mxu0
      %v1015 = vadd.f32 0.0, %v1014
      %v1016 = vpop.f32.mrf.mxu0
      %v1017 = vpop.f32.mrf.mxu0
      %v1018 = vadd.f32 0.0, %v1017
      %v1019 = vpop.f32.mrf.mxu0
      %1020 = vmatprep.mubr.bf16.mxu0 0
      %1021 = vmatmul.mubr.bf16.gmra.mxu0 %v762
      %v1022 = vpop.f32.mrf.mxu0
      %v1023 = vadd.f32 0.0, %v1022
      %v1024 = vpop.f32.mrf.mxu0
      %v1025 = vpop.f32.mrf.mxu0
      %v1026 = vadd.f32 0.0, %v1025
      %v1027 = vpop.f32.mrf.mxu0
      %1028 = vmatprep.mubr.bf16.mxu0 0
      %1029 = vmatmul.mubr.bf16.gmra.mxu0 %v765
      %v1030 = vpop.f32.mrf.mxu0
      %v1031 = vadd.f32 0.0, %v1030
      %v1032 = vpop.f32.mrf.mxu0
      %v1033 = vpop.f32.mrf.mxu0
      %v1034 = vadd.f32 0.0, %v1033
      %v1035 = vpop.f32.mrf.mxu0
      %1036 = vmatprep.mubr.bf16.mxu0 0
      %1037 = vmatmul.mubr.bf16.gmra.mxu0 %v768
      %v1038 = vpop.f32.mrf.mxu0
      %v1039 = vadd.f32 0.0, %v1038
      %v1040 = vpop.f32.mrf.mxu0
      %v1041 = vpop.f32.mrf.mxu0
      %v1042 = vadd.f32 0.0, %v1041
      %v1043 = vpop.f32.mrf.mxu0
      %1044 = vmatprep.mubr.bf16.mxu0 0
      %1045 = vmatmul.mubr.bf16.gmra.mxu0 %v771
      %v1046 = vpop.f32.mrf.mxu0
      %v1047 = vadd.f32 0.0, %v1046
      %v1048 = vpop.f32.mrf.mxu0
      %v1049 = vpop.f32.mrf.mxu0
      %v1050 = vadd.f32 0.0, %v1049
      %v1051 = vpop.f32.mrf.mxu0
      %1052 = vmatprep.mubr.bf16.mxu0 0
      %1053 = vmatmul.mubr.bf16.gmra.mxu0 %v774
      %v1054 = vpop.f32.mrf.mxu0
      %v1055 = vadd.f32 0.0, %v1054
      %v1056 = vpop.f32.mrf.mxu0
      %v1057 = vpop.f32.mrf.mxu0
      %v1058 = vadd.f32 0.0, %v1057
      %v1059 = vpop.f32.mrf.mxu0
      %1060 = vmatprep.mubr.bf16.mxu0 0
      %1061 = vmatmul.mubr.bf16.gmra.mxu0 %v777
      %v1062 = vpop.f32.mrf.mxu0
      %v1063 = vadd.f32 0.0, %v1062
      %v1064 = vpop.f32.mrf.mxu0
      %v1065 = vpop.f32.mrf.mxu0
      %v1066 = vadd.f32 0.0, %v1065
      %v1067 = vpop.f32.mrf.mxu0
      %1068 = vmatprep.mubr.bf16.mxu0 0
      %1069 = vmatmul.mubr.bf16.gmra.mxu0 %v780
      %v1070 = vpop.f32.mrf.mxu0
      %v1071 = vadd.f32 0.0, %v1070
      %v1072 = vpop.f32.mrf.mxu0
      %v1073 = vpop.f32.mrf.mxu0
      %v1074 = vadd.f32 0.0, %v1073
      %v1075 = vpop.f32.mrf.mxu0
      %1076 = vmatprep.mubr.bf16.mxu0 0
      %1077 = vmatmul.mubr.bf16.gmra.mxu0 %v783
      %v1078 = vpop.f32.mrf.mxu0
      %v1079 = vadd.f32 0.0, %v1078
      %v1080 = vpop.f32.mrf.mxu0
      %v1081 = vpop.f32.mrf.mxu0
      %v1082 = vadd.f32 0.0, %v1081
      %v1083 = vpop.f32.mrf.mxu0
      %1084 = vmatprep.mubr.bf16.mxu0 0
      %1085 = vmatmul.mubr.bf16.gmra.mxu0 %v786
      %v1086 = vpop.f32.mrf.mxu0
      %v1087 = vadd.f32 0.0, %v1086
      %v1088 = vpop.f32.mrf.mxu0
      %v1089 = vpop.f32.mrf.mxu0
      %v1090 = vadd.f32 0.0, %v1089
      %v1091 = vpop.f32.mrf.mxu0
      %1092 = vmatprep.mubr.bf16.mxu0 0
      %1093 = vmatmul.mubr.bf16.gmra.mxu0 %v789
      %v1094 = vpop.f32.mrf.mxu0
      %v1095 = vadd.f32 0.0, %v1094
      %v1096 = vpop.f32.mrf.mxu0
      %v1097 = vpop.f32.mrf.mxu0
      %v1098 = vadd.f32 0.0, %v1097
      %v1099 = vpop.f32.mrf.mxu0
      %1100 = vmatprep.mubr.bf16.mxu0 0
      %1101 = vmatmul.mubr.bf16.gmra.mxu0 %v792
      %v1102 = vpop.f32.mrf.mxu0
      %v1103 = vadd.f32 0.0, %v1102
      %v1104 = vpop.f32.mrf.mxu0
      %v1105 = vpop.f32.mrf.mxu0
      %v1106 = vadd.f32 0.0, %v1105
      %v1107 = vpop.f32.mrf.mxu0
      %1108 = vmatprep.mubr.bf16.mxu0 0
      %1109 = vmatmul.mubr.bf16.gmra.mxu0 %v795
      %v1110 = vpop.f32.mrf.mxu0
      %v1111 = vadd.f32 0.0, %v1110
      %v1112 = vpop.f32.mrf.mxu0
      %v1113 = vpop.f32.mrf.mxu0
      %v1114 = vadd.f32 0.0, %v1113
      %v1115 = vpop.f32.mrf.mxu0
      %1116 = vmatprep.mubr.bf16.mxu0 0
      %1117 = vmatmul.mubr.bf16.gmra.mxu0 %v798
      %v1118 = vpop.f32.mrf.mxu0
      %v1119 = vadd.f32 0.0, %v1118
      %v1120 = vpop.f32.mrf.mxu0
      %v1121 = vpop.f32.mrf.mxu0
      %v1122 = vadd.f32 0.0, %v1121
      %v1123 = vpop.f32.mrf.mxu0
      %1124 = vmatprep.mubr.bf16.mxu0 0
      %1125 = vmatmul.mubr.bf16.gmra.mxu0 %v801
      %v1126 = vpop.f32.mrf.mxu0
      %v1127 = vadd.f32 0.0, %v1126
      %v1128 = vpop.f32.mrf.mxu0
      %v1129 = vpop.f32.mrf.mxu0
      %v1130 = vadd.f32 0.0, %v1129
      %v1131 = vpop.f32.mrf.mxu0
      %1132 = vmatprep.mubr.bf16.mxu0 0
      %1133 = vmatmul.mubr.bf16.gmra.mxu0 %v804
      %v1134 = vpop.f32.mrf.mxu0
      %v1135 = vadd.f32 0.0, %v1134
      %v1136 = vpop.f32.mrf.mxu0
      %v1137 = vpop.f32.mrf.mxu0
      %v1138 = vadd.f32 0.0, %v1137
      %v1139 = vpop.f32.mrf.mxu0
      %1140 = vmatprep.mubr.bf16.mxu0 0
      %1141 = vmatmul.mubr.bf16.gmra.mxu0 %v807
      %v1142 = vpop.f32.mrf.mxu0
      %v1143 = vadd.f32 0.0, %v1142
      %v1144 = vpop.f32.mrf.mxu0
      %v1145 = vpop.f32.mrf.mxu0
      %v1146 = vadd.f32 0.0, %v1145
      %v1147 = vpop.f32.mrf.mxu0
      %1148 = vmatprep.mubr.bf16.mxu0 0
      %1149 = vmatmul.mubr.bf16.gmra.mxu0 %v810
      %v1150 = vpop.f32.mrf.mxu0
      %v1151 = vadd.f32 0.0, %v1150
      %v1152 = vpop.f32.mrf.mxu0
      %v1153 = vpop.f32.mrf.mxu0
      %v1154 = vadd.f32 0.0, %v1153
      %v1155 = vpop.f32.mrf.mxu0
      %1156 = vmatprep.mubr.bf16.mxu0 0
      %1157 = vmatmul.mubr.bf16.gmra.mxu0 %v813
      %v1158 = vpop.f32.mrf.mxu0
      %v1159 = vadd.f32 0.0, %v1158
      %v1160 = vpop.f32.mrf.mxu0
      %v1161 = vpop.f32.mrf.mxu0
      %v1162 = vadd.f32 0.0, %v1161
      %v1163 = vpop.f32.mrf.mxu0
      %1164 = vmatprep.mubr.bf16.mxu0 0
      %1165 = vmatmul.mubr.bf16.gmra.mxu0 %v816
      %v1166 = vpop.f32.mrf.mxu0
      %v1167 = vadd.f32 0.0, %v1166
      %v1168 = vpop.f32.mrf.mxu0
      %v1169 = vpop.f32.mrf.mxu0
      %v1170 = vadd.f32 0.0, %v1169
      %v1171 = vpop.f32.mrf.mxu0
      %1172 = vmatprep.mubr.bf16.mxu0 0
      %1173 = vmatmul.mubr.bf16.gmra.mxu0 %v819
      %v1174 = vpop.f32.mrf.mxu0
      %v1175 = vadd.f32 0.0, %v1174
      %v1176 = vpop.f32.mrf.mxu0
      %v1177 = vpop.f32.mrf.mxu0
      %v1178 = vadd.f32 0.0, %v1177
      %v1179 = vpop.f32.mrf.mxu0
      %1180 = vmatprep.mubr.bf16.mxu0 0
      %1181 = vmatmul.mubr.bf16.gmra.mxu0 %v822
      %v1182 = vpop.f32.mrf.mxu0
      %v1183 = vadd.f32 0.0, %v1182
      %v1184 = vpop.f32.mrf.mxu0
      %v1185 = vpop.f32.mrf.mxu0
      %v1186 = vadd.f32 0.0, %v1185
      %v1187 = vpop.f32.mrf.mxu0
      %1188 = vmatprep.mubr.bf16.mxu0 0
      %1189 = vmatmul.mubr.bf16.gmra.mxu0 %v825
      %v1190 = vpop.f32.mrf.mxu0
      %v1191 = vadd.f32 0.0, %v1190
      %v1192 = vpop.f32.mrf.mxu0
      %v1193 = vpop.f32.mrf.mxu0
      %v1194 = vadd.f32 0.0, %v1193
      %v1195 = vpop.f32.mrf.mxu0
      %1196 = vmatprep.mubr.bf16.mxu0 0
      %1197 = vmatmul.mubr.bf16.gmra.mxu0 %v828
      %v1198 = vpop.f32.mrf.mxu0
      %v1199 = vadd.f32 0.0, %v1198
      %v1200 = vpop.f32.mrf.mxu0
      %v1201 = vpop.f32.mrf.mxu0
      %v1202 = vadd.f32 0.0, %v1201
      %v1203 = vpop.f32.mrf.mxu0
      %1204 = vmatprep.mubr.bf16.mxu0 0
      %1205 = vmatmul.mubr.bf16.gmra.mxu0 %v831
      %v1206 = vpop.f32.mrf.mxu0
      %v1207 = vadd.f32 0.0, %v1206
      %v1208 = vpop.f32.mrf.mxu0
      %v1209 = vpop.f32.mrf.mxu0
      %v1210 = vadd.f32 0.0, %v1209
      %v1211 = vpop.f32.mrf.mxu0
      %1212 = vmatprep.mubr.bf16.mxu0 0
      %1213 = vmatmul.mubr.bf16.gmra.mxu0 %v834
      %v1214 = vpop.f32.mrf.mxu0
      %v1215 = vadd.f32 0.0, %v1214
      %v1216 = vpop.f32.mrf.mxu0
      %v1217 = vpop.f32.mrf.mxu0
      %v1218 = vadd.f32 0.0, %v1217
      %v1219 = vpop.f32.mrf.mxu0
      %1220 = vmatprep.mubr.bf16.mxu0 0
      %1221 = vmatmul.mubr.bf16.gmra.mxu0 %v837
      %v1222 = vpop.f32.mrf.mxu0
      %v1223 = vadd.f32 0.0, %v1222
      %v1224 = vpop.f32.mrf.mxu0
      %v1225 = vpop.f32.mrf.mxu0
      %v1226 = vadd.f32 0.0, %v1225
      %v1227 = vpop.f32.mrf.mxu0
      %1228 = vmatprep.mubr.bf16.mxu0 0
      %1229 = vmatmul.mubr.bf16.gmra.mxu0 %v840
      %v1230 = vpop.f32.mrf.mxu0
      %v1231 = vadd.f32 0.0, %v1230
      %v1232 = vpop.f32.mrf.mxu0
      %v1233 = vpop.f32.mrf.mxu0
      %v1234 = vadd.f32 0.0, %v1233
      %v1235 = vpop.f32.mrf.mxu0
      %1236 = vmatprep.mubr.bf16.mxu0 0
      %1237 = vmatmul.mubr.bf16.gmra.mxu0 %v843
      %v1238 = vpop.f32.mrf.mxu0
      %v1239 = vadd.f32 0.0, %v1238
      %v1240 = vpop.f32.mrf.mxu0
      %v1241 = vpop.f32.mrf.mxu0
      %v1242 = vadd.f32 0.0, %v1241
      %v1243 = vpop.f32.mrf.mxu0
      %1244 = vmatprep.mubr.bf16.mxu0 0
      %1245 = vmatmul.mubr.bf16.gmra.mxu0 %v846
      %v1246 = vpop.f32.mrf.mxu0
      %v1247 = vadd.f32 0.0, %v1246
      %v1248 = vpop.f32.mrf.mxu0
      %v1249 = vpop.f32.mrf.mxu0
      %v1250 = vadd.f32 0.0, %v1249
      %v1251 = vpop.f32.mrf.mxu0
      %1252 = vmatprep.mubr.bf16.mxu0 0
      %1253 = vmatmul.mubr.bf16.gmra.mxu0 %v849
      %v1254 = vpop.f32.mrf.mxu0
      %v1255 = vadd.f32 0.0, %v1254
      %v1256 = vpop.f32.mrf.mxu0
      %v1257 = vpop.f32.mrf.mxu0
      %v1258 = vadd.f32 0.0, %v1257
      %v1259 = vpop.f32.mrf.mxu0
      %1260 = vmatprep.mubr.bf16.mxu0 0
      %1261 = vmatmul.mubr.bf16.gmra.mxu0 %v852
      %v1262 = vpop.f32.mrf.mxu0
      %v1263 = vadd.f32 0.0, %v1262
      %v1264 = vpop.f32.mrf.mxu0
      %v1265 = vpop.f32.mrf.mxu0
      %v1266 = vadd.f32 0.0, %v1265
      %v1267 = vpop.f32.mrf.mxu0
      %1268 = vmatprep.mubr.bf16.mxu0 0
      %1269 = vmatmul.mubr.bf16.gmra.mxu0 %v855
      %v1270 = vpop.f32.mrf.mxu0
      %v1271 = vadd.f32 0.0, %v1270
      %v1272 = vpop.f32.mrf.mxu0
      %v1273 = vpop.f32.mrf.mxu0
      %v1274 = vadd.f32 0.0, %v1273
      %v1275 = vpop.f32.mrf.mxu0
      %1276 = vmatprep.mubr.bf16.mxu0 0
      %1277 = vmatmul.mubr.bf16.gmra.mxu0 %v858
      %v1278 = vpop.f32.mrf.mxu0
      %v1279 = vadd.f32 0.0, %v1278
      %v1280 = vpop.f32.mrf.mxu0
      %v1281 = vpop.f32.mrf.mxu0
      %v1282 = vadd.f32 0.0, %v1281
      %v1283 = vpop.f32.mrf.mxu0
      %1284 = vmatprep.mubr.bf16.mxu0 0
      %1285 = vmatmul.mubr.bf16.gmra.mxu0 %v861
      %v1286 = vpop.f32.mrf.mxu0
      %v1287 = vadd.f32 0.0, %v1286
      %v1288 = vpop.f32.mrf.mxu0
      %v1289 = vpop.f32.mrf.mxu0
      %v1290 = vadd.f32 0.0, %v1289
      %v1291 = vpop.f32.mrf.mxu0
      %1292 = vmatprep.mubr.bf16.mxu0 0
      %1293 = vmatmul.mubr.bf16.gmra.mxu0 %v864
      %v1294 = vpop.f32.mrf.mxu0
      %v1295 = vadd.f32 0.0, %v1294
      %v1296 = vpop.f32.mrf.mxu0
      %v1297 = vpop.f32.mrf.mxu0
      %v1298 = vadd.f32 0.0, %v1297
      %v1299 = vpop.f32.mrf.mxu0
      %1300 = vmatprep.mubr.bf16.mxu0 0
      %1301 = vmatmul.mubr.bf16.gmra.mxu0 %v867
      %v1302 = vpop.f32.mrf.mxu0
      %v1303 = vadd.f32 0.0, %v1302
      %v1304 = vpop.f32.mrf.mxu0
      %v1305 = vpop.f32.mrf.mxu0
      %v1306 = vadd.f32 0.0, %v1305
      %v1307 = vpop.f32.mrf.mxu0
      %1308 = vmatprep.mubr.bf16.mxu0 0
      %1309 = vmatmul.mubr.bf16.gmra.mxu0 %v870
      %v1310 = vpop.f32.mrf.mxu0
      %v1311 = vadd.f32 0.0, %v1310
      %v1312 = vpop.f32.mrf.mxu0
      %v1313 = vpop.f32.mrf.mxu0
      %v1314 = vadd.f32 0.0, %v1313
      %v1315 = vpop.f32.mrf.mxu0
      %1316 = vmatprep.mubr.bf16.mxu0 0
      %1317 = vmatmul.mubr.bf16.gmra.mxu0 %v873
      %v1318 = vpop.f32.mrf.mxu0
      %v1319 = vadd.f32 0.0, %v1318
      %v1320 = vpop.f32.mrf.mxu0
      %v1321 = vpop.f32.mrf.mxu0
      %v1322 = vadd.f32 0.0, %v1321
      %v1323 = vpop.f32.mrf.mxu0
      %1324 = vmatprep.mubr.bf16.mxu0 0
      %1325 = vmatmul.mubr.bf16.gmra.mxu0 %v876
      %v1326 = vpop.f32.mrf.mxu0
      %v1327 = vadd.f32 0.0, %v1326
      %v1328 = vpop.f32.mrf.mxu0
      %v1329 = vpop.f32.mrf.mxu0
      %v1330 = vadd.f32 0.0, %v1329
      %v1331 = vpop.f32.mrf.mxu0
      %1332 = vmatprep.mubr.bf16.mxu0 0
      %1333 = vmatmul.mubr.bf16.gmra.mxu0 %v879
      %v1334 = vpop.f32.mrf.mxu0
      %v1335 = vadd.f32 0.0, %v1334
      %v1336 = vpop.f32.mrf.mxu0
      %v1337 = vpop.f32.mrf.mxu0
      %v1338 = vadd.f32 0.0, %v1337
      %v1339 = vpop.f32.mrf.mxu0
      %1340 = vmatprep.mubr.bf16.mxu0 0
      %1341 = vmatmul.mubr.bf16.gmra.mxu0 %v882
      %v1342 = vpop.f32.mrf.mxu0
      %v1343 = vadd.f32 0.0, %v1342
      %v1344 = vpop.f32.mrf.mxu0
      %v1345 = vpop.f32.mrf.mxu0
      %v1346 = vadd.f32 0.0, %v1345
      %v1347 = vpop.f32.mrf.mxu0
      %1348 = vmatprep.mubr.bf16.mxu0 0
      %1349 = vmatmul.mubr.bf16.gmra.mxu0 %v885
      %v1350 = vpop.f32.mrf.mxu0
      %v1351 = vadd.f32 0.0, %v1350
      %v1352 = vpop.f32.mrf.mxu0
      %v1353 = vpop.f32.mrf.mxu0
      %v1354 = vadd.f32 0.0, %v1353
      %v1355 = vpop.f32.mrf.mxu0
      %1356 = vmatprep.mubr.bf16.mxu0 0
      %1357 = vmatmul.mubr.bf16.gmra.mxu0 %v888
      %v1358 = vpop.f32.mrf.mxu0
      %v1359 = vadd.f32 0.0, %v1358
      %v1360 = vpop.f32.mrf.mxu0
      %v1361 = vpop.f32.mrf.mxu0
      %v1362 = vadd.f32 0.0, %v1361
      %v1363 = vpop.f32.mrf.mxu0
      %1364 = vmatprep.mubr.bf16.mxu0 0
      %1365 = vmatmul.mubr.bf16.gmra.mxu0 %v891
      %v1366 = vpop.f32.mrf.mxu0
      %v1367 = vadd.f32 0.0, %v1366
      %v1368 = vpop.f32.mrf.mxu0
      %v1369 = vpop.f32.mrf.mxu0
      %v1370 = vadd.f32 0.0, %v1369
      %v1371 = vpop.f32.mrf.mxu0
      %1372 = vmatprep.mubr.bf16.mxu0 0
      %1373 = vmatmul.mubr.bf16.gmra.mxu0 %v894
      %v1374 = vpop.f32.mrf.mxu0
      %v1375 = vadd.f32 0.0, %v1374
      %v1376 = vpop.f32.mrf.mxu0
      %v1377 = vpop.f32.mrf.mxu0
      %v1378 = vadd.f32 0.0, %v1377
      %v1379 = vpop.f32.mrf.mxu0
      %1380 = vmatprep.mubr.bf16.mxu0 0
      %1381 = vmatmul.mubr.bf16.gmra.mxu0 %v897
      %v1382 = vpop.f32.mrf.mxu0
      %v1383 = vadd.f32 0.0, %v1382
      %v1384 = vpop.f32.mrf.mxu0
      %v1385 = vpop.f32.mrf.mxu0
      %v1386 = vadd.f32 0.0, %v1385
      %v1387 = vpop.f32.mrf.mxu0
      %1388 = vmatprep.mubr.bf16.mxu0 0
      %1389 = vmatmul.mubr.bf16.gmra.mxu0 %v900
      %v1390 = vpop.f32.mrf.mxu0
      %v1391 = vadd.f32 0.0, %v1390
      %v1392 = vpop.f32.mrf.mxu0
      %v1393 = vpop.f32.mrf.mxu0
      %v1394 = vadd.f32 0.0, %v1393
      %v1395 = vpop.f32.mrf.mxu0
      %1396 = vmatprep.mubr.bf16.mxu0 0
      %1397 = vmatmul.mubr.bf16.gmra.mxu0 %v903
      %v1398 = vpop.f32.mrf.mxu0
      %v1399 = vadd.f32 0.0, %v1398
      %v1400 = vpop.f32.mrf.mxu0
      %v1401 = vpop.f32.mrf.mxu0
      %v1402 = vadd.f32 0.0, %v1401
      %v1403 = vpop.f32.mrf.mxu0
      %1404 = vmatprep.mubr.bf16.mxu0 0
      %1405 = vmatmul.mubr.bf16.gmra.mxu0 %v906
      %v1406 = vpop.f32.mrf.mxu0
      %v1407 = vadd.f32 0.0, %v1406
      %v1408 = vpop.f32.mrf.mxu0
      %v1409 = vpop.f32.mrf.mxu0
      %v1410 = vadd.f32 0.0, %v1409
      %v1411 = vpop.f32.mrf.mxu0
      %1412 = vmatprep.mubr.bf16.mxu0 0
      %1413 = vmatmul.mubr.bf16.gmra.mxu0 %v909
      %v1414 = vpop.f32.mrf.mxu0
      %v1415 = vadd.f32 0.0, %v1414
      %v1416 = vpop.f32.mrf.mxu0
      %v1417 = vpop.f32.mrf.mxu0
      %v1418 = vadd.f32 0.0, %v1417
      %v1419 = vpop.f32.mrf.mxu0
      %1420 = vmatprep.mubr.bf16.mxu0 0
      %1421 = vmatmul.mubr.bf16.gmra.mxu0 %v912
      %v1422 = vpop.f32.mrf.mxu0
      %v1423 = vadd.f32 0.0, %v1422
      %v1424 = vpop.f32.mrf.mxu0
      %v1425 = vpop.f32.mrf.mxu0
      %v1426 = vadd.f32 0.0, %v1425
      %v1427 = vpop.f32.mrf.mxu0
      %1428 = vmatprep.mubr.bf16.mxu0 0
      %1429 = vmatmul.mubr.bf16.gmra.mxu0 %v915
      %v1430 = vpop.f32.mrf.mxu0
      %v1431 = vadd.f32 0.0, %v1430
      %v1432 = vpop.f32.mrf.mxu0
      %v1433 = vpop.f32.mrf.mxu0
      %v1434 = vadd.f32 0.0, %v1433
      %v1435 = vpop.f32.mrf.mxu0
      %1436 = vmatprep.mubr.bf16.mxu0 0
      %1437 = vmatmul.mubr.bf16.gmra.mxu0 %v918
      %v1438 = vpop.f32.mrf.mxu0
      %v1439 = vadd.f32 0.0, %v1438
      %v1440 = vpop.f32.mrf.mxu0
      %v1441 = vpop.f32.mrf.mxu0
      %v1442 = vadd.f32 0.0, %v1441
      %v1443 = vpop.f32.mrf.mxu0
      %1444 = vmatprep.mubr.bf16.mxu0 0
      %1445 = vmatmul.mubr.bf16.gmra.mxu0 %v921
      %v1446 = vpop.f32.mrf.mxu0
      %v1447 = vadd.f32 0.0, %v1446
      %v1448 = vpop.f32.mrf.mxu0
      %v1449 = vpop.f32.mrf.mxu0
      %v1450 = vadd.f32 0.0, %v1449
      %v1451 = vpop.f32.mrf.mxu0
      %1452 = vmatprep.mubr.bf16.mxu0 0
      %1453 = vmatmul.mubr.bf16.gmra.mxu0 %v924
      %v1454 = vpop.f32.mrf.mxu0
      %v1455 = vadd.f32 0.0, %v1454
      %v1456 = vpop.f32.mrf.mxu0
      %v1457 = vpop.f32.mrf.mxu0
      %v1458 = vadd.f32 0.0, %v1457
      %v1459 = vpop.f32.mrf.mxu0
      %1460 = vmatprep.mubr.bf16.mxu0 0
      %1461 = vmatmul.mubr.bf16.gmra.mxu0 %v927
      %v1462 = vpop.f32.mrf.mxu0
      %v1463 = vadd.f32 0.0, %v1462
      %v1464 = vpop.f32.mrf.mxu0
      %v1465 = vpop.f32.mrf.mxu0
      %v1466 = vadd.f32 0.0, %v1465
      %v1467 = vpop.f32.mrf.mxu0
      %1468 = vmatprep.mubr.bf16.mxu0 0
      %1469 = vmatmul.mubr.bf16.gmra.mxu0 %v930
      %v1470 = vpop.f32.mrf.mxu0
      %v1471 = vadd.f32 0.0, %v1470
      %v1472 = vpop.f32.mrf.mxu0
      %v1473 = vpop.f32.mrf.mxu0
      %v1474 = vadd.f32 0.0, %v1473
      %v1475 = vpop.f32.mrf.mxu0
      %1476 = vdwg.mxu0
      %1477 = vst [vmem:[%s252] sm:$0xff] %v967
      %1478 = vst [vmem:[%s252 + $0x8] sm:$0xff] %v970
      %1479 = vst [vmem:[%s252 + $0x10] sm:$0xff] %v975
      %1480 = vst [vmem:[%s252 + $0x18] sm:$0xff] %v978
      %1481 = vst [vmem:[%s252 + $0x20] sm:$0xff] %v983
      %1482 = vst [vmem:[%s252 + $0x28] sm:$0xff] %v986
      %1483 = vst [vmem:[%s252 + $0x30] sm:$0xff] %v991
      %1484 = vst [vmem:[%s252 + $0x38] sm:$0xff] %v994
      %1485 = vst [vmem:[%s252 + $0x40] sm:$0xff] %v999
      %1486 = vst [vmem:[%s252 + $0x48] sm:$0xff] %v1002
      %1487 = vst [vmem:[%s252 + $0x50] sm:$0xff] %v1007
      %1488 = vst [vmem:[%s252 + $0x58] sm:$0xff] %v1010
      %1489 = vst [vmem:[%s252 + $0x60] sm:$0xff] %v1015
      %1490 = vst [vmem:[%s252 + $0x68] sm:$0xff] %v1018
      %1491 = vst [vmem:[%s252 + $0x70] sm:$0xff] %v1023
      %1492 = vst [vmem:[%s252 + $0x78] sm:$0xff] %v1026
      %1493 = vst [vmem:[%s252 + $0x80] sm:$0xff] %v1031
      %1494 = vst [vmem:[%s252 + $0x88] sm:$0xff] %v1034
      %1495 = vst [vmem:[%s252 + $0x90] sm:$0xff] %v1039
      %1496 = vst [vmem:[%s252 + $0x98] sm:$0xff] %v1042
      %1497 = vst [vmem:[%s252 + $0xa0] sm:$0xff] %v1047
      %1498 = vst [vmem:[%s252 + $0xa8] sm:$0xff] %v1050
      %1499 = vst [vmem:[%s252 + $0xb0] sm:$0xff] %v1055
      %1500 = vst [vmem:[%s252 + $0xb8] sm:$0xff] %v1058
      %1501 = vst [vmem:[%s252 + $0xc0] sm:$0xff] %v1063
      %1502 = vst [vmem:[%s252 + $0xc8] sm:$0xff] %v1066
      %1503 = vst [vmem:[%s252 + $0xd0] sm:$0xff] %v1071
      %1504 = vst [vmem:[%s252 + $0xd8] sm:$0xff] %v1074
      %1505 = vst [vmem:[%s252 + $0xe0] sm:$0xff] %v1079
      %1506 = vst [vmem:[%s252 + $0xe8] sm:$0xff] %v1082
      %1507 = vst [vmem:[%s252 + $0xf0] sm:$0xff] %v1087
      %1508 = vst [vmem:[%s252 + $0xf8] sm:$0xff] %v1090
      %1509 = vst [vmem:[%s252 + $0x100] sm:$0xff] %v1095
      %1510 = vst [vmem:[%s252 + $0x108] sm:$0xff] %v1098
      %1511 = vst [vmem:[%s252 + $0x110] sm:$0xff] %v1103
      %1512 = vst [vmem:[%s252 + $0x118] sm:$0xff] %v1106
      %1513 = vst [vmem:[%s252 + $0x120] sm:$0xff] %v1111
      %1514 = vst [vmem:[%s252 + $0x128] sm:$0xff] %v1114
      %1515 = vst [vmem:[%s252 + $0x130] sm:$0xff] %v1119
      %1516 = vst [vmem:[%s252 + $0x138] sm:$0xff] %v1122
      %1517 = vst [vmem:[%s252 + $0x140] sm:$0xff] %v1127
      %1518 = vst [vmem:[%s252 + $0x148] sm:$0xff] %v1130
      %1519 = vst [vmem:[%s252 + $0x150] sm:$0xff] %v1135
      %1520 = vst [vmem:[%s252 + $0x158] sm:$0xff] %v1138
      %1521 = vst [vmem:[%s252 + $0x160] sm:$0xff] %v1143
      %1522 = vst [vmem:[%s252 + $0x168] sm:$0xff] %v1146
      %1523 = vst [vmem:[%s252 + $0x170] sm:$0xff] %v1151
      %1524 = vst [vmem:[%s252 + $0x178] sm:$0xff] %v1154
      %1525 = vst [vmem:[%s252 + $0x180] sm:$0xff] %v1159
      %1526 = vst [vmem:[%s252 + $0x188] sm:$0xff] %v1162
      %1527 = vst [vmem:[%s252 + $0x190] sm:$0xff] %v1167
      %1528 = vst [vmem:[%s252 + $0x198] sm:$0xff] %v1170
      %1529 = vst [vmem:[%s252 + $0x1a0] sm:$0xff] %v1175
      %1530 = vst [vmem:[%s252 + $0x1a8] sm:$0xff] %v1178
      %1531 = vst [vmem:[%s252 + $0x1b0] sm:$0xff] %v1183
      %1532 = vst [vmem:[%s252 + $0x1b8] sm:$0xff] %v1186
      %1533 = vst [vmem:[%s252 + $0x1c0] sm:$0xff] %v1191
      %1534 = vst [vmem:[%s252 + $0x1c8] sm:$0xff] %v1194
      %1535 = vst [vmem:[%s252 + $0x1d0] sm:$0xff] %v1199
      %1536 = vst [vmem:[%s252 + $0x1d8] sm:$0xff] %v1202
      %1537 = vst [vmem:[%s252 + $0x1e0] sm:$0xff] %v1207
      %1538 = vst [vmem:[%s252 + $0x1e8] sm:$0xff] %v1210
      %1539 = vst [vmem:[%s252 + $0x1f0] sm:$0xff] %v1215
      %1540 = vst [vmem:[%s252 + $0x1f8] sm:$0xff] %v1218
      %1541 = vst [vmem:[%s252 + $0x200] sm:$0xff] %v1223
      %1542 = vst [vmem:[%s252 + $0x208] sm:$0xff] %v1226
      %1543 = vst [vmem:[%s252 + $0x210] sm:$0xff] %v1231
      %1544 = vst [vmem:[%s252 + $0x218] sm:$0xff] %v1234
      %1545 = vst [vmem:[%s252 + $0x220] sm:$0xff] %v1239
      %1546 = vst [vmem:[%s252 + $0x228] sm:$0xff] %v1242
      %1547 = vst [vmem:[%s252 + $0x230] sm:$0xff] %v1247
      %1548 = vst [vmem:[%s252 + $0x238] sm:$0xff] %v1250
      %1549 = vst [vmem:[%s252 + $0x240] sm:$0xff] %v1255
      %1550 = vst [vmem:[%s252 + $0x248] sm:$0xff] %v1258
      %1551 = vst [vmem:[%s252 + $0x250] sm:$0xff] %v1263
      %1552 = vst [vmem:[%s252 + $0x258] sm:$0xff] %v1266
      %1553 = vst [vmem:[%s252 + $0x260] sm:$0xff] %v1271
      %1554 = vst [vmem:[%s252 + $0x268] sm:$0xff] %v1274
      %1555 = vst [vmem:[%s252 + $0x270] sm:$0xff] %v1279
      %1556 = vst [vmem:[%s252 + $0x278] sm:$0xff] %v1282
      %1557 = vst [vmem:[%s252 + $0x280] sm:$0xff] %v1287
      %1558 = vst [vmem:[%s252 + $0x288] sm:$0xff] %v1290
      %1559 = vst [vmem:[%s252 + $0x290] sm:$0xff] %v1295
      %1560 = vst [vmem:[%s252 + $0x298] sm:$0xff] %v1298
      %1561 = vst [vmem:[%s252 + $0x2a0] sm:$0xff] %v1303
      %1562 = vst [vmem:[%s252 + $0x2a8] sm:$0xff] %v1306
      %1563 = vst [vmem:[%s252 + $0x2b0] sm:$0xff] %v1311
      %1564 = vst [vmem:[%s252 + $0x2b8] sm:$0xff] %v1314
      %1565 = vst [vmem:[%s252 + $0x2c0] sm:$0xff] %v1319
      %1566 = vst [vmem:[%s252 + $0x2c8] sm:$0xff] %v1322
      %1567 = vst [vmem:[%s252 + $0x2d0] sm:$0xff] %v1327
      %1568 = vst [vmem:[%s252 + $0x2d8] sm:$0xff] %v1330
      %1569 = vst [vmem:[%s252 + $0x2e0] sm:$0xff] %v1335
      %1570 = vst [vmem:[%s252 + $0x2e8] sm:$0xff] %v1338
      %1571 = vst [vmem:[%s252 + $0x2f0] sm:$0xff] %v1343
      %1572 = vst [vmem:[%s252 + $0x2f8] sm:$0xff] %v1346
      %1573 = vst [vmem:[%s252 + $0x300] sm:$0xff] %v1351
      %1574 = vst [vmem:[%s252 + $0x308] sm:$0xff] %v1354
      %1575 = vst [vmem:[%s252 + $0x310] sm:$0xff] %v1359
      %1576 = vst [vmem:[%s252 + $0x318] sm:$0xff] %v1362
      %1577 = vst [vmem:[%s252 + $0x320] sm:$0xff] %v1367
      %1578 = vst [vmem:[%s252 + $0x328] sm:$0xff] %v1370
      %1579 = vst [vmem:[%s252 + $0x330] sm:$0xff] %v1375
      %1580 = vst [vmem:[%s252 + $0x338] sm:$0xff] %v1378
      %1581 = vst [vmem:[%s252 + $0x340] sm:$0xff] %v1383
      %1582 = vst [vmem:[%s252 + $0x348] sm:$0xff] %v1386
      %1583 = vst [vmem:[%s252 + $0x350] sm:$0xff] %v1391
      %1584 = vst [vmem:[%s252 + $0x358] sm:$0xff] %v1394
      %1585 = vst [vmem:[%s252 + $0x360] sm:$0xff] %v1399
      %1586 = vst [vmem:[%s252 + $0x368] sm:$0xff] %v1402
      %1587 = vst [vmem:[%s252 + $0x370] sm:$0xff] %v1407
      %1588 = vst [vmem:[%s252 + $0x378] sm:$0xff] %v1410
      %1589 = vst [vmem:[%s252 + $0x380] sm:$0xff] %v1415
      %1590 = vst [vmem:[%s252 + $0x388] sm:$0xff] %v1418
      %1591 = vst [vmem:[%s252 + $0x390] sm:$0xff] %v1423
      %1592 = vst [vmem:[%s252 + $0x398] sm:$0xff] %v1426
      %1593 = vst [vmem:[%s252 + $0x3a0] sm:$0xff] %v1431
      %1594 = vst [vmem:[%s252 + $0x3a8] sm:$0xff] %v1434
      %1595 = vst [vmem:[%s252 + $0x3b0] sm:$0xff] %v1439
      %1596 = vst [vmem:[%s252 + $0x3b8] sm:$0xff] %v1442
      %1597 = vst [vmem:[%s252 + $0x3c0] sm:$0xff] %v1447
      %1598 = vst [vmem:[%s252 + $0x3c8] sm:$0xff] %v1450
      %1599 = vst [vmem:[%s252 + $0x3d0] sm:$0xff] %v1455
      %1600 = vst [vmem:[%s252 + $0x3d8] sm:$0xff] %v1458
      %1601 = vst [vmem:[%s252 + $0x3e0] sm:$0xff] %v1463
      %1602 = vst [vmem:[%s252 + $0x3e8] sm:$0xff] %v1466
      %1603 = vst [vmem:[%s252 + $0x3f0] sm:$0xff] %v1471
      %1604 = vst [vmem:[%s252 + $0x3f8] sm:$0xff] %v1474
      %v1605 = vld [vmem:[%s2] sm:$0xf]
      %v1606 = vld [vmem:[%s2 + $0x4] sm:$0xf]
      %v1607 = vld [vmem:[%s2 + $0x8] sm:$0xf]
      %v1608 = vld [vmem:[%s2 + $0xc] sm:$0xf]
      %v1609 = vld [vmem:[%s2 + $0x10] sm:$0xf]
      %v1610 = vld [vmem:[%s2 + $0x14] sm:$0xf]
      %v1611 = vld [vmem:[%s2 + $0x18] sm:$0xf]
      %v1612 = vld [vmem:[%s2 + $0x1c] sm:$0xf]
      %v1613 = vld [vmem:[%s2 + $0x20] sm:$0xf]
      %v1614 = vld [vmem:[%s2 + $0x24] sm:$0xf]
      %v1615 = vld [vmem:[%s2 + $0x28] sm:$0xf]
      %v1616 = vld [vmem:[%s2 + $0x2c] sm:$0xf]
      %v1617 = vld [vmem:[%s2 + $0x30] sm:$0xf]
      %v1618 = vld [vmem:[%s2 + $0x34] sm:$0xf]
      %v1619 = vld [vmem:[%s2 + $0x38] sm:$0xf]
      %v1620 = vld [vmem:[%s2 + $0x3c] sm:$0xf]
      %v1621 = vld [vmem:[%s2 + $0x40] sm:$0xf]
      %v1622 = vld [vmem:[%s2 + $0x44] sm:$0xf]
      %v1623 = vld [vmem:[%s2 + $0x48] sm:$0xf]
      %v1624 = vld [vmem:[%s2 + $0x4c] sm:$0xf]
      %v1625 = vld [vmem:[%s2 + $0x50] sm:$0xf]
      %v1626 = vld [vmem:[%s2 + $0x54] sm:$0xf]
      %v1627 = vld [vmem:[%s2 + $0x58] sm:$0xf]
      %v1628 = vld [vmem:[%s2 + $0x5c] sm:$0xf]
      %v1629 = vld [vmem:[%s2 + $0x60] sm:$0xf]
      %v1630 = vld [vmem:[%s2 + $0x64] sm:$0xf]
      %v1631 = vld [vmem:[%s2 + $0x68] sm:$0xf]
      %v1632 = vld [vmem:[%s2 + $0x6c] sm:$0xf]
      %v1633 = vld [vmem:[%s2 + $0x70] sm:$0xf]
      %v1634 = vld [vmem:[%s2 + $0x74] sm:$0xf]
      %v1635 = vld [vmem:[%s2 + $0x78] sm:$0xf]
      %v1636 = vld [vmem:[%s2 + $0x7c] sm:$0xf]
      %v1637 = vld [vmem:[%s2 + $0x80] sm:$0xf]
      %v1638 = vld [vmem:[%s2 + $0x84] sm:$0xf]
      %v1639 = vld [vmem:[%s2 + $0x88] sm:$0xf]
      %v1640 = vld [vmem:[%s2 + $0x8c] sm:$0xf]
      %v1641 = vld [vmem:[%s2 + $0x90] sm:$0xf]
      %v1642 = vld [vmem:[%s2 + $0x94] sm:$0xf]
      %v1643 = vld [vmem:[%s2 + $0x98] sm:$0xf]
      %v1644 = vld [vmem:[%s2 + $0x9c] sm:$0xf]
      %v1645 = vld [vmem:[%s2 + $0xa0] sm:$0xf]
      %v1646 = vld [vmem:[%s2 + $0xa4] sm:$0xf]
      %v1647 = vld [vmem:[%s2 + $0xa8] sm:$0xf]
      %v1648 = vld [vmem:[%s2 + $0xac] sm:$0xf]
      %v1649 = vld [vmem:[%s2 + $0xb0] sm:$0xf]
      %v1650 = vld [vmem:[%s2 + $0xb4] sm:$0xf]
      %v1651 = vld [vmem:[%s2 + $0xb8] sm:$0xf]
      %v1652 = vld [vmem:[%s2 + $0xbc] sm:$0xf]
      %v1653 = vld [vmem:[%s2 + $0xc0] sm:$0xf]
      %v1654 = vld [vmem:[%s2 + $0xc4] sm:$0xf]
      %v1655 = vld [vmem:[%s2 + $0xc8] sm:$0xf]
      %v1656 = vld [vmem:[%s2 + $0xcc] sm:$0xf]
      %v1657 = vld [vmem:[%s2 + $0xd0] sm:$0xf]
      %v1658 = vld [vmem:[%s2 + $0xd4] sm:$0xf]
      %v1659 = vld [vmem:[%s2 + $0xd8] sm:$0xf]
      %v1660 = vld [vmem:[%s2 + $0xdc] sm:$0xf]
      %v1661 = vld [vmem:[%s2 + $0xe0] sm:$0xf]
      %v1662 = vld [vmem:[%s2 + $0xe4] sm:$0xf]
      %v1663 = vld [vmem:[%s2 + $0xe8] sm:$0xf]
      %v1664 = vld [vmem:[%s2 + $0xec] sm:$0xf]
      %v1665 = vld [vmem:[%s2 + $0xf0] sm:$0xf]
      %v1666 = vld [vmem:[%s2 + $0xf4] sm:$0xf]
      %v1667 = vld [vmem:[%s2 + $0xf8] sm:$0xf]
      %v1668 = vld [vmem:[%s2 + $0xfc] sm:$0xf]
      %v1669 = vld [vmem:[%s2 + $0x100] sm:$0xf]
      %v1670 = vld [vmem:[%s2 + $0x104] sm:$0xf]
      %v1671 = vld [vmem:[%s2 + $0x108] sm:$0xf]
      %v1672 = vld [vmem:[%s2 + $0x10c] sm:$0xf]
      %v1673 = vld [vmem:[%s2 + $0x110] sm:$0xf]
      %v1674 = vld [vmem:[%s2 + $0x114] sm:$0xf]
      %v1675 = vld [vmem:[%s2 + $0x118] sm:$0xf]
      %v1676 = vld [vmem:[%s2 + $0x11c] sm:$0xf]
      %v1677 = vld [vmem:[%s2 + $0x120] sm:$0xf]
      %v1678 = vld [vmem:[%s2 + $0x124] sm:$0xf]
      %v1679 = vld [vmem:[%s2 + $0x128] sm:$0xf]
      %v1680 = vld [vmem:[%s2 + $0x12c] sm:$0xf]
      %v1681 = vld [vmem:[%s2 + $0x130] sm:$0xf]
      %v1682 = vld [vmem:[%s2 + $0x134] sm:$0xf]
      %v1683 = vld [vmem:[%s2 + $0x138] sm:$0xf]
      %v1684 = vld [vmem:[%s2 + $0x13c] sm:$0xf]
      %v1685 = vld [vmem:[%s2 + $0x140] sm:$0xf]
      %v1686 = vld [vmem:[%s2 + $0x144] sm:$0xf]
      %v1687 = vld [vmem:[%s2 + $0x148] sm:$0xf]
      %v1688 = vld [vmem:[%s2 + $0x14c] sm:$0xf]
      %v1689 = vld [vmem:[%s2 + $0x150] sm:$0xf]
      %v1690 = vld [vmem:[%s2 + $0x154] sm:$0xf]
      %v1691 = vld [vmem:[%s2 + $0x158] sm:$0xf]
      %v1692 = vld [vmem:[%s2 + $0x15c] sm:$0xf]
      %v1693 = vld [vmem:[%s2 + $0x160] sm:$0xf]
      %v1694 = vld [vmem:[%s2 + $0x164] sm:$0xf]
      %v1695 = vld [vmem:[%s2 + $0x168] sm:$0xf]
      %v1696 = vld [vmem:[%s2 + $0x16c] sm:$0xf]
      %v1697 = vld [vmem:[%s2 + $0x170] sm:$0xf]
      %v1698 = vld [vmem:[%s2 + $0x174] sm:$0xf]
      %v1699 = vld [vmem:[%s2 + $0x178] sm:$0xf]
      %v1700 = vld [vmem:[%s2 + $0x17c] sm:$0xf]
      %v1701 = vld [vmem:[%s2 + $0x180] sm:$0xf]
      %v1702 = vld [vmem:[%s2 + $0x184] sm:$0xf]
      %v1703 = vld [vmem:[%s2 + $0x188] sm:$0xf]
      %v1704 = vld [vmem:[%s2 + $0x18c] sm:$0xf]
      %v1705 = vld [vmem:[%s2 + $0x190] sm:$0xf]
      %v1706 = vld [vmem:[%s2 + $0x194] sm:$0xf]
      %v1707 = vld [vmem:[%s2 + $0x198] sm:$0xf]
      %v1708 = vld [vmem:[%s2 + $0x19c] sm:$0xf]
      %v1709 = vld [vmem:[%s2 + $0x1a0] sm:$0xf]
      %v1710 = vld [vmem:[%s2 + $0x1a4] sm:$0xf]
      %v1711 = vld [vmem:[%s2 + $0x1a8] sm:$0xf]
      %v1712 = vld [vmem:[%s2 + $0x1ac] sm:$0xf]
      %v1713 = vld [vmem:[%s2 + $0x1b0] sm:$0xf]
      %v1714 = vld [vmem:[%s2 + $0x1b4] sm:$0xf]
      %v1715 = vld [vmem:[%s2 + $0x1b8] sm:$0xf]
      %v1716 = vld [vmem:[%s2 + $0x1bc] sm:$0xf]
      %v1717 = vld [vmem:[%s2 + $0x1c0] sm:$0xf]
      %v1718 = vld [vmem:[%s2 + $0x1c4] sm:$0xf]
      %v1719 = vld [vmem:[%s2 + $0x1c8] sm:$0xf]
      %v1720 = vld [vmem:[%s2 + $0x1cc] sm:$0xf]
      %v1721 = vld [vmem:[%s2 + $0x1d0] sm:$0xf]
      %v1722 = vld [vmem:[%s2 + $0x1d4] sm:$0xf]
      %v1723 = vld [vmem:[%s2 + $0x1d8] sm:$0xf]
      %v1724 = vld [vmem:[%s2 + $0x1dc] sm:$0xf]
      %v1725 = vld [vmem:[%s2 + $0x1e0] sm:$0xf]
      %v1726 = vld [vmem:[%s2 + $0x1e4] sm:$0xf]
      %v1727 = vld [vmem:[%s2 + $0x1e8] sm:$0xf]
      %v1728 = vld [vmem:[%s2 + $0x1ec] sm:$0xf]
      %v1729 = vld [vmem:[%s2 + $0x1f0] sm:$0xf]
      %v1730 = vld [vmem:[%s2 + $0x1f4] sm:$0xf]
      %v1731 = vld [vmem:[%s2 + $0x1f8] sm:$0xf]
      %v1732 = vld [vmem:[%s2 + $0x1fc] sm:$0xf]
      %v1733 = vld [vmem:[%s247] sm:$0xf]
      %v1734 = vld [vmem:[%s247 + $0x4] sm:$0xf]
      %v1863 = vunpack.c.l.b16 %v1605
      %v1864 = vunpack.c.l.b16 %v1606
      %v1865 = vunpack.c.l.b16 %v1607
      %v1866 = vunpack.c.l.b16 %v1608
      %v1867 = vunpack.c.l.b16 %v1609
      %v1868 = vunpack.c.l.b16 %v1610
      %v1869 = vunpack.c.l.b16 %v1611
      %v1870 = vunpack.c.l.b16 %v1612
      %v1871 = vunpack.c.l.b16 %v1613
      %v1872 = vunpack.c.l.b16 %v1614
      %v1873 = vunpack.c.l.b16 %v1615
      %v1874 = vunpack.c.l.b16 %v1616
      %v1875 = vunpack.c.l.b16 %v1617
      %v1876 = vunpack.c.l.b16 %v1618
      %v1877 = vunpack.c.l.b16 %v1619
      %v1878 = vunpack.c.l.b16 %v1620
      %v1879 = vunpack.c.l.b16 %v1621
      %v1880 = vunpack.c.l.b16 %v1622
      %v1881 = vunpack.c.l.b16 %v1623
      %v1882 = vunpack.c.l.b16 %v1624
      %v1883 = vunpack.c.l.b16 %v1625
      %v1884 = vunpack.c.l.b16 %v1626
      %v1885 = vunpack.c.l.b16 %v1627
      %v1886 = vunpack.c.l.b16 %v1628
      %v1887 = vunpack.c.l.b16 %v1629
      %v1888 = vunpack.c.l.b16 %v1630
      %v1889 = vunpack.c.l.b16 %v1631
      %v1890 = vunpack.c.l.b16 %v1632
      %v1891 = vunpack.c.l.b16 %v1633
      %v1892 = vunpack.c.l.b16 %v1634
      %v1893 = vunpack.c.l.b16 %v1635
      %v1894 = vunpack.c.l.b16 %v1636
      %v1895 = vunpack.c.l.b16 %v1637
      %v1896 = vunpack.c.l.b16 %v1638
      %v1897 = vunpack.c.l.b16 %v1639
      %v1898 = vunpack.c.l.b16 %v1640
      %v1899 = vunpack.c.l.b16 %v1641
      %v1900 = vunpack.c.l.b16 %v1642
      %v1901 = vunpack.c.l.b16 %v1643
      %v1902 = vunpack.c.l.b16 %v1644
      %v1903 = vunpack.c.l.b16 %v1645
      %v1904 = vunpack.c.l.b16 %v1646
      %v1905 = vunpack.c.l.b16 %v1647
      %v1906 = vunpack.c.l.b16 %v1648
      %v1907 = vunpack.c.l.b16 %v1649
      %v1908 = vunpack.c.l.b16 %v1650
      %v1909 = vunpack.c.l.b16 %v1651
      %v1910 = vunpack.c.l.b16 %v1652
      %v1911 = vunpack.c.l.b16 %v1653
      %v1912 = vunpack.c.l.b16 %v1654
      %v1913 = vunpack.c.l.b16 %v1655
      %v1914 = vunpack.c.l.b16 %v1656
      %v1915 = vunpack.c.l.b16 %v1657
      %v1916 = vunpack.c.l.b16 %v1658
      %v1917 = vunpack.c.l.b16 %v1659
      %v1918 = vunpack.c.l.b16 %v1660
      %v1919 = vunpack.c.l.b16 %v1661
      %v1920 = vunpack.c.l.b16 %v1662
      %v1921 = vunpack.c.l.b16 %v1663
      %v1922 = vunpack.c.l.b16 %v1664
      %v1923 = vunpack.c.l.b16 %v1665
      %v1924 = vunpack.c.l.b16 %v1666
      %v1925 = vunpack.c.l.b16 %v1667
      %v1926 = vunpack.c.l.b16 %v1668
      %v1927 = vunpack.c.l.b16 %v1669
      %v1928 = vunpack.c.l.b16 %v1670
      %v1929 = vunpack.c.l.b16 %v1671
      %v1930 = vunpack.c.l.b16 %v1672
      %v1931 = vunpack.c.l.b16 %v1673
      %v1932 = vunpack.c.l.b16 %v1674
      %v1933 = vunpack.c.l.b16 %v1675
      %v1934 = vunpack.c.l.b16 %v1676
      %v1935 = vunpack.c.l.b16 %v1677
      %v1936 = vunpack.c.l.b16 %v1678
      %v1937 = vunpack.c.l.b16 %v1679
      %v1938 = vunpack.c.l.b16 %v1680
      %v1939 = vunpack.c.l.b16 %v1681
      %v1940 = vunpack.c.l.b16 %v1682
      %v1941 = vunpack.c.l.b16 %v1683
      %v1942 = vunpack.c.l.b16 %v1684
      %v1943 = vunpack.c.l.b16 %v1685
      %v1944 = vunpack.c.l.b16 %v1686
      %v1945 = vunpack.c.l.b16 %v1687
      %v1946 = vunpack.c.l.b16 %v1688
      %v1947 = vunpack.c.l.b16 %v1689
      %v1948 = vunpack.c.l.b16 %v1690
      %v1949 = vunpack.c.l.b16 %v1691
      %v1950 = vunpack.c.l.b16 %v1692
      %v1951 = vunpack.c.l.b16 %v1693
      %v1952 = vunpack.c.l.b16 %v1694
      %v1953 = vunpack.c.l.b16 %v1695
      %v1954 = vunpack.c.l.b16 %v1696
      %v1955 = vunpack.c.l.b16 %v1697
      %v1956 = vunpack.c.l.b16 %v1698
      %v1957 = vunpack.c.l.b16 %v1699
      %v1958 = vunpack.c.l.b16 %v1700
      %v1959 = vunpack.c.l.b16 %v1701
      %v1960 = vunpack.c.l.b16 %v1702
      %v1961 = vunpack.c.l.b16 %v1703
      %v1962 = vunpack.c.l.b16 %v1704
      %v1963 = vunpack.c.l.b16 %v1705
      %v1964 = vunpack.c.l.b16 %v1706
      %v1965 = vunpack.c.l.b16 %v1707
      %v1966 = vunpack.c.l.b16 %v1708
      %v1967 = vunpack.c.l.b16 %v1709
      %v1968 = vunpack.c.l.b16 %v1710
      %v1969 = vunpack.c.l.b16 %v1711
      %v1970 = vunpack.c.l.b16 %v1712
      %v1971 = vunpack.c.l.b16 %v1713
      %v1972 = vunpack.c.l.b16 %v1714
      %v1973 = vunpack.c.l.b16 %v1715
      %v1974 = vunpack.c.l.b16 %v1716
      %v1975 = vunpack.c.l.b16 %v1717
      %v1976 = vunpack.c.l.b16 %v1718
      %v1977 = vunpack.c.l.b16 %v1719
      %v1978 = vunpack.c.l.b16 %v1720
      %v1979 = vunpack.c.l.b16 %v1721
      %v1980 = vunpack.c.l.b16 %v1722
      %v1981 = vunpack.c.l.b16 %v1723
      %v1982 = vunpack.c.l.b16 %v1724
      %v1983 = vunpack.c.l.b16 %v1725
      %v1984 = vunpack.c.l.b16 %v1726
      %v1985 = vunpack.c.l.b16 %v1727
      %v1986 = vunpack.c.l.b16 %v1728
      %v1987 = vunpack.c.l.b16 %v1729
      %v1988 = vunpack.c.l.b16 %v1730
      %v1989 = vunpack.c.l.b16 %v1731
      %v1990 = vunpack.c.l.b16 %v1732
      %v1991 = vpack.c.b16 %v1864, %v1863
      %v1992 = vpack.c.b16 %v1866, %v1865
      %v1993 = vpack.c.b16 %v1868, %v1867
      %v1994 = vpack.c.b16 %v1870, %v1869
      %v1995 = vpack.c.b16 %v1872, %v1871
      %v1996 = vpack.c.b16 %v1874, %v1873
      %v1997 = vpack.c.b16 %v1876, %v1875
      %v1998 = vpack.c.b16 %v1878, %v1877
      %v1999 = vpack.c.b16 %v1880, %v1879
      %v2000 = vpack.c.b16 %v1882, %v1881
      %v2001 = vpack.c.b16 %v1884, %v1883
      %v2002 = vpack.c.b16 %v1886, %v1885
      %v2003 = vpack.c.b16 %v1888, %v1887
      %v2004 = vpack.c.b16 %v1890, %v1889
      %v2005 = vpack.c.b16 %v1892, %v1891
      %v2006 = vpack.c.b16 %v1894, %v1893
      %v2007 = vpack.c.b16 %v1896, %v1895
      %v2008 = vpack.c.b16 %v1898, %v1897
      %v2009 = vpack.c.b16 %v1900, %v1899
      %v2010 = vpack.c.b16 %v1902, %v1901
      %v2011 = vpack.c.b16 %v1904, %v1903
      %v2012 = vpack.c.b16 %v1906, %v1905
      %v2013 = vpack.c.b16 %v1908, %v1907
      %v2014 = vpack.c.b16 %v1910, %v1909
      %v2015 = vpack.c.b16 %v1912, %v1911
      %v2016 = vpack.c.b16 %v1914, %v1913
      %v2017 = vpack.c.b16 %v1916, %v1915
      %v2018 = vpack.c.b16 %v1918, %v1917
      %v2019 = vpack.c.b16 %v1920, %v1919
      %v2020 = vpack.c.b16 %v1922, %v1921
      %v2021 = vpack.c.b16 %v1924, %v1923
      %v2022 = vpack.c.b16 %v1926, %v1925
      %v2023 = vpack.c.b16 %v1928, %v1927
      %v2024 = vpack.c.b16 %v1930, %v1929
      %v2025 = vpack.c.b16 %v1932, %v1931
      %v2026 = vpack.c.b16 %v1934, %v1933
      %v2027 = vpack.c.b16 %v1936, %v1935
      %v2028 = vpack.c.b16 %v1938, %v1937
      %v2029 = vpack.c.b16 %v1940, %v1939
      %v2030 = vpack.c.b16 %v1942, %v1941
      %v2031 = vpack.c.b16 %v1944, %v1943
      %v2032 = vpack.c.b16 %v1946, %v1945
      %v2033 = vpack.c.b16 %v1948, %v1947
      %v2034 = vpack.c.b16 %v1950, %v1949
      %v2035 = vpack.c.b16 %v1952, %v1951
      %v2036 = vpack.c.b16 %v1954, %v1953
      %v2037 = vpack.c.b16 %v1956, %v1955
      %v2038 = vpack.c.b16 %v1958, %v1957
      %v2039 = vpack.c.b16 %v1960, %v1959
      %v2040 = vpack.c.b16 %v1962, %v1961
      %v2041 = vpack.c.b16 %v1964, %v1963
      %v2042 = vpack.c.b16 %v1966, %v1965
      %v2043 = vpack.c.b16 %v1968, %v1967
      %v2044 = vpack.c.b16 %v1970, %v1969
      %v2045 = vpack.c.b16 %v1972, %v1971
      %v2046 = vpack.c.b16 %v1974, %v1973
      %v2047 = vpack.c.b16 %v1976, %v1975
      %v2048 = vpack.c.b16 %v1978, %v1977
      %v2049 = vpack.c.b16 %v1980, %v1979
      %v2050 = vpack.c.b16 %v1982, %v1981
      %v2051 = vpack.c.b16 %v1984, %v1983
      %v2052 = vpack.c.b16 %v1986, %v1985
      %v2053 = vpack.c.b16 %v1988, %v1987
      %v2054 = vpack.c.b16 %v1990, %v1989
      %v2057 = vunpack.c.l.b16 %v1733
      %v2058 = vunpack.c.l.b16 %v1734
      %v2059 = vpack.c.b16 %v2058, %v2057
      %vm2061 = vcmask 130048
      %v2063 = vsel %vm2061, %v1991, 0
      %v2066 = vsel %vm2061, %v1992, 0
      %v2069 = vsel %vm2061, %v1993, 0
      %v2072 = vsel %vm2061, %v1994, 0
      %v2075 = vsel %vm2061, %v1995, 0
      %v2078 = vsel %vm2061, %v1996, 0
      %v2081 = vsel %vm2061, %v1997, 0
      %v2084 = vsel %vm2061, %v1998, 0
      %v2087 = vsel %vm2061, %v1999, 0
      %v2090 = vsel %vm2061, %v2000, 0
      %v2093 = vsel %vm2061, %v2001, 0
      %v2096 = vsel %vm2061, %v2002, 0
      %v2099 = vsel %vm2061, %v2003, 0
      %v2102 = vsel %vm2061, %v2004, 0
      %v2105 = vsel %vm2061, %v2005, 0
      %v2108 = vsel %vm2061, %v2006, 0
      %v2111 = vsel %vm2061, %v2007, 0
      %v2114 = vsel %vm2061, %v2008, 0
      %v2117 = vsel %vm2061, %v2009, 0
      %v2120 = vsel %vm2061, %v2010, 0
      %v2123 = vsel %vm2061, %v2011, 0
      %v2126 = vsel %vm2061, %v2012, 0
      %v2129 = vsel %vm2061, %v2013, 0
      %v2132 = vsel %vm2061, %v2014, 0
      %v2135 = vsel %vm2061, %v2015, 0
      %v2138 = vsel %vm2061, %v2016, 0
      %v2141 = vsel %vm2061, %v2017, 0
      %v2144 = vsel %vm2061, %v2018, 0
      %v2147 = vsel %vm2061, %v2019, 0
      %v2150 = vsel %vm2061, %v2020, 0
      %v2153 = vsel %vm2061, %v2021, 0
      %v2156 = vsel %vm2061, %v2022, 0
      %v2159 = vsel %vm2061, %v2023, 0
      %v2162 = vsel %vm2061, %v2024, 0
      %v2165 = vsel %vm2061, %v2025, 0
      %v2168 = vsel %vm2061, %v2026, 0
      %v2171 = vsel %vm2061, %v2027, 0
      %v2174 = vsel %vm2061, %v2028, 0
      %v2177 = vsel %vm2061, %v2029, 0
      %v2180 = vsel %vm2061, %v2030, 0
      %v2183 = vsel %vm2061, %v2031, 0
      %v2186 = vsel %vm2061, %v2032, 0
      %v2189 = vsel %vm2061, %v2033, 0
      %v2192 = vsel %vm2061, %v2034, 0
      %v2195 = vsel %vm2061, %v2035, 0
      %v2198 = vsel %vm2061, %v2036, 0
      %v2201 = vsel %vm2061, %v2037, 0
      %v2204 = vsel %vm2061, %v2038, 0
      %v2207 = vsel %vm2061, %v2039, 0
      %v2210 = vsel %vm2061, %v2040, 0
      %v2213 = vsel %vm2061, %v2041, 0
      %v2216 = vsel %vm2061, %v2042, 0
      %v2219 = vsel %vm2061, %v2043, 0
      %v2222 = vsel %vm2061, %v2044, 0
      %v2225 = vsel %vm2061, %v2045, 0
      %v2228 = vsel %vm2061, %v2046, 0
      %v2231 = vsel %vm2061, %v2047, 0
      %v2234 = vsel %vm2061, %v2048, 0
      %v2237 = vsel %vm2061, %v2049, 0
      %v2240 = vsel %vm2061, %v2050, 0
      %v2243 = vsel %vm2061, %v2051, 0
      %v2246 = vsel %vm2061, %v2052, 0
      %v2249 = vsel %vm2061, %v2053, 0
      %v2252 = vsel %vm2061, %v2054, 0
      %2254 = vmatprep.subr.bf16.mxu0 0
      %2255 = vmatpush1.bf16.msra.mxu0 0
      %2256 = vmatprep.subr.bf16.mxu0 0
      %2257 = vmatpush1.bf16.msra.mxu0 0
      %2258 = vmatprep.subr.bf16.mxu0 0
      %2259 = vmatpush1.bf16.msra.mxu0 0
      %2260 = vmatprep.subr.bf16.mxu0 0
      %2261 = vmatpush1.bf16.msra.mxu0 0
      %2262 = vmatprep.subr.bf16.mxu0 0
      %2263 = vmatpush1.bf16.msra.mxu0 0
      %2264 = vmatprep.subr.bf16.mxu0 0
      %2265 = vmatpush1.bf16.msra.mxu0 0
      %2266 = vmatprep.subr.bf16.mxu0 0
      %2267 = vmatpush1.bf16.msra.mxu0 0
      %2268 = vmatprep.subr.bf16.mxu0 0
      %2269 = vmatpush1.bf16.msra.mxu0 %v2059
      %2270 = vmatprep.subr.bf16.mxu0 0
      %2271 = vmatpush2.bf16.msra.mxu0 0
      %2272 = vmatprep.subr.bf16.mxu0 0
      %2273 = vmatpush2.bf16.msra.mxu0 0
      %2274 = vmatprep.subr.bf16.mxu0 0
      %2275 = vmatpush2.bf16.msra.mxu0 0
      %2276 = vmatprep.subr.bf16.mxu0 0
      %2277 = vmatpush2.bf16.msra.mxu0 0
      %2278 = vmatprep.subr.bf16.mxu0 0
      %2279 = vmatpush2.bf16.msra.mxu0 0
      %2280 = vmatprep.subr.bf16.mxu0 0
      %2281 = vmatpush2.bf16.msra.mxu0 0
      %2282 = vmatprep.subr.bf16.mxu0 0
      %2283 = vmatpush2.bf16.msra.mxu0 0
      %2284 = vmatprep.subr.bf16.mxu0 0
      %2285 = vmatpush2.bf16.msra.mxu0 0
      %2286 = vmatprep.mubr.bf16.mxu0 0
      %2287 = vmatmul.mubr.bf16.gmra.mxu0 %v2063
      %v2288 = vpop.f32.mrf.mxu0
      %v2289 = vadd.f32 0.0, %v2288
      %v2290 = vpop.f32.mrf.mxu0
      %v2291 = vpop.f32.mrf.mxu0
      %v2292 = vadd.f32 0.0, %v2291
      %v2293 = vpop.f32.mrf.mxu0
      %2294 = vmatprep.mubr.bf16.mxu0 0
      %2295 = vmatmul.mubr.bf16.gmra.mxu0 %v2066
      %v2296 = vpop.f32.mrf.mxu0
      %v2297 = vadd.f32 0.0, %v2296
      %v2298 = vpop.f32.mrf.mxu0
      %v2299 = vpop.f32.mrf.mxu0
      %v2300 = vadd.f32 0.0, %v2299
      %v2301 = vpop.f32.mrf.mxu0
      %2302 = vmatprep.mubr.bf16.mxu0 0
      %2303 = vmatmul.mubr.bf16.gmra.mxu0 %v2069
      %v2304 = vpop.f32.mrf.mxu0
      %v2305 = vadd.f32 0.0, %v2304
      %v2306 = vpop.f32.mrf.mxu0
      %v2307 = vpop.f32.mrf.mxu0
      %v2308 = vadd.f32 0.0, %v2307
      %v2309 = vpop.f32.mrf.mxu0
      %2310 = vmatprep.mubr.bf16.mxu0 0
      %2311 = vmatmul.mubr.bf16.gmra.mxu0 %v2072
      %v2312 = vpop.f32.mrf.mxu0
      %v2313 = vadd.f32 0.0, %v2312
      %v2314 = vpop.f32.mrf.mxu0
      %v2315 = vpop.f32.mrf.mxu0
      %v2316 = vadd.f32 0.0, %v2315
      %v2317 = vpop.f32.mrf.mxu0
      %2318 = vmatprep.mubr.bf16.mxu0 0
      %2319 = vmatmul.mubr.bf16.gmra.mxu0 %v2075
      %v2320 = vpop.f32.mrf.mxu0
      %v2321 = vadd.f32 0.0, %v2320
      %v2322 = vpop.f32.mrf.mxu0
      %v2323 = vpop.f32.mrf.mxu0
      %v2324 = vadd.f32 0.0, %v2323
      %v2325 = vpop.f32.mrf.mxu0
      %2326 = vmatprep.mubr.bf16.mxu0 0
      %2327 = vmatmul.mubr.bf16.gmra.mxu0 %v2078
      %v2328 = vpop.f32.mrf.mxu0
      %v2329 = vadd.f32 0.0, %v2328
      %v2330 = vpop.f32.mrf.mxu0
      %v2331 = vpop.f32.mrf.mxu0
      %v2332 = vadd.f32 0.0, %v2331
      %v2333 = vpop.f32.mrf.mxu0
      %2334 = vmatprep.mubr.bf16.mxu0 0
      %2335 = vmatmul.mubr.bf16.gmra.mxu0 %v2081
      %v2336 = vpop.f32.mrf.mxu0
      %v2337 = vadd.f32 0.0, %v2336
      %v2338 = vpop.f32.mrf.mxu0
      %v2339 = vpop.f32.mrf.mxu0
      %v2340 = vadd.f32 0.0, %v2339
      %v2341 = vpop.f32.mrf.mxu0
      %2342 = vmatprep.mubr.bf16.mxu0 0
      %2343 = vmatmul.mubr.bf16.gmra.mxu0 %v2084
      %v2344 = vpop.f32.mrf.mxu0
      %v2345 = vadd.f32 0.0, %v2344
      %v2346 = vpop.f32.mrf.mxu0
      %v2347 = vpop.f32.mrf.mxu0
      %v2348 = vadd.f32 0.0, %v2347
      %v2349 = vpop.f32.mrf.mxu0
      %2350 = vmatprep.mubr.bf16.mxu0 0
      %2351 = vmatmul.mubr.bf16.gmra.mxu0 %v2087
      %v2352 = vpop.f32.mrf.mxu0
      %v2353 = vadd.f32 0.0, %v2352
      %v2354 = vpop.f32.mrf.mxu0
      %v2355 = vpop.f32.mrf.mxu0
      %v2356 = vadd.f32 0.0, %v2355
      %v2357 = vpop.f32.mrf.mxu0
      %2358 = vmatprep.mubr.bf16.mxu0 0
      %2359 = vmatmul.mubr.bf16.gmra.mxu0 %v2090
      %v2360 = vpop.f32.mrf.mxu0
      %v2361 = vadd.f32 0.0, %v2360
      %v2362 = vpop.f32.mrf.mxu0
      %v2363 = vpop.f32.mrf.mxu0
      %v2364 = vadd.f32 0.0, %v2363
      %v2365 = vpop.f32.mrf.mxu0
      %2366 = vmatprep.mubr.bf16.mxu0 0
      %2367 = vmatmul.mubr.bf16.gmra.mxu0 %v2093
      %v2368 = vpop.f32.mrf.mxu0
      %v2369 = vadd.f32 0.0, %v2368
      %v2370 = vpop.f32.mrf.mxu0
      %v2371 = vpop.f32.mrf.mxu0
      %v2372 = vadd.f32 0.0, %v2371
      %v2373 = vpop.f32.mrf.mxu0
      %2374 = vmatprep.mubr.bf16.mxu0 0
      %2375 = vmatmul.mubr.bf16.gmra.mxu0 %v2096
      %v2376 = vpop.f32.mrf.mxu0
      %v2377 = vadd.f32 0.0, %v2376
      %v2378 = vpop.f32.mrf.mxu0
      %v2379 = vpop.f32.mrf.mxu0
      %v2380 = vadd.f32 0.0, %v2379
      %v2381 = vpop.f32.mrf.mxu0
      %2382 = vmatprep.mubr.bf16.mxu0 0
      %2383 = vmatmul.mubr.bf16.gmra.mxu0 %v2099
      %v2384 = vpop.f32.mrf.mxu0
      %v2385 = vadd.f32 0.0, %v2384
      %v2386 = vpop.f32.mrf.mxu0
      %v2387 = vpop.f32.mrf.mxu0
      %v2388 = vadd.f32 0.0, %v2387
      %v2389 = vpop.f32.mrf.mxu0
      %2390 = vmatprep.mubr.bf16.mxu0 0
      %2391 = vmatmul.mubr.bf16.gmra.mxu0 %v2102
      %v2392 = vpop.f32.mrf.mxu0
      %v2393 = vadd.f32 0.0, %v2392
      %v2394 = vpop.f32.mrf.mxu0
      %v2395 = vpop.f32.mrf.mxu0
      %v2396 = vadd.f32 0.0, %v2395
      %v2397 = vpop.f32.mrf.mxu0
      %2398 = vmatprep.mubr.bf16.mxu0 0
      %2399 = vmatmul.mubr.bf16.gmra.mxu0 %v2105
      %v2400 = vpop.f32.mrf.mxu0
      %v2401 = vadd.f32 0.0, %v2400
      %v2402 = vpop.f32.mrf.mxu0
      %v2403 = vpop.f32.mrf.mxu0
      %v2404 = vadd.f32 0.0, %v2403
      %v2405 = vpop.f32.mrf.mxu0
      %2406 = vmatprep.mubr.bf16.mxu0 0
      %2407 = vmatmul.mubr.bf16.gmra.mxu0 %v2108
      %v2408 = vpop.f32.mrf.mxu0
      %v2409 = vadd.f32 0.0, %v2408
      %v2410 = vpop.f32.mrf.mxu0
      %v2411 = vpop.f32.mrf.mxu0
      %v2412 = vadd.f32 0.0, %v2411
      %v2413 = vpop.f32.mrf.mxu0
      %2414 = vmatprep.mubr.bf16.mxu0 0
      %2415 = vmatmul.mubr.bf16.gmra.mxu0 %v2111
      %v2416 = vpop.f32.mrf.mxu0
      %v2417 = vadd.f32 0.0, %v2416
      %v2418 = vpop.f32.mrf.mxu0
      %v2419 = vpop.f32.mrf.mxu0
      %v2420 = vadd.f32 0.0, %v2419
      %v2421 = vpop.f32.mrf.mxu0
      %2422 = vmatprep.mubr.bf16.mxu0 0
      %2423 = vmatmul.mubr.bf16.gmra.mxu0 %v2114
      %v2424 = vpop.f32.mrf.mxu0
      %v2425 = vadd.f32 0.0, %v2424
      %v2426 = vpop.f32.mrf.mxu0
      %v2427 = vpop.f32.mrf.mxu0
      %v2428 = vadd.f32 0.0, %v2427
      %v2429 = vpop.f32.mrf.mxu0
      %2430 = vmatprep.mubr.bf16.mxu0 0
      %2431 = vmatmul.mubr.bf16.gmra.mxu0 %v2117
      %v2432 = vpop.f32.mrf.mxu0
      %v2433 = vadd.f32 0.0, %v2432
      %v2434 = vpop.f32.mrf.mxu0
      %v2435 = vpop.f32.mrf.mxu0
      %v2436 = vadd.f32 0.0, %v2435
      %v2437 = vpop.f32.mrf.mxu0
      %2438 = vmatprep.mubr.bf16.mxu0 0
      %2439 = vmatmul.mubr.bf16.gmra.mxu0 %v2120
      %v2440 = vpop.f32.mrf.mxu0
      %v2441 = vadd.f32 0.0, %v2440
      %v2442 = vpop.f32.mrf.mxu0
      %v2443 = vpop.f32.mrf.mxu0
      %v2444 = vadd.f32 0.0, %v2443
      %v2445 = vpop.f32.mrf.mxu0
      %2446 = vmatprep.mubr.bf16.mxu0 0
      %2447 = vmatmul.mubr.bf16.gmra.mxu0 %v2123
      %v2448 = vpop.f32.mrf.mxu0
      %v2449 = vadd.f32 0.0, %v2448
      %v2450 = vpop.f32.mrf.mxu0
      %v2451 = vpop.f32.mrf.mxu0
      %v2452 = vadd.f32 0.0, %v2451
      %v2453 = vpop.f32.mrf.mxu0
      %2454 = vmatprep.mubr.bf16.mxu0 0
      %2455 = vmatmul.mubr.bf16.gmra.mxu0 %v2126
      %v2456 = vpop.f32.mrf.mxu0
      %v2457 = vadd.f32 0.0, %v2456
      %v2458 = vpop.f32.mrf.mxu0
      %v2459 = vpop.f32.mrf.mxu0
      %v2460 = vadd.f32 0.0, %v2459
      %v2461 = vpop.f32.mrf.mxu0
      %2462 = vmatprep.mubr.bf16.mxu0 0
      %2463 = vmatmul.mubr.bf16.gmra.mxu0 %v2129
      %v2464 = vpop.f32.mrf.mxu0
      %v2465 = vadd.f32 0.0, %v2464
      %v2466 = vpop.f32.mrf.mxu0
      %v2467 = vpop.f32.mrf.mxu0
      %v2468 = vadd.f32 0.0, %v2467
      %v2469 = vpop.f32.mrf.mxu0
      %2470 = vmatprep.mubr.bf16.mxu0 0
      %2471 = vmatmul.mubr.bf16.gmra.mxu0 %v2132
      %v2472 = vpop.f32.mrf.mxu0
      %v2473 = vadd.f32 0.0, %v2472
      %v2474 = vpop.f32.mrf.mxu0
      %v2475 = vpop.f32.mrf.mxu0
      %v2476 = vadd.f32 0.0, %v2475
      %v2477 = vpop.f32.mrf.mxu0
      %2478 = vmatprep.mubr.bf16.mxu0 0
      %2479 = vmatmul.mubr.bf16.gmra.mxu0 %v2135
      %v2480 = vpop.f32.mrf.mxu0
      %v2481 = vadd.f32 0.0, %v2480
      %v2482 = vpop.f32.mrf.mxu0
      %v2483 = vpop.f32.mrf.mxu0
      %v2484 = vadd.f32 0.0, %v2483
      %v2485 = vpop.f32.mrf.mxu0
      %2486 = vmatprep.mubr.bf16.mxu0 0
      %2487 = vmatmul.mubr.bf16.gmra.mxu0 %v2138
      %v2488 = vpop.f32.mrf.mxu0
      %v2489 = vadd.f32 0.0, %v2488
      %v2490 = vpop.f32.mrf.mxu0
      %v2491 = vpop.f32.mrf.mxu0
      %v2492 = vadd.f32 0.0, %v2491
      %v2493 = vpop.f32.mrf.mxu0
      %2494 = vmatprep.mubr.bf16.mxu0 0
      %2495 = vmatmul.mubr.bf16.gmra.mxu0 %v2141
      %v2496 = vpop.f32.mrf.mxu0
      %v2497 = vadd.f32 0.0, %v2496
      %v2498 = vpop.f32.mrf.mxu0
      %v2499 = vpop.f32.mrf.mxu0
      %v2500 = vadd.f32 0.0, %v2499
      %v2501 = vpop.f32.mrf.mxu0
      %2502 = vmatprep.mubr.bf16.mxu0 0
      %2503 = vmatmul.mubr.bf16.gmra.mxu0 %v2144
      %v2504 = vpop.f32.mrf.mxu0
      %v2505 = vadd.f32 0.0, %v2504
      %v2506 = vpop.f32.mrf.mxu0
      %v2507 = vpop.f32.mrf.mxu0
      %v2508 = vadd.f32 0.0, %v2507
      %v2509 = vpop.f32.mrf.mxu0
      %2510 = vmatprep.mubr.bf16.mxu0 0
      %2511 = vmatmul.mubr.bf16.gmra.mxu0 %v2147
      %v2512 = vpop.f32.mrf.mxu0
      %v2513 = vadd.f32 0.0, %v2512
      %v2514 = vpop.f32.mrf.mxu0
      %v2515 = vpop.f32.mrf.mxu0
      %v2516 = vadd.f32 0.0, %v2515
      %v2517 = vpop.f32.mrf.mxu0
      %2518 = vmatprep.mubr.bf16.mxu0 0
      %2519 = vmatmul.mubr.bf16.gmra.mxu0 %v2150
      %v2520 = vpop.f32.mrf.mxu0
      %v2521 = vadd.f32 0.0, %v2520
      %v2522 = vpop.f32.mrf.mxu0
      %v2523 = vpop.f32.mrf.mxu0
      %v2524 = vadd.f32 0.0, %v2523
      %v2525 = vpop.f32.mrf.mxu0
      %2526 = vmatprep.mubr.bf16.mxu0 0
      %2527 = vmatmul.mubr.bf16.gmra.mxu0 %v2153
      %v2528 = vpop.f32.mrf.mxu0
      %v2529 = vadd.f32 0.0, %v2528
      %v2530 = vpop.f32.mrf.mxu0
      %v2531 = vpop.f32.mrf.mxu0
      %v2532 = vadd.f32 0.0, %v2531
      %v2533 = vpop.f32.mrf.mxu0
      %2534 = vmatprep.mubr.bf16.mxu0 0
      %2535 = vmatmul.mubr.bf16.gmra.mxu0 %v2156
      %v2536 = vpop.f32.mrf.mxu0
      %v2537 = vadd.f32 0.0, %v2536
      %v2538 = vpop.f32.mrf.mxu0
      %v2539 = vpop.f32.mrf.mxu0
      %v2540 = vadd.f32 0.0, %v2539
      %v2541 = vpop.f32.mrf.mxu0
      %2542 = vmatprep.mubr.bf16.mxu0 0
      %2543 = vmatmul.mubr.bf16.gmra.mxu0 %v2159
      %v2544 = vpop.f32.mrf.mxu0
      %v2545 = vadd.f32 0.0, %v2544
      %v2546 = vpop.f32.mrf.mxu0
      %v2547 = vpop.f32.mrf.mxu0
      %v2548 = vadd.f32 0.0, %v2547
      %v2549 = vpop.f32.mrf.mxu0
      %2550 = vmatprep.mubr.bf16.mxu0 0
      %2551 = vmatmul.mubr.bf16.gmra.mxu0 %v2162
      %v2552 = vpop.f32.mrf.mxu0
      %v2553 = vadd.f32 0.0, %v2552
      %v2554 = vpop.f32.mrf.mxu0
      %v2555 = vpop.f32.mrf.mxu0
      %v2556 = vadd.f32 0.0, %v2555
      %v2557 = vpop.f32.mrf.mxu0
      %2558 = vmatprep.mubr.bf16.mxu0 0
      %2559 = vmatmul.mubr.bf16.gmra.mxu0 %v2165
      %v2560 = vpop.f32.mrf.mxu0
      %v2561 = vadd.f32 0.0, %v2560
      %v2562 = vpop.f32.mrf.mxu0
      %v2563 = vpop.f32.mrf.mxu0
      %v2564 = vadd.f32 0.0, %v2563
      %v2565 = vpop.f32.mrf.mxu0
      %2566 = vmatprep.mubr.bf16.mxu0 0
      %2567 = vmatmul.mubr.bf16.gmra.mxu0 %v2168
      %v2568 = vpop.f32.mrf.mxu0
      %v2569 = vadd.f32 0.0, %v2568
      %v2570 = vpop.f32.mrf.mxu0
      %v2571 = vpop.f32.mrf.mxu0
      %v2572 = vadd.f32 0.0, %v2571
      %v2573 = vpop.f32.mrf.mxu0
      %2574 = vmatprep.mubr.bf16.mxu0 0
      %2575 = vmatmul.mubr.bf16.gmra.mxu0 %v2171
      %v2576 = vpop.f32.mrf.mxu0
      %v2577 = vadd.f32 0.0, %v2576
      %v2578 = vpop.f32.mrf.mxu0
      %v2579 = vpop.f32.mrf.mxu0
      %v2580 = vadd.f32 0.0, %v2579
      %v2581 = vpop.f32.mrf.mxu0
      %2582 = vmatprep.mubr.bf16.mxu0 0
      %2583 = vmatmul.mubr.bf16.gmra.mxu0 %v2174
      %v2584 = vpop.f32.mrf.mxu0
      %v2585 = vadd.f32 0.0, %v2584
      %v2586 = vpop.f32.mrf.mxu0
      %v2587 = vpop.f32.mrf.mxu0
      %v2588 = vadd.f32 0.0, %v2587
      %v2589 = vpop.f32.mrf.mxu0
      %2590 = vmatprep.mubr.bf16.mxu0 0
      %2591 = vmatmul.mubr.bf16.gmra.mxu0 %v2177
      %v2592 = vpop.f32.mrf.mxu0
      %v2593 = vadd.f32 0.0, %v2592
      %v2594 = vpop.f32.mrf.mxu0
      %v2595 = vpop.f32.mrf.mxu0
      %v2596 = vadd.f32 0.0, %v2595
      %v2597 = vpop.f32.mrf.mxu0
      %2598 = vmatprep.mubr.bf16.mxu0 0
      %2599 = vmatmul.mubr.bf16.gmra.mxu0 %v2180
      %v2600 = vpop.f32.mrf.mxu0
      %v2601 = vadd.f32 0.0, %v2600
      %v2602 = vpop.f32.mrf.mxu0
      %v2603 = vpop.f32.mrf.mxu0
      %v2604 = vadd.f32 0.0, %v2603
      %v2605 = vpop.f32.mrf.mxu0
      %2606 = vmatprep.mubr.bf16.mxu0 0
      %2607 = vmatmul.mubr.bf16.gmra.mxu0 %v2183
      %v2608 = vpop.f32.mrf.mxu0
      %v2609 = vadd.f32 0.0, %v2608
      %v2610 = vpop.f32.mrf.mxu0
      %v2611 = vpop.f32.mrf.mxu0
      %v2612 = vadd.f32 0.0, %v2611
      %v2613 = vpop.f32.mrf.mxu0
      %2614 = vmatprep.mubr.bf16.mxu0 0
      %2615 = vmatmul.mubr.bf16.gmra.mxu0 %v2186
      %v2616 = vpop.f32.mrf.mxu0
      %v2617 = vadd.f32 0.0, %v2616
      %v2618 = vpop.f32.mrf.mxu0
      %v2619 = vpop.f32.mrf.mxu0
      %v2620 = vadd.f32 0.0, %v2619
      %v2621 = vpop.f32.mrf.mxu0
      %2622 = vmatprep.mubr.bf16.mxu0 0
      %2623 = vmatmul.mubr.bf16.gmra.mxu0 %v2189
      %v2624 = vpop.f32.mrf.mxu0
      %v2625 = vadd.f32 0.0, %v2624
      %v2626 = vpop.f32.mrf.mxu0
      %v2627 = vpop.f32.mrf.mxu0
      %v2628 = vadd.f32 0.0, %v2627
      %v2629 = vpop.f32.mrf.mxu0
      %2630 = vmatprep.mubr.bf16.mxu0 0
      %2631 = vmatmul.mubr.bf16.gmra.mxu0 %v2192
      %v2632 = vpop.f32.mrf.mxu0
      %v2633 = vadd.f32 0.0, %v2632
      %v2634 = vpop.f32.mrf.mxu0
      %v2635 = vpop.f32.mrf.mxu0
      %v2636 = vadd.f32 0.0, %v2635
      %v2637 = vpop.f32.mrf.mxu0
      %2638 = vmatprep.mubr.bf16.mxu0 0
      %2639 = vmatmul.mubr.bf16.gmra.mxu0 %v2195
      %v2640 = vpop.f32.mrf.mxu0
      %v2641 = vadd.f32 0.0, %v2640
      %v2642 = vpop.f32.mrf.mxu0
      %v2643 = vpop.f32.mrf.mxu0
      %v2644 = vadd.f32 0.0, %v2643
      %v2645 = vpop.f32.mrf.mxu0
      %2646 = vmatprep.mubr.bf16.mxu0 0
      %2647 = vmatmul.mubr.bf16.gmra.mxu0 %v2198
      %v2648 = vpop.f32.mrf.mxu0
      %v2649 = vadd.f32 0.0, %v2648
      %v2650 = vpop.f32.mrf.mxu0
      %v2651 = vpop.f32.mrf.mxu0
      %v2652 = vadd.f32 0.0, %v2651
      %v2653 = vpop.f32.mrf.mxu0
      %2654 = vmatprep.mubr.bf16.mxu0 0
      %2655 = vmatmul.mubr.bf16.gmra.mxu0 %v2201
      %v2656 = vpop.f32.mrf.mxu0
      %v2657 = vadd.f32 0.0, %v2656
      %v2658 = vpop.f32.mrf.mxu0
      %v2659 = vpop.f32.mrf.mxu0
      %v2660 = vadd.f32 0.0, %v2659
      %v2661 = vpop.f32.mrf.mxu0
      %2662 = vmatprep.mubr.bf16.mxu0 0
      %2663 = vmatmul.mubr.bf16.gmra.mxu0 %v2204
      %v2664 = vpop.f32.mrf.mxu0
      %v2665 = vadd.f32 0.0, %v2664
      %v2666 = vpop.f32.mrf.mxu0
      %v2667 = vpop.f32.mrf.mxu0
      %v2668 = vadd.f32 0.0, %v2667
      %v2669 = vpop.f32.mrf.mxu0
      %2670 = vmatprep.mubr.bf16.mxu0 0
      %2671 = vmatmul.mubr.bf16.gmra.mxu0 %v2207
      %v2672 = vpop.f32.mrf.mxu0
      %v2673 = vadd.f32 0.0, %v2672
      %v2674 = vpop.f32.mrf.mxu0
      %v2675 = vpop.f32.mrf.mxu0
      %v2676 = vadd.f32 0.0, %v2675
      %v2677 = vpop.f32.mrf.mxu0
      %2678 = vmatprep.mubr.bf16.mxu0 0
      %2679 = vmatmul.mubr.bf16.gmra.mxu0 %v2210
      %v2680 = vpop.f32.mrf.mxu0
      %v2681 = vadd.f32 0.0, %v2680
      %v2682 = vpop.f32.mrf.mxu0
      %v2683 = vpop.f32.mrf.mxu0
      %v2684 = vadd.f32 0.0, %v2683
      %v2685 = vpop.f32.mrf.mxu0
      %2686 = vmatprep.mubr.bf16.mxu0 0
      %2687 = vmatmul.mubr.bf16.gmra.mxu0 %v2213
      %v2688 = vpop.f32.mrf.mxu0
      %v2689 = vadd.f32 0.0, %v2688
      %v2690 = vpop.f32.mrf.mxu0
      %v2691 = vpop.f32.mrf.mxu0
      %v2692 = vadd.f32 0.0, %v2691
      %v2693 = vpop.f32.mrf.mxu0
      %2694 = vmatprep.mubr.bf16.mxu0 0
      %2695 = vmatmul.mubr.bf16.gmra.mxu0 %v2216
      %v2696 = vpop.f32.mrf.mxu0
      %v2697 = vadd.f32 0.0, %v2696
      %v2698 = vpop.f32.mrf.mxu0
      %v2699 = vpop.f32.mrf.mxu0
      %v2700 = vadd.f32 0.0, %v2699
      %v2701 = vpop.f32.mrf.mxu0
      %2702 = vmatprep.mubr.bf16.mxu0 0
      %2703 = vmatmul.mubr.bf16.gmra.mxu0 %v2219
      %v2704 = vpop.f32.mrf.mxu0
      %v2705 = vadd.f32 0.0, %v2704
      %v2706 = vpop.f32.mrf.mxu0
      %v2707 = vpop.f32.mrf.mxu0
      %v2708 = vadd.f32 0.0, %v2707
      %v2709 = vpop.f32.mrf.mxu0
      %2710 = vmatprep.mubr.bf16.mxu0 0
      %2711 = vmatmul.mubr.bf16.gmra.mxu0 %v2222
      %v2712 = vpop.f32.mrf.mxu0
      %v2713 = vadd.f32 0.0, %v2712
      %v2714 = vpop.f32.mrf.mxu0
      %v2715 = vpop.f32.mrf.mxu0
      %v2716 = vadd.f32 0.0, %v2715
      %v2717 = vpop.f32.mrf.mxu0
      %2718 = vmatprep.mubr.bf16.mxu0 0
      %2719 = vmatmul.mubr.bf16.gmra.mxu0 %v2225
      %v2720 = vpop.f32.mrf.mxu0
      %v2721 = vadd.f32 0.0, %v2720
      %v2722 = vpop.f32.mrf.mxu0
      %v2723 = vpop.f32.mrf.mxu0
      %v2724 = vadd.f32 0.0, %v2723
      %v2725 = vpop.f32.mrf.mxu0
      %2726 = vmatprep.mubr.bf16.mxu0 0
      %2727 = vmatmul.mubr.bf16.gmra.mxu0 %v2228
      %v2728 = vpop.f32.mrf.mxu0
      %v2729 = vadd.f32 0.0, %v2728
      %v2730 = vpop.f32.mrf.mxu0
      %v2731 = vpop.f32.mrf.mxu0
      %v2732 = vadd.f32 0.0, %v2731
      %v2733 = vpop.f32.mrf.mxu0
      %2734 = vmatprep.mubr.bf16.mxu0 0
      %2735 = vmatmul.mubr.bf16.gmra.mxu0 %v2231
      %v2736 = vpop.f32.mrf.mxu0
      %v2737 = vadd.f32 0.0, %v2736
      %v2738 = vpop.f32.mrf.mxu0
      %v2739 = vpop.f32.mrf.mxu0
      %v2740 = vadd.f32 0.0, %v2739
      %v2741 = vpop.f32.mrf.mxu0
      %2742 = vmatprep.mubr.bf16.mxu0 0
      %2743 = vmatmul.mubr.bf16.gmra.mxu0 %v2234
      %v2744 = vpop.f32.mrf.mxu0
      %v2745 = vadd.f32 0.0, %v2744
      %v2746 = vpop.f32.mrf.mxu0
      %v2747 = vpop.f32.mrf.mxu0
      %v2748 = vadd.f32 0.0, %v2747
      %v2749 = vpop.f32.mrf.mxu0
      %2750 = vmatprep.mubr.bf16.mxu0 0
      %2751 = vmatmul.mubr.bf16.gmra.mxu0 %v2237
      %v2752 = vpop.f32.mrf.mxu0
      %v2753 = vadd.f32 0.0, %v2752
      %v2754 = vpop.f32.mrf.mxu0
      %v2755 = vpop.f32.mrf.mxu0
      %v2756 = vadd.f32 0.0, %v2755
      %v2757 = vpop.f32.mrf.mxu0
      %2758 = vmatprep.mubr.bf16.mxu0 0
      %2759 = vmatmul.mubr.bf16.gmra.mxu0 %v2240
      %v2760 = vpop.f32.mrf.mxu0
      %v2761 = vadd.f32 0.0, %v2760
      %v2762 = vpop.f32.mrf.mxu0
      %v2763 = vpop.f32.mrf.mxu0
      %v2764 = vadd.f32 0.0, %v2763
      %v2765 = vpop.f32.mrf.mxu0
      %2766 = vmatprep.mubr.bf16.mxu0 0
      %2767 = vmatmul.mubr.bf16.gmra.mxu0 %v2243
      %v2768 = vpop.f32.mrf.mxu0
      %v2769 = vadd.f32 0.0, %v2768
      %v2770 = vpop.f32.mrf.mxu0
      %v2771 = vpop.f32.mrf.mxu0
      %v2772 = vadd.f32 0.0, %v2771
      %v2773 = vpop.f32.mrf.mxu0
      %2774 = vmatprep.mubr.bf16.mxu0 0
      %2775 = vmatmul.mubr.bf16.gmra.mxu0 %v2246
      %v2776 = vpop.f32.mrf.mxu0
      %v2777 = vadd.f32 0.0, %v2776
      %v2778 = vpop.f32.mrf.mxu0
      %v2779 = vpop.f32.mrf.mxu0
      %v2780 = vadd.f32 0.0, %v2779
      %v2781 = vpop.f32.mrf.mxu0
      %2782 = vmatprep.mubr.bf16.mxu0 0
      %2783 = vmatmul.mubr.bf16.gmra.mxu0 %v2249
      %v2784 = vpop.f32.mrf.mxu0
      %v2785 = vadd.f32 0.0, %v2784
      %v2786 = vpop.f32.mrf.mxu0
      %v2787 = vpop.f32.mrf.mxu0
      %v2788 = vadd.f32 0.0, %v2787
      %v2789 = vpop.f32.mrf.mxu0
      %2790 = vmatprep.mubr.bf16.mxu0 0
      %2791 = vmatmul.mubr.bf16.gmra.mxu0 %v2252
      %v2792 = vpop.f32.mrf.mxu0
      %v2793 = vadd.f32 0.0, %v2792
      %v2794 = vpop.f32.mrf.mxu0
      %v2795 = vpop.f32.mrf.mxu0
      %v2796 = vadd.f32 0.0, %v2795
      %v2797 = vpop.f32.mrf.mxu0
      %2798 = vdwg.mxu0
      %2799 = vst [vmem:[%s257] sm:$0xff] %v2289
      %2800 = vst [vmem:[%s257 + $0x8] sm:$0xff] %v2292
      %2801 = vst [vmem:[%s257 + $0x10] sm:$0xff] %v2297
      %2802 = vst [vmem:[%s257 + $0x18] sm:$0xff] %v2300
      %2803 = vst [vmem:[%s257 + $0x20] sm:$0xff] %v2305
      %2804 = vst [vmem:[%s257 + $0x28] sm:$0xff] %v2308
      %2805 = vst [vmem:[%s257 + $0x30] sm:$0xff] %v2313
      %2806 = vst [vmem:[%s257 + $0x38] sm:$0xff] %v2316
      %2807 = vst [vmem:[%s257 + $0x40] sm:$0xff] %v2321
      %2808 = vst [vmem:[%s257 + $0x48] sm:$0xff] %v2324
      %2809 = vst [vmem:[%s257 + $0x50] sm:$0xff] %v2329
      %2810 = vst [vmem:[%s257 + $0x58] sm:$0xff] %v2332
      %2811 = vst [vmem:[%s257 + $0x60] sm:$0xff] %v2337
      %2812 = vst [vmem:[%s257 + $0x68] sm:$0xff] %v2340
      %2813 = vst [vmem:[%s257 + $0x70] sm:$0xff] %v2345
      %2814 = vst [vmem:[%s257 + $0x78] sm:$0xff] %v2348
      %2815 = vst [vmem:[%s257 + $0x80] sm:$0xff] %v2353
      %2816 = vst [vmem:[%s257 + $0x88] sm:$0xff] %v2356
      %2817 = vst [vmem:[%s257 + $0x90] sm:$0xff] %v2361
      %2818 = vst [vmem:[%s257 + $0x98] sm:$0xff] %v2364
      %2819 = vst [vmem:[%s257 + $0xa0] sm:$0xff] %v2369
      %2820 = vst [vmem:[%s257 + $0xa8] sm:$0xff] %v2372
      %2821 = vst [vmem:[%s257 + $0xb0] sm:$0xff] %v2377
      %2822 = vst [vmem:[%s257 + $0xb8] sm:$0xff] %v2380
      %2823 = vst [vmem:[%s257 + $0xc0] sm:$0xff] %v2385
      %2824 = vst [vmem:[%s257 + $0xc8] sm:$0xff] %v2388
      %2825 = vst [vmem:[%s257 + $0xd0] sm:$0xff] %v2393
      %2826 = vst [vmem:[%s257 + $0xd8] sm:$0xff] %v2396
      %2827 = vst [vmem:[%s257 + $0xe0] sm:$0xff] %v2401
      %2828 = vst [vmem:[%s257 + $0xe8] sm:$0xff] %v2404
      %2829 = vst [vmem:[%s257 + $0xf0] sm:$0xff] %v2409
      %2830 = vst [vmem:[%s257 + $0xf8] sm:$0xff] %v2412
      %2831 = vst [vmem:[%s257 + $0x100] sm:$0xff] %v2417
      %2832 = vst [vmem:[%s257 + $0x108] sm:$0xff] %v2420
      %2833 = vst [vmem:[%s257 + $0x110] sm:$0xff] %v2425
      %2834 = vst [vmem:[%s257 + $0x118] sm:$0xff] %v2428
      %2835 = vst [vmem:[%s257 + $0x120] sm:$0xff] %v2433
      %2836 = vst [vmem:[%s257 + $0x128] sm:$0xff] %v2436
      %2837 = vst [vmem:[%s257 + $0x130] sm:$0xff] %v2441
      %2838 = vst [vmem:[%s257 + $0x138] sm:$0xff] %v2444
      %2839 = vst [vmem:[%s257 + $0x140] sm:$0xff] %v2449
      %2840 = vst [vmem:[%s257 + $0x148] sm:$0xff] %v2452
      %2841 = vst [vmem:[%s257 + $0x150] sm:$0xff] %v2457
      %2842 = vst [vmem:[%s257 + $0x158] sm:$0xff] %v2460
      %2843 = vst [vmem:[%s257 + $0x160] sm:$0xff] %v2465
      %2844 = vst [vmem:[%s257 + $0x168] sm:$0xff] %v2468
      %2845 = vst [vmem:[%s257 + $0x170] sm:$0xff] %v2473
      %2846 = vst [vmem:[%s257 + $0x178] sm:$0xff] %v2476
      %2847 = vst [vmem:[%s257 + $0x180] sm:$0xff] %v2481
      %2848 = vst [vmem:[%s257 + $0x188] sm:$0xff] %v2484
      %2849 = vst [vmem:[%s257 + $0x190] sm:$0xff] %v2489
      %2850 = vst [vmem:[%s257 + $0x198] sm:$0xff] %v2492
      %2851 = vst [vmem:[%s257 + $0x1a0] sm:$0xff] %v2497
      %2852 = vst [vmem:[%s257 + $0x1a8] sm:$0xff] %v2500
      %2853 = vst [vmem:[%s257 + $0x1b0] sm:$0xff] %v2505
      %2854 = vst [vmem:[%s257 + $0x1b8] sm:$0xff] %v2508
      %2855 = vst [vmem:[%s257 + $0x1c0] sm:$0xff] %v2513
      %2856 = vst [vmem:[%s257 + $0x1c8] sm:$0xff] %v2516
      %2857 = vst [vmem:[%s257 + $0x1d0] sm:$0xff] %v2521
      %2858 = vst [vmem:[%s257 + $0x1d8] sm:$0xff] %v2524
      %2859 = vst [vmem:[%s257 + $0x1e0] sm:$0xff] %v2529
      %2860 = vst [vmem:[%s257 + $0x1e8] sm:$0xff] %v2532
      %2861 = vst [vmem:[%s257 + $0x1f0] sm:$0xff] %v2537
      %2862 = vst [vmem:[%s257 + $0x1f8] sm:$0xff] %v2540
      %2863 = vst [vmem:[%s257 + $0x200] sm:$0xff] %v2545
      %2864 = vst [vmem:[%s257 + $0x208] sm:$0xff] %v2548
      %2865 = vst [vmem:[%s257 + $0x210] sm:$0xff] %v2553
      %2866 = vst [vmem:[%s257 + $0x218] sm:$0xff] %v2556
      %2867 = vst [vmem:[%s257 + $0x220] sm:$0xff] %v2561
      %2868 = vst [vmem:[%s257 + $0x228] sm:$0xff] %v2564
      %2869 = vst [vmem:[%s257 + $0x230] sm:$0xff] %v2569
      %2870 = vst [vmem:[%s257 + $0x238] sm:$0xff] %v2572
      %2871 = vst [vmem:[%s257 + $0x240] sm:$0xff] %v2577
      %2872 = vst [vmem:[%s257 + $0x248] sm:$0xff] %v2580
      %2873 = vst [vmem:[%s257 + $0x250] sm:$0xff] %v2585
      %2874 = vst [vmem:[%s257 + $0x258] sm:$0xff] %v2588
      %2875 = vst [vmem:[%s257 + $0x260] sm:$0xff] %v2593
      %2876 = vst [vmem:[%s257 + $0x268] sm:$0xff] %v2596
      %2877 = vst [vmem:[%s257 + $0x270] sm:$0xff] %v2601
      %2878 = vst [vmem:[%s257 + $0x278] sm:$0xff] %v2604
      %2879 = vst [vmem:[%s257 + $0x280] sm:$0xff] %v2609
      %2880 = vst [vmem:[%s257 + $0x288] sm:$0xff] %v2612
      %2881 = vst [vmem:[%s257 + $0x290] sm:$0xff] %v2617
      %2882 = vst [vmem:[%s257 + $0x298] sm:$0xff] %v2620
      %2883 = vst [vmem:[%s257 + $0x2a0] sm:$0xff] %v2625
      %2884 = vst [vmem:[%s257 + $0x2a8] sm:$0xff] %v2628
      %2885 = vst [vmem:[%s257 + $0x2b0] sm:$0xff] %v2633
      %2886 = vst [vmem:[%s257 + $0x2b8] sm:$0xff] %v2636
      %2887 = vst [vmem:[%s257 + $0x2c0] sm:$0xff] %v2641
      %2888 = vst [vmem:[%s257 + $0x2c8] sm:$0xff] %v2644
      %2889 = vst [vmem:[%s257 + $0x2d0] sm:$0xff] %v2649
      %2890 = vst [vmem:[%s257 + $0x2d8] sm:$0xff] %v2652
      %2891 = vst [vmem:[%s257 + $0x2e0] sm:$0xff] %v2657
      %2892 = vst [vmem:[%s257 + $0x2e8] sm:$0xff] %v2660
      %2893 = vst [vmem:[%s257 + $0x2f0] sm:$0xff] %v2665
      %2894 = vst [vmem:[%s257 + $0x2f8] sm:$0xff] %v2668
      %2895 = vst [vmem:[%s257 + $0x300] sm:$0xff] %v2673
      %2896 = vst [vmem:[%s257 + $0x308] sm:$0xff] %v2676
      %2897 = vst [vmem:[%s257 + $0x310] sm:$0xff] %v2681
      %2898 = vst [vmem:[%s257 + $0x318] sm:$0xff] %v2684
      %2899 = vst [vmem:[%s257 + $0x320] sm:$0xff] %v2689
      %2900 = vst [vmem:[%s257 + $0x328] sm:$0xff] %v2692
      %2901 = vst [vmem:[%s257 + $0x330] sm:$0xff] %v2697
      %2902 = vst [vmem:[%s257 + $0x338] sm:$0xff] %v2700
      %2903 = vst [vmem:[%s257 + $0x340] sm:$0xff] %v2705
      %2904 = vst [vmem:[%s257 + $0x348] sm:$0xff] %v2708
      %2905 = vst [vmem:[%s257 + $0x350] sm:$0xff] %v2713
      %2906 = vst [vmem:[%s257 + $0x358] sm:$0xff] %v2716
      %2907 = vst [vmem:[%s257 + $0x360] sm:$0xff] %v2721
      %2908 = vst [vmem:[%s257 + $0x368] sm:$0xff] %v2724
      %2909 = vst [vmem:[%s257 + $0x370] sm:$0xff] %v2729
      %2910 = vst [vmem:[%s257 + $0x378] sm:$0xff] %v2732
      %2911 = vst [vmem:[%s257 + $0x380] sm:$0xff] %v2737
      %2912 = vst [vmem:[%s257 + $0x388] sm:$0xff] %v2740
      %2913 = vst [vmem:[%s257 + $0x390] sm:$0xff] %v2745
      %2914 = vst [vmem:[%s257 + $0x398] sm:$0xff] %v2748
      %2915 = vst [vmem:[%s257 + $0x3a0] sm:$0xff] %v2753
      %2916 = vst [vmem:[%s257 + $0x3a8] sm:$0xff] %v2756
      %2917 = vst [vmem:[%s257 + $0x3b0] sm:$0xff] %v2761
      %2918 = vst [vmem:[%s257 + $0x3b8] sm:$0xff] %v2764
      %2919 = vst [vmem:[%s257 + $0x3c0] sm:$0xff] %v2769
      %2920 = vst [vmem:[%s257 + $0x3c8] sm:$0xff] %v2772
      %2921 = vst [vmem:[%s257 + $0x3d0] sm:$0xff] %v2777
      %2922 = vst [vmem:[%s257 + $0x3d8] sm:$0xff] %v2780
      %2923 = vst [vmem:[%s257 + $0x3e0] sm:$0xff] %v2785
      %2924 = vst [vmem:[%s257 + $0x3e8] sm:$0xff] %v2788
      %2925 = vst [vmem:[%s257 + $0x3f0] sm:$0xff] %v2793
      %2926 = vst [vmem:[%s257 + $0x3f8] sm:$0xff] %v2796
      %p2927 = scmp.lt.s32.totalorder %s17, 1
      %s2928 = scalar_select %p2927, %s17, 1
      %s2929 = smul.addr %s2928, 128
      %s2930 = smul.addr %s2929, 8
      %s2931 = scalar_lea.vmem %s4, %s2930
      %p2932 = scmp.lt.s32.totalorder %s17, 1
      %s2933 = scalar_select %p2932, %s17, 1
      %s2934 = smul.addr %s2933, 128
      %s2935 = smul.addr %s2934, 8
      %s2936 = scalar_lea.vmem %s5, %s2935
      // Predicated region
      $region37: #{forward.17} parent=35 // pred_check
        %p2937 = pneg %p129
      $region38: #{forward.17} parent=35 // pred_check_branch
        %2939 = sbr.rel (%p2937) target = $region40
      $region39: #{forward.17} parent=35 // pred_region
        _
      $region40: #{forward.17} parent=35 // pred_fallthru
        _
      // Predicated region
      $region41: #{forward.17} parent=35 // pred_check
        %p2940 = pneg %p155
      $region42: #{forward.17} parent=35 // pred_check_branch
        %2942 = sbr.rel (%p2940) target = $region44
      $region43: #{forward.17} parent=35 // pred_region
        _
      $region44: #{forward.17} parent=35 // pred_fallthru
        _
    $region36: #{forward.17} parent=5 // pred_fallthru
      _
    %p2943 = scmp.le.s32.totalorder 2, %s12
    // Predicated region
    $region45: #{forward.17} parent=5 // pred_check
      %p2944 = pneg %p2943
    $region46: #{forward.17} parent=5 // pred_check_branch
      %2946 = sbr.rel (%p2944) target = $region48
    $region47: #{forward.17} parent=5 // pred_region
      %s2947 = ssub.s32 %s12, 2
      // Predicated region
      $region49: #{forward.17} parent=47 // pred_check
        %p2948 = pneg %p135
      $region50: #{forward.17} parent=47 // pred_check_branch
        %2950 = sbr.rel (%p2948) target = $region52
      $region51: #{forward.17} parent=47 // pred_region
        %p2951 = scmp.lt.s32.totalorder %s18, 1
        %s2952 = scalar_select %p2951, %s18, 1
        %s2953 = smul.addr %s2952, 128
        %s2954 = smul.addr %s2953, 8
        %s2955 = scalar_lea.vmem %s4, %s2954
      $region52: #{forward.17} parent=47 // pred_fallthru
        _
      // Predicated region
      $region53: #{forward.17} parent=47 // pred_check
        %p2956 = pneg %p161
      $region54: #{forward.17} parent=47 // pred_check_branch
        %2958 = sbr.rel (%p2956) target = $region56
      $region55: #{forward.17} parent=47 // pred_region
        %p2959 = scmp.lt.s32.totalorder %s18, 1
        %s2960 = scalar_select %p2959, %s18, 1
        %s2961 = smul.addr %s2960, 128
        %s2962 = smul.addr %s2961, 8
        %s2963 = scalar_lea.vmem %s5, %s2962
      $region56: #{forward.17} parent=47 // pred_fallthru
        _
    $region48: #{forward.17} parent=5 // pred_fallthru
      _
  $region6: #{forward.17} parent=0 // loop_footer
    %s16 = sadd.s32 1, %s12
  $region7: #{forward.17} parent=0 // loop_footer_branch
    %11 = sbr.rel target = $region3
  $region8: #{forward.17} parent=0 // loop_exit
    _

</llo_original>
